<compile_context>
chip_gen: v7x
topology: tpu7x:2x2x1
jax: 0.10.0
libtpu: 0.0.40
codegen_flags: <defaults>
</compile_context>

<pallas_src>
import math

import jax
import jax.numpy as jnp
import numpy as np
from jax.experimental import pallas as pl
from jax.experimental.pallas import tpu as pltpu

# ---------------------------------------------------------------------------
# Shape bookkeeping copied from AudioCNN.__init__ (input is 1 x 64 x 292).
# ---------------------------------------------------------------------------
KERNEL_DIMS = [5, 2]
STRIDES = [1, 1]
PADS = [1, 1]
IN_X, IN_Y = 64, 292


def _conv_out(d, k, s, p):
    return math.floor((d + 2 * p - k) / s + 1)


_a_x = _conv_out(IN_X, KERNEL_DIMS[0], STRIDES[0], PADS[0])
_b_x = (_a_x - 2) // 2 + 1
_c_x = _conv_out(_b_x, KERNEL_DIMS[1], STRIDES[1], PADS[1])
_d_x = (_c_x - 2) // 2 + 1
_a_y = _conv_out(IN_Y, KERNEL_DIMS[0], STRIDES[0], PADS[0])
_b_y = (_a_y - 2) // 2 + 1
_c_y = _conv_out(_b_y, KERNEL_DIMS[1], STRIDES[1], PADS[1])
_d_y = (_c_y - 2) // 2 + 1
FC_INPUT_SIZE = 12 * _d_x * _d_y          # = 14016


def _ceil_mult(x, m):
    return ((x + m - 1) // m) * m


# Fused-FC tiling: stream fc1_w (int8, K padded to FC1_TK*FC1_NK) through
# FC1_NK grid steps of FC1_TK rows each.  1 MB int8 tiles double-buffered.
FC1_NK = 7
FC1_TK = _ceil_mult(-(-FC_INPUT_SIZE // FC1_NK), 128)   # 2048
FC1_K_PAD = FC1_TK * FC1_NK                             # 14336
FC1_N = 512                                             # fc1 out 500 -> 512
FC2_N = 128                                             # fc2 out 100 -> 128


# ---------------------------------------------------------------------------
# Pallas kernels
# ---------------------------------------------------------------------------
def conv_pool_kernel(x_ref, w_ref, b_ref, o_ref):
    """One (Cout, tm) pooled-output tile.

    x_ref: (K, tm) bf16 window-im2col patch (shared by all 4 pool offsets)
    w_ref: (4, Cout, K) bf16 zero-expanded weights, one per 2x2 pool offset
    b_ref: (Cout, 1) f32
    o_ref: (Cout, tm) bf16, lane-dense stores.
    """
    x = x_ref[...]
    z = jnp.dot(w_ref[0], x, preferred_element_type=jnp.float32)
    for i in range(1, 4):
        z = jnp.maximum(z, jnp.dot(w_ref[i], x, preferred_element_type=jnp.float32))
    # max_i relu(z_i + b) == relu(max_i z_i + b)  (ReLU monotone, shared bias)
    o_ref[...] = jnp.maximum(z + b_ref[...], 0.0).astype(o_ref.dtype)


def fused_fc_kernel(x_ref, w1q_ref, s1_ref, b1_ref, w2_ref, b2_ref, w3_ref,
                    b3_ref, o_ref, h1_acc):
    """fc1 streamed over K grid steps (int8 weights dequantized in-kernel,
    f32 accumulate); per-column scales + fc2 + fc3 in the last grid step."""
    k = pl.program_id(0)

    @pl.when(k == 0)
    def _():
        h1_acc[...] = jnp.zeros_like(h1_acc)

    w1 = w1q_ref[...].astype(jnp.float32)            # dequant (scale applied later)
    h1_acc[...] += jnp.dot(x_ref[...].astype(jnp.float32), w1,
                           preferred_element_type=jnp.float32)

    @pl.when(k == pl.num_programs(0) - 1)
    def _():
        h1 = jnp.maximum(h1_acc[...] * s1_ref[...] + b1_ref[...], 0.0)
        h2 = jnp.dot(h1, w2_ref[...], preferred_element_type=jnp.float32) + b2_ref[...]
        h2 = jnp.maximum(h2, 0.0)
        out = jnp.dot(h2, w3_ref[...], preferred_element_type=jnp.float32) + b3_ref[...]
        o_ref[...] = out.astype(o_ref.dtype)


# ---------------------------------------------------------------------------
# Wrappers
# ---------------------------------------------------------------------------
def conv_relu_pool(x, w_exp, b_col, *, kh, kw, pad, tm):
    """Fused Conv2d(stride=1, padding=pad) + ReLU + MaxPool2d(2,2), transposed.

    x:      (Cin, N, H, W)  channel-major activations (f32 or bf16)
    w_exp:  (4, Cout, Cin*(kh+1)*(kw+1)) bf16 zero-expanded weights
    b_col:  (Cout, 1) f32
    returns (Cout, N, Hp, Wp) bf16 with Hp = (conv H)//2, Wp = (conv W)//2
    """
    Cin, N, H, W = x.shape
    Cout = w_exp.shape[1]
    Ho = H + 2 * pad - kh + 1
    Wo = W + 2 * pad - kw + 1
    Hp, Wp = Ho // 2, Wo // 2
    wh, ww = kh + 1, kw + 1              # shared window of each 2x2 pool cell
    K = Cin * wh * ww
    M = N * Hp * Wp
    Mp = _ceil_mult(M, tm)

    xp = jnp.pad(x, ((0, 0), (0, 0), (pad, pad), (pad, pad)))
    # Window im2col: patch[cin*wh*ww + r*ww + c, (n,ph,pw)] = xp[cin,n,2ph+r,2pw+c]
    rows = [xp[:, :, r:r + 2 * Hp - 1:2, c:c + 2 * Wp - 1:2]
            for r in range(wh) for c in range(ww)]
    patch = jnp.stack(rows, axis=1).reshape(K, M).astype(jnp.bfloat16)
    if Mp > M:
        patch = jnp.pad(patch, ((0, 0), (0, Mp - M)))

    out = pl.pallas_call(
        conv_pool_kernel,
        out_shape=jax.ShapeDtypeStruct((Cout, Mp), jnp.bfloat16),
        grid_spec=pltpu.PrefetchScalarGridSpec(
            num_scalar_prefetch=0,
            grid=(Mp // tm,),
            in_specs=[pl.BlockSpec((K, tm), lambda i: (0, i)),
                      pl.BlockSpec((4, Cout, K), lambda i: (0, 0, 0)),
                      pl.BlockSpec((Cout, 1), lambda i: (0, 0))],
            out_specs=pl.BlockSpec((Cout, tm), lambda i: (0, i)),
        ),
        compiler_params=pltpu.CompilerParams(
            dimension_semantics=("parallel",)),
    )(patch, w_exp, b_col)

    # Padded M columns hold relu(bias) garbage -> slice them off.
    return out[:, :M].reshape(Cout, N, Hp, Wp)


def fused_fc(xf, p):
    """fc1(+ReLU) -> fc2(+ReLU) -> fc3, in one pallas_call.

    xf: (N, FC_INPUT_SIZE) bf16, features in PyTorch's (c, h, w) flatten order.
    """
    N = xf.shape[0]
    Mp = _ceil_mult(max(N, 8), 8)
    xfp = jnp.pad(xf.astype(jnp.bfloat16),
                  ((0, Mp - N), (0, FC1_K_PAD - FC_INPUT_SIZE)))

    out = pl.pallas_call(
        fused_fc_kernel,
        out_shape=jax.ShapeDtypeStruct((Mp, 8), jnp.float32),
        grid_spec=pltpu.PrefetchScalarGridSpec(
            num_scalar_prefetch=0,
            grid=(FC1_NK,),
            in_specs=[
                pl.BlockSpec((Mp, FC1_TK), lambda k: (0, k)),      # x (bf16)
                pl.BlockSpec((FC1_TK, FC1_N), lambda k: (k, 0)),   # fc1_w (int8)
                pl.BlockSpec((1, FC1_N), lambda k: (0, 0)),        # fc1 col scales
                pl.BlockSpec((1, FC1_N), lambda k: (0, 0)),        # fc1_b
                pl.BlockSpec((FC1_N, FC2_N), lambda k: (0, 0)),    # fc2_w
                pl.BlockSpec((1, FC2_N), lambda k: (0, 0)),        # fc2_b
                pl.BlockSpec((FC2_N, 8), lambda k: (0, 0)),        # fc3_w
                pl.BlockSpec((1, 8), lambda k: (0, 0)),            # fc3_b
            ],
            out_specs=pl.BlockSpec((Mp, 8), lambda k: (0, 0)),
            scratch_shapes=[pltpu.VMEM((Mp, FC1_N), jnp.float32)],
        ),
        compiler_params=pltpu.CompilerParams(
            dimension_semantics=("arbitrary",)),
    )(xfp, p["fc1_wq"], p["fc1_s"], p["fc1_b"], p["fc2_w"], p["fc2_b"],
      p["fc3_w"], p["fc3_b"])
    return out[:N]


# ---------------------------------------------------------------------------
# One-time weight preprocessing (expansion / pad / quantization / casts)
# ---------------------------------------------------------------------------
def _expand_pool_conv_weight(w):
    """(Cout, Cin, kh, kw) -> (4, Cout, Cin*(kh+1)*(kw+1)) bf16.

    For pool offset (oh, ow), the weight is shifted into the shared
    (kh+1)x(kw+1) window with zero padding, so the same window-im2col patch
    serves all four 2x2 pool positions.
    """
    Cout, Cin, kh, kw = w.shape
    mats = []
    for oh in (0, 1):
        for ow in (0, 1):
            wp = jnp.pad(w, ((0, 0), (0, 0), (oh, 1 - oh), (ow, 1 - ow)))
            mats.append(wp.reshape(Cout, Cin * (kh + 1) * (kw + 1)))
    return jnp.stack(mats, axis=0).astype(jnp.bfloat16)


def prepare_params(p):
    # fc1_w: pad K 14016->14336, N 500->512, then symmetric int8 per-column.
    fc1 = jnp.pad(p["fc1_w"], ((0, FC1_K_PAD - FC_INPUT_SIZE),
                               (0, FC1_N - 500))).astype(jnp.float32)
    amax = jnp.max(jnp.abs(fc1), axis=0)
    fc1_s = jnp.where(amax > 0, amax / 127.0, 1.0)
    fc1_q = jnp.clip(jnp.round(fc1 / fc1_s[None, :]), -127, 127).astype(jnp.int8)
    return {
        "c1_w": _expand_pool_conv_weight(p["w1"]),            # (4, 6, 36)
        "c1_b": p["b1"].reshape(6, 1).astype(jnp.float32),
        "c2_w": _expand_pool_conv_weight(p["w2"]),            # (4, 12, 54)
        "c2_b": p["b2"].reshape(12, 1).astype(jnp.float32),
        "fc1_wq": fc1_q,                                      # (14336, 512) int8
        "fc1_s": fc1_s.reshape(1, FC1_N).astype(jnp.float32),
        "fc1_b": jnp.pad(p["fc1_b"], (0, FC1_N - 500)).reshape(1, FC1_N)
                    .astype(jnp.float32),
        "fc2_w": jnp.pad(p["fc2_w"], ((0, FC1_N - 500), (0, FC2_N - 100)))
                    .astype(jnp.float32),
        "fc2_b": jnp.pad(p["fc2_b"], (0, FC2_N - 100)).reshape(1, FC2_N)
                    .astype(jnp.float32),
        "fc3_w": jnp.pad(p["fc3_w"], ((0, FC2_N - 100), (0, 0)))
                    .astype(jnp.float32),
        "fc3_b": p["fc3_b"].reshape(1, 8).astype(jnp.float32),
    }


# ---------------------------------------------------------------------------
# AudioCNN forward (jitted)
# ---------------------------------------------------------------------------
@jax.jit
def audio_cnn_forward(x, p):
    # x: (N, 1, 64, 292) NCHW -> channel-major (Cin, N, H, W).
    x = jnp.transpose(x, (1, 0, 2, 3))
    x = conv_relu_pool(x, p["c1_w"], p["c1_b"],
                       kh=KERNEL_DIMS[0], kw=KERNEL_DIMS[0], pad=PADS[0], tm=4608)
    x = conv_relu_pool(x, p["c2_w"], p["c2_b"],
                       kh=KERNEL_DIMS[1], kw=KERNEL_DIMS[1], pad=PADS[1], tm=1280)
    # (12, N, 16, 73) -> (N, 12*16*73): matches PyTorch's NCHW .view(-1, 14016),
    # so fc1 weight rows need no permutation (tiny 56 KB bf16 transpose).
    n = x.shape[1]
    xf = jnp.transpose(x, (1, 0, 2, 3)).reshape(n, FC_INPUT_SIZE)
    return fused_fc(xf, p)


# Pure-JAX reference (PyTorch semantics, f32, original weight layout).
def ref_forward(x, p):
    def conv(x, w, b, pad):
        y = jax.lax.conv_general_dilated(
            x, w, (1, 1), [(pad, pad), (pad, pad)],
            dimension_numbers=("NCHW", "OIHW", "NCHW"),
            precision=jax.lax.Precision.HIGHEST)
        return jnp.maximum(y + b[None, :, None, None], 0.0)

    def pool(x):
        return jnp.maximum(
            jnp.maximum(x[:, :, 0::2, 0::2], x[:, :, 0::2, 1::2]),
            jnp.maximum(x[:, :, 1::2, 0::2], x[:, :, 1::2, 1::2]))

    x = pool(conv(x, p["w1"], p["b1"], PADS[0]))
    x = pool(conv(x, p["w2"], p["b2"], PADS[1]))
    x = x.reshape(-1, FC_INPUT_SIZE)
    hi = jax.lax.Precision.HIGHEST
    x = jnp.maximum(jnp.dot(x, p["fc1_w"], precision=hi) + p["fc1_b"], 0.0)
    x = jnp.maximum(jnp.dot(x, p["fc2_w"], precision=hi) + p["fc2_b"], 0.0)
    return jnp.dot(x, p["fc3_w"], precision=hi) + p["fc3_b"]


def init_params(key):
    ks = jax.random.split(key, 10)

    def u(k, shape, fan_in):
        bound = 1.0 / math.sqrt(fan_in)
        return jax.random.uniform(k, shape, jnp.float32, -bound, bound)

    return {
        "w1": u(ks[0], (6, 1, 5, 5), 1 * 5 * 5),
        "b1": u(ks[1], (6,), 1 * 5 * 5),
        "w2": u(ks[2], (12, 6, 2, 2), 6 * 2 * 2),
        "b2": u(ks[3], (12,), 6 * 2 * 2),
        # Linear weights stored as (in, out) so forward is x @ W + b.
        "fc1_w": u(ks[4], (FC_INPUT_SIZE, 500), FC_INPUT_SIZE),
        "fc1_b": u(ks[5], (500,), FC_INPUT_SIZE),
        "fc2_w": u(ks[6], (500, 100), 500),
        "fc2_b": u(ks[7], (100,), 500),
        "fc3_w": u(ks[8], (100, 8), 100),
        "fc3_b": u(ks[9], (8,), 100),
    }


if __name__ == "__main__":
    key = jax.random.PRNGKey(0)
    pkey, xkey = jax.random.split(key)
    params = init_params(pkey)
    prep = jax.tree_util.tree_map(jax.block_until_ready, prepare_params(params))

    # Input matching the module's implied shape: (batch, 1, 64, 292), batch=2.
    x = jax.random.normal(xkey, (2, 1, IN_X, IN_Y), jnp.float32)

    out = jax.block_until_ready(audio_cnn_forward(x, prep))
    assert out.shape == (2, 8), out.shape

    ref = jax.block_until_ready(ref_forward(x, params))
    # Tolerance covers bf16 conv activations + int8 (per-column scaled) fc1_w.
    np.testing.assert_allclose(np.asarray(out), np.asarray(ref),
                               rtol=2e-2, atol=2e-2)
    print("KERNEL_OK")
</pallas_src>

<mosaic_0001>
module attributes {stable_mosaic.version = 11 : i64} {
  func.func @conv_pool_kernel(%arg0: i32, %arg1: memref<36x4608xbf16, #tpu.memory_space<vmem>>, %arg2: memref<4x6x36xbf16, #tpu.memory_space<vmem>>, %arg3: memref<6x1xf32, #tpu.memory_space<vmem>>, %arg4: memref<6x4608xbf16, #tpu.memory_space<vmem>>) attributes {dimension_semantics = [#tpu.dimension_semantics<parallel>], iteration_bounds = array<i64: 2>, scalar_prefetch = 0 : i64, scratch_operands = 0 : i64, tpu.core_type = #tpu.core_type<tc>, window_params = [{transform_indices = @transform_0, window_bounds = array<i64: 36, 4608>}, {pipeline_mode = #tpu.pipeline_mode<synchronous>, transform_indices = @transform_1, window_bounds = array<i64: 4, 6, 36>}, {pipeline_mode = #tpu.pipeline_mode<synchronous>, transform_indices = @transform_2, window_bounds = array<i64: 6, 1>}, {transform_indices = @transform_3, window_bounds = array<i64: 6, 4608>}]} {
    %c0 = arith.constant 0 : index
    %c0_0 = arith.constant 0 : index
    %0 = vector.load %arg1[%c0, %c0_0] : memref<36x4608xbf16, #tpu.memory_space<vmem>>, vector<36x4608xbf16>
    %c0_1 = arith.constant 0 : index
    %c0_2 = arith.constant 0 : index
    %c0_3 = arith.constant 0 : index
    %1 = vector.load %arg2[%c0_1, %c0_2, %c0_3] : memref<4x6x36xbf16, #tpu.memory_space<vmem>>, vector<1x6x36xbf16>
    %2 = vector.shape_cast %1 : vector<1x6x36xbf16> to vector<6x36xbf16>
    %cst = arith.constant dense<0.000000e+00> : vector<6x4608xf32>
    %3 = tpu.matmul %2, %0, %cst {dimension_numbers = #tpu.dot_dimension_numbers<[1], [0], [0], [1], [0, 0, 1, 1], [], []>} : vector<6x36xbf16>, vector<36x4608xbf16>, vector<6x4608xf32> -> vector<6x4608xf32>
    %c1 = arith.constant 1 : index
    %c0_4 = arith.constant 0 : index
    %c0_5 = arith.constant 0 : index
    %4 = vector.load %arg2[%c1, %c0_4, %c0_5] : memref<4x6x36xbf16, #tpu.memory_space<vmem>>, vector<1x6x36xbf16>
    %5 = vector.shape_cast %4 : vector<1x6x36xbf16> to vector<6x36xbf16>
    %cst_6 = arith.constant dense<0.000000e+00> : vector<6x4608xf32>
    %6 = tpu.matmul %5, %0, %cst_6 {dimension_numbers = #tpu.dot_dimension_numbers<[1], [0], [0], [1], [0, 0, 1, 1], [], []>} : vector<6x36xbf16>, vector<36x4608xbf16>, vector<6x4608xf32> -> vector<6x4608xf32>
    %7 = arith.maximumf %3, %6 : vector<6x4608xf32>
    %c2 = arith.constant 2 : index
    %c0_7 = arith.constant 0 : index
    %c0_8 = arith.constant 0 : index
    %8 = vector.load %arg2[%c2, %c0_7, %c0_8] : memref<4x6x36xbf16, #tpu.memory_space<vmem>>, vector<1x6x36xbf16>
    %9 = vector.shape_cast %8 : vector<1x6x36xbf16> to vector<6x36xbf16>
    %cst_9 = arith.constant dense<0.000000e+00> : vector<6x4608xf32>
    %10 = tpu.matmul %9, %0, %cst_9 {dimension_numbers = #tpu.dot_dimension_numbers<[1], [0], [0], [1], [0, 0, 1, 1], [], []>} : vector<6x36xbf16>, vector<36x4608xbf16>, vector<6x4608xf32> -> vector<6x4608xf32>
    %11 = arith.maximumf %7, %10 : vector<6x4608xf32>
    %c3 = arith.constant 3 : index
    %c0_10 = arith.constant 0 : index
    %c0_11 = arith.constant 0 : index
    %12 = vector.load %arg2[%c3, %c0_10, %c0_11] : memref<4x6x36xbf16, #tpu.memory_space<vmem>>, vector<1x6x36xbf16>
    %13 = vector.shape_cast %12 : vector<1x6x36xbf16> to vector<6x36xbf16>
    %cst_12 = arith.constant dense<0.000000e+00> : vector<6x4608xf32>
    %14 = tpu.matmul %13, %0, %cst_12 {dimension_numbers = #tpu.dot_dimension_numbers<[1], [0], [0], [1], [0, 0, 1, 1], [], []>} : vector<6x36xbf16>, vector<36x4608xbf16>, vector<6x4608xf32> -> vector<6x4608xf32>
    %15 = arith.maximumf %11, %14 : vector<6x4608xf32>
    %c0_13 = arith.constant 0 : index
    %c0_14 = arith.constant 0 : index
    %16 = vector.load %arg3[%c0_13, %c0_14] : memref<6x1xf32, #tpu.memory_space<vmem>>, vector<6x1xf32>
    %17 = vector.broadcast %16 : vector<6x1xf32> to vector<6x4608xf32>
    %18 = arith.addf %15, %17 : vector<6x4608xf32>
    %cst_15 = arith.constant 0.000000e+00 : f32
    %19 = vector.broadcast %cst_15 : f32 to vector<6x4608xf32>
    %20 = arith.maximumf %18, %19 : vector<6x4608xf32>
    %21 = arith.truncf %20 : vector<6x4608xf32> to vector<6x4608xbf16>
    %c0_16 = arith.constant 0 : index
    %c0_17 = arith.constant 0 : index
    %22 = vector.load %arg4[%c0_16, %c0_17] : memref<6x4608xbf16, #tpu.memory_space<vmem>>, vector<6x4608xbf16>
    tpu.vector_store %arg4[%c0_16, %c0_17], %21 {strides = array<i32>} : memref<6x4608xbf16, #tpu.memory_space<vmem>>, vector<6x4608xbf16>,
    return
  }
  func.func @transform_0(%arg0: i32) -> (i32, i32) {
    %c0_i32 = arith.constant 0 : i32
    %c0_i32_0 = arith.constant 0 : i32
    return %c0_i32, %arg0 : i32, i32
  }
  func.func @transform_1(%arg0: i32) -> (i32, i32, i32) {
    %c0_i32 = arith.constant 0 : i32
    %c0_i32_0 = arith.constant 0 : i32
    %c0_i32_1 = arith.constant 0 : i32
    %c0_i32_2 = arith.constant 0 : i32
    return %c0_i32, %c0_i32_0, %c0_i32_1 : i32, i32, i32
  }
  func.func @transform_2(%arg0: i32) -> (i32, i32) {
    %c0_i32 = arith.constant 0 : i32
    %c0_i32_0 = arith.constant 0 : i32
    %c0_i32_1 = arith.constant 0 : i32
    return %c0_i32, %c0_i32_0 : i32, i32
  }
  func.func @transform_3(%arg0: i32) -> (i32, i32) {
    %c0_i32 = arith.constant 0 : i32
    %c0_i32_0 = arith.constant 0 : i32
    return %c0_i32, %arg0 : i32, i32
  }
}

module attributes {stable_mosaic.version = 11 : i64} {
  func.func @conv_pool_kernel(%arg0: i32, %arg1: memref<54x1280xbf16, #tpu.memory_space<vmem>>, %arg2: memref<4x12x54xbf16, #tpu.memory_space<vmem>>, %arg3: memref<12x1xf32, #tpu.memory_space<vmem>>, %arg4: memref<12x1280xbf16, #tpu.memory_space<vmem>>) attributes {dimension_semantics = [#tpu.dimension_semantics<parallel>], iteration_bounds = array<i64: 2>, scalar_prefetch = 0 : i64, scratch_operands = 0 : i64, tpu.core_type = #tpu.core_type<tc>, window_params = [{transform_indices = @transform_0, window_bounds = array<i64: 54, 1280>}, {pipeline_mode = #tpu.pipeline_mode<synchronous>, transform_indices = @transform_1, window_bounds = array<i64: 4, 12, 54>}, {pipeline_mode = #tpu.pipeline_mode<synchronous>, transform_indices = @transform_2, window_bounds = array<i64: 12, 1>}, {transform_indices = @transform_3, window_bounds = array<i64: 12, 1280>}]} {
    %c0 = arith.constant 0 : index
    %c0_0 = arith.constant 0 : index
    %0 = vector.load %arg1[%c0, %c0_0] : memref<54x1280xbf16, #tpu.memory_space<vmem>>, vector<54x1280xbf16>
    %c0_1 = arith.constant 0 : index
    %c0_2 = arith.constant 0 : index
    %c0_3 = arith.constant 0 : index
    %1 = vector.load %arg2[%c0_1, %c0_2, %c0_3] : memref<4x12x54xbf16, #tpu.memory_space<vmem>>, vector<1x12x54xbf16>
    %2 = vector.shape_cast %1 : vector<1x12x54xbf16> to vector<12x54xbf16>
    %cst = arith.constant dense<0.000000e+00> : vector<12x1280xf32>
    %3 = tpu.matmul %2, %0, %cst {dimension_numbers = #tpu.dot_dimension_numbers<[1], [0], [0], [1], [0, 0, 1, 1], [], []>} : vector<12x54xbf16>, vector<54x1280xbf16>, vector<12x1280xf32> -> vector<12x1280xf32>
    %c1 = arith.constant 1 : index
    %c0_4 = arith.constant 0 : index
    %c0_5 = arith.constant 0 : index
    %4 = vector.load %arg2[%c1, %c0_4, %c0_5] : memref<4x12x54xbf16, #tpu.memory_space<vmem>>, vector<1x12x54xbf16>
    %5 = vector.shape_cast %4 : vector<1x12x54xbf16> to vector<12x54xbf16>
    %cst_6 = arith.constant dense<0.000000e+00> : vector<12x1280xf32>
    %6 = tpu.matmul %5, %0, %cst_6 {dimension_numbers = #tpu.dot_dimension_numbers<[1], [0], [0], [1], [0, 0, 1, 1], [], []>} : vector<12x54xbf16>, vector<54x1280xbf16>, vector<12x1280xf32> -> vector<12x1280xf32>
    %7 = arith.maximumf %3, %6 : vector<12x1280xf32>
    %c2 = arith.constant 2 : index
    %c0_7 = arith.constant 0 : index
    %c0_8 = arith.constant 0 : index
    %8 = vector.load %arg2[%c2, %c0_7, %c0_8] : memref<4x12x54xbf16, #tpu.memory_space<vmem>>, vector<1x12x54xbf16>
    %9 = vector.shape_cast %8 : vector<1x12x54xbf16> to vector<12x54xbf16>
    %cst_9 = arith.constant dense<0.000000e+00> : vector<12x1280xf32>
    %10 = tpu.matmul %9, %0, %cst_9 {dimension_numbers = #tpu.dot_dimension_numbers<[1], [0], [0], [1], [0, 0, 1, 1], [], []>} : vector<12x54xbf16>, vector<54x1280xbf16>, vector<12x1280xf32> -> vector<12x1280xf32>
    %11 = arith.maximumf %7, %10 : vector<12x1280xf32>
    %c3 = arith.constant 3 : index
    %c0_10 = arith.constant 0 : index
    %c0_11 = arith.constant 0 : index
    %12 = vector.load %arg2[%c3, %c0_10, %c0_11] : memref<4x12x54xbf16, #tpu.memory_space<vmem>>, vector<1x12x54xbf16>
    %13 = vector.shape_cast %12 : vector<1x12x54xbf16> to vector<12x54xbf16>
    %cst_12 = arith.constant dense<0.000000e+00> : vector<12x1280xf32>
    %14 = tpu.matmul %13, %0, %cst_12 {dimension_numbers = #tpu.dot_dimension_numbers<[1], [0], [0], [1], [0, 0, 1, 1], [], []>} : vector<12x54xbf16>, vector<54x1280xbf16>, vector<12x1280xf32> -> vector<12x1280xf32>
    %15 = arith.maximumf %11, %14 : vector<12x1280xf32>
    %c0_13 = arith.constant 0 : index
    %c0_14 = arith.constant 0 : index
    %16 = vector.load %arg3[%c0_13, %c0_14] : memref<12x1xf32, #tpu.memory_space<vmem>>, vector<12x1xf32>
    %17 = vector.broadcast %16 : vector<12x1xf32> to vector<12x1280xf32>
    %18 = arith.addf %15, %17 : vector<12x1280xf32>
    %cst_15 = arith.constant 0.000000e+00 : f32
    %19 = vector.broadcast %cst_15 : f32 to vector<12x1280xf32>
    %20 = arith.maximumf %18, %19 : vector<12x1280xf32>
    %21 = arith.truncf %20 : vector<12x1280xf32> to vector<12x1280xbf16>
    %c0_16 = arith.constant 0 : index
    %c0_17 = arith.constant 0 : index
    %22 = vector.load %arg4[%c0_16, %c0_17] : memref<12x1280xbf16, #tpu.memory_space<vmem>>, vector<12x1280xbf16>
    tpu.vector_store %arg4[%c0_16, %c0_17], %21 {strides = array<i32>} : memref<12x1280xbf16, #tpu.memory_space<vmem>>, vector<12x1280xbf16>,
    return
  }
  func.func @transform_0(%arg0: i32) -> (i32, i32) {
    %c0_i32 = arith.constant 0 : i32
    %c0_i32_0 = arith.constant 0 : i32
    return %c0_i32, %arg0 : i32, i32
  }
  func.func @transform_1(%arg0: i32) -> (i32, i32, i32) {
    %c0_i32 = arith.constant 0 : i32
    %c0_i32_0 = arith.constant 0 : i32
    %c0_i32_1 = arith.constant 0 : i32
    %c0_i32_2 = arith.constant 0 : i32
    return %c0_i32, %c0_i32_0, %c0_i32_1 : i32, i32, i32
  }
  func.func @transform_2(%arg0: i32) -> (i32, i32) {
    %c0_i32 = arith.constant 0 : i32
    %c0_i32_0 = arith.constant 0 : i32
    %c0_i32_1 = arith.constant 0 : i32
    return %c0_i32, %c0_i32_0 : i32, i32
  }
  func.func @transform_3(%arg0: i32) -> (i32, i32) {
    %c0_i32 = arith.constant 0 : i32
    %c0_i32_0 = arith.constant 0 : i32
    return %c0_i32, %arg0 : i32, i32
  }
}

module attributes {stable_mosaic.version = 11 : i64} {
  func.func @fused_fc_kernel(%arg0: i32, %arg1: memref<8x2048xbf16, #tpu.memory_space<vmem>>, %arg2: memref<2048x512xi8, #tpu.memory_space<vmem>>, %arg3: memref<1x512xf32, #tpu.memory_space<vmem>>, %arg4: memref<1x512xf32, #tpu.memory_space<vmem>>, %arg5: memref<512x128xf32, #tpu.memory_space<vmem>>, %arg6: memref<1x128xf32, #tpu.memory_space<vmem>>, %arg7: memref<128x8xf32, #tpu.memory_space<vmem>>, %arg8: memref<1x8xf32, #tpu.memory_space<vmem>>, %arg9: memref<8x8xf32, #tpu.memory_space<vmem>>, %arg10: memref<8x512xf32, #tpu.memory_space<vmem>>) attributes {dimension_semantics = [#tpu.dimension_semantics<arbitrary>], iteration_bounds = array<i64: 7>, scalar_prefetch = 0 : i64, scratch_operands = 1 : i64, tpu.core_type = #tpu.core_type<tc>, window_params = [{transform_indices = @transform_0, window_bounds = array<i64: 8, 2048>}, {transform_indices = @transform_1, window_bounds = array<i64: 2048, 512>}, {pipeline_mode = #tpu.pipeline_mode<synchronous>, transform_indices = @transform_2, window_bounds = array<i64: 1, 512>}, {pipeline_mode = #tpu.pipeline_mode<synchronous>, transform_indices = @transform_3, window_bounds = array<i64: 1, 512>}, {pipeline_mode = #tpu.pipeline_mode<synchronous>, transform_indices = @transform_4, window_bounds = array<i64: 512, 128>}, {pipeline_mode = #tpu.pipeline_mode<synchronous>, transform_indices = @transform_5, window_bounds = array<i64: 1, 128>}, {pipeline_mode = #tpu.pipeline_mode<synchronous>, transform_indices = @transform_6, window_bounds = array<i64: 128, 8>}, {pipeline_mode = #tpu.pipeline_mode<synchronous>, transform_indices = @transform_7, window_bounds = array<i64: 1, 8>}, {pipeline_mode = #tpu.pipeline_mode<synchronous>, transform_indices = @transform_8, window_bounds = array<i64: 8, 8>}]} {
    %c0_i32 = arith.constant 0 : i32
    %0 = arith.cmpi eq, %arg0, %c0_i32 : i32
    %1 = arith.extui %0 : i1 to i32
    %c0_i32_0 = arith.constant 0 : i32
    %2 = arith.cmpi ne, %1, %c0_i32_0 : i32
    scf.if %2 {
      %cst_9 = arith.constant 0.000000e+00 : f32
      %14 = vector.broadcast %cst_9 : f32 to vector<8x512xf32>
      %c0_10 = arith.constant 0 : index
      %c0_11 = arith.constant 0 : index
      %15 = vector.load %arg10[%c0_10, %c0_11] : memref<8x512xf32, #tpu.memory_space<vmem>>, vector<8x512xf32>
      tpu.vector_store %arg10[%c0_10, %c0_11], %14 {strides = array<i32>} : memref<8x512xf32, #tpu.memory_space<vmem>>, vector<8x512xf32>,
    } else {
    }
    %c0 = arith.constant 0 : index
    %c0_1 = arith.constant 0 : index
    %3 = vector.load %arg2[%c0, %c0_1] : memref<2048x512xi8, #tpu.memory_space<vmem>>, vector<2048x512xi8>
    %4 = arith.sitofp %3 : vector<2048x512xi8> to vector<2048x512xf32>
    %c0_2 = arith.constant 0 : index
    %c0_3 = arith.constant 0 : index
    %5 = vector.load %arg10[%c0_2, %c0_3] : memref<8x512xf32, #tpu.memory_space<vmem>>, vector<8x512xf32>
    %c0_4 = arith.constant 0 : index
    %c0_5 = arith.constant 0 : index
    %6 = vector.load %arg1[%c0_4, %c0_5] : memref<8x2048xbf16, #tpu.memory_space<vmem>>, vector<8x2048xbf16>
    %7 = arith.extf %6 : vector<8x2048xbf16> to vector<8x2048xf32>
    %cst = arith.constant dense<0.000000e+00> : vector<8x512xf32>
    %8 = tpu.matmul %7, %4, %cst {dimension_numbers = #tpu.dot_dimension_numbers<[1], [0], [0], [1], [0, 0, 1, 1], [], []>} : vector<8x2048xf32>, vector<2048x512xf32>, vector<8x512xf32> -> vector<8x512xf32>
    %9 = arith.addf %5, %8 : vector<8x512xf32>
    %c0_6 = arith.constant 0 : index
    %c0_7 = arith.constant 0 : index
    %10 = vector.load %arg10[%c0_6, %c0_7] : memref<8x512xf32, #tpu.memory_space<vmem>>, vector<8x512xf32>
    tpu.vector_store %arg10[%c0_6, %c0_7], %9 {strides = array<i32>} : memref<8x512xf32, #tpu.memory_space<vmem>>, vector<8x512xf32>,
    %c6_i32 = arith.constant 6 : i32
    %11 = arith.cmpi eq, %arg0, %c6_i32 : i32
    %12 = arith.extui %11 : i1 to i32
    %c0_i32_8 = arith.constant 0 : i32
    %13 = arith.cmpi ne, %12, %c0_i32_8 : i32
    scf.if %13 {
      %c0_9 = arith.constant 0 : index
      %c0_10 = arith.constant 0 : index
      %14 = vector.load %arg10[%c0_9, %c0_10] : memref<8x512xf32, #tpu.memory_space<vmem>>, vector<8x512xf32>
      %c0_11 = arith.constant 0 : index
      %c0_12 = arith.constant 0 : index
      %15 = vector.load %arg3[%c0_11, %c0_12] : memref<1x512xf32, #tpu.memory_space<vmem>>, vector<1x512xf32>
      %16 = vector.broadcast %15 : vector<1x512xf32> to vector<8x512xf32>
      %17 = arith.mulf %14, %16 : vector<8x512xf32>
      %c0_13 = arith.constant 0 : index
      %c0_14 = arith.constant 0 : index
      %18 = vector.load %arg4[%c0_13, %c0_14] : memref<1x512xf32, #tpu.memory_space<vmem>>, vector<1x512xf32>
      %19 = vector.broadcast %18 : vector<1x512xf32> to vector<8x512xf32>
      %20 = arith.addf %17, %19 : vector<8x512xf32>
      %cst_15 = arith.constant 0.000000e+00 : f32
      %21 = vector.broadcast %cst_15 : f32 to vector<8x512xf32>
      %22 = arith.maximumf %20, %21 : vector<8x512xf32>
      %c0_16 = arith.constant 0 : index
      %c0_17 = arith.constant 0 : index
      %23 = vector.load %arg5[%c0_16, %c0_17] : memref<512x128xf32, #tpu.memory_space<vmem>>, vector<512x128xf32>
      %cst_18 = arith.constant dense<0.000000e+00> : vector<8x128xf32>
      %24 = tpu.matmul %22, %23, %cst_18 {dimension_numbers = #tpu.dot_dimension_numbers<[1], [0], [0], [1], [0, 0, 1, 1], [], []>} : vector<8x512xf32>, vector<512x128xf32>, vector<8x128xf32> -> vector<8x128xf32>
      %c0_19 = arith.constant 0 : index
      %c0_20 = arith.constant 0 : index
      %25 = vector.load %arg6[%c0_19, %c0_20] : memref<1x128xf32, #tpu.memory_space<vmem>>, vector<1x128xf32>
      %26 = vector.broadcast %25 : vector<1x128xf32> to vector<8x128xf32>
      %27 = arith.addf %24, %26 : vector<8x128xf32>
      %cst_21 = arith.constant 0.000000e+00 : f32
      %28 = vector.broadcast %cst_21 : f32 to vector<8x128xf32>
      %29 = arith.maximumf %27, %28 : vector<8x128xf32>
      %c0_22 = arith.constant 0 : index
      %c0_23 = arith.constant 0 : index
      %30 = vector.load %arg7[%c0_22, %c0_23] : memref<128x8xf32, #tpu.memory_space<vmem>>, vector<128x8xf32>
      %cst_24 = arith.constant dense<0.000000e+00> : vector<8x8xf32>
      %31 = tpu.matmul %29, %30, %cst_24 {dimension_numbers = #tpu.dot_dimension_numbers<[1], [0], [0], [1], [0, 0, 1, 1], [], []>} : vector<8x128xf32>, vector<128x8xf32>, vector<8x8xf32> -> vector<8x8xf32>
      %c0_25 = arith.constant 0 : index
      %c0_26 = arith.constant 0 : index
      %32 = vector.load %arg8[%c0_25, %c0_26] : memref<1x8xf32, #tpu.memory_space<vmem>>, vector<1x8xf32>
      %33 = vector.broadcast %32 : vector<1x8xf32> to vector<8x8xf32>
      %34 = arith.addf %31, %33 : vector<8x8xf32>
      %c0_27 = arith.constant 0 : index
      %c0_28 = arith.constant 0 : index
      %35 = vector.load %arg9[%c0_27, %c0_28] : memref<8x8xf32, #tpu.memory_space<vmem>>, vector<8x8xf32>
      tpu.vector_store %arg9[%c0_27, %c0_28], %34 {strides = array<i32>} : memref<8x8xf32, #tpu.memory_space<vmem>>, vector<8x8xf32>,
    } else {
    }
    return
  }
  func.func @transform_0(%arg0: i32) -> (i32, i32) {
    %c0_i32 = arith.constant 0 : i32
    %c0_i32_0 = arith.constant 0 : i32
    return %c0_i32, %arg0 : i32, i32
  }
  func.func @transform_1(%arg0: i32) -> (i32, i32) {
    %c0_i32 = arith.constant 0 : i32
    %c0_i32_0 = arith.constant 0 : i32
    return %arg0, %c0_i32 : i32, i32
  }
  func.func @transform_2(%arg0: i32) -> (i32, i32) {
    %c0_i32 = arith.constant 0 : i32
    %c0_i32_0 = arith.constant 0 : i32
    %c0_i32_1 = arith.constant 0 : i32
    return %c0_i32, %c0_i32_0 : i32, i32
  }
  func.func @transform_3(%arg0: i32) -> (i32, i32) {
    %c0_i32 = arith.constant 0 : i32
    %c0_i32_0 = arith.constant 0 : i32
    %c0_i32_1 = arith.constant 0 : i32
    return %c0_i32, %c0_i32_0 : i32, i32
  }
  func.func @transform_4(%arg0: i32) -> (i32, i32) {
    %c0_i32 = arith.constant 0 : i32
    %c0_i32_0 = arith.constant 0 : i32
    %c0_i32_1 = arith.constant 0 : i32
    return %c0_i32, %c0_i32_0 : i32, i32
  }
  func.func @transform_5(%arg0: i32) -> (i32, i32) {
    %c0_i32 = arith.constant 0 : i32
    %c0_i32_0 = arith.constant 0 : i32
    %c0_i32_1 = arith.constant 0 : i32
    return %c0_i32, %c0_i32_0 : i32, i32
  }
  func.func @transform_6(%arg0: i32) -> (i32, i32) {
    %c0_i32 = arith.constant 0 : i32
    %c0_i32_0 = arith.constant 0 : i32
    %c0_i32_1 = arith.constant 0 : i32
    return %c0_i32, %c0_i32_0 : i32, i32
  }
  func.func @transform_7(%arg0: i32) -> (i32, i32) {
    %c0_i32 = arith.constant 0 : i32
    %c0_i32_0 = arith.constant 0 : i32
    %c0_i32_1 = arith.constant 0 : i32
    return %c0_i32, %c0_i32_0 : i32, i32
  }
  func.func @transform_8(%arg0: i32) -> (i32, i32) {
    %c0_i32 = arith.constant 0 : i32
    %c0_i32_0 = arith.constant 0 : i32
    %c0_i32_1 = arith.constant 0 : i32
    return %c0_i32, %c0_i32_0 : i32, i32
  }
}

</mosaic_0001>

<llo_original>
// kernel: audio_cnn_forward.3
$region0: #{audio_cnn_forward.3}
  #allocation0 [shape = 'u32[]', space=smem, size = 0x4, offset = 0x4, fixed_abs, tag = 'smem constant byte address 0x4 - core index']
  #allocation1 [shape = 'u32[144,128]{1,0:T(1,128)}', space=vmem, size = 0x12000, scoped, tag = 'internal scratch']
  %s0 = inlined_call_operand.vmem [shape: bf16[36,9216], index: 0, kind: input, shape index: {}]
  %s1 = inlined_call_operand.vmem [shape: bf16[4,6,36], index: 1, kind: input, shape index: {}]
  %s2 = inlined_call_operand.vmem [shape: f32[6,1], index: 2, kind: input, shape index: {}]
  %s3 = inlined_call_operand.vmem [shape: bf16[6,9216], index: 3, kind: output, shape index: {}]
  %s4 = sld [smem:[#allocation0]]
  $region68: #{audio_cnn_forward.3} parent=0
    _
  %s6 = ssub.s32 1, %s4
  %s7 = scalar_select 0, %s6, %s4
  $region1: #{audio_cnn_forward.3} parent=0
    #allocation2 [shape = 'u8[737280]{0}', space=vmem, size = 0xb4000, scoped, tag = 'input window, operand 0']
    loop: start=0, step=1, limit=4
    $region2: #{audio_cnn_forward.3} parent=1 // loop_pre_header
      _
    $region3: #{audio_cnn_forward.3} parent=1 // loop_header
      %s9 = sphi 0, %s13
      %p10 = scmp.ge.s32.totalorder %s9, 4
      %s19 = sphi 0, %s21
      %s22 = sphi 0, %s19
      %s23 = sphi 0, %s22
      %s39 = sphi 0, %s23
      %s43 = sphi 0, %s43
      %s45 = sphi 0, %s43
      %s46 = sphi 0, %s45
      %s60 = sphi 0, %s46
      %s64 = sphi 0, %s64
      %s66 = sphi 0, %s64
      %s67 = sphi 0, %s66
      %s81 = sphi 0, %s67
      %s87 = sphi 0, %s89
      %s90 = sphi 0, %s87
      %s91 = sphi 0, %s90
      %s107 = sphi 0, %s91
    $region4: #{audio_cnn_forward.3} parent=1 // loop_header_branch
      %12 = sbr.rel (%p10) target = $region8
    $region5: #{audio_cnn_forward.3} parent=1 // loop_body
      %s14 = ssub.s32 %s9, 1
      %s15 = ssub.s32 %s9, 2
      %s16 = sadd.s32 %s9, 1
      %s17 = ssub.s32 %s9, %s16
      %p18 = scmp.eq.s32.totalorder %s17, 0
      %s20 = sadd.s32 %s19, 1
      %s21 = scalar_select %p18, %s19, %s20
      %p24 = pneg %p18
      %p25 = scmp.eq.s32.totalorder %s9, 1
      %p26 = por %p24, %p25
      %p27 = scmp.ne.s32.totalorder %s19, %s22
      %p28 = scmp.eq.s32.totalorder %s9, 0
      %p29 = por %p27, %p28
      %p30 = scmp.ne.s32.totalorder %s19, %s22
      %p31 = scmp.eq.s32.totalorder %s14, 1
      %p32 = por %p30, %p31
      %p33 = scmp.ne.s32.totalorder %s22, %s23
      %p34 = scmp.eq.s32.totalorder %s14, 0
      %p35 = por %p33, %p34
      %p36 = scmp.ne.s32.totalorder %s22, %s23
      %p37 = scmp.eq.s32.totalorder %s15, 1
      %p38 = por %p36, %p37
      %p40 = scmp.ne.s32.totalorder %s23, %s39
      %p41 = scmp.eq.s32.totalorder %s15, 0
      %p42 = por %p40, %p41
      %s44 = sadd.s32 %s43, 1
      %p47 = scmp.eq.s32.totalorder %s9, 1
      %p48 = scmp.ne.s32.totalorder %s43, %s45
      %p49 = scmp.eq.s32.totalorder %s9, 0
      %p50 = por %p48, %p49
      %p51 = scmp.ne.s32.totalorder %s43, %s45
      %p52 = scmp.eq.s32.totalorder %s14, 1
      %p53 = por %p51, %p52
      %p54 = scmp.ne.s32.totalorder %s45, %s46
      %p55 = scmp.eq.s32.totalorder %s14, 0
      %p56 = por %p54, %p55
      %p57 = scmp.ne.s32.totalorder %s45, %s46
      %p58 = scmp.eq.s32.totalorder %s15, 1
      %p59 = por %p57, %p58
      %p61 = scmp.ne.s32.totalorder %s46, %s60
      %p62 = scmp.eq.s32.totalorder %s15, 0
      %p63 = por %p61, %p62
      %s65 = sadd.s32 %s64, 1
      %p68 = scmp.eq.s32.totalorder %s9, 1
      %p69 = scmp.ne.s32.totalorder %s64, %s66
      %p70 = scmp.eq.s32.totalorder %s9, 0
      %p71 = por %p69, %p70
      %p72 = scmp.ne.s32.totalorder %s64, %s66
      %p73 = scmp.eq.s32.totalorder %s14, 1
      %p74 = por %p72, %p73
      %p75 = scmp.ne.s32.totalorder %s66, %s67
      %p76 = scmp.eq.s32.totalorder %s14, 0
      %p77 = por %p75, %p76
      %p78 = scmp.ne.s32.totalorder %s66, %s67
      %p79 = scmp.eq.s32.totalorder %s15, 1
      %p80 = por %p78, %p79
      %p82 = scmp.ne.s32.totalorder %s67, %s81
      %p83 = scmp.eq.s32.totalorder %s15, 0
      %p84 = por %p82, %p83
      %s85 = ssub.s32 %s9, %s16
      %p86 = scmp.eq.s32.totalorder %s85, 0
      %s88 = sadd.s32 %s87, 1
      %s89 = scalar_select %p86, %s87, %s88
      %p92 = pneg %p86
      %p93 = scmp.eq.s32.totalorder %s9, 1
      %p94 = por %p92, %p93
      %p95 = scmp.ne.s32.totalorder %s87, %s90
      %p96 = scmp.eq.s32.totalorder %s9, 0
      %p97 = por %p95, %p96
      %p98 = scmp.ne.s32.totalorder %s87, %s90
      %p99 = scmp.eq.s32.totalorder %s14, 1
      %p100 = por %p98, %p99
      %p101 = scmp.ne.s32.totalorder %s90, %s91
      %p102 = scmp.eq.s32.totalorder %s14, 0
      %p103 = por %p101, %p102
      %p104 = scmp.ne.s32.totalorder %s90, %s91
      %p105 = scmp.eq.s32.totalorder %s15, 1
      %p106 = por %p104, %p105
      %p108 = scmp.ne.s32.totalorder %s91, %s107
      %p109 = scmp.eq.s32.totalorder %s15, 0
      %p110 = por %p108, %p109
      %p111 = scmp.le.s32.totalorder 1, %s9
      %p112 = scmp.lt.s32.totalorder %s9, 3
      %p113 = pnand %p111, %p112
      %p114 = pneg %p113
      // Predicated region
      $region9: #{audio_cnn_forward.3} parent=5 // pred_check
        _
      $region10: #{audio_cnn_forward.3} parent=5 // pred_check_branch
        %116 = sbr.rel (%p113) target = $region12
      $region11: #{audio_cnn_forward.3} parent=5 // pred_region
        %s117 = ssub.s32 %s9, 1
        // Predicated region
        $region13: #{audio_cnn_forward.3} parent=11 // pred_check
          %p118 = pneg %p56
        $region14: #{audio_cnn_forward.3} parent=11 // pred_check_branch
          %120 = sbr.rel (%p118) target = $region16
        $region15: #{audio_cnn_forward.3} parent=11 // pred_region
          _
        $region16: #{audio_cnn_forward.3} parent=11 // pred_fallthru
          _
        // Predicated region
        $region17: #{audio_cnn_forward.3} parent=11 // pred_check
          %p121 = pneg %p77
        $region18: #{audio_cnn_forward.3} parent=11 // pred_check_branch
          %123 = sbr.rel (%p121) target = $region20
        $region19: #{audio_cnn_forward.3} parent=11 // pred_region
          _
        $region20: #{audio_cnn_forward.3} parent=11 // pred_fallthru
          _
      $region12: #{audio_cnn_forward.3} parent=5 // pred_fallthru
        _
      %p124 = scmp.lt.s32.totalorder %s9, 2
      // Predicated region
      $region21: #{audio_cnn_forward.3} parent=5 // pred_check
        %p125 = pneg %p124
      $region22: #{audio_cnn_forward.3} parent=5 // pred_check_branch
        %127 = sbr.rel (%p125) target = $region24
      $region23: #{audio_cnn_forward.3} parent=5 // pred_region
        // Predicated region
        $region25: #{audio_cnn_forward.3} parent=23 // pred_check
          %p128 = pneg %p29
        $region26: #{audio_cnn_forward.3} parent=23 // pred_check_branch
          %130 = sbr.rel (%p128) target = $region28
        $region27: #{audio_cnn_forward.3} parent=23 // pred_region
          %s131 = sand.u32 %s19, 1
          %s132 = sand.u32 %s19, 1
          %s133 = smul.addr %s132, 720
          %s134 = scalar_lea.vmem [#allocation2], %s133
          %s135 = smul.u32 36, %s9
          %s136 = smul.addr %s135, 4
          %s137 = scalar_lea.vmem %s0, %s136
          // Predicated region
          $region29: #{audio_cnn_forward.3} parent=27 // pred_check
            _
          $region30: #{audio_cnn_forward.3} parent=27 // pred_check_branch
            %139 = sbr.rel (0) target = $region32
          $region31: #{audio_cnn_forward.3} parent=27 // pred_region
            // Predicated region
            $region33: #{audio_cnn_forward.3} parent=31 // pred_check
              _
            $region34: #{audio_cnn_forward.3} parent=31 // pred_check_branch
              %141 = sbr.rel (0) target = $region36
            $region35: #{audio_cnn_forward.3} parent=31 // pred_region
              loop: start=0, step=1, limit=1
              $region37: #{audio_cnn_forward.3} parent=35 // loop_pre_header
                _
              $region38: #{audio_cnn_forward.3} parent=35 // loop_header
                %s143 = sphi 0, %s147
                %p144 = scmp.ge.s32.totalorder %s143, 1
                %s148 = sphi %s137, %s137
                %s149 = sphi %s134, %s134
              $region39: #{audio_cnn_forward.3} parent=35 // loop_header_branch
                %146 = sbr.rel (%p144) target = $region43
              $region40: #{audio_cnn_forward.3} parent=35 // loop_body
                %v150 = vld [vmem:[%s148] sm:$0xff]
                %151 = vst [vmem:[%s149] sm:$0xff] %v150
                %v152 = vld [vmem:[%s148 + $0x8] sm:$0xff]
                %153 = vst [vmem:[%s149 + $0x8] sm:$0xff] %v152
                %v154 = vld [vmem:[%s148 + $0x10] sm:$0xff]
                %155 = vst [vmem:[%s149 + $0x10] sm:$0xff] %v154
                %v156 = vld [vmem:[%s148 + $0x18] sm:$0xff]
                %157 = vst [vmem:[%s149 + $0x18] sm:$0xff] %v156
                %v158 = vld [vmem:[%s148 + $0x20] sm:$0xff]
                %159 = vst [vmem:[%s149 + $0x20] sm:$0xff] %v158
                %v160 = vld [vmem:[%s148 + $0x28] sm:$0xff]
                %161 = vst [vmem:[%s149 + $0x28] sm:$0xff] %v160
                %v162 = vld [vmem:[%s148 + $0x30] sm:$0xff]
                %163 = vst [vmem:[%s149 + $0x30] sm:$0xff] %v162
                %v164 = vld [vmem:[%s148 + $0x38] sm:$0xff]
                %165 = vst [vmem:[%s149 + $0x38] sm:$0xff] %v164
                %v166 = vld [vmem:[%s148 + $0x40] sm:$0xff]
                %167 = vst [vmem:[%s149 + $0x40] sm:$0xff] %v166
                %v168 = vld [vmem:[%s148 + $0x48] sm:$0xff]
                %169 = vst [vmem:[%s149 + $0x48] sm:$0xff] %v168
                %v170 = vld [vmem:[%s148 + $0x50] sm:$0xff]
                %171 = vst [vmem:[%s149 + $0x50] sm:$0xff] %v170
                %v172 = vld [vmem:[%s148 + $0x58] sm:$0xff]
                %173 = vst [vmem:[%s149 + $0x58] sm:$0xff] %v172
                %v174 = vld [vmem:[%s148 + $0x60] sm:$0xff]
                %175 = vst [vmem:[%s149 + $0x60] sm:$0xff] %v174
                %v176 = vld [vmem:[%s148 + $0x68] sm:$0xff]
                %177 = vst [vmem:[%s149 + $0x68] sm:$0xff] %v176
                %v178 = vld [vmem:[%s148 + $0x70] sm:$0xff]
                %179 = vst [vmem:[%s149 + $0x70] sm:$0xff] %v178
                %v180 = vld [vmem:[%s148 + $0x78] sm:$0xff]
                %181 = vst [vmem:[%s149 + $0x78] sm:$0xff] %v180
                %v182 = vld [vmem:[%s148 + $0x80] sm:$0xff]
                %183 = vst [vmem:[%s149 + $0x80] sm:$0xff] %v182
                %v184 = vld [vmem:[%s148 + $0x88] sm:$0xff]
                %185 = vst [vmem:[%s149 + $0x88] sm:$0xff] %v184
                %v186 = vld [vmem:[%s148 + $0x120] sm:$0xff]
                %187 = vst [vmem:[%s149 + $0x90] sm:$0xff] %v186
                %v188 = vld [vmem:[%s148 + $0x128] sm:$0xff]
                %189 = vst [vmem:[%s149 + $0x98] sm:$0xff] %v188
                %v190 = vld [vmem:[%s148 + $0x130] sm:$0xff]
                %191 = vst [vmem:[%s149 + $0xa0] sm:$0xff] %v190
                %v192 = vld [vmem:[%s148 + $0x138] sm:$0xff]
                %193 = vst [vmem:[%s149 + $0xa8] sm:$0xff] %v192
                %v194 = vld [vmem:[%s148 + $0x140] sm:$0xff]
                %195 = vst [vmem:[%s149 + $0xb0] sm:$0xff] %v194
                %v196 = vld [vmem:[%s148 + $0x148] sm:$0xff]
                %197 = vst [vmem:[%s149 + $0xb8] sm:$0xff] %v196
                %v198 = vld [vmem:[%s148 + $0x150] sm:$0xff]
                %199 = vst [vmem:[%s149 + $0xc0] sm:$0xff] %v198
                %v200 = vld [vmem:[%s148 + $0x158] sm:$0xff]
                %201 = vst [vmem:[%s149 + $0xc8] sm:$0xff] %v200
                %v202 = vld [vmem:[%s148 + $0x160] sm:$0xff]
                %203 = vst [vmem:[%s149 + $0xd0] sm:$0xff] %v202
                %v204 = vld [vmem:[%s148 + $0x168] sm:$0xff]
                %205 = vst [vmem:[%s149 + $0xd8] sm:$0xff] %v204
                %v206 = vld [vmem:[%s148 + $0x170] sm:$0xff]
                %207 = vst [vmem:[%s149 + $0xe0] sm:$0xff] %v206
                %v208 = vld [vmem:[%s148 + $0x178] sm:$0xff]
                %209 = vst [vmem:[%s149 + $0xe8] sm:$0xff] %v208
                %v210 = vld [vmem:[%s148 + $0x180] sm:$0xff]
                %211 = vst [vmem:[%s149 + $0xf0] sm:$0xff] %v210
                %v212 = vld [vmem:[%s148 + $0x188] sm:$0xff]
                %213 = vst [vmem:[%s149 + $0xf8] sm:$0xff] %v212
                %v214 = vld [vmem:[%s148 + $0x190] sm:$0xff]
                %215 = vst [vmem:[%s149 + $0x100] sm:$0xff] %v214
                %v216 = vld [vmem:[%s148 + $0x198] sm:$0xff]
                %217 = vst [vmem:[%s149 + $0x108] sm:$0xff] %v216
                %v218 = vld [vmem:[%s148 + $0x1a0] sm:$0xff]
                %219 = vst [vmem:[%s149 + $0x110] sm:$0xff] %v218
                %v220 = vld [vmem:[%s148 + $0x1a8] sm:$0xff]
                %221 = vst [vmem:[%s149 + $0x118] sm:$0xff] %v220
                %v222 = vld [vmem:[%s148 + $0x240] sm:$0xff]
                %223 = vst [vmem:[%s149 + $0x120] sm:$0xff] %v222
                %v224 = vld [vmem:[%s148 + $0x248] sm:$0xff]
                %225 = vst [vmem:[%s149 + $0x128] sm:$0xff] %v224
                %v226 = vld [vmem:[%s148 + $0x250] sm:$0xff]
                %227 = vst [vmem:[%s149 + $0x130] sm:$0xff] %v226
                %v228 = vld [vmem:[%s148 + $0x258] sm:$0xff]
                %229 = vst [vmem:[%s149 + $0x138] sm:$0xff] %v228
                %v230 = vld [vmem:[%s148 + $0x260] sm:$0xff]
                %231 = vst [vmem:[%s149 + $0x140] sm:$0xff] %v230
                %v232 = vld [vmem:[%s148 + $0x268] sm:$0xff]
                %233 = vst [vmem:[%s149 + $0x148] sm:$0xff] %v232
                %v234 = vld [vmem:[%s148 + $0x270] sm:$0xff]
                %235 = vst [vmem:[%s149 + $0x150] sm:$0xff] %v234
                %v236 = vld [vmem:[%s148 + $0x278] sm:$0xff]
                %237 = vst [vmem:[%s149 + $0x158] sm:$0xff] %v236
                %v238 = vld [vmem:[%s148 + $0x280] sm:$0xff]
                %239 = vst [vmem:[%s149 + $0x160] sm:$0xff] %v238
                %v240 = vld [vmem:[%s148 + $0x288] sm:$0xff]
                %241 = vst [vmem:[%s149 + $0x168] sm:$0xff] %v240
                %v242 = vld [vmem:[%s148 + $0x290] sm:$0xff]
                %243 = vst [vmem:[%s149 + $0x170] sm:$0xff] %v242
                %v244 = vld [vmem:[%s148 + $0x298] sm:$0xff]
                %245 = vst [vmem:[%s149 + $0x178] sm:$0xff] %v244
                %v246 = vld [vmem:[%s148 + $0x2a0] sm:$0xff]
                %247 = vst [vmem:[%s149 + $0x180] sm:$0xff] %v246
                %v248 = vld [vmem:[%s148 + $0x2a8] sm:$0xff]
                %249 = vst [vmem:[%s149 + $0x188] sm:$0xff] %v248
                %v250 = vld [vmem:[%s148 + $0x2b0] sm:$0xff]
                %251 = vst [vmem:[%s149 + $0x190] sm:$0xff] %v250
                %v252 = vld [vmem:[%s148 + $0x2b8] sm:$0xff]
                %253 = vst [vmem:[%s149 + $0x198] sm:$0xff] %v252
                %v254 = vld [vmem:[%s148 + $0x2c0] sm:$0xff]
                %255 = vst [vmem:[%s149 + $0x1a0] sm:$0xff] %v254
                %v256 = vld [vmem:[%s148 + $0x2c8] sm:$0xff]
                %257 = vst [vmem:[%s149 + $0x1a8] sm:$0xff] %v256
                %v258 = vld [vmem:[%s148 + $0x360] sm:$0xff]
                %259 = vst [vmem:[%s149 + $0x1b0] sm:$0xff] %v258
                %v260 = vld [vmem:[%s148 + $0x368] sm:$0xff]
                %261 = vst [vmem:[%s149 + $0x1b8] sm:$0xff] %v260
                %v262 = vld [vmem:[%s148 + $0x370] sm:$0xff]
                %263 = vst [vmem:[%s149 + $0x1c0] sm:$0xff] %v262
                %v264 = vld [vmem:[%s148 + $0x378] sm:$0xff]
                %265 = vst [vmem:[%s149 + $0x1c8] sm:$0xff] %v264
                %v266 = vld [vmem:[%s148 + $0x380] sm:$0xff]
                %267 = vst [vmem:[%s149 + $0x1d0] sm:$0xff] %v266
                %v268 = vld [vmem:[%s148 + $0x388] sm:$0xff]
                %269 = vst [vmem:[%s149 + $0x1d8] sm:$0xff] %v268
                %v270 = vld [vmem:[%s148 + $0x390] sm:$0xff]
                %271 = vst [vmem:[%s149 + $0x1e0] sm:$0xff] %v270
                %v272 = vld [vmem:[%s148 + $0x398] sm:$0xff]
                %273 = vst [vmem:[%s149 + $0x1e8] sm:$0xff] %v272
                %v274 = vld [vmem:[%s148 + $0x3a0] sm:$0xff]
                %275 = vst [vmem:[%s149 + $0x1f0] sm:$0xff] %v274
                %v276 = vld [vmem:[%s148 + $0x3a8] sm:$0xff]
                %277 = vst [vmem:[%s149 + $0x1f8] sm:$0xff] %v276
                %v278 = vld [vmem:[%s148 + $0x3b0] sm:$0xff]
                %279 = vst [vmem:[%s149 + $0x200] sm:$0xff] %v278
                %v280 = vld [vmem:[%s148 + $0x3b8] sm:$0xff]
                %281 = vst [vmem:[%s149 + $0x208] sm:$0xff] %v280
                %v282 = vld [vmem:[%s148 + $0x3c0] sm:$0xff]
                %283 = vst [vmem:[%s149 + $0x210] sm:$0xff] %v282
                %v284 = vld [vmem:[%s148 + $0x3c8] sm:$0xff]
                %285 = vst [vmem:[%s149 + $0x218] sm:$0xff] %v284
                %v286 = vld [vmem:[%s148 + $0x3d0] sm:$0xff]
                %287 = vst [vmem:[%s149 + $0x220] sm:$0xff] %v286
                %v288 = vld [vmem:[%s148 + $0x3d8] sm:$0xff]
                %289 = vst [vmem:[%s149 + $0x228] sm:$0xff] %v288
                %v290 = vld [vmem:[%s148 + $0x3e0] sm:$0xff]
                %291 = vst [vmem:[%s149 + $0x230] sm:$0xff] %v290
                %v292 = vld [vmem:[%s148 + $0x3e8] sm:$0xff]
                %293 = vst [vmem:[%s149 + $0x238] sm:$0xff] %v292
                %v294 = vld [vmem:[%s148 + $0x480] sm:$0xff]
                %295 = vst [vmem:[%s149 + $0x240] sm:$0xff] %v294
                %v296 = vld [vmem:[%s148 + $0x488] sm:$0xff]
                %297 = vst [vmem:[%s149 + $0x248] sm:$0xff] %v296
                %v298 = vld [vmem:[%s148 + $0x490] sm:$0xff]
                %299 = vst [vmem:[%s149 + $0x250] sm:$0xff] %v298
                %v300 = vld [vmem:[%s148 + $0x498] sm:$0xff]
                %301 = vst [vmem:[%s149 + $0x258] sm:$0xff] %v300
                %v302 = vld [vmem:[%s148 + $0x4a0] sm:$0xff]
                %303 = vst [vmem:[%s149 + $0x260] sm:$0xff] %v302
                %v304 = vld [vmem:[%s148 + $0x4a8] sm:$0xff]
                %305 = vst [vmem:[%s149 + $0x268] sm:$0xff] %v304
                %v306 = vld [vmem:[%s148 + $0x4b0] sm:$0xff]
                %307 = vst [vmem:[%s149 + $0x270] sm:$0xff] %v306
                %v308 = vld [vmem:[%s148 + $0x4b8] sm:$0xff]
                %309 = vst [vmem:[%s149 + $0x278] sm:$0xff] %v308
                %v310 = vld [vmem:[%s148 + $0x4c0] sm:$0xff]
                %311 = vst [vmem:[%s149 + $0x280] sm:$0xff] %v310
                %v312 = vld [vmem:[%s148 + $0x4c8] sm:$0xff]
                %313 = vst [vmem:[%s149 + $0x288] sm:$0xff] %v312
                %v314 = vld [vmem:[%s148 + $0x4d0] sm:$0xff]
                %315 = vst [vmem:[%s149 + $0x290] sm:$0xff] %v314
                %v316 = vld [vmem:[%s148 + $0x4d8] sm:$0xff]
                %317 = vst [vmem:[%s149 + $0x298] sm:$0xff] %v316
                %v318 = vld [vmem:[%s148 + $0x4e0] sm:$0xff]
                %319 = vst [vmem:[%s149 + $0x2a0] sm:$0xff] %v318
                %v320 = vld [vmem:[%s148 + $0x4e8] sm:$0xff]
                %321 = vst [vmem:[%s149 + $0x2a8] sm:$0xff] %v320
                %v322 = vld [vmem:[%s148 + $0x4f0] sm:$0xff]
                %323 = vst [vmem:[%s149 + $0x2b0] sm:$0xff] %v322
                %v324 = vld [vmem:[%s148 + $0x4f8] sm:$0xff]
                %325 = vst [vmem:[%s149 + $0x2b8] sm:$0xff] %v324
                %v326 = vld [vmem:[%s148 + $0x500] sm:$0xff]
                %327 = vst [vmem:[%s149 + $0x2c0] sm:$0xff] %v326
                %v328 = vld [vmem:[%s148 + $0x508] sm:$0xff]
                %329 = vst [vmem:[%s149 + $0x2c8] sm:$0xff] %v328
              $region41: #{audio_cnn_forward.3} parent=35 // loop_footer
                %s147 = sadd.s32 1, %s143
              $region42: #{audio_cnn_forward.3} parent=35 // loop_footer_branch
                %142 = sbr.rel target = $region38
              $region43: #{audio_cnn_forward.3} parent=35 // loop_exit
                _
            $region36: #{audio_cnn_forward.3} parent=31 // pred_fallthru
              _
            // Predicated region
            $region44: #{audio_cnn_forward.3} parent=31 // pred_check
              _
            $region45: #{audio_cnn_forward.3} parent=31 // pred_check_branch
              %331 = sbr.rel target = $region47
            $region46: #{audio_cnn_forward.3} parent=31 // pred_region
              _
            $region47: #{audio_cnn_forward.3} parent=31 // pred_fallthru
              _
          $region32: #{audio_cnn_forward.3} parent=27 // pred_fallthru
            _
          %332 = vnop
        $region28: #{audio_cnn_forward.3} parent=23 // pred_fallthru
          _
      $region24: #{audio_cnn_forward.3} parent=5 // pred_fallthru
        _
      %p333 = scmp.le.s32.totalorder 1, %s9
      %p334 = scmp.lt.s32.totalorder %s9, 3
      %p335 = pnand %p333, %p334
      %p336 = pneg %p335
      // Predicated region
      $region48: #{audio_cnn_forward.3} parent=5 // pred_check
        _
      $region49: #{audio_cnn_forward.3} parent=5 // pred_check_branch
        %338 = sbr.rel (%p335) target = $region51
      $region50: #{audio_cnn_forward.3} parent=5 // pred_region
        %s339 = ssub.s32 %s9, 1
        %s340 = sand.u32 %s22, 1
        %s341 = sand.u32 %s22, 1
        %s342 = smul.addr %s341, 720
        %s343 = scalar_lea.vmem [#allocation2], %s342
        // Predicated region
        $region52: #{audio_cnn_forward.3} parent=50 // pred_check
          %p344 = pneg %p35
        $region53: #{audio_cnn_forward.3} parent=50 // pred_check_branch
          %346 = sbr.rel (%p344) target = $region55
        $region54: #{audio_cnn_forward.3} parent=50 // pred_region
          _
        $region55: #{audio_cnn_forward.3} parent=50 // pred_fallthru
          _
        %s347 = sand.u32 %s22, 1
        %s348 = sand.u32 %s22, 1
        %s349 = smul.addr %s348, 720
        %s350 = scalar_lea.vmem [#allocation2], %s349
        %p351 = pneg %p35
        %p352 = pneg %p32
        %p353 = pneg %p56
        %p354 = pneg %p53
        %p355 = pneg %p77
        %p356 = pneg %p74
        %p357 = pneg %p103
        %p358 = pneg %p100
        %s359 = smul.u32 36, %s14
        %p360 = scmp.lt.s32.totalorder %s359, 71
        %s361 = scalar_select %p360, %s359, 71
        %s362 = smul.addr %s361, 4
        %s363 = scalar_lea.vmem %s3, %s362
        %s364 = smul.u32 36, %s14
        %s365 = smul.u32 36, %s14
        %p366 = scmp.lt.s32.totalorder %s365, 71
        %s367 = scalar_select %p366, %s365, 71
        %s368 = smul.addr %s367, 4
        %s369 = scalar_lea.vmem %s3, %s368
        %s370 = smul.u32 36, %s14
        %v372 = vld [vmem:[%s343] sm:$0xff]
        %v373 = vld [vmem:[%s343 + $0x8] sm:$0xff]
        %v374 = vld [vmem:[%s343 + $0x10] sm:$0xff]
        %v375 = vld [vmem:[%s343 + $0x18] sm:$0xff]
        %v376 = vld [vmem:[%s343 + $0x20] sm:$0xff]
        %v377 = vld [vmem:[%s343 + $0x28] sm:$0xff]
        %v378 = vld [vmem:[%s343 + $0x30] sm:$0xff]
        %v379 = vld [vmem:[%s343 + $0x38] sm:$0xff]
        %v380 = vld [vmem:[%s343 + $0x40] sm:$0xff]
        %v381 = vld [vmem:[%s343 + $0x48] sm:$0xff]
        %v382 = vld [vmem:[%s343 + $0x50] sm:$0xff]
        %v383 = vld [vmem:[%s343 + $0x58] sm:$0xff]
        %v384 = vld [vmem:[%s343 + $0x60] sm:$0xff]
        %v385 = vld [vmem:[%s343 + $0x68] sm:$0xff]
        %v386 = vld [vmem:[%s343 + $0x70] sm:$0xff]
        %v387 = vld [vmem:[%s343 + $0x78] sm:$0xff]
        %v388 = vld [vmem:[%s343 + $0x80] sm:$0xff]
        %v389 = vld [vmem:[%s343 + $0x88] sm:$0xff]
        %v390 = vld [vmem:[%s343 + $0x90] sm:$0xff]
        %v391 = vld [vmem:[%s343 + $0x98] sm:$0xff]
        %v392 = vld [vmem:[%s343 + $0xa0] sm:$0xff]
        %v393 = vld [vmem:[%s343 + $0xa8] sm:$0xff]
        %v394 = vld [vmem:[%s343 + $0xb0] sm:$0xff]
        %v395 = vld [vmem:[%s343 + $0xb8] sm:$0xff]
        %v396 = vld [vmem:[%s343 + $0xc0] sm:$0xff]
        %v397 = vld [vmem:[%s343 + $0xc8] sm:$0xff]
        %v398 = vld [vmem:[%s343 + $0xd0] sm:$0xff]
        %v399 = vld [vmem:[%s343 + $0xd8] sm:$0xff]
        %v400 = vld [vmem:[%s343 + $0xe0] sm:$0xff]
        %v401 = vld [vmem:[%s343 + $0xe8] sm:$0xff]
        %v402 = vld [vmem:[%s343 + $0xf0] sm:$0xff]
        %v403 = vld [vmem:[%s343 + $0xf8] sm:$0xff]
        %v404 = vld [vmem:[%s343 + $0x100] sm:$0xff]
        %v405 = vld [vmem:[%s343 + $0x108] sm:$0xff]
        %v406 = vld [vmem:[%s343 + $0x110] sm:$0xff]
        %v407 = vld [vmem:[%s343 + $0x118] sm:$0xff]
        %v408 = vld [vmem:[%s343 + $0x120] sm:$0xff]
        %v409 = vld [vmem:[%s343 + $0x128] sm:$0xff]
        %v410 = vld [vmem:[%s343 + $0x130] sm:$0xff]
        %v411 = vld [vmem:[%s343 + $0x138] sm:$0xff]
        %v412 = vld [vmem:[%s343 + $0x140] sm:$0xff]
        %v413 = vld [vmem:[%s343 + $0x148] sm:$0xff]
        %v414 = vld [vmem:[%s343 + $0x150] sm:$0xff]
        %v415 = vld [vmem:[%s343 + $0x158] sm:$0xff]
        %v416 = vld [vmem:[%s343 + $0x160] sm:$0xff]
        %v417 = vld [vmem:[%s343 + $0x168] sm:$0xff]
        %v418 = vld [vmem:[%s343 + $0x170] sm:$0xff]
        %v419 = vld [vmem:[%s343 + $0x178] sm:$0xff]
        %v420 = vld [vmem:[%s343 + $0x180] sm:$0xff]
        %v421 = vld [vmem:[%s343 + $0x188] sm:$0xff]
        %v422 = vld [vmem:[%s343 + $0x190] sm:$0xff]
        %v423 = vld [vmem:[%s343 + $0x198] sm:$0xff]
        %v424 = vld [vmem:[%s343 + $0x1a0] sm:$0xff]
        %v425 = vld [vmem:[%s343 + $0x1a8] sm:$0xff]
        %v426 = vld [vmem:[%s343 + $0x1b0] sm:$0xff]
        %v427 = vld [vmem:[%s343 + $0x1b8] sm:$0xff]
        %v428 = vld [vmem:[%s343 + $0x1c0] sm:$0xff]
        %v429 = vld [vmem:[%s343 + $0x1c8] sm:$0xff]
        %v430 = vld [vmem:[%s343 + $0x1d0] sm:$0xff]
        %v431 = vld [vmem:[%s343 + $0x1d8] sm:$0xff]
        %v432 = vld [vmem:[%s343 + $0x1e0] sm:$0xff]
        %v433 = vld [vmem:[%s343 + $0x1e8] sm:$0xff]
        %v434 = vld [vmem:[%s343 + $0x1f0] sm:$0xff]
        %v435 = vld [vmem:[%s343 + $0x1f8] sm:$0xff]
        %v436 = vld [vmem:[%s343 + $0x200] sm:$0xff]
        %v437 = vld [vmem:[%s343 + $0x208] sm:$0xff]
        %v438 = vld [vmem:[%s343 + $0x210] sm:$0xff]
        %v439 = vld [vmem:[%s343 + $0x218] sm:$0xff]
        %v440 = vld [vmem:[%s343 + $0x220] sm:$0xff]
        %v441 = vld [vmem:[%s343 + $0x228] sm:$0xff]
        %v442 = vld [vmem:[%s343 + $0x230] sm:$0xff]
        %v443 = vld [vmem:[%s343 + $0x238] sm:$0xff]
        %v444 = vld [vmem:[%s343 + $0x240] sm:$0x33]
        %v445 = vld [vmem:[%s343 + $0x248] sm:$0x33]
        %v446 = vld [vmem:[%s343 + $0x250] sm:$0x33]
        %v447 = vld [vmem:[%s343 + $0x258] sm:$0x33]
        %v448 = vld [vmem:[%s343 + $0x260] sm:$0x33]
        %v449 = vld [vmem:[%s343 + $0x268] sm:$0x33]
        %v450 = vld [vmem:[%s343 + $0x270] sm:$0x33]
        %v451 = vld [vmem:[%s343 + $0x278] sm:$0x33]
        %v452 = vld [vmem:[%s343 + $0x280] sm:$0x33]
        %v453 = vld [vmem:[%s343 + $0x288] sm:$0x33]
        %v454 = vld [vmem:[%s343 + $0x290] sm:$0x33]
        %v455 = vld [vmem:[%s343 + $0x298] sm:$0x33]
        %v456 = vld [vmem:[%s343 + $0x2a0] sm:$0x33]
        %v457 = vld [vmem:[%s343 + $0x2a8] sm:$0x33]
        %v458 = vld [vmem:[%s343 + $0x2b0] sm:$0x33]
        %v459 = vld [vmem:[%s343 + $0x2b8] sm:$0x33]
        %v460 = vld [vmem:[%s343 + $0x2c0] sm:$0x33]
        %v461 = vld [vmem:[%s343 + $0x2c8] sm:$0x33]
        %v462 = vld [vmem:[%s1] sm:$0x7]
        %v553 = vunpack.c.l.b16 %v372
        %v554 = vunpack.c.h.b16 %v372
        %v555 = vunpack.c.l.b16 %v373
        %v556 = vunpack.c.h.b16 %v373
        %v557 = vunpack.c.l.b16 %v374
        %v558 = vunpack.c.h.b16 %v374
        %v559 = vunpack.c.l.b16 %v375
        %v560 = vunpack.c.h.b16 %v375
        %v561 = vunpack.c.l.b16 %v376
        %v562 = vunpack.c.h.b16 %v376
        %v563 = vunpack.c.l.b16 %v377
        %v564 = vunpack.c.h.b16 %v377
        %v565 = vunpack.c.l.b16 %v378
        %v566 = vunpack.c.h.b16 %v378
        %v567 = vunpack.c.l.b16 %v379
        %v568 = vunpack.c.h.b16 %v379
        %v569 = vunpack.c.l.b16 %v380
        %v570 = vunpack.c.h.b16 %v380
        %v571 = vunpack.c.l.b16 %v381
        %v572 = vunpack.c.h.b16 %v381
        %v573 = vunpack.c.l.b16 %v382
        %v574 = vunpack.c.h.b16 %v382
        %v575 = vunpack.c.l.b16 %v383
        %v576 = vunpack.c.h.b16 %v383
        %v577 = vunpack.c.l.b16 %v384
        %v578 = vunpack.c.h.b16 %v384
        %v579 = vunpack.c.l.b16 %v385
        %v580 = vunpack.c.h.b16 %v385
        %v581 = vunpack.c.l.b16 %v386
        %v582 = vunpack.c.h.b16 %v386
        %v583 = vunpack.c.l.b16 %v387
        %v584 = vunpack.c.h.b16 %v387
        %v585 = vunpack.c.l.b16 %v388
        %v586 = vunpack.c.h.b16 %v388
        %v587 = vunpack.c.l.b16 %v389
        %v588 = vunpack.c.h.b16 %v389
        %v589 = vunpack.c.l.b16 %v390
        %v590 = vunpack.c.h.b16 %v390
        %v591 = vunpack.c.l.b16 %v391
        %v592 = vunpack.c.h.b16 %v391
        %v593 = vunpack.c.l.b16 %v392
        %v594 = vunpack.c.h.b16 %v392
        %v595 = vunpack.c.l.b16 %v393
        %v596 = vunpack.c.h.b16 %v393
        %v597 = vunpack.c.l.b16 %v394
        %v598 = vunpack.c.h.b16 %v394
        %v599 = vunpack.c.l.b16 %v395
        %v600 = vunpack.c.h.b16 %v395
        %v601 = vunpack.c.l.b16 %v396
        %v602 = vunpack.c.h.b16 %v396
        %v603 = vunpack.c.l.b16 %v397
        %v604 = vunpack.c.h.b16 %v397
        %v605 = vunpack.c.l.b16 %v398
        %v606 = vunpack.c.h.b16 %v398
        %v607 = vunpack.c.l.b16 %v399
        %v608 = vunpack.c.h.b16 %v399
        %v609 = vunpack.c.l.b16 %v400
        %v610 = vunpack.c.h.b16 %v400
        %v611 = vunpack.c.l.b16 %v401
        %v612 = vunpack.c.h.b16 %v401
        %v613 = vunpack.c.l.b16 %v402
        %v614 = vunpack.c.h.b16 %v402
        %v615 = vunpack.c.l.b16 %v403
        %v616 = vunpack.c.h.b16 %v403
        %v617 = vunpack.c.l.b16 %v404
        %v618 = vunpack.c.h.b16 %v404
        %v619 = vunpack.c.l.b16 %v405
        %v620 = vunpack.c.h.b16 %v405
        %v621 = vunpack.c.l.b16 %v406
        %v622 = vunpack.c.h.b16 %v406
        %v623 = vunpack.c.l.b16 %v407
        %v624 = vunpack.c.h.b16 %v407
        %v625 = vunpack.c.l.b16 %v408
        %v626 = vunpack.c.h.b16 %v408
        %v627 = vunpack.c.l.b16 %v409
        %v628 = vunpack.c.h.b16 %v409
        %v629 = vunpack.c.l.b16 %v410
        %v630 = vunpack.c.h.b16 %v410
        %v631 = vunpack.c.l.b16 %v411
        %v632 = vunpack.c.h.b16 %v411
        %v633 = vunpack.c.l.b16 %v412
        %v634 = vunpack.c.h.b16 %v412
        %v635 = vunpack.c.l.b16 %v413
        %v636 = vunpack.c.h.b16 %v413
        %v637 = vunpack.c.l.b16 %v414
        %v638 = vunpack.c.h.b16 %v414
        %v639 = vunpack.c.l.b16 %v415
        %v640 = vunpack.c.h.b16 %v415
        %v641 = vunpack.c.l.b16 %v416
        %v642 = vunpack.c.h.b16 %v416
        %v643 = vunpack.c.l.b16 %v417
        %v644 = vunpack.c.h.b16 %v417
        %v645 = vunpack.c.l.b16 %v418
        %v646 = vunpack.c.h.b16 %v418
        %v647 = vunpack.c.l.b16 %v419
        %v648 = vunpack.c.h.b16 %v419
        %v649 = vunpack.c.l.b16 %v420
        %v650 = vunpack.c.h.b16 %v420
        %v651 = vunpack.c.l.b16 %v421
        %v652 = vunpack.c.h.b16 %v421
        %v653 = vunpack.c.l.b16 %v422
        %v654 = vunpack.c.h.b16 %v422
        %v655 = vunpack.c.l.b16 %v423
        %v656 = vunpack.c.h.b16 %v423
        %v657 = vunpack.c.l.b16 %v424
        %v658 = vunpack.c.h.b16 %v424
        %v659 = vunpack.c.l.b16 %v425
        %v660 = vunpack.c.h.b16 %v425
        %v661 = vunpack.c.l.b16 %v426
        %v662 = vunpack.c.h.b16 %v426
        %v663 = vunpack.c.l.b16 %v427
        %v664 = vunpack.c.h.b16 %v427
        %v665 = vunpack.c.l.b16 %v428
        %v666 = vunpack.c.h.b16 %v428
        %v667 = vunpack.c.l.b16 %v429
        %v668 = vunpack.c.h.b16 %v429
        %v669 = vunpack.c.l.b16 %v430
        %v670 = vunpack.c.h.b16 %v430
        %v671 = vunpack.c.l.b16 %v431
        %v672 = vunpack.c.h.b16 %v431
        %v673 = vunpack.c.l.b16 %v432
        %v674 = vunpack.c.h.b16 %v432
        %v675 = vunpack.c.l.b16 %v433
        %v676 = vunpack.c.h.b16 %v433
        %v677 = vunpack.c.l.b16 %v434
        %v678 = vunpack.c.h.b16 %v434
        %v679 = vunpack.c.l.b16 %v435
        %v680 = vunpack.c.h.b16 %v435
        %v681 = vunpack.c.l.b16 %v436
        %v682 = vunpack.c.h.b16 %v436
        %v683 = vunpack.c.l.b16 %v437
        %v684 = vunpack.c.h.b16 %v437
        %v685 = vunpack.c.l.b16 %v438
        %v686 = vunpack.c.h.b16 %v438
        %v687 = vunpack.c.l.b16 %v439
        %v688 = vunpack.c.h.b16 %v439
        %v689 = vunpack.c.l.b16 %v440
        %v690 = vunpack.c.h.b16 %v440
        %v691 = vunpack.c.l.b16 %v441
        %v692 = vunpack.c.h.b16 %v441
        %v693 = vunpack.c.l.b16 %v442
        %v694 = vunpack.c.h.b16 %v442
        %v695 = vunpack.c.l.b16 %v443
        %v696 = vunpack.c.h.b16 %v443
        %v697 = vunpack.c.l.b16 %v444
        %v698 = vunpack.c.h.b16 %v444
        %v699 = vunpack.c.l.b16 %v445
        %v700 = vunpack.c.h.b16 %v445
        %v701 = vunpack.c.l.b16 %v446
        %v702 = vunpack.c.h.b16 %v446
        %v703 = vunpack.c.l.b16 %v447
        %v704 = vunpack.c.h.b16 %v447
        %v705 = vunpack.c.l.b16 %v448
        %v706 = vunpack.c.h.b16 %v448
        %v707 = vunpack.c.l.b16 %v449
        %v708 = vunpack.c.h.b16 %v449
        %v709 = vunpack.c.l.b16 %v450
        %v710 = vunpack.c.h.b16 %v450
        %v711 = vunpack.c.l.b16 %v451
        %v712 = vunpack.c.h.b16 %v451
        %v713 = vunpack.c.l.b16 %v452
        %v714 = vunpack.c.h.b16 %v452
        %v715 = vunpack.c.l.b16 %v453
        %v716 = vunpack.c.h.b16 %v453
        %v717 = vunpack.c.l.b16 %v454
        %v718 = vunpack.c.h.b16 %v454
        %v719 = vunpack.c.l.b16 %v455
        %v720 = vunpack.c.h.b16 %v455
        %v721 = vunpack.c.l.b16 %v456
        %v722 = vunpack.c.h.b16 %v456
        %v723 = vunpack.c.l.b16 %v457
        %v724 = vunpack.c.h.b16 %v457
        %v725 = vunpack.c.l.b16 %v458
        %v726 = vunpack.c.h.b16 %v458
        %v727 = vunpack.c.l.b16 %v459
        %v728 = vunpack.c.h.b16 %v459
        %v729 = vunpack.c.l.b16 %v460
        %v730 = vunpack.c.h.b16 %v460
        %v731 = vunpack.c.l.b16 %v461
        %v732 = vunpack.c.h.b16 %v461
        %v733 = vpack.c.b16 %v589, %v553
        %v734 = vpack.c.b16 %v590, %v554
        %v735 = vpack.c.b16 %v591, %v555
        %v736 = vpack.c.b16 %v592, %v556
        %v737 = vpack.c.b16 %v593, %v557
        %v738 = vpack.c.b16 %v594, %v558
        %v739 = vpack.c.b16 %v595, %v559
        %v740 = vpack.c.b16 %v596, %v560
        %v741 = vpack.c.b16 %v597, %v561
        %v742 = vpack.c.b16 %v598, %v562
        %v743 = vpack.c.b16 %v599, %v563
        %v744 = vpack.c.b16 %v600, %v564
        %v745 = vpack.c.b16 %v601, %v565
        %v746 = vpack.c.b16 %v602, %v566
        %v747 = vpack.c.b16 %v603, %v567
        %v748 = vpack.c.b16 %v604, %v568
        %v749 = vpack.c.b16 %v605, %v569
        %v750 = vpack.c.b16 %v606, %v570
        %v751 = vpack.c.b16 %v607, %v571
        %v752 = vpack.c.b16 %v608, %v572
        %v753 = vpack.c.b16 %v609, %v573
        %v754 = vpack.c.b16 %v610, %v574
        %v755 = vpack.c.b16 %v611, %v575
        %v756 = vpack.c.b16 %v612, %v576
        %v757 = vpack.c.b16 %v613, %v577
        %v758 = vpack.c.b16 %v614, %v578
        %v759 = vpack.c.b16 %v615, %v579
        %v760 = vpack.c.b16 %v616, %v580
        %v761 = vpack.c.b16 %v617, %v581
        %v762 = vpack.c.b16 %v618, %v582
        %v763 = vpack.c.b16 %v619, %v583
        %v764 = vpack.c.b16 %v620, %v584
        %v765 = vpack.c.b16 %v621, %v585
        %v766 = vpack.c.b16 %v622, %v586
        %v767 = vpack.c.b16 %v623, %v587
        %v768 = vpack.c.b16 %v624, %v588
        %v769 = vpack.c.b16 %v661, %v625
        %v770 = vpack.c.b16 %v662, %v626
        %v771 = vpack.c.b16 %v663, %v627
        %v772 = vpack.c.b16 %v664, %v628
        %v773 = vpack.c.b16 %v665, %v629
        %v774 = vpack.c.b16 %v666, %v630
        %v775 = vpack.c.b16 %v667, %v631
        %v776 = vpack.c.b16 %v668, %v632
        %v777 = vpack.c.b16 %v669, %v633
        %v778 = vpack.c.b16 %v670, %v634
        %v779 = vpack.c.b16 %v671, %v635
        %v780 = vpack.c.b16 %v672, %v636
        %v781 = vpack.c.b16 %v673, %v637
        %v782 = vpack.c.b16 %v674, %v638
        %v783 = vpack.c.b16 %v675, %v639
        %v784 = vpack.c.b16 %v676, %v640
        %v785 = vpack.c.b16 %v677, %v641
        %v786 = vpack.c.b16 %v678, %v642
        %v787 = vpack.c.b16 %v679, %v643
        %v788 = vpack.c.b16 %v680, %v644
        %v789 = vpack.c.b16 %v681, %v645
        %v790 = vpack.c.b16 %v682, %v646
        %v791 = vpack.c.b16 %v683, %v647
        %v792 = vpack.c.b16 %v684, %v648
        %v793 = vpack.c.b16 %v685, %v649
        %v794 = vpack.c.b16 %v686, %v650
        %v795 = vpack.c.b16 %v687, %v651
        %v796 = vpack.c.b16 %v688, %v652
        %v797 = vpack.c.b16 %v689, %v653
        %v798 = vpack.c.b16 %v690, %v654
        %v799 = vpack.c.b16 %v691, %v655
        %v800 = vpack.c.b16 %v692, %v656
        %v801 = vpack.c.b16 %v693, %v657
        %v802 = vpack.c.b16 %v694, %v658
        %v803 = vpack.c.b16 %v695, %v659
        %v804 = vpack.c.b16 %v696, %v660
        %v805 = vpack.c.b16 %v697, %v697
        %v806 = vpack.c.b16 %v698, %v698
        %v807 = vpack.c.b16 %v699, %v699
        %v808 = vpack.c.b16 %v700, %v700
        %v809 = vpack.c.b16 %v701, %v701
        %v810 = vpack.c.b16 %v702, %v702
        %v811 = vpack.c.b16 %v703, %v703
        %v812 = vpack.c.b16 %v704, %v704
        %v813 = vpack.c.b16 %v705, %v705
        %v814 = vpack.c.b16 %v706, %v706
        %v815 = vpack.c.b16 %v707, %v707
        %v816 = vpack.c.b16 %v708, %v708
        %v817 = vpack.c.b16 %v709, %v709
        %v818 = vpack.c.b16 %v710, %v710
        %v819 = vpack.c.b16 %v711, %v711
        %v820 = vpack.c.b16 %v712, %v712
        %v821 = vpack.c.b16 %v713, %v713
        %v822 = vpack.c.b16 %v714, %v714
        %v823 = vpack.c.b16 %v715, %v715
        %v824 = vpack.c.b16 %v716, %v716
        %v825 = vpack.c.b16 %v717, %v717
        %v826 = vpack.c.b16 %v718, %v718
        %v827 = vpack.c.b16 %v719, %v719
        %v828 = vpack.c.b16 %v720, %v720
        %v829 = vpack.c.b16 %v721, %v721
        %v830 = vpack.c.b16 %v722, %v722
        %v831 = vpack.c.b16 %v723, %v723
        %v832 = vpack.c.b16 %v724, %v724
        %v833 = vpack.c.b16 %v725, %v725
        %v834 = vpack.c.b16 %v726, %v726
        %v835 = vpack.c.b16 %v727, %v727
        %v836 = vpack.c.b16 %v728, %v728
        %v837 = vpack.c.b16 %v729, %v729
        %v838 = vpack.c.b16 %v730, %v730
        %v839 = vpack.c.b16 %v731, %v731
        %v840 = vpack.c.b16 %v732, %v732
        %vm913 = vcmask 293888
        %v915 = vsel %vm913, %v462, 0
        %vm917 = vcmask 1041408
        %v919 = vsel %vm917, %v805, 0
        %v922 = vsel %vm917, %v806, 0
        %v925 = vsel %vm917, %v807, 0
        %v928 = vsel %vm917, %v808, 0
        %v931 = vsel %vm917, %v809, 0
        %v934 = vsel %vm917, %v810, 0
        %v937 = vsel %vm917, %v811, 0
        %v940 = vsel %vm917, %v812, 0
        %v943 = vsel %vm917, %v813, 0
        %v946 = vsel %vm917, %v814, 0
        %v949 = vsel %vm917, %v815, 0
        %v952 = vsel %vm917, %v816, 0
        %v955 = vsel %vm917, %v817, 0
        %v958 = vsel %vm917, %v818, 0
        %v961 = vsel %vm917, %v819, 0
        %v964 = vsel %vm917, %v820, 0
        %v967 = vsel %vm917, %v821, 0
        %v970 = vsel %vm917, %v822, 0
        %v973 = vsel %vm917, %v823, 0
        %v976 = vsel %vm917, %v824, 0
        %v979 = vsel %vm917, %v825, 0
        %v982 = vsel %vm917, %v826, 0
        %v985 = vsel %vm917, %v827, 0
        %v988 = vsel %vm917, %v828, 0
        %v991 = vsel %vm917, %v829, 0
        %v994 = vsel %vm917, %v830, 0
        %v997 = vsel %vm917, %v831, 0
        %v1000 = vsel %vm917, %v832, 0
        %v1003 = vsel %vm917, %v833, 0
        %v1006 = vsel %vm917, %v834, 0
        %v1009 = vsel %vm917, %v835, 0
        %v1012 = vsel %vm917, %v836, 0
        %v1015 = vsel %vm917, %v837, 0
        %v1018 = vsel %vm917, %v838, 0
        %v1021 = vsel %vm917, %v839, 0
        %v1024 = vsel %vm917, %v840, 0
        %1026 = vmatprep.subr.bf16.mxu0 %v734
        %1027 = vmatpush1.bf16.msra.mxu0 %v733
        %1028 = vmatprep.subr.bf16.mxu0 %v770
        %1029 = vmatpush1.bf16.msra.mxu0 %v769
        %1030 = vmatprep.subr.bf16.mxu0 %v922
        %1031 = vmatpush1.bf16.msra.mxu0 %v919
        %1032 = vmatprep.subr.bf16.mxu0 0
        %1033 = vmatpush1.bf16.msra.mxu0 0
        %1034 = vmatprep.subr.bf16.mxu0 0
        %1035 = vmatpush1.bf16.msra.mxu0 0
        %1036 = vmatprep.subr.bf16.mxu0 0
        %1037 = vmatpush1.bf16.msra.mxu0 0
        %1038 = vmatprep.subr.bf16.mxu0 0
        %1039 = vmatpush1.bf16.msra.mxu0 0
        %1040 = vmatprep.subr.bf16.mxu0 0
        %1041 = vmatpush1.bf16.msra.mxu0 0
        %1042 = vmatprep.subr.bf16.mxu0 0
        %1043 = vmatpush1.bf16.msra.mxu0 0
        %1044 = vmatprep.subr.bf16.mxu0 0
        %1045 = vmatpush1.bf16.msra.mxu0 0
        %1046 = vmatprep.subr.bf16.mxu0 0
        %1047 = vmatpush1.bf16.msra.mxu0 0
        %1048 = vmatprep.subr.bf16.mxu0 0
        %1049 = vmatpush1.bf16.msra.mxu0 0
        %1050 = vmatprep.subr.bf16.mxu0 0
        %1051 = vmatpush1.bf16.msra.mxu0 0
        %1052 = vmatprep.subr.bf16.mxu0 0
        %1053 = vmatpush1.bf16.msra.mxu0 0
        %1054 = vmatprep.subr.bf16.mxu0 0
        %1055 = vmatpush1.bf16.msra.mxu0 0
        %1056 = vmatprep.subr.bf16.mxu0 0
        %1057 = vmatpush1.bf16.msra.mxu0 0
        %1058 = vmatprep.mubr.bf16.mxu0 0
        %1059 = vmatmul.mubr.bf16.gmra.mrb[0].mxu0 %v915
        %v1060 = vpop.f32.mrb[0].mxu0
        %v1061 = vadd.f32 0.0, %v1060
        %v1062 = vpop.f32.mrb[0].mxu0
        %v1063 = vadd.f32 0.0, %v1062
        %v1064 = vpop.f32.mrb[0].mxu0
        %v1065 = vpop.f32.mrb[0].mxu0
        %1066 = vdwg.mxu0
        %1067 = vmatprep.subr.bf16.mxu0 %v736
        %1068 = vmatpush1.bf16.msra.mxu0 %v735
        %1069 = vmatprep.subr.bf16.mxu0 %v772
        %1070 = vmatpush1.bf16.msra.mxu0 %v771
        %1071 = vmatprep.subr.bf16.mxu0 %v928
        %1072 = vmatpush1.bf16.msra.mxu0 %v925
        %1073 = vmatprep.subr.bf16.mxu0 0
        %1074 = vmatpush1.bf16.msra.mxu0 0
        %1075 = vmatprep.subr.bf16.mxu0 0
        %1076 = vmatpush1.bf16.msra.mxu0 0
        %1077 = vmatprep.subr.bf16.mxu0 0
        %1078 = vmatpush1.bf16.msra.mxu0 0
        %1079 = vmatprep.subr.bf16.mxu0 0
        %1080 = vmatpush1.bf16.msra.mxu0 0
        %1081 = vmatprep.subr.bf16.mxu0 0
        %1082 = vmatpush1.bf16.msra.mxu0 0
        %1083 = vmatprep.subr.bf16.mxu0 0
        %1084 = vmatpush1.bf16.msra.mxu0 0
        %1085 = vmatprep.subr.bf16.mxu0 0
        %1086 = vmatpush1.bf16.msra.mxu0 0
        %1087 = vmatprep.subr.bf16.mxu0 0
        %1088 = vmatpush1.bf16.msra.mxu0 0
        %1089 = vmatprep.subr.bf16.mxu0 0
        %1090 = vmatpush1.bf16.msra.mxu0 0
        %1091 = vmatprep.subr.bf16.mxu0 0
        %1092 = vmatpush1.bf16.msra.mxu0 0
        %1093 = vmatprep.subr.bf16.mxu0 0
        %1094 = vmatpush1.bf16.msra.mxu0 0
        %1095 = vmatprep.subr.bf16.mxu0 0
        %1096 = vmatpush1.bf16.msra.mxu0 0
        %1097 = vmatprep.subr.bf16.mxu0 0
        %1098 = vmatpush1.bf16.msra.mxu0 0
        %1099 = vmatprep.mubr.bf16.mxu0 0
        %1100 = vmatmul.mubr.bf16.gmra.mrb[0].mxu0 %v915
        %v1101 = vpop.f32.mrb[0].mxu0
        %v1102 = vadd.f32 0.0, %v1101
        %v1103 = vpop.f32.mrb[0].mxu0
        %v1104 = vadd.f32 0.0, %v1103
        %v1105 = vpop.f32.mrb[0].mxu0
        %v1106 = vpop.f32.mrb[0].mxu0
        %1107 = vdwg.mxu0
        %1108 = vmatprep.subr.bf16.mxu0 %v738
        %1109 = vmatpush1.bf16.msra.mxu0 %v737
        %1110 = vmatprep.subr.bf16.mxu0 %v774
        %1111 = vmatpush1.bf16.msra.mxu0 %v773
        %1112 = vmatprep.subr.bf16.mxu0 %v934
        %1113 = vmatpush1.bf16.msra.mxu0 %v931
        %1114 = vmatprep.subr.bf16.mxu0 0
        %1115 = vmatpush1.bf16.msra.mxu0 0
        %1116 = vmatprep.subr.bf16.mxu0 0
        %1117 = vmatpush1.bf16.msra.mxu0 0
        %1118 = vmatprep.subr.bf16.mxu0 0
        %1119 = vmatpush1.bf16.msra.mxu0 0
        %1120 = vmatprep.subr.bf16.mxu0 0
        %1121 = vmatpush1.bf16.msra.mxu0 0
        %1122 = vmatprep.subr.bf16.mxu0 0
        %1123 = vmatpush1.bf16.msra.mxu0 0
        %1124 = vmatprep.subr.bf16.mxu0 0
        %1125 = vmatpush1.bf16.msra.mxu0 0
        %1126 = vmatprep.subr.bf16.mxu0 0
        %1127 = vmatpush1.bf16.msra.mxu0 0
        %1128 = vmatprep.subr.bf16.mxu0 0
        %1129 = vmatpush1.bf16.msra.mxu0 0
        %1130 = vmatprep.subr.bf16.mxu0 0
        %1131 = vmatpush1.bf16.msra.mxu0 0
        %1132 = vmatprep.subr.bf16.mxu0 0
        %1133 = vmatpush1.bf16.msra.mxu0 0
        %1134 = vmatprep.subr.bf16.mxu0 0
        %1135 = vmatpush1.bf16.msra.mxu0 0
        %1136 = vmatprep.subr.bf16.mxu0 0
        %1137 = vmatpush1.bf16.msra.mxu0 0
        %1138 = vmatprep.subr.bf16.mxu0 0
        %1139 = vmatpush1.bf16.msra.mxu0 0
        %1140 = vmatprep.mubr.bf16.mxu0 0
        %1141 = vmatmul.mubr.bf16.gmra.mrb[0].mxu0 %v915
        %v1142 = vpop.f32.mrb[0].mxu0
        %v1143 = vadd.f32 0.0, %v1142
        %v1144 = vpop.f32.mrb[0].mxu0
        %v1145 = vadd.f32 0.0, %v1144
        %v1146 = vpop.f32.mrb[0].mxu0
        %v1147 = vpop.f32.mrb[0].mxu0
        %1148 = vdwg.mxu0
        %1149 = vmatprep.subr.bf16.mxu0 %v740
        %1150 = vmatpush1.bf16.msra.mxu0 %v739
        %1151 = vmatprep.subr.bf16.mxu0 %v776
        %1152 = vmatpush1.bf16.msra.mxu0 %v775
        %1153 = vmatprep.subr.bf16.mxu0 %v940
        %1154 = vmatpush1.bf16.msra.mxu0 %v937
        %1155 = vmatprep.subr.bf16.mxu0 0
        %1156 = vmatpush1.bf16.msra.mxu0 0
        %1157 = vmatprep.subr.bf16.mxu0 0
        %1158 = vmatpush1.bf16.msra.mxu0 0
        %1159 = vmatprep.subr.bf16.mxu0 0
        %1160 = vmatpush1.bf16.msra.mxu0 0
        %1161 = vmatprep.subr.bf16.mxu0 0
        %1162 = vmatpush1.bf16.msra.mxu0 0
        %1163 = vmatprep.subr.bf16.mxu0 0
        %1164 = vmatpush1.bf16.msra.mxu0 0
        %1165 = vmatprep.subr.bf16.mxu0 0
        %1166 = vmatpush1.bf16.msra.mxu0 0
        %1167 = vmatprep.subr.bf16.mxu0 0
        %1168 = vmatpush1.bf16.msra.mxu0 0
        %1169 = vmatprep.subr.bf16.mxu0 0
        %1170 = vmatpush1.bf16.msra.mxu0 0
        %1171 = vmatprep.subr.bf16.mxu0 0
        %1172 = vmatpush1.bf16.msra.mxu0 0
        %1173 = vmatprep.subr.bf16.mxu0 0
        %1174 = vmatpush1.bf16.msra.mxu0 0
        %1175 = vmatprep.subr.bf16.mxu0 0
        %1176 = vmatpush1.bf16.msra.mxu0 0
        %1177 = vmatprep.subr.bf16.mxu0 0
        %1178 = vmatpush1.bf16.msra.mxu0 0
        %1179 = vmatprep.subr.bf16.mxu0 0
        %1180 = vmatpush1.bf16.msra.mxu0 0
        %1181 = vmatprep.mubr.bf16.mxu0 0
        %1182 = vmatmul.mubr.bf16.gmra.mrb[0].mxu0 %v915
        %v1183 = vpop.f32.mrb[0].mxu0
        %v1184 = vadd.f32 0.0, %v1183
        %v1185 = vpop.f32.mrb[0].mxu0
        %v1186 = vadd.f32 0.0, %v1185
        %v1187 = vpop.f32.mrb[0].mxu0
        %v1188 = vpop.f32.mrb[0].mxu0
        %1189 = vdwg.mxu0
        %1190 = vmatprep.subr.bf16.mxu0 %v742
        %1191 = vmatpush1.bf16.msra.mxu0 %v741
        %1192 = vmatprep.subr.bf16.mxu0 %v778
        %1193 = vmatpush1.bf16.msra.mxu0 %v777
        %1194 = vmatprep.subr.bf16.mxu0 %v946
        %1195 = vmatpush1.bf16.msra.mxu0 %v943
        %1196 = vmatprep.subr.bf16.mxu0 0
        %1197 = vmatpush1.bf16.msra.mxu0 0
        %1198 = vmatprep.subr.bf16.mxu0 0
        %1199 = vmatpush1.bf16.msra.mxu0 0
        %1200 = vmatprep.subr.bf16.mxu0 0
        %1201 = vmatpush1.bf16.msra.mxu0 0
        %1202 = vmatprep.subr.bf16.mxu0 0
        %1203 = vmatpush1.bf16.msra.mxu0 0
        %1204 = vmatprep.subr.bf16.mxu0 0
        %1205 = vmatpush1.bf16.msra.mxu0 0
        %1206 = vmatprep.subr.bf16.mxu0 0
        %1207 = vmatpush1.bf16.msra.mxu0 0
        %1208 = vmatprep.subr.bf16.mxu0 0
        %1209 = vmatpush1.bf16.msra.mxu0 0
        %1210 = vmatprep.subr.bf16.mxu0 0
        %1211 = vmatpush1.bf16.msra.mxu0 0
        %1212 = vmatprep.subr.bf16.mxu0 0
        %1213 = vmatpush1.bf16.msra.mxu0 0
        %1214 = vmatprep.subr.bf16.mxu0 0
        %1215 = vmatpush1.bf16.msra.mxu0 0
        %1216 = vmatprep.subr.bf16.mxu0 0
        %1217 = vmatpush1.bf16.msra.mxu0 0
        %1218 = vmatprep.subr.bf16.mxu0 0
        %1219 = vmatpush1.bf16.msra.mxu0 0
        %1220 = vmatprep.subr.bf16.mxu0 0
        %1221 = vmatpush1.bf16.msra.mxu0 0
        %1222 = vmatprep.mubr.bf16.mxu0 0
        %1223 = vmatmul.mubr.bf16.gmra.mrb[0].mxu0 %v915
        %v1224 = vpop.f32.mrb[0].mxu0
        %v1225 = vadd.f32 0.0, %v1224
        %v1226 = vpop.f32.mrb[0].mxu0
        %v1227 = vadd.f32 0.0, %v1226
        %v1228 = vpop.f32.mrb[0].mxu0
        %v1229 = vpop.f32.mrb[0].mxu0
        %1230 = vdwg.mxu0
        %1231 = vmatprep.subr.bf16.mxu0 %v744
        %1232 = vmatpush1.bf16.msra.mxu0 %v743
        %1233 = vmatprep.subr.bf16.mxu0 %v780
        %1234 = vmatpush1.bf16.msra.mxu0 %v779
        %1235 = vmatprep.subr.bf16.mxu0 %v952
        %1236 = vmatpush1.bf16.msra.mxu0 %v949
        %1237 = vmatprep.subr.bf16.mxu0 0
        %1238 = vmatpush1.bf16.msra.mxu0 0
        %1239 = vmatprep.subr.bf16.mxu0 0
        %1240 = vmatpush1.bf16.msra.mxu0 0
        %1241 = vmatprep.subr.bf16.mxu0 0
        %1242 = vmatpush1.bf16.msra.mxu0 0
        %1243 = vmatprep.subr.bf16.mxu0 0
        %1244 = vmatpush1.bf16.msra.mxu0 0
        %1245 = vmatprep.subr.bf16.mxu0 0
        %1246 = vmatpush1.bf16.msra.mxu0 0
        %1247 = vmatprep.subr.bf16.mxu0 0
        %1248 = vmatpush1.bf16.msra.mxu0 0
        %1249 = vmatprep.subr.bf16.mxu0 0
        %1250 = vmatpush1.bf16.msra.mxu0 0
        %1251 = vmatprep.subr.bf16.mxu0 0
        %1252 = vmatpush1.bf16.msra.mxu0 0
        %1253 = vmatprep.subr.bf16.mxu0 0
        %1254 = vmatpush1.bf16.msra.mxu0 0
        %1255 = vmatprep.subr.bf16.mxu0 0
        %1256 = vmatpush1.bf16.msra.mxu0 0
        %1257 = vmatprep.subr.bf16.mxu0 0
        %1258 = vmatpush1.bf16.msra.mxu0 0
        %1259 = vmatprep.subr.bf16.mxu0 0
        %1260 = vmatpush1.bf16.msra.mxu0 0
        %1261 = vmatprep.subr.bf16.mxu0 0
        %1262 = vmatpush1.bf16.msra.mxu0 0
        %1263 = vmatprep.mubr.bf16.mxu0 0
        %1264 = vmatmul.mubr.bf16.gmra.mrb[0].mxu0 %v915
        %v1265 = vpop.f32.mrb[0].mxu0
        %v1266 = vadd.f32 0.0, %v1265
        %v1267 = vpop.f32.mrb[0].mxu0
        %v1268 = vadd.f32 0.0, %v1267
        %v1269 = vpop.f32.mrb[0].mxu0
        %v1270 = vpop.f32.mrb[0].mxu0
        %1271 = vdwg.mxu0
        %1272 = vmatprep.subr.bf16.mxu0 %v746
        %1273 = vmatpush1.bf16.msra.mxu0 %v745
        %1274 = vmatprep.subr.bf16.mxu0 %v782
        %1275 = vmatpush1.bf16.msra.mxu0 %v781
        %1276 = vmatprep.subr.bf16.mxu0 %v958
        %1277 = vmatpush1.bf16.msra.mxu0 %v955
        %1278 = vmatprep.subr.bf16.mxu0 0
        %1279 = vmatpush1.bf16.msra.mxu0 0
        %1280 = vmatprep.subr.bf16.mxu0 0
        %1281 = vmatpush1.bf16.msra.mxu0 0
        %1282 = vmatprep.subr.bf16.mxu0 0
        %1283 = vmatpush1.bf16.msra.mxu0 0
        %1284 = vmatprep.subr.bf16.mxu0 0
        %1285 = vmatpush1.bf16.msra.mxu0 0
        %1286 = vmatprep.subr.bf16.mxu0 0
        %1287 = vmatpush1.bf16.msra.mxu0 0
        %1288 = vmatprep.subr.bf16.mxu0 0
        %1289 = vmatpush1.bf16.msra.mxu0 0
        %1290 = vmatprep.subr.bf16.mxu0 0
        %1291 = vmatpush1.bf16.msra.mxu0 0
        %1292 = vmatprep.subr.bf16.mxu0 0
        %1293 = vmatpush1.bf16.msra.mxu0 0
        %1294 = vmatprep.subr.bf16.mxu0 0
        %1295 = vmatpush1.bf16.msra.mxu0 0
        %1296 = vmatprep.subr.bf16.mxu0 0
        %1297 = vmatpush1.bf16.msra.mxu0 0
        %1298 = vmatprep.subr.bf16.mxu0 0
        %1299 = vmatpush1.bf16.msra.mxu0 0
        %1300 = vmatprep.subr.bf16.mxu0 0
        %1301 = vmatpush1.bf16.msra.mxu0 0
        %1302 = vmatprep.subr.bf16.mxu0 0
        %1303 = vmatpush1.bf16.msra.mxu0 0
        %1304 = vmatprep.mubr.bf16.mxu0 0
        %1305 = vmatmul.mubr.bf16.gmra.mrb[0].mxu0 %v915
        %v1306 = vpop.f32.mrb[0].mxu0
        %v1307 = vadd.f32 0.0, %v1306
        %v1308 = vpop.f32.mrb[0].mxu0
        %v1309 = vadd.f32 0.0, %v1308
        %v1310 = vpop.f32.mrb[0].mxu0
        %v1311 = vpop.f32.mrb[0].mxu0
        %1312 = vdwg.mxu0
        %1313 = vmatprep.subr.bf16.mxu0 %v748
        %1314 = vmatpush1.bf16.msra.mxu0 %v747
        %1315 = vmatprep.subr.bf16.mxu0 %v784
        %1316 = vmatpush1.bf16.msra.mxu0 %v783
        %1317 = vmatprep.subr.bf16.mxu0 %v964
        %1318 = vmatpush1.bf16.msra.mxu0 %v961
        %1319 = vmatprep.subr.bf16.mxu0 0
        %1320 = vmatpush1.bf16.msra.mxu0 0
        %1321 = vmatprep.subr.bf16.mxu0 0
        %1322 = vmatpush1.bf16.msra.mxu0 0
        %1323 = vmatprep.subr.bf16.mxu0 0
        %1324 = vmatpush1.bf16.msra.mxu0 0
        %1325 = vmatprep.subr.bf16.mxu0 0
        %1326 = vmatpush1.bf16.msra.mxu0 0
        %1327 = vmatprep.subr.bf16.mxu0 0
        %1328 = vmatpush1.bf16.msra.mxu0 0
        %1329 = vmatprep.subr.bf16.mxu0 0
        %1330 = vmatpush1.bf16.msra.mxu0 0
        %1331 = vmatprep.subr.bf16.mxu0 0
        %1332 = vmatpush1.bf16.msra.mxu0 0
        %1333 = vmatprep.subr.bf16.mxu0 0
        %1334 = vmatpush1.bf16.msra.mxu0 0
        %1335 = vmatprep.subr.bf16.mxu0 0
        %1336 = vmatpush1.bf16.msra.mxu0 0
        %1337 = vmatprep.subr.bf16.mxu0 0
        %1338 = vmatpush1.bf16.msra.mxu0 0
        %1339 = vmatprep.subr.bf16.mxu0 0
        %1340 = vmatpush1.bf16.msra.mxu0 0
        %1341 = vmatprep.subr.bf16.mxu0 0
        %1342 = vmatpush1.bf16.msra.mxu0 0
        %1343 = vmatprep.subr.bf16.mxu0 0
        %1344 = vmatpush1.bf16.msra.mxu0 0
        %1345 = vmatprep.mubr.bf16.mxu0 0
        %1346 = vmatmul.mubr.bf16.gmra.mrb[0].mxu0 %v915
        %v1347 = vpop.f32.mrb[0].mxu0
        %v1348 = vadd.f32 0.0, %v1347
        %v1349 = vpop.f32.mrb[0].mxu0
        %v1350 = vadd.f32 0.0, %v1349
        %v1351 = vpop.f32.mrb[0].mxu0
        %v1352 = vpop.f32.mrb[0].mxu0
        %1353 = vdwg.mxu0
        %1354 = vmatprep.subr.bf16.mxu0 %v750
        %1355 = vmatpush1.bf16.msra.mxu0 %v749
        %1356 = vmatprep.subr.bf16.mxu0 %v786
        %1357 = vmatpush1.bf16.msra.mxu0 %v785
        %1358 = vmatprep.subr.bf16.mxu0 %v970
        %1359 = vmatpush1.bf16.msra.mxu0 %v967
        %1360 = vmatprep.subr.bf16.mxu0 0
        %1361 = vmatpush1.bf16.msra.mxu0 0
        %1362 = vmatprep.subr.bf16.mxu0 0
        %1363 = vmatpush1.bf16.msra.mxu0 0
        %1364 = vmatprep.subr.bf16.mxu0 0
        %1365 = vmatpush1.bf16.msra.mxu0 0
        %1366 = vmatprep.subr.bf16.mxu0 0
        %1367 = vmatpush1.bf16.msra.mxu0 0
        %1368 = vmatprep.subr.bf16.mxu0 0
        %1369 = vmatpush1.bf16.msra.mxu0 0
        %1370 = vmatprep.subr.bf16.mxu0 0
        %1371 = vmatpush1.bf16.msra.mxu0 0
        %1372 = vmatprep.subr.bf16.mxu0 0
        %1373 = vmatpush1.bf16.msra.mxu0 0
        %1374 = vmatprep.subr.bf16.mxu0 0
        %1375 = vmatpush1.bf16.msra.mxu0 0
        %1376 = vmatprep.subr.bf16.mxu0 0
        %1377 = vmatpush1.bf16.msra.mxu0 0
        %1378 = vmatprep.subr.bf16.mxu0 0
        %1379 = vmatpush1.bf16.msra.mxu0 0
        %1380 = vmatprep.subr.bf16.mxu0 0
        %1381 = vmatpush1.bf16.msra.mxu0 0
        %1382 = vmatprep.subr.bf16.mxu0 0
        %1383 = vmatpush1.bf16.msra.mxu0 0
        %1384 = vmatprep.subr.bf16.mxu0 0
        %1385 = vmatpush1.bf16.msra.mxu0 0
        %1386 = vmatprep.mubr.bf16.mxu0 0
        %1387 = vmatmul.mubr.bf16.gmra.mrb[0].mxu0 %v915
        %v1388 = vpop.f32.mrb[0].mxu0
        %v1389 = vadd.f32 0.0, %v1388
        %v1390 = vpop.f32.mrb[0].mxu0
        %v1391 = vadd.f32 0.0, %v1390
        %v1392 = vpop.f32.mrb[0].mxu0
        %v1393 = vpop.f32.mrb[0].mxu0
        %1394 = vdwg.mxu0
        %1395 = vmatprep.subr.bf16.mxu0 %v752
        %1396 = vmatpush1.bf16.msra.mxu0 %v751
        %1397 = vmatprep.subr.bf16.mxu0 %v788
        %1398 = vmatpush1.bf16.msra.mxu0 %v787
        %1399 = vmatprep.subr.bf16.mxu0 %v976
        %1400 = vmatpush1.bf16.msra.mxu0 %v973
        %1401 = vmatprep.subr.bf16.mxu0 0
        %1402 = vmatpush1.bf16.msra.mxu0 0
        %1403 = vmatprep.subr.bf16.mxu0 0
        %1404 = vmatpush1.bf16.msra.mxu0 0
        %1405 = vmatprep.subr.bf16.mxu0 0
        %1406 = vmatpush1.bf16.msra.mxu0 0
        %1407 = vmatprep.subr.bf16.mxu0 0
        %1408 = vmatpush1.bf16.msra.mxu0 0
        %1409 = vmatprep.subr.bf16.mxu0 0
        %1410 = vmatpush1.bf16.msra.mxu0 0
        %1411 = vmatprep.subr.bf16.mxu0 0
        %1412 = vmatpush1.bf16.msra.mxu0 0
        %1413 = vmatprep.subr.bf16.mxu0 0
        %1414 = vmatpush1.bf16.msra.mxu0 0
        %1415 = vmatprep.subr.bf16.mxu0 0
        %1416 = vmatpush1.bf16.msra.mxu0 0
        %1417 = vmatprep.subr.bf16.mxu0 0
        %1418 = vmatpush1.bf16.msra.mxu0 0
        %1419 = vmatprep.subr.bf16.mxu0 0
        %1420 = vmatpush1.bf16.msra.mxu0 0
        %1421 = vmatprep.subr.bf16.mxu0 0
        %1422 = vmatpush1.bf16.msra.mxu0 0
        %1423 = vmatprep.subr.bf16.mxu0 0
        %1424 = vmatpush1.bf16.msra.mxu0 0
        %1425 = vmatprep.subr.bf16.mxu0 0
        %1426 = vmatpush1.bf16.msra.mxu0 0
        %1427 = vmatprep.mubr.bf16.mxu0 0
        %1428 = vmatmul.mubr.bf16.gmra.mrb[0].mxu0 %v915
        %v1429 = vpop.f32.mrb[0].mxu0
        %v1430 = vadd.f32 0.0, %v1429
        %v1431 = vpop.f32.mrb[0].mxu0
        %v1432 = vadd.f32 0.0, %v1431
        %v1433 = vpop.f32.mrb[0].mxu0
        %v1434 = vpop.f32.mrb[0].mxu0
        %1435 = vdwg.mxu0
        %1436 = vmatprep.subr.bf16.mxu0 %v754
        %1437 = vmatpush1.bf16.msra.mxu0 %v753
        %1438 = vmatprep.subr.bf16.mxu0 %v790
        %1439 = vmatpush1.bf16.msra.mxu0 %v789
        %1440 = vmatprep.subr.bf16.mxu0 %v982
        %1441 = vmatpush1.bf16.msra.mxu0 %v979
        %1442 = vmatprep.subr.bf16.mxu0 0
        %1443 = vmatpush1.bf16.msra.mxu0 0
        %1444 = vmatprep.subr.bf16.mxu0 0
        %1445 = vmatpush1.bf16.msra.mxu0 0
        %1446 = vmatprep.subr.bf16.mxu0 0
        %1447 = vmatpush1.bf16.msra.mxu0 0
        %1448 = vmatprep.subr.bf16.mxu0 0
        %1449 = vmatpush1.bf16.msra.mxu0 0
        %1450 = vmatprep.subr.bf16.mxu0 0
        %1451 = vmatpush1.bf16.msra.mxu0 0
        %1452 = vmatprep.subr.bf16.mxu0 0
        %1453 = vmatpush1.bf16.msra.mxu0 0
        %1454 = vmatprep.subr.bf16.mxu0 0
        %1455 = vmatpush1.bf16.msra.mxu0 0
        %1456 = vmatprep.subr.bf16.mxu0 0
        %1457 = vmatpush1.bf16.msra.mxu0 0
        %1458 = vmatprep.subr.bf16.mxu0 0
        %1459 = vmatpush1.bf16.msra.mxu0 0
        %1460 = vmatprep.subr.bf16.mxu0 0
        %1461 = vmatpush1.bf16.msra.mxu0 0
        %1462 = vmatprep.subr.bf16.mxu0 0
        %1463 = vmatpush1.bf16.msra.mxu0 0
        %1464 = vmatprep.subr.bf16.mxu0 0
        %1465 = vmatpush1.bf16.msra.mxu0 0
        %1466 = vmatprep.subr.bf16.mxu0 0
        %1467 = vmatpush1.bf16.msra.mxu0 0
        %1468 = vmatprep.mubr.bf16.mxu0 0
        %1469 = vmatmul.mubr.bf16.gmra.mrb[0].mxu0 %v915
        %v1470 = vpop.f32.mrb[0].mxu0
        %v1471 = vadd.f32 0.0, %v1470
        %v1472 = vpop.f32.mrb[0].mxu0
        %v1473 = vadd.f32 0.0, %v1472
        %v1474 = vpop.f32.mrb[0].mxu0
        %v1475 = vpop.f32.mrb[0].mxu0
        %1476 = vdwg.mxu0
        %1477 = vmatprep.subr.bf16.mxu0 %v756
        %1478 = vmatpush1.bf16.msra.mxu0 %v755
        %1479 = vmatprep.subr.bf16.mxu0 %v792
        %1480 = vmatpush1.bf16.msra.mxu0 %v791
        %1481 = vmatprep.subr.bf16.mxu0 %v988
        %1482 = vmatpush1.bf16.msra.mxu0 %v985
        %1483 = vmatprep.subr.bf16.mxu0 0
        %1484 = vmatpush1.bf16.msra.mxu0 0
        %1485 = vmatprep.subr.bf16.mxu0 0
        %1486 = vmatpush1.bf16.msra.mxu0 0
        %1487 = vmatprep.subr.bf16.mxu0 0
        %1488 = vmatpush1.bf16.msra.mxu0 0
        %1489 = vmatprep.subr.bf16.mxu0 0
        %1490 = vmatpush1.bf16.msra.mxu0 0
        %1491 = vmatprep.subr.bf16.mxu0 0
        %1492 = vmatpush1.bf16.msra.mxu0 0
        %1493 = vmatprep.subr.bf16.mxu0 0
        %1494 = vmatpush1.bf16.msra.mxu0 0
        %1495 = vmatprep.subr.bf16.mxu0 0
        %1496 = vmatpush1.bf16.msra.mxu0 0
        %1497 = vmatprep.subr.bf16.mxu0 0
        %1498 = vmatpush1.bf16.msra.mxu0 0
        %1499 = vmatprep.subr.bf16.mxu0 0
        %1500 = vmatpush1.bf16.msra.mxu0 0
        %1501 = vmatprep.subr.bf16.mxu0 0
        %1502 = vmatpush1.bf16.msra.mxu0 0
        %1503 = vmatprep.subr.bf16.mxu0 0
        %1504 = vmatpush1.bf16.msra.mxu0 0
        %1505 = vmatprep.subr.bf16.mxu0 0
        %1506 = vmatpush1.bf16.msra.mxu0 0
        %1507 = vmatprep.subr.bf16.mxu0 0
        %1508 = vmatpush1.bf16.msra.mxu0 0
        %1509 = vmatprep.mubr.bf16.mxu0 0
        %1510 = vmatmul.mubr.bf16.gmra.mrb[0].mxu0 %v915
        %v1511 = vpop.f32.mrb[0].mxu0
        %v1512 = vadd.f32 0.0, %v1511
        %v1513 = vpop.f32.mrb[0].mxu0
        %v1514 = vadd.f32 0.0, %v1513
        %v1515 = vpop.f32.mrb[0].mxu0
        %v1516 = vpop.f32.mrb[0].mxu0
        %1517 = vdwg.mxu0
        %1518 = vmatprep.subr.bf16.mxu0 %v758
        %1519 = vmatpush1.bf16.msra.mxu0 %v757
        %1520 = vmatprep.subr.bf16.mxu0 %v794
        %1521 = vmatpush1.bf16.msra.mxu0 %v793
        %1522 = vmatprep.subr.bf16.mxu0 %v994
        %1523 = vmatpush1.bf16.msra.mxu0 %v991
        %1524 = vmatprep.subr.bf16.mxu0 0
        %1525 = vmatpush1.bf16.msra.mxu0 0
        %1526 = vmatprep.subr.bf16.mxu0 0
        %1527 = vmatpush1.bf16.msra.mxu0 0
        %1528 = vmatprep.subr.bf16.mxu0 0
        %1529 = vmatpush1.bf16.msra.mxu0 0
        %1530 = vmatprep.subr.bf16.mxu0 0
        %1531 = vmatpush1.bf16.msra.mxu0 0
        %1532 = vmatprep.subr.bf16.mxu0 0
        %1533 = vmatpush1.bf16.msra.mxu0 0
        %1534 = vmatprep.subr.bf16.mxu0 0
        %1535 = vmatpush1.bf16.msra.mxu0 0
        %1536 = vmatprep.subr.bf16.mxu0 0
        %1537 = vmatpush1.bf16.msra.mxu0 0
        %1538 = vmatprep.subr.bf16.mxu0 0
        %1539 = vmatpush1.bf16.msra.mxu0 0
        %1540 = vmatprep.subr.bf16.mxu0 0
        %1541 = vmatpush1.bf16.msra.mxu0 0
        %1542 = vmatprep.subr.bf16.mxu0 0
        %1543 = vmatpush1.bf16.msra.mxu0 0
        %1544 = vmatprep.subr.bf16.mxu0 0
        %1545 = vmatpush1.bf16.msra.mxu0 0
        %1546 = vmatprep.subr.bf16.mxu0 0
        %1547 = vmatpush1.bf16.msra.mxu0 0
        %1548 = vmatprep.subr.bf16.mxu0 0
        %1549 = vmatpush1.bf16.msra.mxu0 0
        %1550 = vmatprep.mubr.bf16.mxu0 0
        %1551 = vmatmul.mubr.bf16.gmra.mrb[0].mxu0 %v915
        %v1552 = vpop.f32.mrb[0].mxu0
        %v1553 = vadd.f32 0.0, %v1552
        %v1554 = vpop.f32.mrb[0].mxu0
        %v1555 = vadd.f32 0.0, %v1554
        %v1556 = vpop.f32.mrb[0].mxu0
        %v1557 = vpop.f32.mrb[0].mxu0
        %1558 = vdwg.mxu0
        %1559 = vmatprep.subr.bf16.mxu0 %v760
        %1560 = vmatpush1.bf16.msra.mxu0 %v759
        %1561 = vmatprep.subr.bf16.mxu0 %v796
        %1562 = vmatpush1.bf16.msra.mxu0 %v795
        %1563 = vmatprep.subr.bf16.mxu0 %v1000
        %1564 = vmatpush1.bf16.msra.mxu0 %v997
        %1565 = vmatprep.subr.bf16.mxu0 0
        %1566 = vmatpush1.bf16.msra.mxu0 0
        %1567 = vmatprep.subr.bf16.mxu0 0
        %1568 = vmatpush1.bf16.msra.mxu0 0
        %1569 = vmatprep.subr.bf16.mxu0 0
        %1570 = vmatpush1.bf16.msra.mxu0 0
        %1571 = vmatprep.subr.bf16.mxu0 0
        %1572 = vmatpush1.bf16.msra.mxu0 0
        %1573 = vmatprep.subr.bf16.mxu0 0
        %1574 = vmatpush1.bf16.msra.mxu0 0
        %1575 = vmatprep.subr.bf16.mxu0 0
        %1576 = vmatpush1.bf16.msra.mxu0 0
        %1577 = vmatprep.subr.bf16.mxu0 0
        %1578 = vmatpush1.bf16.msra.mxu0 0
        %1579 = vmatprep.subr.bf16.mxu0 0
        %1580 = vmatpush1.bf16.msra.mxu0 0
        %1581 = vmatprep.subr.bf16.mxu0 0
        %1582 = vmatpush1.bf16.msra.mxu0 0
        %1583 = vmatprep.subr.bf16.mxu0 0
        %1584 = vmatpush1.bf16.msra.mxu0 0
        %1585 = vmatprep.subr.bf16.mxu0 0
        %1586 = vmatpush1.bf16.msra.mxu0 0
        %1587 = vmatprep.subr.bf16.mxu0 0
        %1588 = vmatpush1.bf16.msra.mxu0 0
        %1589 = vmatprep.subr.bf16.mxu0 0
        %1590 = vmatpush1.bf16.msra.mxu0 0
        %1591 = vmatprep.mubr.bf16.mxu0 0
        %1592 = vmatmul.mubr.bf16.gmra.mrb[0].mxu0 %v915
        %v1593 = vpop.f32.mrb[0].mxu0
        %v1594 = vadd.f32 0.0, %v1593
        %v1595 = vpop.f32.mrb[0].mxu0
        %v1596 = vadd.f32 0.0, %v1595
        %v1597 = vpop.f32.mrb[0].mxu0
        %v1598 = vpop.f32.mrb[0].mxu0
        %1599 = vdwg.mxu0
        %1600 = vmatprep.subr.bf16.mxu0 %v762
        %1601 = vmatpush1.bf16.msra.mxu0 %v761
        %1602 = vmatprep.subr.bf16.mxu0 %v798
        %1603 = vmatpush1.bf16.msra.mxu0 %v797
        %1604 = vmatprep.subr.bf16.mxu0 %v1006
        %1605 = vmatpush1.bf16.msra.mxu0 %v1003
        %1606 = vmatprep.subr.bf16.mxu0 0
        %1607 = vmatpush1.bf16.msra.mxu0 0
        %1608 = vmatprep.subr.bf16.mxu0 0
        %1609 = vmatpush1.bf16.msra.mxu0 0
        %1610 = vmatprep.subr.bf16.mxu0 0
        %1611 = vmatpush1.bf16.msra.mxu0 0
        %1612 = vmatprep.subr.bf16.mxu0 0
        %1613 = vmatpush1.bf16.msra.mxu0 0
        %1614 = vmatprep.subr.bf16.mxu0 0
        %1615 = vmatpush1.bf16.msra.mxu0 0
        %1616 = vmatprep.subr.bf16.mxu0 0
        %1617 = vmatpush1.bf16.msra.mxu0 0
        %1618 = vmatprep.subr.bf16.mxu0 0
        %1619 = vmatpush1.bf16.msra.mxu0 0
        %1620 = vmatprep.subr.bf16.mxu0 0
        %1621 = vmatpush1.bf16.msra.mxu0 0
        %1622 = vmatprep.subr.bf16.mxu0 0
        %1623 = vmatpush1.bf16.msra.mxu0 0
        %1624 = vmatprep.subr.bf16.mxu0 0
        %1625 = vmatpush1.bf16.msra.mxu0 0
        %1626 = vmatprep.subr.bf16.mxu0 0
        %1627 = vmatpush1.bf16.msra.mxu0 0
        %1628 = vmatprep.subr.bf16.mxu0 0
        %1629 = vmatpush1.bf16.msra.mxu0 0
        %1630 = vmatprep.subr.bf16.mxu0 0
        %1631 = vmatpush1.bf16.msra.mxu0 0
        %1632 = vmatprep.mubr.bf16.mxu0 0
        %1633 = vmatmul.mubr.bf16.gmra.mrb[0].mxu0 %v915
        %v1634 = vpop.f32.mrb[0].mxu0
        %v1635 = vadd.f32 0.0, %v1634
        %v1636 = vpop.f32.mrb[0].mxu0
        %v1637 = vadd.f32 0.0, %v1636
        %v1638 = vpop.f32.mrb[0].mxu0
        %v1639 = vpop.f32.mrb[0].mxu0
        %1640 = vdwg.mxu0
        %1641 = vmatprep.subr.bf16.mxu0 %v764
        %1642 = vmatpush1.bf16.msra.mxu0 %v763
        %1643 = vmatprep.subr.bf16.mxu0 %v800
        %1644 = vmatpush1.bf16.msra.mxu0 %v799
        %1645 = vmatprep.subr.bf16.mxu0 %v1012
        %1646 = vmatpush1.bf16.msra.mxu0 %v1009
        %1647 = vmatprep.subr.bf16.mxu0 0
        %1648 = vmatpush1.bf16.msra.mxu0 0
        %1649 = vmatprep.subr.bf16.mxu0 0
        %1650 = vmatpush1.bf16.msra.mxu0 0
        %1651 = vmatprep.subr.bf16.mxu0 0
        %1652 = vmatpush1.bf16.msra.mxu0 0
        %1653 = vmatprep.subr.bf16.mxu0 0
        %1654 = vmatpush1.bf16.msra.mxu0 0
        %1655 = vmatprep.subr.bf16.mxu0 0
        %1656 = vmatpush1.bf16.msra.mxu0 0
        %1657 = vmatprep.subr.bf16.mxu0 0
        %1658 = vmatpush1.bf16.msra.mxu0 0
        %1659 = vmatprep.subr.bf16.mxu0 0
        %1660 = vmatpush1.bf16.msra.mxu0 0
        %1661 = vmatprep.subr.bf16.mxu0 0
        %1662 = vmatpush1.bf16.msra.mxu0 0
        %1663 = vmatprep.subr.bf16.mxu0 0
        %1664 = vmatpush1.bf16.msra.mxu0 0
        %1665 = vmatprep.subr.bf16.mxu0 0
        %1666 = vmatpush1.bf16.msra.mxu0 0
        %1667 = vmatprep.subr.bf16.mxu0 0
        %1668 = vmatpush1.bf16.msra.mxu0 0
        %1669 = vmatprep.subr.bf16.mxu0 0
        %1670 = vmatpush1.bf16.msra.mxu0 0
        %1671 = vmatprep.subr.bf16.mxu0 0
        %1672 = vmatpush1.bf16.msra.mxu0 0
        %1673 = vmatprep.mubr.bf16.mxu0 0
        %1674 = vmatmul.mubr.bf16.gmra.mrb[0].mxu0 %v915
        %v1675 = vpop.f32.mrb[0].mxu0
        %v1676 = vadd.f32 0.0, %v1675
        %v1677 = vpop.f32.mrb[0].mxu0
        %v1678 = vadd.f32 0.0, %v1677
        %v1679 = vpop.f32.mrb[0].mxu0
        %v1680 = vpop.f32.mrb[0].mxu0
        %1681 = vdwg.mxu0
        %1682 = vmatprep.subr.bf16.mxu0 %v766
        %1683 = vmatpush1.bf16.msra.mxu0 %v765
        %1684 = vmatprep.subr.bf16.mxu0 %v802
        %1685 = vmatpush1.bf16.msra.mxu0 %v801
        %1686 = vmatprep.subr.bf16.mxu0 %v1018
        %1687 = vmatpush1.bf16.msra.mxu0 %v1015
        %1688 = vmatprep.subr.bf16.mxu0 0
        %1689 = vmatpush1.bf16.msra.mxu0 0
        %1690 = vmatprep.subr.bf16.mxu0 0
        %1691 = vmatpush1.bf16.msra.mxu0 0
        %1692 = vmatprep.subr.bf16.mxu0 0
        %1693 = vmatpush1.bf16.msra.mxu0 0
        %1694 = vmatprep.subr.bf16.mxu0 0
        %1695 = vmatpush1.bf16.msra.mxu0 0
        %1696 = vmatprep.subr.bf16.mxu0 0
        %1697 = vmatpush1.bf16.msra.mxu0 0
        %1698 = vmatprep.subr.bf16.mxu0 0
        %1699 = vmatpush1.bf16.msra.mxu0 0
        %1700 = vmatprep.subr.bf16.mxu0 0
        %1701 = vmatpush1.bf16.msra.mxu0 0
        %1702 = vmatprep.subr.bf16.mxu0 0
        %1703 = vmatpush1.bf16.msra.mxu0 0
        %1704 = vmatprep.subr.bf16.mxu0 0
        %1705 = vmatpush1.bf16.msra.mxu0 0
        %1706 = vmatprep.subr.bf16.mxu0 0
        %1707 = vmatpush1.bf16.msra.mxu0 0
        %1708 = vmatprep.subr.bf16.mxu0 0
        %1709 = vmatpush1.bf16.msra.mxu0 0
        %1710 = vmatprep.subr.bf16.mxu0 0
        %1711 = vmatpush1.bf16.msra.mxu0 0
        %1712 = vmatprep.subr.bf16.mxu0 0
        %1713 = vmatpush1.bf16.msra.mxu0 0
        %1714 = vmatprep.mubr.bf16.mxu0 0
        %1715 = vmatmul.mubr.bf16.gmra.mrb[0].mxu0 %v915
        %v1716 = vpop.f32.mrb[0].mxu0
        %v1717 = vadd.f32 0.0, %v1716
        %v1718 = vpop.f32.mrb[0].mxu0
        %v1719 = vadd.f32 0.0, %v1718
        %v1720 = vpop.f32.mrb[0].mxu0
        %v1721 = vpop.f32.mrb[0].mxu0
        %1722 = vdwg.mxu0
        %1723 = vmatprep.subr.bf16.mxu0 %v768
        %1724 = vmatpush1.bf16.msra.mxu0 %v767
        %1725 = vmatprep.subr.bf16.mxu0 %v804
        %1726 = vmatpush1.bf16.msra.mxu0 %v803
        %1727 = vmatprep.subr.bf16.mxu0 %v1024
        %1728 = vmatpush1.bf16.msra.mxu0 %v1021
        %1729 = vmatprep.subr.bf16.mxu0 0
        %1730 = vmatpush1.bf16.msra.mxu0 0
        %1731 = vmatprep.subr.bf16.mxu0 0
        %1732 = vmatpush1.bf16.msra.mxu0 0
        %1733 = vmatprep.subr.bf16.mxu0 0
        %1734 = vmatpush1.bf16.msra.mxu0 0
        %1735 = vmatprep.subr.bf16.mxu0 0
        %1736 = vmatpush1.bf16.msra.mxu0 0
        %1737 = vmatprep.subr.bf16.mxu0 0
        %1738 = vmatpush1.bf16.msra.mxu0 0
        %1739 = vmatprep.subr.bf16.mxu0 0
        %1740 = vmatpush1.bf16.msra.mxu0 0
        %1741 = vmatprep.subr.bf16.mxu0 0
        %1742 = vmatpush1.bf16.msra.mxu0 0
        %1743 = vmatprep.subr.bf16.mxu0 0
        %1744 = vmatpush1.bf16.msra.mxu0 0
        %1745 = vmatprep.subr.bf16.mxu0 0
        %1746 = vmatpush1.bf16.msra.mxu0 0
        %1747 = vmatprep.subr.bf16.mxu0 0
        %1748 = vmatpush1.bf16.msra.mxu0 0
        %1749 = vmatprep.subr.bf16.mxu0 0
        %1750 = vmatpush1.bf16.msra.mxu0 0
        %1751 = vmatprep.subr.bf16.mxu0 0
        %1752 = vmatpush1.bf16.msra.mxu0 0
        %1753 = vmatprep.subr.bf16.mxu0 0
        %1754 = vmatpush1.bf16.msra.mxu0 0
        %1755 = vmatprep.mubr.bf16.mxu0 0
        %1756 = vmatmul.mubr.bf16.gmra.mrb[0].mxu0 %v915
        %v1757 = vpop.f32.mrb[0].mxu0
        %v1758 = vadd.f32 0.0, %v1757
        %v1759 = vpop.f32.mrb[0].mxu0
        %v1760 = vadd.f32 0.0, %v1759
        %v1761 = vpop.f32.mrb[0].mxu0
        %v1762 = vpop.f32.mrb[0].mxu0
        %1763 = vdwg.mxu0
        %s1764 = scalar_lea.vmem %s1, 4
        %v1765 = vld [vmem:[%s1764] sm:$0x7]
        %v1767 = vsel %vm913, %v1765, 0
        %1769 = vmatprep.subr.bf16.mxu0 %v734
        %1770 = vmatpush1.bf16.msra.mxu0 %v733
        %1771 = vmatprep.subr.bf16.mxu0 %v770
        %1772 = vmatpush1.bf16.msra.mxu0 %v769
        %1773 = vmatprep.subr.bf16.mxu0 %v922
        %1774 = vmatpush1.bf16.msra.mxu0 %v919
        %1775 = vmatprep.subr.bf16.mxu0 0
        %1776 = vmatpush1.bf16.msra.mxu0 0
        %1777 = vmatprep.subr.bf16.mxu0 0
        %1778 = vmatpush1.bf16.msra.mxu0 0
        %1779 = vmatprep.subr.bf16.mxu0 0
        %1780 = vmatpush1.bf16.msra.mxu0 0
        %1781 = vmatprep.subr.bf16.mxu0 0
        %1782 = vmatpush1.bf16.msra.mxu0 0
        %1783 = vmatprep.subr.bf16.mxu0 0
        %1784 = vmatpush1.bf16.msra.mxu0 0
        %1785 = vmatprep.subr.bf16.mxu0 0
        %1786 = vmatpush1.bf16.msra.mxu0 0
        %1787 = vmatprep.subr.bf16.mxu0 0
        %1788 = vmatpush1.bf16.msra.mxu0 0
        %1789 = vmatprep.subr.bf16.mxu0 0
        %1790 = vmatpush1.bf16.msra.mxu0 0
        %1791 = vmatprep.subr.bf16.mxu0 0
        %1792 = vmatpush1.bf16.msra.mxu0 0
        %1793 = vmatprep.subr.bf16.mxu0 0
        %1794 = vmatpush1.bf16.msra.mxu0 0
        %1795 = vmatprep.subr.bf16.mxu0 0
        %1796 = vmatpush1.bf16.msra.mxu0 0
        %1797 = vmatprep.subr.bf16.mxu0 0
        %1798 = vmatpush1.bf16.msra.mxu0 0
        %1799 = vmatprep.subr.bf16.mxu0 0
        %1800 = vmatpush1.bf16.msra.mxu0 0
        %1801 = vmatprep.mubr.bf16.mxu0 0
        %1802 = vmatmul.mubr.bf16.gmra.mrb[0].mxu0 %v1767
        %v1803 = vpop.f32.mrb[0].mxu0
        %v1804 = vadd.f32 0.0, %v1803
        %v1805 = vpop.f32.mrb[0].mxu0
        %v1806 = vadd.f32 0.0, %v1805
        %v1807 = vpop.f32.mrb[0].mxu0
        %v1808 = vpop.f32.mrb[0].mxu0
        %1809 = vdwg.mxu0
        %1810 = vmatprep.subr.bf16.mxu0 %v736
        %1811 = vmatpush1.bf16.msra.mxu0 %v735
        %1812 = vmatprep.subr.bf16.mxu0 %v772
        %1813 = vmatpush1.bf16.msra.mxu0 %v771
        %1814 = vmatprep.subr.bf16.mxu0 %v928
        %1815 = vmatpush1.bf16.msra.mxu0 %v925
        %1816 = vmatprep.subr.bf16.mxu0 0
        %1817 = vmatpush1.bf16.msra.mxu0 0
        %1818 = vmatprep.subr.bf16.mxu0 0
        %1819 = vmatpush1.bf16.msra.mxu0 0
        %1820 = vmatprep.subr.bf16.mxu0 0
        %1821 = vmatpush1.bf16.msra.mxu0 0
        %1822 = vmatprep.subr.bf16.mxu0 0
        %1823 = vmatpush1.bf16.msra.mxu0 0
        %1824 = vmatprep.subr.bf16.mxu0 0
        %1825 = vmatpush1.bf16.msra.mxu0 0
        %1826 = vmatprep.subr.bf16.mxu0 0
        %1827 = vmatpush1.bf16.msra.mxu0 0
        %1828 = vmatprep.subr.bf16.mxu0 0
        %1829 = vmatpush1.bf16.msra.mxu0 0
        %1830 = vmatprep.subr.bf16.mxu0 0
        %1831 = vmatpush1.bf16.msra.mxu0 0
        %1832 = vmatprep.subr.bf16.mxu0 0
        %1833 = vmatpush1.bf16.msra.mxu0 0
        %1834 = vmatprep.subr.bf16.mxu0 0
        %1835 = vmatpush1.bf16.msra.mxu0 0
        %1836 = vmatprep.subr.bf16.mxu0 0
        %1837 = vmatpush1.bf16.msra.mxu0 0
        %1838 = vmatprep.subr.bf16.mxu0 0
        %1839 = vmatpush1.bf16.msra.mxu0 0
        %1840 = vmatprep.subr.bf16.mxu0 0
        %1841 = vmatpush1.bf16.msra.mxu0 0
        %1842 = vmatprep.mubr.bf16.mxu0 0
        %1843 = vmatmul.mubr.bf16.gmra.mrb[0].mxu0 %v1767
        %v1844 = vpop.f32.mrb[0].mxu0
        %v1845 = vadd.f32 0.0, %v1844
        %v1846 = vpop.f32.mrb[0].mxu0
        %v1847 = vadd.f32 0.0, %v1846
        %v1848 = vpop.f32.mrb[0].mxu0
        %v1849 = vpop.f32.mrb[0].mxu0
        %1850 = vdwg.mxu0
        %1851 = vmatprep.subr.bf16.mxu0 %v738
        %1852 = vmatpush1.bf16.msra.mxu0 %v737
        %1853 = vmatprep.subr.bf16.mxu0 %v774
        %1854 = vmatpush1.bf16.msra.mxu0 %v773
        %1855 = vmatprep.subr.bf16.mxu0 %v934
        %1856 = vmatpush1.bf16.msra.mxu0 %v931
        %1857 = vmatprep.subr.bf16.mxu0 0
        %1858 = vmatpush1.bf16.msra.mxu0 0
        %1859 = vmatprep.subr.bf16.mxu0 0
        %1860 = vmatpush1.bf16.msra.mxu0 0
        %1861 = vmatprep.subr.bf16.mxu0 0
        %1862 = vmatpush1.bf16.msra.mxu0 0
        %1863 = vmatprep.subr.bf16.mxu0 0
        %1864 = vmatpush1.bf16.msra.mxu0 0
        %1865 = vmatprep.subr.bf16.mxu0 0
        %1866 = vmatpush1.bf16.msra.mxu0 0
        %1867 = vmatprep.subr.bf16.mxu0 0
        %1868 = vmatpush1.bf16.msra.mxu0 0
        %1869 = vmatprep.subr.bf16.mxu0 0
        %1870 = vmatpush1.bf16.msra.mxu0 0
        %1871 = vmatprep.subr.bf16.mxu0 0
        %1872 = vmatpush1.bf16.msra.mxu0 0
        %1873 = vmatprep.subr.bf16.mxu0 0
        %1874 = vmatpush1.bf16.msra.mxu0 0
        %1875 = vmatprep.subr.bf16.mxu0 0
        %1876 = vmatpush1.bf16.msra.mxu0 0
        %1877 = vmatprep.subr.bf16.mxu0 0
        %1878 = vmatpush1.bf16.msra.mxu0 0
        %1879 = vmatprep.subr.bf16.mxu0 0
        %1880 = vmatpush1.bf16.msra.mxu0 0
        %1881 = vmatprep.subr.bf16.mxu0 0
        %1882 = vmatpush1.bf16.msra.mxu0 0
        %1883 = vmatprep.mubr.bf16.mxu0 0
        %1884 = vmatmul.mubr.bf16.gmra.mrb[0].mxu0 %v1767
        %v1885 = vpop.f32.mrb[0].mxu0
        %v1886 = vadd.f32 0.0, %v1885
        %v1887 = vpop.f32.mrb[0].mxu0
        %v1888 = vadd.f32 0.0, %v1887
        %v1889 = vpop.f32.mrb[0].mxu0
        %v1890 = vpop.f32.mrb[0].mxu0
        %1891 = vdwg.mxu0
        %1892 = vmatprep.subr.bf16.mxu0 %v740
        %1893 = vmatpush1.bf16.msra.mxu0 %v739
        %1894 = vmatprep.subr.bf16.mxu0 %v776
        %1895 = vmatpush1.bf16.msra.mxu0 %v775
        %1896 = vmatprep.subr.bf16.mxu0 %v940
        %1897 = vmatpush1.bf16.msra.mxu0 %v937
        %1898 = vmatprep.subr.bf16.mxu0 0
        %1899 = vmatpush1.bf16.msra.mxu0 0
        %1900 = vmatprep.subr.bf16.mxu0 0
        %1901 = vmatpush1.bf16.msra.mxu0 0
        %1902 = vmatprep.subr.bf16.mxu0 0
        %1903 = vmatpush1.bf16.msra.mxu0 0
        %1904 = vmatprep.subr.bf16.mxu0 0
        %1905 = vmatpush1.bf16.msra.mxu0 0
        %1906 = vmatprep.subr.bf16.mxu0 0
        %1907 = vmatpush1.bf16.msra.mxu0 0
        %1908 = vmatprep.subr.bf16.mxu0 0
        %1909 = vmatpush1.bf16.msra.mxu0 0
        %1910 = vmatprep.subr.bf16.mxu0 0
        %1911 = vmatpush1.bf16.msra.mxu0 0
        %1912 = vmatprep.subr.bf16.mxu0 0
        %1913 = vmatpush1.bf16.msra.mxu0 0
        %1914 = vmatprep.subr.bf16.mxu0 0
        %1915 = vmatpush1.bf16.msra.mxu0 0
        %1916 = vmatprep.subr.bf16.mxu0 0
        %1917 = vmatpush1.bf16.msra.mxu0 0
        %1918 = vmatprep.subr.bf16.mxu0 0
        %1919 = vmatpush1.bf16.msra.mxu0 0
        %1920 = vmatprep.subr.bf16.mxu0 0
        %1921 = vmatpush1.bf16.msra.mxu0 0
        %1922 = vmatprep.subr.bf16.mxu0 0
        %1923 = vmatpush1.bf16.msra.mxu0 0
        %1924 = vmatprep.mubr.bf16.mxu0 0
        %1925 = vmatmul.mubr.bf16.gmra.mrb[0].mxu0 %v1767
        %v1926 = vpop.f32.mrb[0].mxu0
        %v1927 = vadd.f32 0.0, %v1926
        %v1928 = vpop.f32.mrb[0].mxu0
        %v1929 = vadd.f32 0.0, %v1928
        %v1930 = vpop.f32.mrb[0].mxu0
        %v1931 = vpop.f32.mrb[0].mxu0
        %1932 = vdwg.mxu0
        %1933 = vmatprep.subr.bf16.mxu0 %v742
        %1934 = vmatpush1.bf16.msra.mxu0 %v741
        %1935 = vmatprep.subr.bf16.mxu0 %v778
        %1936 = vmatpush1.bf16.msra.mxu0 %v777
        %1937 = vmatprep.subr.bf16.mxu0 %v946
        %1938 = vmatpush1.bf16.msra.mxu0 %v943
        %1939 = vmatprep.subr.bf16.mxu0 0
        %1940 = vmatpush1.bf16.msra.mxu0 0
        %1941 = vmatprep.subr.bf16.mxu0 0
        %1942 = vmatpush1.bf16.msra.mxu0 0
        %1943 = vmatprep.subr.bf16.mxu0 0
        %1944 = vmatpush1.bf16.msra.mxu0 0
        %1945 = vmatprep.subr.bf16.mxu0 0
        %1946 = vmatpush1.bf16.msra.mxu0 0
        %1947 = vmatprep.subr.bf16.mxu0 0
        %1948 = vmatpush1.bf16.msra.mxu0 0
        %1949 = vmatprep.subr.bf16.mxu0 0
        %1950 = vmatpush1.bf16.msra.mxu0 0
        %1951 = vmatprep.subr.bf16.mxu0 0
        %1952 = vmatpush1.bf16.msra.mxu0 0
        %1953 = vmatprep.subr.bf16.mxu0 0
        %1954 = vmatpush1.bf16.msra.mxu0 0
        %1955 = vmatprep.subr.bf16.mxu0 0
        %1956 = vmatpush1.bf16.msra.mxu0 0
        %1957 = vmatprep.subr.bf16.mxu0 0
        %1958 = vmatpush1.bf16.msra.mxu0 0
        %1959 = vmatprep.subr.bf16.mxu0 0
        %1960 = vmatpush1.bf16.msra.mxu0 0
        %1961 = vmatprep.subr.bf16.mxu0 0
        %1962 = vmatpush1.bf16.msra.mxu0 0
        %1963 = vmatprep.subr.bf16.mxu0 0
        %1964 = vmatpush1.bf16.msra.mxu0 0
        %1965 = vmatprep.mubr.bf16.mxu0 0
        %1966 = vmatmul.mubr.bf16.gmra.mrb[0].mxu0 %v1767
        %v1967 = vpop.f32.mrb[0].mxu0
        %v1968 = vadd.f32 0.0, %v1967
        %v1969 = vpop.f32.mrb[0].mxu0
        %v1970 = vadd.f32 0.0, %v1969
        %v1971 = vpop.f32.mrb[0].mxu0
        %v1972 = vpop.f32.mrb[0].mxu0
        %1973 = vdwg.mxu0
        %1974 = vmatprep.subr.bf16.mxu0 %v744
        %1975 = vmatpush1.bf16.msra.mxu0 %v743
        %1976 = vmatprep.subr.bf16.mxu0 %v780
        %1977 = vmatpush1.bf16.msra.mxu0 %v779
        %1978 = vmatprep.subr.bf16.mxu0 %v952
        %1979 = vmatpush1.bf16.msra.mxu0 %v949
        %1980 = vmatprep.subr.bf16.mxu0 0
        %1981 = vmatpush1.bf16.msra.mxu0 0
        %1982 = vmatprep.subr.bf16.mxu0 0
        %1983 = vmatpush1.bf16.msra.mxu0 0
        %1984 = vmatprep.subr.bf16.mxu0 0
        %1985 = vmatpush1.bf16.msra.mxu0 0
        %1986 = vmatprep.subr.bf16.mxu0 0
        %1987 = vmatpush1.bf16.msra.mxu0 0
        %1988 = vmatprep.subr.bf16.mxu0 0
        %1989 = vmatpush1.bf16.msra.mxu0 0
        %1990 = vmatprep.subr.bf16.mxu0 0
        %1991 = vmatpush1.bf16.msra.mxu0 0
        %1992 = vmatprep.subr.bf16.mxu0 0
        %1993 = vmatpush1.bf16.msra.mxu0 0
        %1994 = vmatprep.subr.bf16.mxu0 0
        %1995 = vmatpush1.bf16.msra.mxu0 0
        %1996 = vmatprep.subr.bf16.mxu0 0
        %1997 = vmatpush1.bf16.msra.mxu0 0
        %1998 = vmatprep.subr.bf16.mxu0 0
        %1999 = vmatpush1.bf16.msra.mxu0 0
        %2000 = vmatprep.subr.bf16.mxu0 0
        %2001 = vmatpush1.bf16.msra.mxu0 0
        %2002 = vmatprep.subr.bf16.mxu0 0
        %2003 = vmatpush1.bf16.msra.mxu0 0
        %2004 = vmatprep.subr.bf16.mxu0 0
        %2005 = vmatpush1.bf16.msra.mxu0 0
        %2006 = vmatprep.mubr.bf16.mxu0 0
        %2007 = vmatmul.mubr.bf16.gmra.mrb[0].mxu0 %v1767
        %v2008 = vpop.f32.mrb[0].mxu0
        %v2009 = vadd.f32 0.0, %v2008
        %v2010 = vpop.f32.mrb[0].mxu0
        %v2011 = vadd.f32 0.0, %v2010
        %v2012 = vpop.f32.mrb[0].mxu0
        %v2013 = vpop.f32.mrb[0].mxu0
        %2014 = vdwg.mxu0
        %2015 = vmatprep.subr.bf16.mxu0 %v746
        %2016 = vmatpush1.bf16.msra.mxu0 %v745
        %2017 = vmatprep.subr.bf16.mxu0 %v782
        %2018 = vmatpush1.bf16.msra.mxu0 %v781
        %2019 = vmatprep.subr.bf16.mxu0 %v958
        %2020 = vmatpush1.bf16.msra.mxu0 %v955
        %2021 = vmatprep.subr.bf16.mxu0 0
        %2022 = vmatpush1.bf16.msra.mxu0 0
        %2023 = vmatprep.subr.bf16.mxu0 0
        %2024 = vmatpush1.bf16.msra.mxu0 0
        %2025 = vmatprep.subr.bf16.mxu0 0
        %2026 = vmatpush1.bf16.msra.mxu0 0
        %2027 = vmatprep.subr.bf16.mxu0 0
        %2028 = vmatpush1.bf16.msra.mxu0 0
        %2029 = vmatprep.subr.bf16.mxu0 0
        %2030 = vmatpush1.bf16.msra.mxu0 0
        %2031 = vmatprep.subr.bf16.mxu0 0
        %2032 = vmatpush1.bf16.msra.mxu0 0
        %2033 = vmatprep.subr.bf16.mxu0 0
        %2034 = vmatpush1.bf16.msra.mxu0 0
        %2035 = vmatprep.subr.bf16.mxu0 0
        %2036 = vmatpush1.bf16.msra.mxu0 0
        %2037 = vmatprep.subr.bf16.mxu0 0
        %2038 = vmatpush1.bf16.msra.mxu0 0
        %2039 = vmatprep.subr.bf16.mxu0 0
        %2040 = vmatpush1.bf16.msra.mxu0 0
        %2041 = vmatprep.subr.bf16.mxu0 0
        %2042 = vmatpush1.bf16.msra.mxu0 0
        %2043 = vmatprep.subr.bf16.mxu0 0
        %2044 = vmatpush1.bf16.msra.mxu0 0
        %2045 = vmatprep.subr.bf16.mxu0 0
        %2046 = vmatpush1.bf16.msra.mxu0 0
        %2047 = vmatprep.mubr.bf16.mxu0 0
        %2048 = vmatmul.mubr.bf16.gmra.mrb[0].mxu0 %v1767
        %v2049 = vpop.f32.mrb[0].mxu0
        %v2050 = vadd.f32 0.0, %v2049
        %v2051 = vpop.f32.mrb[0].mxu0
        %v2052 = vadd.f32 0.0, %v2051
        %v2053 = vpop.f32.mrb[0].mxu0
        %v2054 = vpop.f32.mrb[0].mxu0
        %2055 = vdwg.mxu0
        %2056 = vmatprep.subr.bf16.mxu0 %v748
        %2057 = vmatpush1.bf16.msra.mxu0 %v747
        %2058 = vmatprep.subr.bf16.mxu0 %v784
        %2059 = vmatpush1.bf16.msra.mxu0 %v783
        %2060 = vmatprep.subr.bf16.mxu0 %v964
        %2061 = vmatpush1.bf16.msra.mxu0 %v961
        %2062 = vmatprep.subr.bf16.mxu0 0
        %2063 = vmatpush1.bf16.msra.mxu0 0
        %2064 = vmatprep.subr.bf16.mxu0 0
        %2065 = vmatpush1.bf16.msra.mxu0 0
        %2066 = vmatprep.subr.bf16.mxu0 0
        %2067 = vmatpush1.bf16.msra.mxu0 0
        %2068 = vmatprep.subr.bf16.mxu0 0
        %2069 = vmatpush1.bf16.msra.mxu0 0
        %2070 = vmatprep.subr.bf16.mxu0 0
        %2071 = vmatpush1.bf16.msra.mxu0 0
        %2072 = vmatprep.subr.bf16.mxu0 0
        %2073 = vmatpush1.bf16.msra.mxu0 0
        %2074 = vmatprep.subr.bf16.mxu0 0
        %2075 = vmatpush1.bf16.msra.mxu0 0
        %2076 = vmatprep.subr.bf16.mxu0 0
        %2077 = vmatpush1.bf16.msra.mxu0 0
        %2078 = vmatprep.subr.bf16.mxu0 0
        %2079 = vmatpush1.bf16.msra.mxu0 0
        %2080 = vmatprep.subr.bf16.mxu0 0
        %2081 = vmatpush1.bf16.msra.mxu0 0
        %2082 = vmatprep.subr.bf16.mxu0 0
        %2083 = vmatpush1.bf16.msra.mxu0 0
        %2084 = vmatprep.subr.bf16.mxu0 0
        %2085 = vmatpush1.bf16.msra.mxu0 0
        %2086 = vmatprep.subr.bf16.mxu0 0
        %2087 = vmatpush1.bf16.msra.mxu0 0
        %2088 = vmatprep.mubr.bf16.mxu0 0
        %2089 = vmatmul.mubr.bf16.gmra.mrb[0].mxu0 %v1767
        %v2090 = vpop.f32.mrb[0].mxu0
        %v2091 = vadd.f32 0.0, %v2090
        %v2092 = vpop.f32.mrb[0].mxu0
        %v2093 = vadd.f32 0.0, %v2092
        %v2094 = vpop.f32.mrb[0].mxu0
        %v2095 = vpop.f32.mrb[0].mxu0
        %2096 = vdwg.mxu0
        %2097 = vmatprep.subr.bf16.mxu0 %v750
        %2098 = vmatpush1.bf16.msra.mxu0 %v749
        %2099 = vmatprep.subr.bf16.mxu0 %v786
        %2100 = vmatpush1.bf16.msra.mxu0 %v785
        %2101 = vmatprep.subr.bf16.mxu0 %v970
        %2102 = vmatpush1.bf16.msra.mxu0 %v967
        %2103 = vmatprep.subr.bf16.mxu0 0
        %2104 = vmatpush1.bf16.msra.mxu0 0
        %2105 = vmatprep.subr.bf16.mxu0 0
        %2106 = vmatpush1.bf16.msra.mxu0 0
        %2107 = vmatprep.subr.bf16.mxu0 0
        %2108 = vmatpush1.bf16.msra.mxu0 0
        %2109 = vmatprep.subr.bf16.mxu0 0
        %2110 = vmatpush1.bf16.msra.mxu0 0
        %2111 = vmatprep.subr.bf16.mxu0 0
        %2112 = vmatpush1.bf16.msra.mxu0 0
        %2113 = vmatprep.subr.bf16.mxu0 0
        %2114 = vmatpush1.bf16.msra.mxu0 0
        %2115 = vmatprep.subr.bf16.mxu0 0
        %2116 = vmatpush1.bf16.msra.mxu0 0
        %2117 = vmatprep.subr.bf16.mxu0 0
        %2118 = vmatpush1.bf16.msra.mxu0 0
        %2119 = vmatprep.subr.bf16.mxu0 0
        %2120 = vmatpush1.bf16.msra.mxu0 0
        %2121 = vmatprep.subr.bf16.mxu0 0
        %2122 = vmatpush1.bf16.msra.mxu0 0
        %2123 = vmatprep.subr.bf16.mxu0 0
        %2124 = vmatpush1.bf16.msra.mxu0 0
        %2125 = vmatprep.subr.bf16.mxu0 0
        %2126 = vmatpush1.bf16.msra.mxu0 0
        %2127 = vmatprep.subr.bf16.mxu0 0
        %2128 = vmatpush1.bf16.msra.mxu0 0
        %2129 = vmatprep.mubr.bf16.mxu0 0
        %2130 = vmatmul.mubr.bf16.gmra.mrb[0].mxu0 %v1767
        %v2131 = vpop.f32.mrb[0].mxu0
        %v2132 = vadd.f32 0.0, %v2131
        %v2133 = vpop.f32.mrb[0].mxu0
        %v2134 = vadd.f32 0.0, %v2133
        %v2135 = vpop.f32.mrb[0].mxu0
        %v2136 = vpop.f32.mrb[0].mxu0
        %2137 = vdwg.mxu0
        %2138 = vmatprep.subr.bf16.mxu0 %v752
        %2139 = vmatpush1.bf16.msra.mxu0 %v751
        %2140 = vmatprep.subr.bf16.mxu0 %v788
        %2141 = vmatpush1.bf16.msra.mxu0 %v787
        %2142 = vmatprep.subr.bf16.mxu0 %v976
        %2143 = vmatpush1.bf16.msra.mxu0 %v973
        %2144 = vmatprep.subr.bf16.mxu0 0
        %2145 = vmatpush1.bf16.msra.mxu0 0
        %2146 = vmatprep.subr.bf16.mxu0 0
        %2147 = vmatpush1.bf16.msra.mxu0 0
        %2148 = vmatprep.subr.bf16.mxu0 0
        %2149 = vmatpush1.bf16.msra.mxu0 0
        %2150 = vmatprep.subr.bf16.mxu0 0
        %2151 = vmatpush1.bf16.msra.mxu0 0
        %2152 = vmatprep.subr.bf16.mxu0 0
        %2153 = vmatpush1.bf16.msra.mxu0 0
        %2154 = vmatprep.subr.bf16.mxu0 0
        %2155 = vmatpush1.bf16.msra.mxu0 0
        %2156 = vmatprep.subr.bf16.mxu0 0
        %2157 = vmatpush1.bf16.msra.mxu0 0
        %2158 = vmatprep.subr.bf16.mxu0 0
        %2159 = vmatpush1.bf16.msra.mxu0 0
        %2160 = vmatprep.subr.bf16.mxu0 0
        %2161 = vmatpush1.bf16.msra.mxu0 0
        %2162 = vmatprep.subr.bf16.mxu0 0
        %2163 = vmatpush1.bf16.msra.mxu0 0
        %2164 = vmatprep.subr.bf16.mxu0 0
        %2165 = vmatpush1.bf16.msra.mxu0 0
        %2166 = vmatprep.subr.bf16.mxu0 0
        %2167 = vmatpush1.bf16.msra.mxu0 0
        %2168 = vmatprep.subr.bf16.mxu0 0
        %2169 = vmatpush1.bf16.msra.mxu0 0
        %2170 = vmatprep.mubr.bf16.mxu0 0
        %2171 = vmatmul.mubr.bf16.gmra.mrb[0].mxu0 %v1767
        %v2172 = vpop.f32.mrb[0].mxu0
        %v2173 = vadd.f32 0.0, %v2172
        %v2174 = vpop.f32.mrb[0].mxu0
        %v2175 = vadd.f32 0.0, %v2174
        %v2176 = vpop.f32.mrb[0].mxu0
        %v2177 = vpop.f32.mrb[0].mxu0
        %2178 = vdwg.mxu0
        %2179 = vmatprep.subr.bf16.mxu0 %v754
        %2180 = vmatpush1.bf16.msra.mxu0 %v753
        %2181 = vmatprep.subr.bf16.mxu0 %v790
        %2182 = vmatpush1.bf16.msra.mxu0 %v789
        %2183 = vmatprep.subr.bf16.mxu0 %v982
        %2184 = vmatpush1.bf16.msra.mxu0 %v979
        %2185 = vmatprep.subr.bf16.mxu0 0
        %2186 = vmatpush1.bf16.msra.mxu0 0
        %2187 = vmatprep.subr.bf16.mxu0 0
        %2188 = vmatpush1.bf16.msra.mxu0 0
        %2189 = vmatprep.subr.bf16.mxu0 0
        %2190 = vmatpush1.bf16.msra.mxu0 0
        %2191 = vmatprep.subr.bf16.mxu0 0
        %2192 = vmatpush1.bf16.msra.mxu0 0
        %2193 = vmatprep.subr.bf16.mxu0 0
        %2194 = vmatpush1.bf16.msra.mxu0 0
        %2195 = vmatprep.subr.bf16.mxu0 0
        %2196 = vmatpush1.bf16.msra.mxu0 0
        %2197 = vmatprep.subr.bf16.mxu0 0
        %2198 = vmatpush1.bf16.msra.mxu0 0
        %2199 = vmatprep.subr.bf16.mxu0 0
        %2200 = vmatpush1.bf16.msra.mxu0 0
        %2201 = vmatprep.subr.bf16.mxu0 0
        %2202 = vmatpush1.bf16.msra.mxu0 0
        %2203 = vmatprep.subr.bf16.mxu0 0
        %2204 = vmatpush1.bf16.msra.mxu0 0
        %2205 = vmatprep.subr.bf16.mxu0 0
        %2206 = vmatpush1.bf16.msra.mxu0 0
        %2207 = vmatprep.subr.bf16.mxu0 0
        %2208 = vmatpush1.bf16.msra.mxu0 0
        %2209 = vmatprep.subr.bf16.mxu0 0
        %2210 = vmatpush1.bf16.msra.mxu0 0
        %2211 = vmatprep.mubr.bf16.mxu0 0
        %2212 = vmatmul.mubr.bf16.gmra.mrb[0].mxu0 %v1767
        %v2213 = vpop.f32.mrb[0].mxu0
        %v2214 = vadd.f32 0.0, %v2213
        %v2215 = vpop.f32.mrb[0].mxu0
        %v2216 = vadd.f32 0.0, %v2215
        %v2217 = vpop.f32.mrb[0].mxu0
        %v2218 = vpop.f32.mrb[0].mxu0
        %2219 = vdwg.mxu0
        %2220 = vmatprep.subr.bf16.mxu0 %v756
        %2221 = vmatpush1.bf16.msra.mxu0 %v755
        %2222 = vmatprep.subr.bf16.mxu0 %v792
        %2223 = vmatpush1.bf16.msra.mxu0 %v791
        %2224 = vmatprep.subr.bf16.mxu0 %v988
        %2225 = vmatpush1.bf16.msra.mxu0 %v985
        %2226 = vmatprep.subr.bf16.mxu0 0
        %2227 = vmatpush1.bf16.msra.mxu0 0
        %2228 = vmatprep.subr.bf16.mxu0 0
        %2229 = vmatpush1.bf16.msra.mxu0 0
        %2230 = vmatprep.subr.bf16.mxu0 0
        %2231 = vmatpush1.bf16.msra.mxu0 0
        %2232 = vmatprep.subr.bf16.mxu0 0
        %2233 = vmatpush1.bf16.msra.mxu0 0
        %2234 = vmatprep.subr.bf16.mxu0 0
        %2235 = vmatpush1.bf16.msra.mxu0 0
        %2236 = vmatprep.subr.bf16.mxu0 0
        %2237 = vmatpush1.bf16.msra.mxu0 0
        %2238 = vmatprep.subr.bf16.mxu0 0
        %2239 = vmatpush1.bf16.msra.mxu0 0
        %2240 = vmatprep.subr.bf16.mxu0 0
        %2241 = vmatpush1.bf16.msra.mxu0 0
        %2242 = vmatprep.subr.bf16.mxu0 0
        %2243 = vmatpush1.bf16.msra.mxu0 0
        %2244 = vmatprep.subr.bf16.mxu0 0
        %2245 = vmatpush1.bf16.msra.mxu0 0
        %2246 = vmatprep.subr.bf16.mxu0 0
        %2247 = vmatpush1.bf16.msra.mxu0 0
        %2248 = vmatprep.subr.bf16.mxu0 0
        %2249 = vmatpush1.bf16.msra.mxu0 0
        %2250 = vmatprep.subr.bf16.mxu0 0
        %2251 = vmatpush1.bf16.msra.mxu0 0
        %2252 = vmatprep.mubr.bf16.mxu0 0
        %2253 = vmatmul.mubr.bf16.gmra.mrb[0].mxu0 %v1767
        %v2254 = vpop.f32.mrb[0].mxu0
        %v2255 = vadd.f32 0.0, %v2254
        %v2256 = vpop.f32.mrb[0].mxu0
        %v2257 = vadd.f32 0.0, %v2256
        %v2258 = vpop.f32.mrb[0].mxu0
        %v2259 = vpop.f32.mrb[0].mxu0
        %2260 = vdwg.mxu0
        %2261 = vmatprep.subr.bf16.mxu0 %v758
        %2262 = vmatpush1.bf16.msra.mxu0 %v757
        %2263 = vmatprep.subr.bf16.mxu0 %v794
        %2264 = vmatpush1.bf16.msra.mxu0 %v793
        %2265 = vmatprep.subr.bf16.mxu0 %v994
        %2266 = vmatpush1.bf16.msra.mxu0 %v991
        %2267 = vmatprep.subr.bf16.mxu0 0
        %2268 = vmatpush1.bf16.msra.mxu0 0
        %2269 = vmatprep.subr.bf16.mxu0 0
        %2270 = vmatpush1.bf16.msra.mxu0 0
        %2271 = vmatprep.subr.bf16.mxu0 0
        %2272 = vmatpush1.bf16.msra.mxu0 0
        %2273 = vmatprep.subr.bf16.mxu0 0
        %2274 = vmatpush1.bf16.msra.mxu0 0
        %2275 = vmatprep.subr.bf16.mxu0 0
        %2276 = vmatpush1.bf16.msra.mxu0 0
        %2277 = vmatprep.subr.bf16.mxu0 0
        %2278 = vmatpush1.bf16.msra.mxu0 0
        %2279 = vmatprep.subr.bf16.mxu0 0
        %2280 = vmatpush1.bf16.msra.mxu0 0
        %2281 = vmatprep.subr.bf16.mxu0 0
        %2282 = vmatpush1.bf16.msra.mxu0 0
        %2283 = vmatprep.subr.bf16.mxu0 0
        %2284 = vmatpush1.bf16.msra.mxu0 0
        %2285 = vmatprep.subr.bf16.mxu0 0
        %2286 = vmatpush1.bf16.msra.mxu0 0
        %2287 = vmatprep.subr.bf16.mxu0 0
        %2288 = vmatpush1.bf16.msra.mxu0 0
        %2289 = vmatprep.subr.bf16.mxu0 0
        %2290 = vmatpush1.bf16.msra.mxu0 0
        %2291 = vmatprep.subr.bf16.mxu0 0
        %2292 = vmatpush1.bf16.msra.mxu0 0
        %2293 = vmatprep.mubr.bf16.mxu0 0
        %2294 = vmatmul.mubr.bf16.gmra.mrb[0].mxu0 %v1767
        %v2295 = vpop.f32.mrb[0].mxu0
        %v2296 = vadd.f32 0.0, %v2295
        %v2297 = vpop.f32.mrb[0].mxu0
        %v2298 = vadd.f32 0.0, %v2297
        %v2299 = vpop.f32.mrb[0].mxu0
        %v2300 = vpop.f32.mrb[0].mxu0
        %2301 = vdwg.mxu0
        %2302 = vmatprep.subr.bf16.mxu0 %v760
        %2303 = vmatpush1.bf16.msra.mxu0 %v759
        %2304 = vmatprep.subr.bf16.mxu0 %v796
        %2305 = vmatpush1.bf16.msra.mxu0 %v795
        %2306 = vmatprep.subr.bf16.mxu0 %v1000
        %2307 = vmatpush1.bf16.msra.mxu0 %v997
        %2308 = vmatprep.subr.bf16.mxu0 0
        %2309 = vmatpush1.bf16.msra.mxu0 0
        %2310 = vmatprep.subr.bf16.mxu0 0
        %2311 = vmatpush1.bf16.msra.mxu0 0
        %2312 = vmatprep.subr.bf16.mxu0 0
        %2313 = vmatpush1.bf16.msra.mxu0 0
        %2314 = vmatprep.subr.bf16.mxu0 0
        %2315 = vmatpush1.bf16.msra.mxu0 0
        %2316 = vmatprep.subr.bf16.mxu0 0
        %2317 = vmatpush1.bf16.msra.mxu0 0
        %2318 = vmatprep.subr.bf16.mxu0 0
        %2319 = vmatpush1.bf16.msra.mxu0 0
        %2320 = vmatprep.subr.bf16.mxu0 0
        %2321 = vmatpush1.bf16.msra.mxu0 0
        %2322 = vmatprep.subr.bf16.mxu0 0
        %2323 = vmatpush1.bf16.msra.mxu0 0
        %2324 = vmatprep.subr.bf16.mxu0 0
        %2325 = vmatpush1.bf16.msra.mxu0 0
        %2326 = vmatprep.subr.bf16.mxu0 0
        %2327 = vmatpush1.bf16.msra.mxu0 0
        %2328 = vmatprep.subr.bf16.mxu0 0
        %2329 = vmatpush1.bf16.msra.mxu0 0
        %2330 = vmatprep.subr.bf16.mxu0 0
        %2331 = vmatpush1.bf16.msra.mxu0 0
        %2332 = vmatprep.subr.bf16.mxu0 0
        %2333 = vmatpush1.bf16.msra.mxu0 0
        %2334 = vmatprep.mubr.bf16.mxu0 0
        %2335 = vmatmul.mubr.bf16.gmra.mrb[0].mxu0 %v1767
        %v2336 = vpop.f32.mrb[0].mxu0
        %v2337 = vadd.f32 0.0, %v2336
        %v2338 = vpop.f32.mrb[0].mxu0
        %v2339 = vadd.f32 0.0, %v2338
        %v2340 = vpop.f32.mrb[0].mxu0
        %v2341 = vpop.f32.mrb[0].mxu0
        %2342 = vdwg.mxu0
        %2343 = vmatprep.subr.bf16.mxu0 %v762
        %2344 = vmatpush1.bf16.msra.mxu0 %v761
        %2345 = vmatprep.subr.bf16.mxu0 %v798
        %2346 = vmatpush1.bf16.msra.mxu0 %v797
        %2347 = vmatprep.subr.bf16.mxu0 %v1006
        %2348 = vmatpush1.bf16.msra.mxu0 %v1003
        %2349 = vmatprep.subr.bf16.mxu0 0
        %2350 = vmatpush1.bf16.msra.mxu0 0
        %2351 = vmatprep.subr.bf16.mxu0 0
        %2352 = vmatpush1.bf16.msra.mxu0 0
        %2353 = vmatprep.subr.bf16.mxu0 0
        %2354 = vmatpush1.bf16.msra.mxu0 0
        %2355 = vmatprep.subr.bf16.mxu0 0
        %2356 = vmatpush1.bf16.msra.mxu0 0
        %2357 = vmatprep.subr.bf16.mxu0 0
        %2358 = vmatpush1.bf16.msra.mxu0 0
        %2359 = vmatprep.subr.bf16.mxu0 0
        %2360 = vmatpush1.bf16.msra.mxu0 0
        %2361 = vmatprep.subr.bf16.mxu0 0
        %2362 = vmatpush1.bf16.msra.mxu0 0
        %2363 = vmatprep.subr.bf16.mxu0 0
        %2364 = vmatpush1.bf16.msra.mxu0 0
        %2365 = vmatprep.subr.bf16.mxu0 0
        %2366 = vmatpush1.bf16.msra.mxu0 0
        %2367 = vmatprep.subr.bf16.mxu0 0
        %2368 = vmatpush1.bf16.msra.mxu0 0
        %2369 = vmatprep.subr.bf16.mxu0 0
        %2370 = vmatpush1.bf16.msra.mxu0 0
        %2371 = vmatprep.subr.bf16.mxu0 0
        %2372 = vmatpush1.bf16.msra.mxu0 0
        %2373 = vmatprep.subr.bf16.mxu0 0
        %2374 = vmatpush1.bf16.msra.mxu0 0
        %2375 = vmatprep.mubr.bf16.mxu0 0
        %2376 = vmatmul.mubr.bf16.gmra.mrb[0].mxu0 %v1767
        %v2377 = vpop.f32.mrb[0].mxu0
        %v2378 = vadd.f32 0.0, %v2377
        %v2379 = vpop.f32.mrb[0].mxu0
        %v2380 = vadd.f32 0.0, %v2379
        %v2381 = vpop.f32.mrb[0].mxu0
        %v2382 = vpop.f32.mrb[0].mxu0
        %2383 = vdwg.mxu0
        %2384 = vmatprep.subr.bf16.mxu0 %v764
        %2385 = vmatpush1.bf16.msra.mxu0 %v763
        %2386 = vmatprep.subr.bf16.mxu0 %v800
        %2387 = vmatpush1.bf16.msra.mxu0 %v799
        %2388 = vmatprep.subr.bf16.mxu0 %v1012
        %2389 = vmatpush1.bf16.msra.mxu0 %v1009
        %2390 = vmatprep.subr.bf16.mxu0 0
        %2391 = vmatpush1.bf16.msra.mxu0 0
        %2392 = vmatprep.subr.bf16.mxu0 0
        %2393 = vmatpush1.bf16.msra.mxu0 0
        %2394 = vmatprep.subr.bf16.mxu0 0
        %2395 = vmatpush1.bf16.msra.mxu0 0
        %2396 = vmatprep.subr.bf16.mxu0 0
        %2397 = vmatpush1.bf16.msra.mxu0 0
        %2398 = vmatprep.subr.bf16.mxu0 0
        %2399 = vmatpush1.bf16.msra.mxu0 0
        %2400 = vmatprep.subr.bf16.mxu0 0
        %2401 = vmatpush1.bf16.msra.mxu0 0
        %2402 = vmatprep.subr.bf16.mxu0 0
        %2403 = vmatpush1.bf16.msra.mxu0 0
        %2404 = vmatprep.subr.bf16.mxu0 0
        %2405 = vmatpush1.bf16.msra.mxu0 0
        %2406 = vmatprep.subr.bf16.mxu0 0
        %2407 = vmatpush1.bf16.msra.mxu0 0
        %2408 = vmatprep.subr.bf16.mxu0 0
        %2409 = vmatpush1.bf16.msra.mxu0 0
        %2410 = vmatprep.subr.bf16.mxu0 0
        %2411 = vmatpush1.bf16.msra.mxu0 0
        %2412 = vmatprep.subr.bf16.mxu0 0
        %2413 = vmatpush1.bf16.msra.mxu0 0
        %2414 = vmatprep.subr.bf16.mxu0 0
        %2415 = vmatpush1.bf16.msra.mxu0 0
        %2416 = vmatprep.mubr.bf16.mxu0 0
        %2417 = vmatmul.mubr.bf16.gmra.mrb[0].mxu0 %v1767
        %v2418 = vpop.f32.mrb[0].mxu0
        %v2419 = vadd.f32 0.0, %v2418
        %v2420 = vpop.f32.mrb[0].mxu0
        %v2421 = vadd.f32 0.0, %v2420
        %v2422 = vpop.f32.mrb[0].mxu0
        %v2423 = vpop.f32.mrb[0].mxu0
        %2424 = vdwg.mxu0
        %2425 = vmatprep.subr.bf16.mxu0 %v766
        %2426 = vmatpush1.bf16.msra.mxu0 %v765
        %2427 = vmatprep.subr.bf16.mxu0 %v802
        %2428 = vmatpush1.bf16.msra.mxu0 %v801
        %2429 = vmatprep.subr.bf16.mxu0 %v1018
        %2430 = vmatpush1.bf16.msra.mxu0 %v1015
        %2431 = vmatprep.subr.bf16.mxu0 0
        %2432 = vmatpush1.bf16.msra.mxu0 0
        %2433 = vmatprep.subr.bf16.mxu0 0
        %2434 = vmatpush1.bf16.msra.mxu0 0
        %2435 = vmatprep.subr.bf16.mxu0 0
        %2436 = vmatpush1.bf16.msra.mxu0 0
        %2437 = vmatprep.subr.bf16.mxu0 0
        %2438 = vmatpush1.bf16.msra.mxu0 0
        %2439 = vmatprep.subr.bf16.mxu0 0
        %2440 = vmatpush1.bf16.msra.mxu0 0
        %2441 = vmatprep.subr.bf16.mxu0 0
        %2442 = vmatpush1.bf16.msra.mxu0 0
        %2443 = vmatprep.subr.bf16.mxu0 0
        %2444 = vmatpush1.bf16.msra.mxu0 0
        %2445 = vmatprep.subr.bf16.mxu0 0
        %2446 = vmatpush1.bf16.msra.mxu0 0
        %2447 = vmatprep.subr.bf16.mxu0 0
        %2448 = vmatpush1.bf16.msra.mxu0 0
        %2449 = vmatprep.subr.bf16.mxu0 0
        %2450 = vmatpush1.bf16.msra.mxu0 0
        %2451 = vmatprep.subr.bf16.mxu0 0
        %2452 = vmatpush1.bf16.msra.mxu0 0
        %2453 = vmatprep.subr.bf16.mxu0 0
        %2454 = vmatpush1.bf16.msra.mxu0 0
        %2455 = vmatprep.subr.bf16.mxu0 0
        %2456 = vmatpush1.bf16.msra.mxu0 0
        %2457 = vmatprep.mubr.bf16.mxu0 0
        %2458 = vmatmul.mubr.bf16.gmra.mrb[0].mxu0 %v1767
        %v2459 = vpop.f32.mrb[0].mxu0
        %v2460 = vadd.f32 0.0, %v2459
        %v2461 = vpop.f32.mrb[0].mxu0
        %v2462 = vadd.f32 0.0, %v2461
        %v2463 = vpop.f32.mrb[0].mxu0
        %v2464 = vpop.f32.mrb[0].mxu0
        %2465 = vdwg.mxu0
        %2466 = vmatprep.subr.bf16.mxu0 %v768
        %2467 = vmatpush1.bf16.msra.mxu0 %v767
        %2468 = vmatprep.subr.bf16.mxu0 %v804
        %2469 = vmatpush1.bf16.msra.mxu0 %v803
        %2470 = vmatprep.subr.bf16.mxu0 %v1024
        %2471 = vmatpush1.bf16.msra.mxu0 %v1021
        %2472 = vmatprep.subr.bf16.mxu0 0
        %2473 = vmatpush1.bf16.msra.mxu0 0
        %2474 = vmatprep.subr.bf16.mxu0 0
        %2475 = vmatpush1.bf16.msra.mxu0 0
        %2476 = vmatprep.subr.bf16.mxu0 0
        %2477 = vmatpush1.bf16.msra.mxu0 0
        %2478 = vmatprep.subr.bf16.mxu0 0
        %2479 = vmatpush1.bf16.msra.mxu0 0
        %2480 = vmatprep.subr.bf16.mxu0 0
        %2481 = vmatpush1.bf16.msra.mxu0 0
        %2482 = vmatprep.subr.bf16.mxu0 0
        %2483 = vmatpush1.bf16.msra.mxu0 0
        %2484 = vmatprep.subr.bf16.mxu0 0
        %2485 = vmatpush1.bf16.msra.mxu0 0
        %2486 = vmatprep.subr.bf16.mxu0 0
        %2487 = vmatpush1.bf16.msra.mxu0 0
        %2488 = vmatprep.subr.bf16.mxu0 0
        %2489 = vmatpush1.bf16.msra.mxu0 0
        %2490 = vmatprep.subr.bf16.mxu0 0
        %2491 = vmatpush1.bf16.msra.mxu0 0
        %2492 = vmatprep.subr.bf16.mxu0 0
        %2493 = vmatpush1.bf16.msra.mxu0 0
        %2494 = vmatprep.subr.bf16.mxu0 0
        %2495 = vmatpush1.bf16.msra.mxu0 0
        %2496 = vmatprep.subr.bf16.mxu0 0
        %2497 = vmatpush1.bf16.msra.mxu0 0
        %2498 = vmatprep.mubr.bf16.mxu0 0
        %2499 = vmatmul.mubr.bf16.gmra.mrb[0].mxu0 %v1767
        %v2500 = vpop.f32.mrb[0].mxu0
        %v2501 = vadd.f32 0.0, %v2500
        %v2502 = vpop.f32.mrb[0].mxu0
        %v2503 = vadd.f32 0.0, %v2502
        %v2504 = vpop.f32.mrb[0].mxu0
        %v2505 = vpop.f32.mrb[0].mxu0
        %2506 = vdwg.mxu0
        %v2507 = vmax.f32 %v1061, %v1804
        %v2508 = vmax.f32 %v1063, %v1806
        %v2509 = vmax.f32 %v1102, %v1845
        %v2510 = vmax.f32 %v1104, %v1847
        %v2511 = vmax.f32 %v1143, %v1886
        %v2512 = vmax.f32 %v1145, %v1888
        %v2513 = vmax.f32 %v1184, %v1927
        %v2514 = vmax.f32 %v1186, %v1929
        %v2515 = vmax.f32 %v1225, %v1968
        %v2516 = vmax.f32 %v1227, %v1970
        %v2517 = vmax.f32 %v1266, %v2009
        %v2518 = vmax.f32 %v1268, %v2011
        %v2519 = vmax.f32 %v1307, %v2050
        %v2520 = vmax.f32 %v1309, %v2052
        %v2521 = vmax.f32 %v1348, %v2091
        %v2522 = vmax.f32 %v1350, %v2093
        %v2523 = vmax.f32 %v1389, %v2132
        %v2524 = vmax.f32 %v1391, %v2134
        %v2525 = vmax.f32 %v1430, %v2173
        %v2526 = vmax.f32 %v1432, %v2175
        %v2527 = vmax.f32 %v1471, %v2214
        %v2528 = vmax.f32 %v1473, %v2216
        %v2529 = vmax.f32 %v1512, %v2255
        %v2530 = vmax.f32 %v1514, %v2257
        %v2531 = vmax.f32 %v1553, %v2296
        %v2532 = vmax.f32 %v1555, %v2298
        %v2533 = vmax.f32 %v1594, %v2337
        %v2534 = vmax.f32 %v1596, %v2339
        %v2535 = vmax.f32 %v1635, %v2378
        %v2536 = vmax.f32 %v1637, %v2380
        %v2537 = vmax.f32 %v1676, %v2419
        %v2538 = vmax.f32 %v1678, %v2421
        %v2539 = vmax.f32 %v1717, %v2460
        %v2540 = vmax.f32 %v1719, %v2462
        %v2541 = vmax.f32 %v1758, %v2501
        %v2542 = vmax.f32 %v1760, %v2503
        %s2543 = scalar_lea.vmem %s1, 8
        %v2544 = vld [vmem:[%s2543] sm:$0x7]
        %v2546 = vsel %vm913, %v2544, 0
        %2548 = vmatprep.subr.bf16.mxu0 %v734
        %2549 = vmatpush1.bf16.msra.mxu0 %v733
        %2550 = vmatprep.subr.bf16.mxu0 %v770
        %2551 = vmatpush1.bf16.msra.mxu0 %v769
        %2552 = vmatprep.subr.bf16.mxu0 %v922
        %2553 = vmatpush1.bf16.msra.mxu0 %v919
        %2554 = vmatprep.subr.bf16.mxu0 0
        %2555 = vmatpush1.bf16.msra.mxu0 0
        %2556 = vmatprep.subr.bf16.mxu0 0
        %2557 = vmatpush1.bf16.msra.mxu0 0
        %2558 = vmatprep.subr.bf16.mxu0 0
        %2559 = vmatpush1.bf16.msra.mxu0 0
        %2560 = vmatprep.subr.bf16.mxu0 0
        %2561 = vmatpush1.bf16.msra.mxu0 0
        %2562 = vmatprep.subr.bf16.mxu0 0
        %2563 = vmatpush1.bf16.msra.mxu0 0
        %2564 = vmatprep.subr.bf16.mxu0 0
        %2565 = vmatpush1.bf16.msra.mxu0 0
        %2566 = vmatprep.subr.bf16.mxu0 0
        %2567 = vmatpush1.bf16.msra.mxu0 0
        %2568 = vmatprep.subr.bf16.mxu0 0
        %2569 = vmatpush1.bf16.msra.mxu0 0
        %2570 = vmatprep.subr.bf16.mxu0 0
        %2571 = vmatpush1.bf16.msra.mxu0 0
        %2572 = vmatprep.subr.bf16.mxu0 0
        %2573 = vmatpush1.bf16.msra.mxu0 0
        %2574 = vmatprep.subr.bf16.mxu0 0
        %2575 = vmatpush1.bf16.msra.mxu0 0
        %2576 = vmatprep.subr.bf16.mxu0 0
        %2577 = vmatpush1.bf16.msra.mxu0 0
        %2578 = vmatprep.subr.bf16.mxu0 0
        %2579 = vmatpush1.bf16.msra.mxu0 0
        %2580 = vmatprep.mubr.bf16.mxu0 0
        %2581 = vmatmul.mubr.bf16.gmra.mrb[0].mxu0 %v2546
        %v2582 = vpop.f32.mrb[0].mxu0
        %v2583 = vadd.f32 0.0, %v2582
        %v2584 = vpop.f32.mrb[0].mxu0
        %v2585 = vadd.f32 0.0, %v2584
        %v2586 = vpop.f32.mrb[0].mxu0
        %v2587 = vpop.f32.mrb[0].mxu0
        %2588 = vdwg.mxu0
        %2589 = vmatprep.subr.bf16.mxu0 %v736
        %2590 = vmatpush1.bf16.msra.mxu0 %v735
        %2591 = vmatprep.subr.bf16.mxu0 %v772
        %2592 = vmatpush1.bf16.msra.mxu0 %v771
        %2593 = vmatprep.subr.bf16.mxu0 %v928
        %2594 = vmatpush1.bf16.msra.mxu0 %v925
        %2595 = vmatprep.subr.bf16.mxu0 0
        %2596 = vmatpush1.bf16.msra.mxu0 0
        %2597 = vmatprep.subr.bf16.mxu0 0
        %2598 = vmatpush1.bf16.msra.mxu0 0
        %2599 = vmatprep.subr.bf16.mxu0 0
        %2600 = vmatpush1.bf16.msra.mxu0 0
        %2601 = vmatprep.subr.bf16.mxu0 0
        %2602 = vmatpush1.bf16.msra.mxu0 0
        %2603 = vmatprep.subr.bf16.mxu0 0
        %2604 = vmatpush1.bf16.msra.mxu0 0
        %2605 = vmatprep.subr.bf16.mxu0 0
        %2606 = vmatpush1.bf16.msra.mxu0 0
        %2607 = vmatprep.subr.bf16.mxu0 0
        %2608 = vmatpush1.bf16.msra.mxu0 0
        %2609 = vmatprep.subr.bf16.mxu0 0
        %2610 = vmatpush1.bf16.msra.mxu0 0
        %2611 = vmatprep.subr.bf16.mxu0 0
        %2612 = vmatpush1.bf16.msra.mxu0 0
        %2613 = vmatprep.subr.bf16.mxu0 0
        %2614 = vmatpush1.bf16.msra.mxu0 0
        %2615 = vmatprep.subr.bf16.mxu0 0
        %2616 = vmatpush1.bf16.msra.mxu0 0
        %2617 = vmatprep.subr.bf16.mxu0 0
        %2618 = vmatpush1.bf16.msra.mxu0 0
        %2619 = vmatprep.subr.bf16.mxu0 0
        %2620 = vmatpush1.bf16.msra.mxu0 0
        %2621 = vmatprep.mubr.bf16.mxu0 0
        %2622 = vmatmul.mubr.bf16.gmra.mrb[0].mxu0 %v2546
        %v2623 = vpop.f32.mrb[0].mxu0
        %v2624 = vadd.f32 0.0, %v2623
        %v2625 = vpop.f32.mrb[0].mxu0
        %v2626 = vadd.f32 0.0, %v2625
        %v2627 = vpop.f32.mrb[0].mxu0
        %v2628 = vpop.f32.mrb[0].mxu0
        %2629 = vdwg.mxu0
        %2630 = vmatprep.subr.bf16.mxu0 %v738
        %2631 = vmatpush1.bf16.msra.mxu0 %v737
        %2632 = vmatprep.subr.bf16.mxu0 %v774
        %2633 = vmatpush1.bf16.msra.mxu0 %v773
        %2634 = vmatprep.subr.bf16.mxu0 %v934
        %2635 = vmatpush1.bf16.msra.mxu0 %v931
        %2636 = vmatprep.subr.bf16.mxu0 0
        %2637 = vmatpush1.bf16.msra.mxu0 0
        %2638 = vmatprep.subr.bf16.mxu0 0
        %2639 = vmatpush1.bf16.msra.mxu0 0
        %2640 = vmatprep.subr.bf16.mxu0 0
        %2641 = vmatpush1.bf16.msra.mxu0 0
        %2642 = vmatprep.subr.bf16.mxu0 0
        %2643 = vmatpush1.bf16.msra.mxu0 0
        %2644 = vmatprep.subr.bf16.mxu0 0
        %2645 = vmatpush1.bf16.msra.mxu0 0
        %2646 = vmatprep.subr.bf16.mxu0 0
        %2647 = vmatpush1.bf16.msra.mxu0 0
        %2648 = vmatprep.subr.bf16.mxu0 0
        %2649 = vmatpush1.bf16.msra.mxu0 0
        %2650 = vmatprep.subr.bf16.mxu0 0
        %2651 = vmatpush1.bf16.msra.mxu0 0
        %2652 = vmatprep.subr.bf16.mxu0 0
        %2653 = vmatpush1.bf16.msra.mxu0 0
        %2654 = vmatprep.subr.bf16.mxu0 0
        %2655 = vmatpush1.bf16.msra.mxu0 0
        %2656 = vmatprep.subr.bf16.mxu0 0
        %2657 = vmatpush1.bf16.msra.mxu0 0
        %2658 = vmatprep.subr.bf16.mxu0 0
        %2659 = vmatpush1.bf16.msra.mxu0 0
        %2660 = vmatprep.subr.bf16.mxu0 0
        %2661 = vmatpush1.bf16.msra.mxu0 0
        %2662 = vmatprep.mubr.bf16.mxu0 0
        %2663 = vmatmul.mubr.bf16.gmra.mrb[0].mxu0 %v2546
        %v2664 = vpop.f32.mrb[0].mxu0
        %v2665 = vadd.f32 0.0, %v2664
        %v2666 = vpop.f32.mrb[0].mxu0
        %v2667 = vadd.f32 0.0, %v2666
        %v2668 = vpop.f32.mrb[0].mxu0
        %v2669 = vpop.f32.mrb[0].mxu0
        %2670 = vdwg.mxu0
        %2671 = vmatprep.subr.bf16.mxu0 %v740
        %2672 = vmatpush1.bf16.msra.mxu0 %v739
        %2673 = vmatprep.subr.bf16.mxu0 %v776
        %2674 = vmatpush1.bf16.msra.mxu0 %v775
        %2675 = vmatprep.subr.bf16.mxu0 %v940
        %2676 = vmatpush1.bf16.msra.mxu0 %v937
        %2677 = vmatprep.subr.bf16.mxu0 0
        %2678 = vmatpush1.bf16.msra.mxu0 0
        %2679 = vmatprep.subr.bf16.mxu0 0
        %2680 = vmatpush1.bf16.msra.mxu0 0
        %2681 = vmatprep.subr.bf16.mxu0 0
        %2682 = vmatpush1.bf16.msra.mxu0 0
        %2683 = vmatprep.subr.bf16.mxu0 0
        %2684 = vmatpush1.bf16.msra.mxu0 0
        %2685 = vmatprep.subr.bf16.mxu0 0
        %2686 = vmatpush1.bf16.msra.mxu0 0
        %2687 = vmatprep.subr.bf16.mxu0 0
        %2688 = vmatpush1.bf16.msra.mxu0 0
        %2689 = vmatprep.subr.bf16.mxu0 0
        %2690 = vmatpush1.bf16.msra.mxu0 0
        %2691 = vmatprep.subr.bf16.mxu0 0
        %2692 = vmatpush1.bf16.msra.mxu0 0
        %2693 = vmatprep.subr.bf16.mxu0 0
        %2694 = vmatpush1.bf16.msra.mxu0 0
        %2695 = vmatprep.subr.bf16.mxu0 0
        %2696 = vmatpush1.bf16.msra.mxu0 0
        %2697 = vmatprep.subr.bf16.mxu0 0
        %2698 = vmatpush1.bf16.msra.mxu0 0
        %2699 = vmatprep.subr.bf16.mxu0 0
        %2700 = vmatpush1.bf16.msra.mxu0 0
        %2701 = vmatprep.subr.bf16.mxu0 0
        %2702 = vmatpush1.bf16.msra.mxu0 0
        %2703 = vmatprep.mubr.bf16.mxu0 0
        %2704 = vmatmul.mubr.bf16.gmra.mrb[0].mxu0 %v2546
        %v2705 = vpop.f32.mrb[0].mxu0
        %v2706 = vadd.f32 0.0, %v2705
        %v2707 = vpop.f32.mrb[0].mxu0
        %v2708 = vadd.f32 0.0, %v2707
        %v2709 = vpop.f32.mrb[0].mxu0
        %v2710 = vpop.f32.mrb[0].mxu0
        %2711 = vdwg.mxu0
        %2712 = vmatprep.subr.bf16.mxu0 %v742
        %2713 = vmatpush1.bf16.msra.mxu0 %v741
        %2714 = vmatprep.subr.bf16.mxu0 %v778
        %2715 = vmatpush1.bf16.msra.mxu0 %v777
        %2716 = vmatprep.subr.bf16.mxu0 %v946
        %2717 = vmatpush1.bf16.msra.mxu0 %v943
        %2718 = vmatprep.subr.bf16.mxu0 0
        %2719 = vmatpush1.bf16.msra.mxu0 0
        %2720 = vmatprep.subr.bf16.mxu0 0
        %2721 = vmatpush1.bf16.msra.mxu0 0
        %2722 = vmatprep.subr.bf16.mxu0 0
        %2723 = vmatpush1.bf16.msra.mxu0 0
        %2724 = vmatprep.subr.bf16.mxu0 0
        %2725 = vmatpush1.bf16.msra.mxu0 0
        %2726 = vmatprep.subr.bf16.mxu0 0
        %2727 = vmatpush1.bf16.msra.mxu0 0
        %2728 = vmatprep.subr.bf16.mxu0 0
        %2729 = vmatpush1.bf16.msra.mxu0 0
        %2730 = vmatprep.subr.bf16.mxu0 0
        %2731 = vmatpush1.bf16.msra.mxu0 0
        %2732 = vmatprep.subr.bf16.mxu0 0
        %2733 = vmatpush1.bf16.msra.mxu0 0
        %2734 = vmatprep.subr.bf16.mxu0 0
        %2735 = vmatpush1.bf16.msra.mxu0 0
        %2736 = vmatprep.subr.bf16.mxu0 0
        %2737 = vmatpush1.bf16.msra.mxu0 0
        %2738 = vmatprep.subr.bf16.mxu0 0
        %2739 = vmatpush1.bf16.msra.mxu0 0
        %2740 = vmatprep.subr.bf16.mxu0 0
        %2741 = vmatpush1.bf16.msra.mxu0 0
        %2742 = vmatprep.subr.bf16.mxu0 0
        %2743 = vmatpush1.bf16.msra.mxu0 0
        %2744 = vmatprep.mubr.bf16.mxu0 0
        %2745 = vmatmul.mubr.bf16.gmra.mrb[0].mxu0 %v2546
        %v2746 = vpop.f32.mrb[0].mxu0
        %v2747 = vadd.f32 0.0, %v2746
        %v2748 = vpop.f32.mrb[0].mxu0
        %v2749 = vadd.f32 0.0, %v2748
        %v2750 = vpop.f32.mrb[0].mxu0
        %v2751 = vpop.f32.mrb[0].mxu0
        %2752 = vdwg.mxu0
        %2753 = vmatprep.subr.bf16.mxu0 %v744
        %2754 = vmatpush1.bf16.msra.mxu0 %v743
        %2755 = vmatprep.subr.bf16.mxu0 %v780
        %2756 = vmatpush1.bf16.msra.mxu0 %v779
        %2757 = vmatprep.subr.bf16.mxu0 %v952
        %2758 = vmatpush1.bf16.msra.mxu0 %v949
        %2759 = vmatprep.subr.bf16.mxu0 0
        %2760 = vmatpush1.bf16.msra.mxu0 0
        %2761 = vmatprep.subr.bf16.mxu0 0
        %2762 = vmatpush1.bf16.msra.mxu0 0
        %2763 = vmatprep.subr.bf16.mxu0 0
        %2764 = vmatpush1.bf16.msra.mxu0 0
        %2765 = vmatprep.subr.bf16.mxu0 0
        %2766 = vmatpush1.bf16.msra.mxu0 0
        %2767 = vmatprep.subr.bf16.mxu0 0
        %2768 = vmatpush1.bf16.msra.mxu0 0
        %2769 = vmatprep.subr.bf16.mxu0 0
        %2770 = vmatpush1.bf16.msra.mxu0 0
        %2771 = vmatprep.subr.bf16.mxu0 0
        %2772 = vmatpush1.bf16.msra.mxu0 0
        %2773 = vmatprep.subr.bf16.mxu0 0
        %2774 = vmatpush1.bf16.msra.mxu0 0
        %2775 = vmatprep.subr.bf16.mxu0 0
        %2776 = vmatpush1.bf16.msra.mxu0 0
        %2777 = vmatprep.subr.bf16.mxu0 0
        %2778 = vmatpush1.bf16.msra.mxu0 0
        %2779 = vmatprep.subr.bf16.mxu0 0
        %2780 = vmatpush1.bf16.msra.mxu0 0
        %2781 = vmatprep.subr.bf16.mxu0 0
        %2782 = vmatpush1.bf16.msra.mxu0 0
        %2783 = vmatprep.subr.bf16.mxu0 0
        %2784 = vmatpush1.bf16.msra.mxu0 0
        %2785 = vmatprep.mubr.bf16.mxu0 0
        %2786 = vmatmul.mubr.bf16.gmra.mrb[0].mxu0 %v2546
        %v2787 = vpop.f32.mrb[0].mxu0
        %v2788 = vadd.f32 0.0, %v2787
        %v2789 = vpop.f32.mrb[0].mxu0
        %v2790 = vadd.f32 0.0, %v2789
        %v2791 = vpop.f32.mrb[0].mxu0
        %v2792 = vpop.f32.mrb[0].mxu0
        %2793 = vdwg.mxu0
        %2794 = vmatprep.subr.bf16.mxu0 %v746
        %2795 = vmatpush1.bf16.msra.mxu0 %v745
        %2796 = vmatprep.subr.bf16.mxu0 %v782
        %2797 = vmatpush1.bf16.msra.mxu0 %v781
        %2798 = vmatprep.subr.bf16.mxu0 %v958
        %2799 = vmatpush1.bf16.msra.mxu0 %v955
        %2800 = vmatprep.subr.bf16.mxu0 0
        %2801 = vmatpush1.bf16.msra.mxu0 0
        %2802 = vmatprep.subr.bf16.mxu0 0
        %2803 = vmatpush1.bf16.msra.mxu0 0
        %2804 = vmatprep.subr.bf16.mxu0 0
        %2805 = vmatpush1.bf16.msra.mxu0 0
        %2806 = vmatprep.subr.bf16.mxu0 0
        %2807 = vmatpush1.bf16.msra.mxu0 0
        %2808 = vmatprep.subr.bf16.mxu0 0
        %2809 = vmatpush1.bf16.msra.mxu0 0
        %2810 = vmatprep.subr.bf16.mxu0 0
        %2811 = vmatpush1.bf16.msra.mxu0 0
        %2812 = vmatprep.subr.bf16.mxu0 0
        %2813 = vmatpush1.bf16.msra.mxu0 0
        %2814 = vmatprep.subr.bf16.mxu0 0
        %2815 = vmatpush1.bf16.msra.mxu0 0
        %2816 = vmatprep.subr.bf16.mxu0 0
        %2817 = vmatpush1.bf16.msra.mxu0 0
        %2818 = vmatprep.subr.bf16.mxu0 0
        %2819 = vmatpush1.bf16.msra.mxu0 0
        %2820 = vmatprep.subr.bf16.mxu0 0
        %2821 = vmatpush1.bf16.msra.mxu0 0
        %2822 = vmatprep.subr.bf16.mxu0 0
        %2823 = vmatpush1.bf16.msra.mxu0 0
        %2824 = vmatprep.subr.bf16.mxu0 0
        %2825 = vmatpush1.bf16.msra.mxu0 0
        %2826 = vmatprep.mubr.bf16.mxu0 0
        %2827 = vmatmul.mubr.bf16.gmra.mrb[0].mxu0 %v2546
        %v2828 = vpop.f32.mrb[0].mxu0
        %v2829 = vadd.f32 0.0, %v2828
        %v2830 = vpop.f32.mrb[0].mxu0
        %v2831 = vadd.f32 0.0, %v2830
        %v2832 = vpop.f32.mrb[0].mxu0
        %v2833 = vpop.f32.mrb[0].mxu0
        %2834 = vdwg.mxu0
        %2835 = vmatprep.subr.bf16.mxu0 %v748
        %2836 = vmatpush1.bf16.msra.mxu0 %v747
        %2837 = vmatprep.subr.bf16.mxu0 %v784
        %2838 = vmatpush1.bf16.msra.mxu0 %v783
        %2839 = vmatprep.subr.bf16.mxu0 %v964
        %2840 = vmatpush1.bf16.msra.mxu0 %v961
        %2841 = vmatprep.subr.bf16.mxu0 0
        %2842 = vmatpush1.bf16.msra.mxu0 0
        %2843 = vmatprep.subr.bf16.mxu0 0
        %2844 = vmatpush1.bf16.msra.mxu0 0
        %2845 = vmatprep.subr.bf16.mxu0 0
        %2846 = vmatpush1.bf16.msra.mxu0 0
        %2847 = vmatprep.subr.bf16.mxu0 0
        %2848 = vmatpush1.bf16.msra.mxu0 0
        %2849 = vmatprep.subr.bf16.mxu0 0
        %2850 = vmatpush1.bf16.msra.mxu0 0
        %2851 = vmatprep.subr.bf16.mxu0 0
        %2852 = vmatpush1.bf16.msra.mxu0 0
        %2853 = vmatprep.subr.bf16.mxu0 0
        %2854 = vmatpush1.bf16.msra.mxu0 0
        %2855 = vmatprep.subr.bf16.mxu0 0
        %2856 = vmatpush1.bf16.msra.mxu0 0
        %2857 = vmatprep.subr.bf16.mxu0 0
        %2858 = vmatpush1.bf16.msra.mxu0 0
        %2859 = vmatprep.subr.bf16.mxu0 0
        %2860 = vmatpush1.bf16.msra.mxu0 0
        %2861 = vmatprep.subr.bf16.mxu0 0
        %2862 = vmatpush1.bf16.msra.mxu0 0
        %2863 = vmatprep.subr.bf16.mxu0 0
        %2864 = vmatpush1.bf16.msra.mxu0 0
        %2865 = vmatprep.subr.bf16.mxu0 0
        %2866 = vmatpush1.bf16.msra.mxu0 0
        %2867 = vmatprep.mubr.bf16.mxu0 0
        %2868 = vmatmul.mubr.bf16.gmra.mrb[0].mxu0 %v2546
        %v2869 = vpop.f32.mrb[0].mxu0
        %v2870 = vadd.f32 0.0, %v2869
        %v2871 = vpop.f32.mrb[0].mxu0
        %v2872 = vadd.f32 0.0, %v2871
        %v2873 = vpop.f32.mrb[0].mxu0
        %v2874 = vpop.f32.mrb[0].mxu0
        %2875 = vdwg.mxu0
        %2876 = vmatprep.subr.bf16.mxu0 %v750
        %2877 = vmatpush1.bf16.msra.mxu0 %v749
        %2878 = vmatprep.subr.bf16.mxu0 %v786
        %2879 = vmatpush1.bf16.msra.mxu0 %v785
        %2880 = vmatprep.subr.bf16.mxu0 %v970
        %2881 = vmatpush1.bf16.msra.mxu0 %v967
        %2882 = vmatprep.subr.bf16.mxu0 0
        %2883 = vmatpush1.bf16.msra.mxu0 0
        %2884 = vmatprep.subr.bf16.mxu0 0
        %2885 = vmatpush1.bf16.msra.mxu0 0
        %2886 = vmatprep.subr.bf16.mxu0 0
        %2887 = vmatpush1.bf16.msra.mxu0 0
        %2888 = vmatprep.subr.bf16.mxu0 0
        %2889 = vmatpush1.bf16.msra.mxu0 0
        %2890 = vmatprep.subr.bf16.mxu0 0
        %2891 = vmatpush1.bf16.msra.mxu0 0
        %2892 = vmatprep.subr.bf16.mxu0 0
        %2893 = vmatpush1.bf16.msra.mxu0 0
        %2894 = vmatprep.subr.bf16.mxu0 0
        %2895 = vmatpush1.bf16.msra.mxu0 0
        %2896 = vmatprep.subr.bf16.mxu0 0
        %2897 = vmatpush1.bf16.msra.mxu0 0
        %2898 = vmatprep.subr.bf16.mxu0 0
        %2899 = vmatpush1.bf16.msra.mxu0 0
        %2900 = vmatprep.subr.bf16.mxu0 0
        %2901 = vmatpush1.bf16.msra.mxu0 0
        %2902 = vmatprep.subr.bf16.mxu0 0
        %2903 = vmatpush1.bf16.msra.mxu0 0
        %2904 = vmatprep.subr.bf16.mxu0 0
        %2905 = vmatpush1.bf16.msra.mxu0 0
        %2906 = vmatprep.subr.bf16.mxu0 0
        %2907 = vmatpush1.bf16.msra.mxu0 0
        %2908 = vmatprep.mubr.bf16.mxu0 0
        %2909 = vmatmul.mubr.bf16.gmra.mrb[0].mxu0 %v2546
        %v2910 = vpop.f32.mrb[0].mxu0
        %v2911 = vadd.f32 0.0, %v2910
        %v2912 = vpop.f32.mrb[0].mxu0
        %v2913 = vadd.f32 0.0, %v2912
        %v2914 = vpop.f32.mrb[0].mxu0
        %v2915 = vpop.f32.mrb[0].mxu0
        %2916 = vdwg.mxu0
        %2917 = vmatprep.subr.bf16.mxu0 %v752
        %2918 = vmatpush1.bf16.msra.mxu0 %v751
        %2919 = vmatprep.subr.bf16.mxu0 %v788
        %2920 = vmatpush1.bf16.msra.mxu0 %v787
        %2921 = vmatprep.subr.bf16.mxu0 %v976
        %2922 = vmatpush1.bf16.msra.mxu0 %v973
        %2923 = vmatprep.subr.bf16.mxu0 0
        %2924 = vmatpush1.bf16.msra.mxu0 0
        %2925 = vmatprep.subr.bf16.mxu0 0
        %2926 = vmatpush1.bf16.msra.mxu0 0
        %2927 = vmatprep.subr.bf16.mxu0 0
        %2928 = vmatpush1.bf16.msra.mxu0 0
        %2929 = vmatprep.subr.bf16.mxu0 0
        %2930 = vmatpush1.bf16.msra.mxu0 0
        %2931 = vmatprep.subr.bf16.mxu0 0
        %2932 = vmatpush1.bf16.msra.mxu0 0
        %2933 = vmatprep.subr.bf16.mxu0 0
        %2934 = vmatpush1.bf16.msra.mxu0 0
        %2935 = vmatprep.subr.bf16.mxu0 0
        %2936 = vmatpush1.bf16.msra.mxu0 0
        %2937 = vmatprep.subr.bf16.mxu0 0
        %2938 = vmatpush1.bf16.msra.mxu0 0
        %2939 = vmatprep.subr.bf16.mxu0 0
        %2940 = vmatpush1.bf16.msra.mxu0 0
        %2941 = vmatprep.subr.bf16.mxu0 0
        %2942 = vmatpush1.bf16.msra.mxu0 0
        %2943 = vmatprep.subr.bf16.mxu0 0
        %2944 = vmatpush1.bf16.msra.mxu0 0
        %2945 = vmatprep.subr.bf16.mxu0 0
        %2946 = vmatpush1.bf16.msra.mxu0 0
        %2947 = vmatprep.subr.bf16.mxu0 0
        %2948 = vmatpush1.bf16.msra.mxu0 0
        %2949 = vmatprep.mubr.bf16.mxu0 0
        %2950 = vmatmul.mubr.bf16.gmra.mrb[0].mxu0 %v2546
        %v2951 = vpop.f32.mrb[0].mxu0
        %v2952 = vadd.f32 0.0, %v2951
        %v2953 = vpop.f32.mrb[0].mxu0
        %v2954 = vadd.f32 0.0, %v2953
        %v2955 = vpop.f32.mrb[0].mxu0
        %v2956 = vpop.f32.mrb[0].mxu0
        %2957 = vdwg.mxu0
        %2958 = vmatprep.subr.bf16.mxu0 %v754
        %2959 = vmatpush1.bf16.msra.mxu0 %v753
        %2960 = vmatprep.subr.bf16.mxu0 %v790
        %2961 = vmatpush1.bf16.msra.mxu0 %v789
        %2962 = vmatprep.subr.bf16.mxu0 %v982
        %2963 = vmatpush1.bf16.msra.mxu0 %v979
        %2964 = vmatprep.subr.bf16.mxu0 0
        %2965 = vmatpush1.bf16.msra.mxu0 0
        %2966 = vmatprep.subr.bf16.mxu0 0
        %2967 = vmatpush1.bf16.msra.mxu0 0
        %2968 = vmatprep.subr.bf16.mxu0 0
        %2969 = vmatpush1.bf16.msra.mxu0 0
        %2970 = vmatprep.subr.bf16.mxu0 0
        %2971 = vmatpush1.bf16.msra.mxu0 0
        %2972 = vmatprep.subr.bf16.mxu0 0
        %2973 = vmatpush1.bf16.msra.mxu0 0
        %2974 = vmatprep.subr.bf16.mxu0 0
        %2975 = vmatpush1.bf16.msra.mxu0 0
        %2976 = vmatprep.subr.bf16.mxu0 0
        %2977 = vmatpush1.bf16.msra.mxu0 0
        %2978 = vmatprep.subr.bf16.mxu0 0
        %2979 = vmatpush1.bf16.msra.mxu0 0
        %2980 = vmatprep.subr.bf16.mxu0 0
        %2981 = vmatpush1.bf16.msra.mxu0 0
        %2982 = vmatprep.subr.bf16.mxu0 0
        %2983 = vmatpush1.bf16.msra.mxu0 0
        %2984 = vmatprep.subr.bf16.mxu0 0
        %2985 = vmatpush1.bf16.msra.mxu0 0
        %2986 = vmatprep.subr.bf16.mxu0 0
        %2987 = vmatpush1.bf16.msra.mxu0 0
        %2988 = vmatprep.subr.bf16.mxu0 0
        %2989 = vmatpush1.bf16.msra.mxu0 0
        %2990 = vmatprep.mubr.bf16.mxu0 0
        %2991 = vmatmul.mubr.bf16.gmra.mrb[0].mxu0 %v2546
        %v2992 = vpop.f32.mrb[0].mxu0
        %v2993 = vadd.f32 0.0, %v2992
        %v2994 = vpop.f32.mrb[0].mxu0
        %v2995 = vadd.f32 0.0, %v2994
        %v2996 = vpop.f32.mrb[0].mxu0
        %v2997 = vpop.f32.mrb[0].mxu0
        %2998 = vdwg.mxu0
        %2999 = vmatprep.subr.bf16.mxu0 %v756
        %3000 = vmatpush1.bf16.msra.mxu0 %v755
        %3001 = vmatprep.subr.bf16.mxu0 %v792
        %3002 = vmatpush1.bf16.msra.mxu0 %v791
        %3003 = vmatprep.subr.bf16.mxu0 %v988
        %3004 = vmatpush1.bf16.msra.mxu0 %v985
        %3005 = vmatprep.subr.bf16.mxu0 0
        %3006 = vmatpush1.bf16.msra.mxu0 0
        %3007 = vmatprep.subr.bf16.mxu0 0
        %3008 = vmatpush1.bf16.msra.mxu0 0
        %3009 = vmatprep.subr.bf16.mxu0 0
        %3010 = vmatpush1.bf16.msra.mxu0 0
        %3011 = vmatprep.subr.bf16.mxu0 0
        %3012 = vmatpush1.bf16.msra.mxu0 0
        %3013 = vmatprep.subr.bf16.mxu0 0
        %3014 = vmatpush1.bf16.msra.mxu0 0
        %3015 = vmatprep.subr.bf16.mxu0 0
        %3016 = vmatpush1.bf16.msra.mxu0 0
        %3017 = vmatprep.subr.bf16.mxu0 0
        %3018 = vmatpush1.bf16.msra.mxu0 0
        %3019 = vmatprep.subr.bf16.mxu0 0
        %3020 = vmatpush1.bf16.msra.mxu0 0
        %3021 = vmatprep.subr.bf16.mxu0 0
        %3022 = vmatpush1.bf16.msra.mxu0 0
        %3023 = vmatprep.subr.bf16.mxu0 0
        %3024 = vmatpush1.bf16.msra.mxu0 0
        %3025 = vmatprep.subr.bf16.mxu0 0
        %3026 = vmatpush1.bf16.msra.mxu0 0
        %3027 = vmatprep.subr.bf16.mxu0 0
        %3028 = vmatpush1.bf16.msra.mxu0 0
        %3029 = vmatprep.subr.bf16.mxu0 0
        %3030 = vmatpush1.bf16.msra.mxu0 0
        %3031 = vmatprep.mubr.bf16.mxu0 0
        %3032 = vmatmul.mubr.bf16.gmra.mrb[0].mxu0 %v2546
        %v3033 = vpop.f32.mrb[0].mxu0
        %v3034 = vadd.f32 0.0, %v3033
        %v3035 = vpop.f32.mrb[0].mxu0
        %v3036 = vadd.f32 0.0, %v3035
        %v3037 = vpop.f32.mrb[0].mxu0
        %v3038 = vpop.f32.mrb[0].mxu0
        %3039 = vdwg.mxu0
        %3040 = vmatprep.subr.bf16.mxu0 %v758
        %3041 = vmatpush1.bf16.msra.mxu0 %v757
        %3042 = vmatprep.subr.bf16.mxu0 %v794
        %3043 = vmatpush1.bf16.msra.mxu0 %v793
        %3044 = vmatprep.subr.bf16.mxu0 %v994
        %3045 = vmatpush1.bf16.msra.mxu0 %v991
        %3046 = vmatprep.subr.bf16.mxu0 0
        %3047 = vmatpush1.bf16.msra.mxu0 0
        %3048 = vmatprep.subr.bf16.mxu0 0
        %3049 = vmatpush1.bf16.msra.mxu0 0
        %3050 = vmatprep.subr.bf16.mxu0 0
        %3051 = vmatpush1.bf16.msra.mxu0 0
        %3052 = vmatprep.subr.bf16.mxu0 0
        %3053 = vmatpush1.bf16.msra.mxu0 0
        %3054 = vmatprep.subr.bf16.mxu0 0
        %3055 = vmatpush1.bf16.msra.mxu0 0
        %3056 = vmatprep.subr.bf16.mxu0 0
        %3057 = vmatpush1.bf16.msra.mxu0 0
        %3058 = vmatprep.subr.bf16.mxu0 0
        %3059 = vmatpush1.bf16.msra.mxu0 0
        %3060 = vmatprep.subr.bf16.mxu0 0
        %3061 = vmatpush1.bf16.msra.mxu0 0
        %3062 = vmatprep.subr.bf16.mxu0 0
        %3063 = vmatpush1.bf16.msra.mxu0 0
        %3064 = vmatprep.subr.bf16.mxu0 0
        %3065 = vmatpush1.bf16.msra.mxu0 0
        %3066 = vmatprep.subr.bf16.mxu0 0
        %3067 = vmatpush1.bf16.msra.mxu0 0
        %3068 = vmatprep.subr.bf16.mxu0 0
        %3069 = vmatpush1.bf16.msra.mxu0 0
        %3070 = vmatprep.subr.bf16.mxu0 0
        %3071 = vmatpush1.bf16.msra.mxu0 0
        %3072 = vmatprep.mubr.bf16.mxu0 0
        %3073 = vmatmul.mubr.bf16.gmra.mrb[0].mxu0 %v2546
        %v3074 = vpop.f32.mrb[0].mxu0
        %v3075 = vadd.f32 0.0, %v3074
        %v3076 = vpop.f32.mrb[0].mxu0
        %v3077 = vadd.f32 0.0, %v3076
        %v3078 = vpop.f32.mrb[0].mxu0
        %v3079 = vpop.f32.mrb[0].mxu0
        %3080 = vdwg.mxu0
        %3081 = vmatprep.subr.bf16.mxu0 %v760
        %3082 = vmatpush1.bf16.msra.mxu0 %v759
        %3083 = vmatprep.subr.bf16.mxu0 %v796
        %3084 = vmatpush1.bf16.msra.mxu0 %v795
        %3085 = vmatprep.subr.bf16.mxu0 %v1000
        %3086 = vmatpush1.bf16.msra.mxu0 %v997
        %3087 = vmatprep.subr.bf16.mxu0 0
        %3088 = vmatpush1.bf16.msra.mxu0 0
        %3089 = vmatprep.subr.bf16.mxu0 0
        %3090 = vmatpush1.bf16.msra.mxu0 0
        %3091 = vmatprep.subr.bf16.mxu0 0
        %3092 = vmatpush1.bf16.msra.mxu0 0
        %3093 = vmatprep.subr.bf16.mxu0 0
        %3094 = vmatpush1.bf16.msra.mxu0 0
        %3095 = vmatprep.subr.bf16.mxu0 0
        %3096 = vmatpush1.bf16.msra.mxu0 0
        %3097 = vmatprep.subr.bf16.mxu0 0
        %3098 = vmatpush1.bf16.msra.mxu0 0
        %3099 = vmatprep.subr.bf16.mxu0 0
        %3100 = vmatpush1.bf16.msra.mxu0 0
        %3101 = vmatprep.subr.bf16.mxu0 0
        %3102 = vmatpush1.bf16.msra.mxu0 0
        %3103 = vmatprep.subr.bf16.mxu0 0
        %3104 = vmatpush1.bf16.msra.mxu0 0
        %3105 = vmatprep.subr.bf16.mxu0 0
        %3106 = vmatpush1.bf16.msra.mxu0 0
        %3107 = vmatprep.subr.bf16.mxu0 0
        %3108 = vmatpush1.bf16.msra.mxu0 0
        %3109 = vmatprep.subr.bf16.mxu0 0
        %3110 = vmatpush1.bf16.msra.mxu0 0
        %3111 = vmatprep.subr.bf16.mxu0 0
        %3112 = vmatpush1.bf16.msra.mxu0 0
        %3113 = vmatprep.mubr.bf16.mxu0 0
        %3114 = vmatmul.mubr.bf16.gmra.mrb[0].mxu0 %v2546
        %v3115 = vpop.f32.mrb[0].mxu0
        %v3116 = vadd.f32 0.0, %v3115
        %v3117 = vpop.f32.mrb[0].mxu0
        %v3118 = vadd.f32 0.0, %v3117
        %v3119 = vpop.f32.mrb[0].mxu0
        %v3120 = vpop.f32.mrb[0].mxu0
        %3121 = vdwg.mxu0
        %3122 = vmatprep.subr.bf16.mxu0 %v762
        %3123 = vmatpush1.bf16.msra.mxu0 %v761
        %3124 = vmatprep.subr.bf16.mxu0 %v798
        %3125 = vmatpush1.bf16.msra.mxu0 %v797
        %3126 = vmatprep.subr.bf16.mxu0 %v1006
        %3127 = vmatpush1.bf16.msra.mxu0 %v1003
        %3128 = vmatprep.subr.bf16.mxu0 0
        %3129 = vmatpush1.bf16.msra.mxu0 0
        %3130 = vmatprep.subr.bf16.mxu0 0
        %3131 = vmatpush1.bf16.msra.mxu0 0
        %3132 = vmatprep.subr.bf16.mxu0 0
        %3133 = vmatpush1.bf16.msra.mxu0 0
        %3134 = vmatprep.subr.bf16.mxu0 0
        %3135 = vmatpush1.bf16.msra.mxu0 0
        %3136 = vmatprep.subr.bf16.mxu0 0
        %3137 = vmatpush1.bf16.msra.mxu0 0
        %3138 = vmatprep.subr.bf16.mxu0 0
        %3139 = vmatpush1.bf16.msra.mxu0 0
        %3140 = vmatprep.subr.bf16.mxu0 0
        %3141 = vmatpush1.bf16.msra.mxu0 0
        %3142 = vmatprep.subr.bf16.mxu0 0
        %3143 = vmatpush1.bf16.msra.mxu0 0
        %3144 = vmatprep.subr.bf16.mxu0 0
        %3145 = vmatpush1.bf16.msra.mxu0 0
        %3146 = vmatprep.subr.bf16.mxu0 0
        %3147 = vmatpush1.bf16.msra.mxu0 0
        %3148 = vmatprep.subr.bf16.mxu0 0
        %3149 = vmatpush1.bf16.msra.mxu0 0
        %3150 = vmatprep.subr.bf16.mxu0 0
        %3151 = vmatpush1.bf16.msra.mxu0 0
        %3152 = vmatprep.subr.bf16.mxu0 0
        %3153 = vmatpush1.bf16.msra.mxu0 0
        %3154 = vmatprep.mubr.bf16.mxu0 0
        %3155 = vmatmul.mubr.bf16.gmra.mrb[0].mxu0 %v2546
        %v3156 = vpop.f32.mrb[0].mxu0
        %v3157 = vadd.f32 0.0, %v3156
        %v3158 = vpop.f32.mrb[0].mxu0
        %v3159 = vadd.f32 0.0, %v3158
        %v3160 = vpop.f32.mrb[0].mxu0
        %v3161 = vpop.f32.mrb[0].mxu0
        %3162 = vdwg.mxu0
        %3163 = vmatprep.subr.bf16.mxu0 %v764
        %3164 = vmatpush1.bf16.msra.mxu0 %v763
        %3165 = vmatprep.subr.bf16.mxu0 %v800
        %3166 = vmatpush1.bf16.msra.mxu0 %v799
        %3167 = vmatprep.subr.bf16.mxu0 %v1012
        %3168 = vmatpush1.bf16.msra.mxu0 %v1009
        %3169 = vmatprep.subr.bf16.mxu0 0
        %3170 = vmatpush1.bf16.msra.mxu0 0
        %3171 = vmatprep.subr.bf16.mxu0 0
        %3172 = vmatpush1.bf16.msra.mxu0 0
        %3173 = vmatprep.subr.bf16.mxu0 0
        %3174 = vmatpush1.bf16.msra.mxu0 0
        %3175 = vmatprep.subr.bf16.mxu0 0
        %3176 = vmatpush1.bf16.msra.mxu0 0
        %3177 = vmatprep.subr.bf16.mxu0 0
        %3178 = vmatpush1.bf16.msra.mxu0 0
        %3179 = vmatprep.subr.bf16.mxu0 0
        %3180 = vmatpush1.bf16.msra.mxu0 0
        %3181 = vmatprep.subr.bf16.mxu0 0
        %3182 = vmatpush1.bf16.msra.mxu0 0
        %3183 = vmatprep.subr.bf16.mxu0 0
        %3184 = vmatpush1.bf16.msra.mxu0 0
        %3185 = vmatprep.subr.bf16.mxu0 0
        %3186 = vmatpush1.bf16.msra.mxu0 0
        %3187 = vmatprep.subr.bf16.mxu0 0
        %3188 = vmatpush1.bf16.msra.mxu0 0
        %3189 = vmatprep.subr.bf16.mxu0 0
        %3190 = vmatpush1.bf16.msra.mxu0 0
        %3191 = vmatprep.subr.bf16.mxu0 0
        %3192 = vmatpush1.bf16.msra.mxu0 0
        %3193 = vmatprep.subr.bf16.mxu0 0
        %3194 = vmatpush1.bf16.msra.mxu0 0
        %3195 = vmatprep.mubr.bf16.mxu0 0
        %3196 = vmatmul.mubr.bf16.gmra.mrb[0].mxu0 %v2546
        %v3197 = vpop.f32.mrb[0].mxu0
        %v3198 = vadd.f32 0.0, %v3197
        %v3199 = vpop.f32.mrb[0].mxu0
        %v3200 = vadd.f32 0.0, %v3199
        %v3201 = vpop.f32.mrb[0].mxu0
        %v3202 = vpop.f32.mrb[0].mxu0
        %3203 = vdwg.mxu0
        %3204 = vmatprep.subr.bf16.mxu0 %v766
        %3205 = vmatpush1.bf16.msra.mxu0 %v765
        %3206 = vmatprep.subr.bf16.mxu0 %v802
        %3207 = vmatpush1.bf16.msra.mxu0 %v801
        %3208 = vmatprep.subr.bf16.mxu0 %v1018
        %3209 = vmatpush1.bf16.msra.mxu0 %v1015
        %3210 = vmatprep.subr.bf16.mxu0 0
        %3211 = vmatpush1.bf16.msra.mxu0 0
        %3212 = vmatprep.subr.bf16.mxu0 0
        %3213 = vmatpush1.bf16.msra.mxu0 0
        %3214 = vmatprep.subr.bf16.mxu0 0
        %3215 = vmatpush1.bf16.msra.mxu0 0
        %3216 = vmatprep.subr.bf16.mxu0 0
        %3217 = vmatpush1.bf16.msra.mxu0 0
        %3218 = vmatprep.subr.bf16.mxu0 0
        %3219 = vmatpush1.bf16.msra.mxu0 0
        %3220 = vmatprep.subr.bf16.mxu0 0
        %3221 = vmatpush1.bf16.msra.mxu0 0
        %3222 = vmatprep.subr.bf16.mxu0 0
        %3223 = vmatpush1.bf16.msra.mxu0 0
        %3224 = vmatprep.subr.bf16.mxu0 0
        %3225 = vmatpush1.bf16.msra.mxu0 0
        %3226 = vmatprep.subr.bf16.mxu0 0
        %3227 = vmatpush1.bf16.msra.mxu0 0
        %3228 = vmatprep.subr.bf16.mxu0 0
        %3229 = vmatpush1.bf16.msra.mxu0 0
        %3230 = vmatprep.subr.bf16.mxu0 0
        %3231 = vmatpush1.bf16.msra.mxu0 0
        %3232 = vmatprep.subr.bf16.mxu0 0
        %3233 = vmatpush1.bf16.msra.mxu0 0
        %3234 = vmatprep.subr.bf16.mxu0 0
        %3235 = vmatpush1.bf16.msra.mxu0 0
        %3236 = vmatprep.mubr.bf16.mxu0 0
        %3237 = vmatmul.mubr.bf16.gmra.mrb[0].mxu0 %v2546
        %v3238 = vpop.f32.mrb[0].mxu0
        %v3239 = vadd.f32 0.0, %v3238
        %v3240 = vpop.f32.mrb[0].mxu0
        %v3241 = vadd.f32 0.0, %v3240
        %v3242 = vpop.f32.mrb[0].mxu0
        %v3243 = vpop.f32.mrb[0].mxu0
        %3244 = vdwg.mxu0
        %3245 = vmatprep.subr.bf16.mxu0 %v768
        %3246 = vmatpush1.bf16.msra.mxu0 %v767
        %3247 = vmatprep.subr.bf16.mxu0 %v804
        %3248 = vmatpush1.bf16.msra.mxu0 %v803
        %3249 = vmatprep.subr.bf16.mxu0 %v1024
        %3250 = vmatpush1.bf16.msra.mxu0 %v1021
        %3251 = vmatprep.subr.bf16.mxu0 0
        %3252 = vmatpush1.bf16.msra.mxu0 0
        %3253 = vmatprep.subr.bf16.mxu0 0
        %3254 = vmatpush1.bf16.msra.mxu0 0
        %3255 = vmatprep.subr.bf16.mxu0 0
        %3256 = vmatpush1.bf16.msra.mxu0 0
        %3257 = vmatprep.subr.bf16.mxu0 0
        %3258 = vmatpush1.bf16.msra.mxu0 0
        %3259 = vmatprep.subr.bf16.mxu0 0
        %3260 = vmatpush1.bf16.msra.mxu0 0
        %3261 = vmatprep.subr.bf16.mxu0 0
        %3262 = vmatpush1.bf16.msra.mxu0 0
        %3263 = vmatprep.subr.bf16.mxu0 0
        %3264 = vmatpush1.bf16.msra.mxu0 0
        %3265 = vmatprep.subr.bf16.mxu0 0
        %3266 = vmatpush1.bf16.msra.mxu0 0
        %3267 = vmatprep.subr.bf16.mxu0 0
        %3268 = vmatpush1.bf16.msra.mxu0 0
        %3269 = vmatprep.subr.bf16.mxu0 0
        %3270 = vmatpush1.bf16.msra.mxu0 0
        %3271 = vmatprep.subr.bf16.mxu0 0
        %3272 = vmatpush1.bf16.msra.mxu0 0
        %3273 = vmatprep.subr.bf16.mxu0 0
        %3274 = vmatpush1.bf16.msra.mxu0 0
        %3275 = vmatprep.subr.bf16.mxu0 0
        %3276 = vmatpush1.bf16.msra.mxu0 0
        %3277 = vmatprep.mubr.bf16.mxu0 0
        %3278 = vmatmul.mubr.bf16.gmra.mrb[0].mxu0 %v2546
        %v3279 = vpop.f32.mrb[0].mxu0
        %v3280 = vadd.f32 0.0, %v3279
        %v3281 = vpop.f32.mrb[0].mxu0
        %v3282 = vadd.f32 0.0, %v3281
        %v3283 = vpop.f32.mrb[0].mxu0
        %v3284 = vpop.f32.mrb[0].mxu0
        %3285 = vdwg.mxu0
        %v3286 = vmax.f32 %v2507, %v2583
        %v3287 = vmax.f32 %v2508, %v2585
        %v3288 = vmax.f32 %v2509, %v2624
        %v3289 = vmax.f32 %v2510, %v2626
        %v3290 = vmax.f32 %v2511, %v2665
        %v3291 = vmax.f32 %v2512, %v2667
        %v3292 = vmax.f32 %v2513, %v2706
        %v3293 = vmax.f32 %v2514, %v2708
        %v3294 = vmax.f32 %v2515, %v2747
        %v3295 = vmax.f32 %v2516, %v2749
        %v3296 = vmax.f32 %v2517, %v2788
        %v3297 = vmax.f32 %v2518, %v2790
        %v3298 = vmax.f32 %v2519, %v2829
        %v3299 = vmax.f32 %v2520, %v2831
        %v3300 = vmax.f32 %v2521, %v2870
        %v3301 = vmax.f32 %v2522, %v2872
        %v3302 = vmax.f32 %v2523, %v2911
        %v3303 = vmax.f32 %v2524, %v2913
        %v3304 = vmax.f32 %v2525, %v2952
        %v3305 = vmax.f32 %v2526, %v2954
        %v3306 = vmax.f32 %v2527, %v2993
        %v3307 = vmax.f32 %v2528, %v2995
        %v3308 = vmax.f32 %v2529, %v3034
        %v3309 = vmax.f32 %v2530, %v3036
        %v3310 = vmax.f32 %v2531, %v3075
        %v3311 = vmax.f32 %v2532, %v3077
        %v3312 = vmax.f32 %v2533, %v3116
        %v3313 = vmax.f32 %v2534, %v3118
        %v3314 = vmax.f32 %v2535, %v3157
        %v3315 = vmax.f32 %v2536, %v3159
        %v3316 = vmax.f32 %v2537, %v3198
        %v3317 = vmax.f32 %v2538, %v3200
        %v3318 = vmax.f32 %v2539, %v3239
        %v3319 = vmax.f32 %v2540, %v3241
        %v3320 = vmax.f32 %v2541, %v3280
        %v3321 = vmax.f32 %v2542, %v3282
        %s3322 = scalar_lea.vmem %s1, 12
        %v3323 = vld [vmem:[%s3322] sm:$0x7]
        %v3325 = vsel %vm913, %v3323, 0
        %3327 = vmatprep.subr.bf16.mxu0 %v734
        %3328 = vmatpush1.bf16.msra.mxu0 %v733
        %3329 = vmatprep.subr.bf16.mxu0 %v770
        %3330 = vmatpush1.bf16.msra.mxu0 %v769
        %3331 = vmatprep.subr.bf16.mxu0 %v922
        %3332 = vmatpush1.bf16.msra.mxu0 %v919
        %3333 = vmatprep.subr.bf16.mxu0 0
        %3334 = vmatpush1.bf16.msra.mxu0 0
        %3335 = vmatprep.subr.bf16.mxu0 0
        %3336 = vmatpush1.bf16.msra.mxu0 0
        %3337 = vmatprep.subr.bf16.mxu0 0
        %3338 = vmatpush1.bf16.msra.mxu0 0
        %3339 = vmatprep.subr.bf16.mxu0 0
        %3340 = vmatpush1.bf16.msra.mxu0 0
        %3341 = vmatprep.subr.bf16.mxu0 0
        %3342 = vmatpush1.bf16.msra.mxu0 0
        %3343 = vmatprep.subr.bf16.mxu0 0
        %3344 = vmatpush1.bf16.msra.mxu0 0
        %3345 = vmatprep.subr.bf16.mxu0 0
        %3346 = vmatpush1.bf16.msra.mxu0 0
        %3347 = vmatprep.subr.bf16.mxu0 0
        %3348 = vmatpush1.bf16.msra.mxu0 0
        %3349 = vmatprep.subr.bf16.mxu0 0
        %3350 = vmatpush1.bf16.msra.mxu0 0
        %3351 = vmatprep.subr.bf16.mxu0 0
        %3352 = vmatpush1.bf16.msra.mxu0 0
        %3353 = vmatprep.subr.bf16.mxu0 0
        %3354 = vmatpush1.bf16.msra.mxu0 0
        %3355 = vmatprep.subr.bf16.mxu0 0
        %3356 = vmatpush1.bf16.msra.mxu0 0
        %3357 = vmatprep.subr.bf16.mxu0 0
        %3358 = vmatpush1.bf16.msra.mxu0 0
        %3359 = vmatprep.mubr.bf16.mxu0 0
        %3360 = vmatmul.mubr.bf16.gmra.mrb[0].mxu0 %v3325
        %v3361 = vpop.f32.mrb[0].mxu0
        %v3362 = vadd.f32 0.0, %v3361
        %v3363 = vpop.f32.mrb[0].mxu0
        %v3364 = vadd.f32 0.0, %v3363
        %v3365 = vpop.f32.mrb[0].mxu0
        %v3366 = vpop.f32.mrb[0].mxu0
        %3367 = vdwg.mxu0
        %3368 = vmatprep.subr.bf16.mxu0 %v736
        %3369 = vmatpush1.bf16.msra.mxu0 %v735
        %3370 = vmatprep.subr.bf16.mxu0 %v772
        %3371 = vmatpush1.bf16.msra.mxu0 %v771
        %3372 = vmatprep.subr.bf16.mxu0 %v928
        %3373 = vmatpush1.bf16.msra.mxu0 %v925
        %3374 = vmatprep.subr.bf16.mxu0 0
        %3375 = vmatpush1.bf16.msra.mxu0 0
        %3376 = vmatprep.subr.bf16.mxu0 0
        %3377 = vmatpush1.bf16.msra.mxu0 0
        %3378 = vmatprep.subr.bf16.mxu0 0
        %3379 = vmatpush1.bf16.msra.mxu0 0
        %3380 = vmatprep.subr.bf16.mxu0 0
        %3381 = vmatpush1.bf16.msra.mxu0 0
        %3382 = vmatprep.subr.bf16.mxu0 0
        %3383 = vmatpush1.bf16.msra.mxu0 0
        %3384 = vmatprep.subr.bf16.mxu0 0
        %3385 = vmatpush1.bf16.msra.mxu0 0
        %3386 = vmatprep.subr.bf16.mxu0 0
        %3387 = vmatpush1.bf16.msra.mxu0 0
        %3388 = vmatprep.subr.bf16.mxu0 0
        %3389 = vmatpush1.bf16.msra.mxu0 0
        %3390 = vmatprep.subr.bf16.mxu0 0
        %3391 = vmatpush1.bf16.msra.mxu0 0
        %3392 = vmatprep.subr.bf16.mxu0 0
        %3393 = vmatpush1.bf16.msra.mxu0 0
        %3394 = vmatprep.subr.bf16.mxu0 0
        %3395 = vmatpush1.bf16.msra.mxu0 0
        %3396 = vmatprep.subr.bf16.mxu0 0
        %3397 = vmatpush1.bf16.msra.mxu0 0
        %3398 = vmatprep.subr.bf16.mxu0 0
        %3399 = vmatpush1.bf16.msra.mxu0 0
        %3400 = vmatprep.mubr.bf16.mxu0 0
        %3401 = vmatmul.mubr.bf16.gmra.mrb[0].mxu0 %v3325
        %v3402 = vpop.f32.mrb[0].mxu0
        %v3403 = vadd.f32 0.0, %v3402
        %v3404 = vpop.f32.mrb[0].mxu0
        %v3405 = vadd.f32 0.0, %v3404
        %v3406 = vpop.f32.mrb[0].mxu0
        %v3407 = vpop.f32.mrb[0].mxu0
        %3408 = vdwg.mxu0
        %3409 = vmatprep.subr.bf16.mxu0 %v738
        %3410 = vmatpush1.bf16.msra.mxu0 %v737
        %3411 = vmatprep.subr.bf16.mxu0 %v774
        %3412 = vmatpush1.bf16.msra.mxu0 %v773
        %3413 = vmatprep.subr.bf16.mxu0 %v934
        %3414 = vmatpush1.bf16.msra.mxu0 %v931
        %3415 = vmatprep.subr.bf16.mxu0 0
        %3416 = vmatpush1.bf16.msra.mxu0 0
        %3417 = vmatprep.subr.bf16.mxu0 0
        %3418 = vmatpush1.bf16.msra.mxu0 0
        %3419 = vmatprep.subr.bf16.mxu0 0
        %3420 = vmatpush1.bf16.msra.mxu0 0
        %3421 = vmatprep.subr.bf16.mxu0 0
        %3422 = vmatpush1.bf16.msra.mxu0 0
        %3423 = vmatprep.subr.bf16.mxu0 0
        %3424 = vmatpush1.bf16.msra.mxu0 0
        %3425 = vmatprep.subr.bf16.mxu0 0
        %3426 = vmatpush1.bf16.msra.mxu0 0
        %3427 = vmatprep.subr.bf16.mxu0 0
        %3428 = vmatpush1.bf16.msra.mxu0 0
        %3429 = vmatprep.subr.bf16.mxu0 0
        %3430 = vmatpush1.bf16.msra.mxu0 0
        %3431 = vmatprep.subr.bf16.mxu0 0
        %3432 = vmatpush1.bf16.msra.mxu0 0
        %3433 = vmatprep.subr.bf16.mxu0 0
        %3434 = vmatpush1.bf16.msra.mxu0 0
        %3435 = vmatprep.subr.bf16.mxu0 0
        %3436 = vmatpush1.bf16.msra.mxu0 0
        %3437 = vmatprep.subr.bf16.mxu0 0
        %3438 = vmatpush1.bf16.msra.mxu0 0
        %3439 = vmatprep.subr.bf16.mxu0 0
        %3440 = vmatpush1.bf16.msra.mxu0 0
        %3441 = vmatprep.mubr.bf16.mxu0 0
        %3442 = vmatmul.mubr.bf16.gmra.mrb[0].mxu0 %v3325
        %v3443 = vpop.f32.mrb[0].mxu0
        %v3444 = vadd.f32 0.0, %v3443
        %v3445 = vpop.f32.mrb[0].mxu0
        %v3446 = vadd.f32 0.0, %v3445
        %v3447 = vpop.f32.mrb[0].mxu0
        %v3448 = vpop.f32.mrb[0].mxu0
        %3449 = vdwg.mxu0
        %3450 = vmatprep.subr.bf16.mxu0 %v740
        %3451 = vmatpush1.bf16.msra.mxu0 %v739
        %3452 = vmatprep.subr.bf16.mxu0 %v776
        %3453 = vmatpush1.bf16.msra.mxu0 %v775
        %3454 = vmatprep.subr.bf16.mxu0 %v940
        %3455 = vmatpush1.bf16.msra.mxu0 %v937
        %3456 = vmatprep.subr.bf16.mxu0 0
        %3457 = vmatpush1.bf16.msra.mxu0 0
        %3458 = vmatprep.subr.bf16.mxu0 0
        %3459 = vmatpush1.bf16.msra.mxu0 0
        %3460 = vmatprep.subr.bf16.mxu0 0
        %3461 = vmatpush1.bf16.msra.mxu0 0
        %3462 = vmatprep.subr.bf16.mxu0 0
        %3463 = vmatpush1.bf16.msra.mxu0 0
        %3464 = vmatprep.subr.bf16.mxu0 0
        %3465 = vmatpush1.bf16.msra.mxu0 0
        %3466 = vmatprep.subr.bf16.mxu0 0
        %3467 = vmatpush1.bf16.msra.mxu0 0
        %3468 = vmatprep.subr.bf16.mxu0 0
        %3469 = vmatpush1.bf16.msra.mxu0 0
        %3470 = vmatprep.subr.bf16.mxu0 0
        %3471 = vmatpush1.bf16.msra.mxu0 0
        %3472 = vmatprep.subr.bf16.mxu0 0
        %3473 = vmatpush1.bf16.msra.mxu0 0
        %3474 = vmatprep.subr.bf16.mxu0 0
        %3475 = vmatpush1.bf16.msra.mxu0 0
        %3476 = vmatprep.subr.bf16.mxu0 0
        %3477 = vmatpush1.bf16.msra.mxu0 0
        %3478 = vmatprep.subr.bf16.mxu0 0
        %3479 = vmatpush1.bf16.msra.mxu0 0
        %3480 = vmatprep.subr.bf16.mxu0 0
        %3481 = vmatpush1.bf16.msra.mxu0 0
        %3482 = vmatprep.mubr.bf16.mxu0 0
        %3483 = vmatmul.mubr.bf16.gmra.mrb[0].mxu0 %v3325
        %v3484 = vpop.f32.mrb[0].mxu0
        %v3485 = vadd.f32 0.0, %v3484
        %v3486 = vpop.f32.mrb[0].mxu0
        %v3487 = vadd.f32 0.0, %v3486
        %v3488 = vpop.f32.mrb[0].mxu0
        %v3489 = vpop.f32.mrb[0].mxu0
        %3490 = vdwg.mxu0
        %3491 = vmatprep.subr.bf16.mxu0 %v742
        %3492 = vmatpush1.bf16.msra.mxu0 %v741
        %3493 = vmatprep.subr.bf16.mxu0 %v778
        %3494 = vmatpush1.bf16.msra.mxu0 %v777
        %3495 = vmatprep.subr.bf16.mxu0 %v946
        %3496 = vmatpush1.bf16.msra.mxu0 %v943
        %3497 = vmatprep.subr.bf16.mxu0 0
        %3498 = vmatpush1.bf16.msra.mxu0 0
        %3499 = vmatprep.subr.bf16.mxu0 0
        %3500 = vmatpush1.bf16.msra.mxu0 0
        %3501 = vmatprep.subr.bf16.mxu0 0
        %3502 = vmatpush1.bf16.msra.mxu0 0
        %3503 = vmatprep.subr.bf16.mxu0 0
        %3504 = vmatpush1.bf16.msra.mxu0 0
        %3505 = vmatprep.subr.bf16.mxu0 0
        %3506 = vmatpush1.bf16.msra.mxu0 0
        %3507 = vmatprep.subr.bf16.mxu0 0
        %3508 = vmatpush1.bf16.msra.mxu0 0
        %3509 = vmatprep.subr.bf16.mxu0 0
        %3510 = vmatpush1.bf16.msra.mxu0 0
        %3511 = vmatprep.subr.bf16.mxu0 0
        %3512 = vmatpush1.bf16.msra.mxu0 0
        %3513 = vmatprep.subr.bf16.mxu0 0
        %3514 = vmatpush1.bf16.msra.mxu0 0
        %3515 = vmatprep.subr.bf16.mxu0 0
        %3516 = vmatpush1.bf16.msra.mxu0 0
        %3517 = vmatprep.subr.bf16.mxu0 0
        %3518 = vmatpush1.bf16.msra.mxu0 0
        %3519 = vmatprep.subr.bf16.mxu0 0
        %3520 = vmatpush1.bf16.msra.mxu0 0
        %3521 = vmatprep.subr.bf16.mxu0 0
        %3522 = vmatpush1.bf16.msra.mxu0 0
        %3523 = vmatprep.mubr.bf16.mxu0 0
        %3524 = vmatmul.mubr.bf16.gmra.mrb[0].mxu0 %v3325
        %v3525 = vpop.f32.mrb[0].mxu0
        %v3526 = vadd.f32 0.0, %v3525
        %v3527 = vpop.f32.mrb[0].mxu0
        %v3528 = vadd.f32 0.0, %v3527
        %v3529 = vpop.f32.mrb[0].mxu0
        %v3530 = vpop.f32.mrb[0].mxu0
        %3531 = vdwg.mxu0
        %3532 = vmatprep.subr.bf16.mxu0 %v744
        %3533 = vmatpush1.bf16.msra.mxu0 %v743
        %3534 = vmatprep.subr.bf16.mxu0 %v780
        %3535 = vmatpush1.bf16.msra.mxu0 %v779
        %3536 = vmatprep.subr.bf16.mxu0 %v952
        %3537 = vmatpush1.bf16.msra.mxu0 %v949
        %3538 = vmatprep.subr.bf16.mxu0 0
        %3539 = vmatpush1.bf16.msra.mxu0 0
        %3540 = vmatprep.subr.bf16.mxu0 0
        %3541 = vmatpush1.bf16.msra.mxu0 0
        %3542 = vmatprep.subr.bf16.mxu0 0
        %3543 = vmatpush1.bf16.msra.mxu0 0
        %3544 = vmatprep.subr.bf16.mxu0 0
        %3545 = vmatpush1.bf16.msra.mxu0 0
        %3546 = vmatprep.subr.bf16.mxu0 0
        %3547 = vmatpush1.bf16.msra.mxu0 0
        %3548 = vmatprep.subr.bf16.mxu0 0
        %3549 = vmatpush1.bf16.msra.mxu0 0
        %3550 = vmatprep.subr.bf16.mxu0 0
        %3551 = vmatpush1.bf16.msra.mxu0 0
        %3552 = vmatprep.subr.bf16.mxu0 0
        %3553 = vmatpush1.bf16.msra.mxu0 0
        %3554 = vmatprep.subr.bf16.mxu0 0
        %3555 = vmatpush1.bf16.msra.mxu0 0
        %3556 = vmatprep.subr.bf16.mxu0 0
        %3557 = vmatpush1.bf16.msra.mxu0 0
        %3558 = vmatprep.subr.bf16.mxu0 0
        %3559 = vmatpush1.bf16.msra.mxu0 0
        %3560 = vmatprep.subr.bf16.mxu0 0
        %3561 = vmatpush1.bf16.msra.mxu0 0
        %3562 = vmatprep.subr.bf16.mxu0 0
        %3563 = vmatpush1.bf16.msra.mxu0 0
        %3564 = vmatprep.mubr.bf16.mxu0 0
        %3565 = vmatmul.mubr.bf16.gmra.mrb[0].mxu0 %v3325
        %v3566 = vpop.f32.mrb[0].mxu0
        %v3567 = vadd.f32 0.0, %v3566
        %v3568 = vpop.f32.mrb[0].mxu0
        %v3569 = vadd.f32 0.0, %v3568
        %v3570 = vpop.f32.mrb[0].mxu0
        %v3571 = vpop.f32.mrb[0].mxu0
        %3572 = vdwg.mxu0
        %3573 = vmatprep.subr.bf16.mxu0 %v746
        %3574 = vmatpush1.bf16.msra.mxu0 %v745
        %3575 = vmatprep.subr.bf16.mxu0 %v782
        %3576 = vmatpush1.bf16.msra.mxu0 %v781
        %3577 = vmatprep.subr.bf16.mxu0 %v958
        %3578 = vmatpush1.bf16.msra.mxu0 %v955
        %3579 = vmatprep.subr.bf16.mxu0 0
        %3580 = vmatpush1.bf16.msra.mxu0 0
        %3581 = vmatprep.subr.bf16.mxu0 0
        %3582 = vmatpush1.bf16.msra.mxu0 0
        %3583 = vmatprep.subr.bf16.mxu0 0
        %3584 = vmatpush1.bf16.msra.mxu0 0
        %3585 = vmatprep.subr.bf16.mxu0 0
        %3586 = vmatpush1.bf16.msra.mxu0 0
        %3587 = vmatprep.subr.bf16.mxu0 0
        %3588 = vmatpush1.bf16.msra.mxu0 0
        %3589 = vmatprep.subr.bf16.mxu0 0
        %3590 = vmatpush1.bf16.msra.mxu0 0
        %3591 = vmatprep.subr.bf16.mxu0 0
        %3592 = vmatpush1.bf16.msra.mxu0 0
        %3593 = vmatprep.subr.bf16.mxu0 0
        %3594 = vmatpush1.bf16.msra.mxu0 0
        %3595 = vmatprep.subr.bf16.mxu0 0
        %3596 = vmatpush1.bf16.msra.mxu0 0
        %3597 = vmatprep.subr.bf16.mxu0 0
        %3598 = vmatpush1.bf16.msra.mxu0 0
        %3599 = vmatprep.subr.bf16.mxu0 0
        %3600 = vmatpush1.bf16.msra.mxu0 0
        %3601 = vmatprep.subr.bf16.mxu0 0
        %3602 = vmatpush1.bf16.msra.mxu0 0
        %3603 = vmatprep.subr.bf16.mxu0 0
        %3604 = vmatpush1.bf16.msra.mxu0 0
        %3605 = vmatprep.mubr.bf16.mxu0 0
        %3606 = vmatmul.mubr.bf16.gmra.mrb[0].mxu0 %v3325
        %v3607 = vpop.f32.mrb[0].mxu0
        %v3608 = vadd.f32 0.0, %v3607
        %v3609 = vpop.f32.mrb[0].mxu0
        %v3610 = vadd.f32 0.0, %v3609
        %v3611 = vpop.f32.mrb[0].mxu0
        %v3612 = vpop.f32.mrb[0].mxu0
        %3613 = vdwg.mxu0
        %3614 = vmatprep.subr.bf16.mxu0 %v748
        %3615 = vmatpush1.bf16.msra.mxu0 %v747
        %3616 = vmatprep.subr.bf16.mxu0 %v784
        %3617 = vmatpush1.bf16.msra.mxu0 %v783
        %3618 = vmatprep.subr.bf16.mxu0 %v964
        %3619 = vmatpush1.bf16.msra.mxu0 %v961
        %3620 = vmatprep.subr.bf16.mxu0 0
        %3621 = vmatpush1.bf16.msra.mxu0 0
        %3622 = vmatprep.subr.bf16.mxu0 0
        %3623 = vmatpush1.bf16.msra.mxu0 0
        %3624 = vmatprep.subr.bf16.mxu0 0
        %3625 = vmatpush1.bf16.msra.mxu0 0
        %3626 = vmatprep.subr.bf16.mxu0 0
        %3627 = vmatpush1.bf16.msra.mxu0 0
        %3628 = vmatprep.subr.bf16.mxu0 0
        %3629 = vmatpush1.bf16.msra.mxu0 0
        %3630 = vmatprep.subr.bf16.mxu0 0
        %3631 = vmatpush1.bf16.msra.mxu0 0
        %3632 = vmatprep.subr.bf16.mxu0 0
        %3633 = vmatpush1.bf16.msra.mxu0 0
        %3634 = vmatprep.subr.bf16.mxu0 0
        %3635 = vmatpush1.bf16.msra.mxu0 0
        %3636 = vmatprep.subr.bf16.mxu0 0
        %3637 = vmatpush1.bf16.msra.mxu0 0
        %3638 = vmatprep.subr.bf16.mxu0 0
        %3639 = vmatpush1.bf16.msra.mxu0 0
        %3640 = vmatprep.subr.bf16.mxu0 0
        %3641 = vmatpush1.bf16.msra.mxu0 0
        %3642 = vmatprep.subr.bf16.mxu0 0
        %3643 = vmatpush1.bf16.msra.mxu0 0
        %3644 = vmatprep.subr.bf16.mxu0 0
        %3645 = vmatpush1.bf16.msra.mxu0 0
        %3646 = vmatprep.mubr.bf16.mxu0 0
        %3647 = vmatmul.mubr.bf16.gmra.mrb[0].mxu0 %v3325
        %v3648 = vpop.f32.mrb[0].mxu0
        %v3649 = vadd.f32 0.0, %v3648
        %v3650 = vpop.f32.mrb[0].mxu0
        %v3651 = vadd.f32 0.0, %v3650
        %v3652 = vpop.f32.mrb[0].mxu0
        %v3653 = vpop.f32.mrb[0].mxu0
        %3654 = vdwg.mxu0
        %3655 = vmatprep.subr.bf16.mxu0 %v750
        %3656 = vmatpush1.bf16.msra.mxu0 %v749
        %3657 = vmatprep.subr.bf16.mxu0 %v786
        %3658 = vmatpush1.bf16.msra.mxu0 %v785
        %3659 = vmatprep.subr.bf16.mxu0 %v970
        %3660 = vmatpush1.bf16.msra.mxu0 %v967
        %3661 = vmatprep.subr.bf16.mxu0 0
        %3662 = vmatpush1.bf16.msra.mxu0 0
        %3663 = vmatprep.subr.bf16.mxu0 0
        %3664 = vmatpush1.bf16.msra.mxu0 0
        %3665 = vmatprep.subr.bf16.mxu0 0
        %3666 = vmatpush1.bf16.msra.mxu0 0
        %3667 = vmatprep.subr.bf16.mxu0 0
        %3668 = vmatpush1.bf16.msra.mxu0 0
        %3669 = vmatprep.subr.bf16.mxu0 0
        %3670 = vmatpush1.bf16.msra.mxu0 0
        %3671 = vmatprep.subr.bf16.mxu0 0
        %3672 = vmatpush1.bf16.msra.mxu0 0
        %3673 = vmatprep.subr.bf16.mxu0 0
        %3674 = vmatpush1.bf16.msra.mxu0 0
        %3675 = vmatprep.subr.bf16.mxu0 0
        %3676 = vmatpush1.bf16.msra.mxu0 0
        %3677 = vmatprep.subr.bf16.mxu0 0
        %3678 = vmatpush1.bf16.msra.mxu0 0
        %3679 = vmatprep.subr.bf16.mxu0 0
        %3680 = vmatpush1.bf16.msra.mxu0 0
        %3681 = vmatprep.subr.bf16.mxu0 0
        %3682 = vmatpush1.bf16.msra.mxu0 0
        %3683 = vmatprep.subr.bf16.mxu0 0
        %3684 = vmatpush1.bf16.msra.mxu0 0
        %3685 = vmatprep.subr.bf16.mxu0 0
        %3686 = vmatpush1.bf16.msra.mxu0 0
        %3687 = vmatprep.mubr.bf16.mxu0 0
        %3688 = vmatmul.mubr.bf16.gmra.mrb[0].mxu0 %v3325
        %v3689 = vpop.f32.mrb[0].mxu0
        %v3690 = vadd.f32 0.0, %v3689
        %v3691 = vpop.f32.mrb[0].mxu0
        %v3692 = vadd.f32 0.0, %v3691
        %v3693 = vpop.f32.mrb[0].mxu0
        %v3694 = vpop.f32.mrb[0].mxu0
        %3695 = vdwg.mxu0
        %3696 = vmatprep.subr.bf16.mxu0 %v752
        %3697 = vmatpush1.bf16.msra.mxu0 %v751
        %3698 = vmatprep.subr.bf16.mxu0 %v788
        %3699 = vmatpush1.bf16.msra.mxu0 %v787
        %3700 = vmatprep.subr.bf16.mxu0 %v976
        %3701 = vmatpush1.bf16.msra.mxu0 %v973
        %3702 = vmatprep.subr.bf16.mxu0 0
        %3703 = vmatpush1.bf16.msra.mxu0 0
        %3704 = vmatprep.subr.bf16.mxu0 0
        %3705 = vmatpush1.bf16.msra.mxu0 0
        %3706 = vmatprep.subr.bf16.mxu0 0
        %3707 = vmatpush1.bf16.msra.mxu0 0
        %3708 = vmatprep.subr.bf16.mxu0 0
        %3709 = vmatpush1.bf16.msra.mxu0 0
        %3710 = vmatprep.subr.bf16.mxu0 0
        %3711 = vmatpush1.bf16.msra.mxu0 0
        %3712 = vmatprep.subr.bf16.mxu0 0
        %3713 = vmatpush1.bf16.msra.mxu0 0
        %3714 = vmatprep.subr.bf16.mxu0 0
        %3715 = vmatpush1.bf16.msra.mxu0 0
        %3716 = vmatprep.subr.bf16.mxu0 0
        %3717 = vmatpush1.bf16.msra.mxu0 0
        %3718 = vmatprep.subr.bf16.mxu0 0
        %3719 = vmatpush1.bf16.msra.mxu0 0
        %3720 = vmatprep.subr.bf16.mxu0 0
        %3721 = vmatpush1.bf16.msra.mxu0 0
        %3722 = vmatprep.subr.bf16.mxu0 0
        %3723 = vmatpush1.bf16.msra.mxu0 0
        %3724 = vmatprep.subr.bf16.mxu0 0
        %3725 = vmatpush1.bf16.msra.mxu0 0
        %3726 = vmatprep.subr.bf16.mxu0 0
        %3727 = vmatpush1.bf16.msra.mxu0 0
        %3728 = vmatprep.mubr.bf16.mxu0 0
        %3729 = vmatmul.mubr.bf16.gmra.mrb[0].mxu0 %v3325
        %v3730 = vpop.f32.mrb[0].mxu0
        %v3731 = vadd.f32 0.0, %v3730
        %v3732 = vpop.f32.mrb[0].mxu0
        %v3733 = vadd.f32 0.0, %v3732
        %v3734 = vpop.f32.mrb[0].mxu0
        %v3735 = vpop.f32.mrb[0].mxu0
        %3736 = vdwg.mxu0
        %3737 = vmatprep.subr.bf16.mxu0 %v754
        %3738 = vmatpush1.bf16.msra.mxu0 %v753
        %3739 = vmatprep.subr.bf16.mxu0 %v790
        %3740 = vmatpush1.bf16.msra.mxu0 %v789
        %3741 = vmatprep.subr.bf16.mxu0 %v982
        %3742 = vmatpush1.bf16.msra.mxu0 %v979
        %3743 = vmatprep.subr.bf16.mxu0 0
        %3744 = vmatpush1.bf16.msra.mxu0 0
        %3745 = vmatprep.subr.bf16.mxu0 0
        %3746 = vmatpush1.bf16.msra.mxu0 0
        %3747 = vmatprep.subr.bf16.mxu0 0
        %3748 = vmatpush1.bf16.msra.mxu0 0
        %3749 = vmatprep.subr.bf16.mxu0 0
        %3750 = vmatpush1.bf16.msra.mxu0 0
        %3751 = vmatprep.subr.bf16.mxu0 0
        %3752 = vmatpush1.bf16.msra.mxu0 0
        %3753 = vmatprep.subr.bf16.mxu0 0
        %3754 = vmatpush1.bf16.msra.mxu0 0
        %3755 = vmatprep.subr.bf16.mxu0 0
        %3756 = vmatpush1.bf16.msra.mxu0 0
        %3757 = vmatprep.subr.bf16.mxu0 0
        %3758 = vmatpush1.bf16.msra.mxu0 0
        %3759 = vmatprep.subr.bf16.mxu0 0
        %3760 = vmatpush1.bf16.msra.mxu0 0
        %3761 = vmatprep.subr.bf16.mxu0 0
        %3762 = vmatpush1.bf16.msra.mxu0 0
        %3763 = vmatprep.subr.bf16.mxu0 0
        %3764 = vmatpush1.bf16.msra.mxu0 0
        %3765 = vmatprep.subr.bf16.mxu0 0
        %3766 = vmatpush1.bf16.msra.mxu0 0
        %3767 = vmatprep.subr.bf16.mxu0 0
        %3768 = vmatpush1.bf16.msra.mxu0 0
        %3769 = vmatprep.mubr.bf16.mxu0 0
        %3770 = vmatmul.mubr.bf16.gmra.mrb[0].mxu0 %v3325
        %v3771 = vpop.f32.mrb[0].mxu0
        %v3772 = vadd.f32 0.0, %v3771
        %v3773 = vpop.f32.mrb[0].mxu0
        %v3774 = vadd.f32 0.0, %v3773
        %v3775 = vpop.f32.mrb[0].mxu0
        %v3776 = vpop.f32.mrb[0].mxu0
        %3777 = vdwg.mxu0
        %3778 = vmatprep.subr.bf16.mxu0 %v756
        %3779 = vmatpush1.bf16.msra.mxu0 %v755
        %3780 = vmatprep.subr.bf16.mxu0 %v792
        %3781 = vmatpush1.bf16.msra.mxu0 %v791
        %3782 = vmatprep.subr.bf16.mxu0 %v988
        %3783 = vmatpush1.bf16.msra.mxu0 %v985
        %3784 = vmatprep.subr.bf16.mxu0 0
        %3785 = vmatpush1.bf16.msra.mxu0 0
        %3786 = vmatprep.subr.bf16.mxu0 0
        %3787 = vmatpush1.bf16.msra.mxu0 0
        %3788 = vmatprep.subr.bf16.mxu0 0
        %3789 = vmatpush1.bf16.msra.mxu0 0
        %3790 = vmatprep.subr.bf16.mxu0 0
        %3791 = vmatpush1.bf16.msra.mxu0 0
        %3792 = vmatprep.subr.bf16.mxu0 0
        %3793 = vmatpush1.bf16.msra.mxu0 0
        %3794 = vmatprep.subr.bf16.mxu0 0
        %3795 = vmatpush1.bf16.msra.mxu0 0
        %3796 = vmatprep.subr.bf16.mxu0 0
        %3797 = vmatpush1.bf16.msra.mxu0 0
        %3798 = vmatprep.subr.bf16.mxu0 0
        %3799 = vmatpush1.bf16.msra.mxu0 0
        %3800 = vmatprep.subr.bf16.mxu0 0
        %3801 = vmatpush1.bf16.msra.mxu0 0
        %3802 = vmatprep.subr.bf16.mxu0 0
        %3803 = vmatpush1.bf16.msra.mxu0 0
        %3804 = vmatprep.subr.bf16.mxu0 0
        %3805 = vmatpush1.bf16.msra.mxu0 0
        %3806 = vmatprep.subr.bf16.mxu0 0
        %3807 = vmatpush1.bf16.msra.mxu0 0
        %3808 = vmatprep.subr.bf16.mxu0 0
        %3809 = vmatpush1.bf16.msra.mxu0 0
        %3810 = vmatprep.mubr.bf16.mxu0 0
        %3811 = vmatmul.mubr.bf16.gmra.mrb[0].mxu0 %v3325
        %v3812 = vpop.f32.mrb[0].mxu0
        %v3813 = vadd.f32 0.0, %v3812
        %v3814 = vpop.f32.mrb[0].mxu0
        %v3815 = vadd.f32 0.0, %v3814
        %v3816 = vpop.f32.mrb[0].mxu0
        %v3817 = vpop.f32.mrb[0].mxu0
        %3818 = vdwg.mxu0
        %3819 = vmatprep.subr.bf16.mxu0 %v758
        %3820 = vmatpush1.bf16.msra.mxu0 %v757
        %3821 = vmatprep.subr.bf16.mxu0 %v794
        %3822 = vmatpush1.bf16.msra.mxu0 %v793
        %3823 = vmatprep.subr.bf16.mxu0 %v994
        %3824 = vmatpush1.bf16.msra.mxu0 %v991
        %3825 = vmatprep.subr.bf16.mxu0 0
        %3826 = vmatpush1.bf16.msra.mxu0 0
        %3827 = vmatprep.subr.bf16.mxu0 0
        %3828 = vmatpush1.bf16.msra.mxu0 0
        %3829 = vmatprep.subr.bf16.mxu0 0
        %3830 = vmatpush1.bf16.msra.mxu0 0
        %3831 = vmatprep.subr.bf16.mxu0 0
        %3832 = vmatpush1.bf16.msra.mxu0 0
        %3833 = vmatprep.subr.bf16.mxu0 0
        %3834 = vmatpush1.bf16.msra.mxu0 0
        %3835 = vmatprep.subr.bf16.mxu0 0
        %3836 = vmatpush1.bf16.msra.mxu0 0
        %3837 = vmatprep.subr.bf16.mxu0 0
        %3838 = vmatpush1.bf16.msra.mxu0 0
        %3839 = vmatprep.subr.bf16.mxu0 0
        %3840 = vmatpush1.bf16.msra.mxu0 0
        %3841 = vmatprep.subr.bf16.mxu0 0
        %3842 = vmatpush1.bf16.msra.mxu0 0
        %3843 = vmatprep.subr.bf16.mxu0 0
        %3844 = vmatpush1.bf16.msra.mxu0 0
        %3845 = vmatprep.subr.bf16.mxu0 0
        %3846 = vmatpush1.bf16.msra.mxu0 0
        %3847 = vmatprep.subr.bf16.mxu0 0
        %3848 = vmatpush1.bf16.msra.mxu0 0
        %3849 = vmatprep.subr.bf16.mxu0 0
        %3850 = vmatpush1.bf16.msra.mxu0 0
        %3851 = vmatprep.mubr.bf16.mxu0 0
        %3852 = vmatmul.mubr.bf16.gmra.mrb[0].mxu0 %v3325
        %v3853 = vpop.f32.mrb[0].mxu0
        %v3854 = vadd.f32 0.0, %v3853
        %v3855 = vpop.f32.mrb[0].mxu0
        %v3856 = vadd.f32 0.0, %v3855
        %v3857 = vpop.f32.mrb[0].mxu0
        %v3858 = vpop.f32.mrb[0].mxu0
        %3859 = vdwg.mxu0
        %3860 = vmatprep.subr.bf16.mxu0 %v760
        %3861 = vmatpush1.bf16.msra.mxu0 %v759
        %3862 = vmatprep.subr.bf16.mxu0 %v796
        %3863 = vmatpush1.bf16.msra.mxu0 %v795
        %3864 = vmatprep.subr.bf16.mxu0 %v1000
        %3865 = vmatpush1.bf16.msra.mxu0 %v997
        %3866 = vmatprep.subr.bf16.mxu0 0
        %3867 = vmatpush1.bf16.msra.mxu0 0
        %3868 = vmatprep.subr.bf16.mxu0 0
        %3869 = vmatpush1.bf16.msra.mxu0 0
        %3870 = vmatprep.subr.bf16.mxu0 0
        %3871 = vmatpush1.bf16.msra.mxu0 0
        %3872 = vmatprep.subr.bf16.mxu0 0
        %3873 = vmatpush1.bf16.msra.mxu0 0
        %3874 = vmatprep.subr.bf16.mxu0 0
        %3875 = vmatpush1.bf16.msra.mxu0 0
        %3876 = vmatprep.subr.bf16.mxu0 0
        %3877 = vmatpush1.bf16.msra.mxu0 0
        %3878 = vmatprep.subr.bf16.mxu0 0
        %3879 = vmatpush1.bf16.msra.mxu0 0
        %3880 = vmatprep.subr.bf16.mxu0 0
        %3881 = vmatpush1.bf16.msra.mxu0 0
        %3882 = vmatprep.subr.bf16.mxu0 0
        %3883 = vmatpush1.bf16.msra.mxu0 0
        %3884 = vmatprep.subr.bf16.mxu0 0
        %3885 = vmatpush1.bf16.msra.mxu0 0
        %3886 = vmatprep.subr.bf16.mxu0 0
        %3887 = vmatpush1.bf16.msra.mxu0 0
        %3888 = vmatprep.subr.bf16.mxu0 0
        %3889 = vmatpush1.bf16.msra.mxu0 0
        %3890 = vmatprep.subr.bf16.mxu0 0
        %3891 = vmatpush1.bf16.msra.mxu0 0
        %3892 = vmatprep.mubr.bf16.mxu0 0
        %3893 = vmatmul.mubr.bf16.gmra.mrb[0].mxu0 %v3325
        %v3894 = vpop.f32.mrb[0].mxu0
        %v3895 = vadd.f32 0.0, %v3894
        %v3896 = vpop.f32.mrb[0].mxu0
        %v3897 = vadd.f32 0.0, %v3896
        %v3898 = vpop.f32.mrb[0].mxu0
        %v3899 = vpop.f32.mrb[0].mxu0
        %3900 = vdwg.mxu0
        %3901 = vmatprep.subr.bf16.mxu0 %v762
        %3902 = vmatpush1.bf16.msra.mxu0 %v761
        %3903 = vmatprep.subr.bf16.mxu0 %v798
        %3904 = vmatpush1.bf16.msra.mxu0 %v797
        %3905 = vmatprep.subr.bf16.mxu0 %v1006
        %3906 = vmatpush1.bf16.msra.mxu0 %v1003
        %3907 = vmatprep.subr.bf16.mxu0 0
        %3908 = vmatpush1.bf16.msra.mxu0 0
        %3909 = vmatprep.subr.bf16.mxu0 0
        %3910 = vmatpush1.bf16.msra.mxu0 0
        %3911 = vmatprep.subr.bf16.mxu0 0
        %3912 = vmatpush1.bf16.msra.mxu0 0
        %3913 = vmatprep.subr.bf16.mxu0 0
        %3914 = vmatpush1.bf16.msra.mxu0 0
        %3915 = vmatprep.subr.bf16.mxu0 0
        %3916 = vmatpush1.bf16.msra.mxu0 0
        %3917 = vmatprep.subr.bf16.mxu0 0
        %3918 = vmatpush1.bf16.msra.mxu0 0
        %3919 = vmatprep.subr.bf16.mxu0 0
        %3920 = vmatpush1.bf16.msra.mxu0 0
        %3921 = vmatprep.subr.bf16.mxu0 0
        %3922 = vmatpush1.bf16.msra.mxu0 0
        %3923 = vmatprep.subr.bf16.mxu0 0
        %3924 = vmatpush1.bf16.msra.mxu0 0
        %3925 = vmatprep.subr.bf16.mxu0 0
        %3926 = vmatpush1.bf16.msra.mxu0 0
        %3927 = vmatprep.subr.bf16.mxu0 0
        %3928 = vmatpush1.bf16.msra.mxu0 0
        %3929 = vmatprep.subr.bf16.mxu0 0
        %3930 = vmatpush1.bf16.msra.mxu0 0
        %3931 = vmatprep.subr.bf16.mxu0 0
        %3932 = vmatpush1.bf16.msra.mxu0 0
        %3933 = vmatprep.mubr.bf16.mxu0 0
        %3934 = vmatmul.mubr.bf16.gmra.mrb[0].mxu0 %v3325
        %v3935 = vpop.f32.mrb[0].mxu0
        %v3936 = vadd.f32 0.0, %v3935
        %v3937 = vpop.f32.mrb[0].mxu0
        %v3938 = vadd.f32 0.0, %v3937
        %v3939 = vpop.f32.mrb[0].mxu0
        %v3940 = vpop.f32.mrb[0].mxu0
        %3941 = vdwg.mxu0
        %3942 = vmatprep.subr.bf16.mxu0 %v764
        %3943 = vmatpush1.bf16.msra.mxu0 %v763
        %3944 = vmatprep.subr.bf16.mxu0 %v800
        %3945 = vmatpush1.bf16.msra.mxu0 %v799
        %3946 = vmatprep.subr.bf16.mxu0 %v1012
        %3947 = vmatpush1.bf16.msra.mxu0 %v1009
        %3948 = vmatprep.subr.bf16.mxu0 0
        %3949 = vmatpush1.bf16.msra.mxu0 0
        %3950 = vmatprep.subr.bf16.mxu0 0
        %3951 = vmatpush1.bf16.msra.mxu0 0
        %3952 = vmatprep.subr.bf16.mxu0 0
        %3953 = vmatpush1.bf16.msra.mxu0 0
        %3954 = vmatprep.subr.bf16.mxu0 0
        %3955 = vmatpush1.bf16.msra.mxu0 0
        %3956 = vmatprep.subr.bf16.mxu0 0
        %3957 = vmatpush1.bf16.msra.mxu0 0
        %3958 = vmatprep.subr.bf16.mxu0 0
        %3959 = vmatpush1.bf16.msra.mxu0 0
        %3960 = vmatprep.subr.bf16.mxu0 0
        %3961 = vmatpush1.bf16.msra.mxu0 0
        %3962 = vmatprep.subr.bf16.mxu0 0
        %3963 = vmatpush1.bf16.msra.mxu0 0
        %3964 = vmatprep.subr.bf16.mxu0 0
        %3965 = vmatpush1.bf16.msra.mxu0 0
        %3966 = vmatprep.subr.bf16.mxu0 0
        %3967 = vmatpush1.bf16.msra.mxu0 0
        %3968 = vmatprep.subr.bf16.mxu0 0
        %3969 = vmatpush1.bf16.msra.mxu0 0
        %3970 = vmatprep.subr.bf16.mxu0 0
        %3971 = vmatpush1.bf16.msra.mxu0 0
        %3972 = vmatprep.subr.bf16.mxu0 0
        %3973 = vmatpush1.bf16.msra.mxu0 0
        %3974 = vmatprep.mubr.bf16.mxu0 0
        %3975 = vmatmul.mubr.bf16.gmra.mrb[0].mxu0 %v3325
        %v3976 = vpop.f32.mrb[0].mxu0
        %v3977 = vadd.f32 0.0, %v3976
        %v3978 = vpop.f32.mrb[0].mxu0
        %v3979 = vadd.f32 0.0, %v3978
        %v3980 = vpop.f32.mrb[0].mxu0
        %v3981 = vpop.f32.mrb[0].mxu0
        %3982 = vdwg.mxu0
        %3983 = vmatprep.subr.bf16.mxu0 %v766
        %3984 = vmatpush1.bf16.msra.mxu0 %v765
        %3985 = vmatprep.subr.bf16.mxu0 %v802
        %3986 = vmatpush1.bf16.msra.mxu0 %v801
        %3987 = vmatprep.subr.bf16.mxu0 %v1018
        %3988 = vmatpush1.bf16.msra.mxu0 %v1015
        %3989 = vmatprep.subr.bf16.mxu0 0
        %3990 = vmatpush1.bf16.msra.mxu0 0
        %3991 = vmatprep.subr.bf16.mxu0 0
        %3992 = vmatpush1.bf16.msra.mxu0 0
        %3993 = vmatprep.subr.bf16.mxu0 0
        %3994 = vmatpush1.bf16.msra.mxu0 0
        %3995 = vmatprep.subr.bf16.mxu0 0
        %3996 = vmatpush1.bf16.msra.mxu0 0
        %3997 = vmatprep.subr.bf16.mxu0 0
        %3998 = vmatpush1.bf16.msra.mxu0 0
        %3999 = vmatprep.subr.bf16.mxu0 0
        %4000 = vmatpush1.bf16.msra.mxu0 0
        %4001 = vmatprep.subr.bf16.mxu0 0
        %4002 = vmatpush1.bf16.msra.mxu0 0
        %4003 = vmatprep.subr.bf16.mxu0 0
        %4004 = vmatpush1.bf16.msra.mxu0 0
        %4005 = vmatprep.subr.bf16.mxu0 0
        %4006 = vmatpush1.bf16.msra.mxu0 0
        %4007 = vmatprep.subr.bf16.mxu0 0
        %4008 = vmatpush1.bf16.msra.mxu0 0
        %4009 = vmatprep.subr.bf16.mxu0 0
        %4010 = vmatpush1.bf16.msra.mxu0 0
        %4011 = vmatprep.subr.bf16.mxu0 0
        %4012 = vmatpush1.bf16.msra.mxu0 0
        %4013 = vmatprep.subr.bf16.mxu0 0
        %4014 = vmatpush1.bf16.msra.mxu0 0
        %4015 = vmatprep.mubr.bf16.mxu0 0
        %4016 = vmatmul.mubr.bf16.gmra.mrb[0].mxu0 %v3325
        %v4017 = vpop.f32.mrb[0].mxu0
        %v4018 = vadd.f32 0.0, %v4017
        %v4019 = vpop.f32.mrb[0].mxu0
        %v4020 = vadd.f32 0.0, %v4019
        %v4021 = vpop.f32.mrb[0].mxu0
        %v4022 = vpop.f32.mrb[0].mxu0
        %4023 = vdwg.mxu0
        %4024 = vmatprep.subr.bf16.mxu0 %v768
        %4025 = vmatpush1.bf16.msra.mxu0 %v767
        %4026 = vmatprep.subr.bf16.mxu0 %v804
        %4027 = vmatpush1.bf16.msra.mxu0 %v803
        %4028 = vmatprep.subr.bf16.mxu0 %v1024
        %4029 = vmatpush1.bf16.msra.mxu0 %v1021
        %4030 = vmatprep.subr.bf16.mxu0 0
        %4031 = vmatpush1.bf16.msra.mxu0 0
        %4032 = vmatprep.subr.bf16.mxu0 0
        %4033 = vmatpush1.bf16.msra.mxu0 0
        %4034 = vmatprep.subr.bf16.mxu0 0
        %4035 = vmatpush1.bf16.msra.mxu0 0
        %4036 = vmatprep.subr.bf16.mxu0 0
        %4037 = vmatpush1.bf16.msra.mxu0 0
        %4038 = vmatprep.subr.bf16.mxu0 0
        %4039 = vmatpush1.bf16.msra.mxu0 0
        %4040 = vmatprep.subr.bf16.mxu0 0
        %4041 = vmatpush1.bf16.msra.mxu0 0
        %4042 = vmatprep.subr.bf16.mxu0 0
        %4043 = vmatpush1.bf16.msra.mxu0 0
        %4044 = vmatprep.subr.bf16.mxu0 0
        %4045 = vmatpush1.bf16.msra.mxu0 0
        %4046 = vmatprep.subr.bf16.mxu0 0
        %4047 = vmatpush1.bf16.msra.mxu0 0
        %4048 = vmatprep.subr.bf16.mxu0 0
        %4049 = vmatpush1.bf16.msra.mxu0 0
        %4050 = vmatprep.subr.bf16.mxu0 0
        %4051 = vmatpush1.bf16.msra.mxu0 0
        %4052 = vmatprep.subr.bf16.mxu0 0
        %4053 = vmatpush1.bf16.msra.mxu0 0
        %4054 = vmatprep.subr.bf16.mxu0 0
        %4055 = vmatpush1.bf16.msra.mxu0 0
        %4056 = vmatprep.mubr.bf16.mxu0 0
        %4057 = vmatmul.mubr.bf16.gmra.mrb[0].mxu0 %v3325
        %v4058 = vpop.f32.mrb[0].mxu0
        %v4059 = vadd.f32 0.0, %v4058
        %v4060 = vpop.f32.mrb[0].mxu0
        %v4061 = vadd.f32 0.0, %v4060
        %v4062 = vpop.f32.mrb[0].mxu0
        %v4063 = vpop.f32.mrb[0].mxu0
        %4064 = vdwg.mxu0
        %v4065 = vmax.f32 %v3286, %v3362
        %v4066 = vmax.f32 %v3287, %v3364
        %v4067 = vmax.f32 %v3288, %v3403
        %v4068 = vmax.f32 %v3289, %v3405
        %v4069 = vmax.f32 %v3290, %v3444
        %v4070 = vmax.f32 %v3291, %v3446
        %v4071 = vmax.f32 %v3292, %v3485
        %v4072 = vmax.f32 %v3293, %v3487
        %v4073 = vmax.f32 %v3294, %v3526
        %v4074 = vmax.f32 %v3295, %v3528
        %v4075 = vmax.f32 %v3296, %v3567
        %v4076 = vmax.f32 %v3297, %v3569
        %v4077 = vmax.f32 %v3298, %v3608
        %v4078 = vmax.f32 %v3299, %v3610
        %v4079 = vmax.f32 %v3300, %v3649
        %v4080 = vmax.f32 %v3301, %v3651
        %v4081 = vmax.f32 %v3302, %v3690
        %v4082 = vmax.f32 %v3303, %v3692
        %v4083 = vmax.f32 %v3304, %v3731
        %v4084 = vmax.f32 %v3305, %v3733
        %v4085 = vmax.f32 %v3306, %v3772
        %v4086 = vmax.f32 %v3307, %v3774
        %v4087 = vmax.f32 %v3308, %v3813
        %v4088 = vmax.f32 %v3309, %v3815
        %v4089 = vmax.f32 %v3310, %v3854
        %v4090 = vmax.f32 %v3311, %v3856
        %v4091 = vmax.f32 %v3312, %v3895
        %v4092 = vmax.f32 %v3313, %v3897
        %v4093 = vmax.f32 %v3314, %v3936
        %v4094 = vmax.f32 %v3315, %v3938
        %v4095 = vmax.f32 %v3316, %v3977
        %v4096 = vmax.f32 %v3317, %v3979
        %v4097 = vmax.f32 %v3318, %v4018
        %v4098 = vmax.f32 %v3319, %v4020
        %v4099 = vmax.f32 %v3320, %v4059
        %v4100 = vmax.f32 %v3321, %v4061
        %v4101 = vld [vmem:[%s2] sm:$0x3f]
        %4103 = vset.pattern.permute.xlu0 0
        %4104 = vperm.xlu0 %4103, %v4101
        %v4105 = vpop.permute.xlu0 %4104
        %v4107 = vadd.f32 %v4065, %v4105
        %v4108 = vadd.f32 %v4066, %v4105
        %v4109 = vadd.f32 %v4067, %v4105
        %v4110 = vadd.f32 %v4068, %v4105
        %v4111 = vadd.f32 %v4069, %v4105
        %v4112 = vadd.f32 %v4070, %v4105
        %v4113 = vadd.f32 %v4071, %v4105
        %v4114 = vadd.f32 %v4072, %v4105
        %v4115 = vadd.f32 %v4073, %v4105
        %v4116 = vadd.f32 %v4074, %v4105
        %v4117 = vadd.f32 %v4075, %v4105
        %v4118 = vadd.f32 %v4076, %v4105
        %v4119 = vadd.f32 %v4077, %v4105
        %v4120 = vadd.f32 %v4078, %v4105
        %v4121 = vadd.f32 %v4079, %v4105
        %v4122 = vadd.f32 %v4080, %v4105
        %v4123 = vadd.f32 %v4081, %v4105
        %v4124 = vadd.f32 %v4082, %v4105
        %v4125 = vadd.f32 %v4083, %v4105
        %v4126 = vadd.f32 %v4084, %v4105
        %v4127 = vadd.f32 %v4085, %v4105
        %v4128 = vadd.f32 %v4086, %v4105
        %v4129 = vadd.f32 %v4087, %v4105
        %v4130 = vadd.f32 %v4088, %v4105
        %v4131 = vadd.f32 %v4089, %v4105
        %v4132 = vadd.f32 %v4090, %v4105
        %v4133 = vadd.f32 %v4091, %v4105
        %v4134 = vadd.f32 %v4092, %v4105
        %v4135 = vadd.f32 %v4093, %v4105
        %v4136 = vadd.f32 %v4094, %v4105
        %v4137 = vadd.f32 %v4095, %v4105
        %v4138 = vadd.f32 %v4096, %v4105
        %v4139 = vadd.f32 %v4097, %v4105
        %v4140 = vadd.f32 %v4098, %v4105
        %v4141 = vadd.f32 %v4099, %v4105
        %v4142 = vadd.f32 %v4100, %v4105
        %v4143 = vmax.f32 %v4107, 0.0
        %v4144 = vmax.f32 %v4108, 0.0
        %v4145 = vmax.f32 %v4109, 0.0
        %v4146 = vmax.f32 %v4110, 0.0
        %v4147 = vmax.f32 %v4111, 0.0
        %v4148 = vmax.f32 %v4112, 0.0
        %v4149 = vmax.f32 %v4113, 0.0
        %v4150 = vmax.f32 %v4114, 0.0
        %v4151 = vmax.f32 %v4115, 0.0
        %v4152 = vmax.f32 %v4116, 0.0
        %v4153 = vmax.f32 %v4117, 0.0
        %v4154 = vmax.f32 %v4118, 0.0
        %v4155 = vmax.f32 %v4119, 0.0
        %v4156 = vmax.f32 %v4120, 0.0
        %v4157 = vmax.f32 %v4121, 0.0
        %v4158 = vmax.f32 %v4122, 0.0
        %v4159 = vmax.f32 %v4123, 0.0
        %v4160 = vmax.f32 %v4124, 0.0
        %v4161 = vmax.f32 %v4125, 0.0
        %v4162 = vmax.f32 %v4126, 0.0
        %v4163 = vmax.f32 %v4127, 0.0
        %v4164 = vmax.f32 %v4128, 0.0
        %v4165 = vmax.f32 %v4129, 0.0
        %v4166 = vmax.f32 %v4130, 0.0
        %v4167 = vmax.f32 %v4131, 0.0
        %v4168 = vmax.f32 %v4132, 0.0
        %v4169 = vmax.f32 %v4133, 0.0
        %v4170 = vmax.f32 %v4134, 0.0
        %v4171 = vmax.f32 %v4135, 0.0
        %v4172 = vmax.f32 %v4136, 0.0
        %v4173 = vmax.f32 %v4137, 0.0
        %v4174 = vmax.f32 %v4138, 0.0
        %v4175 = vmax.f32 %v4139, 0.0
        %v4176 = vmax.f32 %v4140, 0.0
        %v4177 = vmax.f32 %v4141, 0.0
        %v4178 = vmax.f32 %v4142, 0.0
        %v4179 = vpack.c.bf16 %v4143, %v4143
        %v4180 = vpack.c.bf16 %v4144, %v4144
        %v4181 = vpack.c.bf16 %v4145, %v4145
        %v4182 = vpack.c.bf16 %v4146, %v4146
        %v4183 = vpack.c.bf16 %v4147, %v4147
        %v4184 = vpack.c.bf16 %v4148, %v4148
        %v4185 = vpack.c.bf16 %v4149, %v4149
        %v4186 = vpack.c.bf16 %v4150, %v4150
        %v4187 = vpack.c.bf16 %v4151, %v4151
        %v4188 = vpack.c.bf16 %v4152, %v4152
        %v4189 = vpack.c.bf16 %v4153, %v4153
        %v4190 = vpack.c.bf16 %v4154, %v4154
        %v4191 = vpack.c.bf16 %v4155, %v4155
        %v4192 = vpack.c.bf16 %v4156, %v4156
        %v4193 = vpack.c.bf16 %v4157, %v4157
        %v4194 = vpack.c.bf16 %v4158, %v4158
        %v4195 = vpack.c.bf16 %v4159, %v4159
        %v4196 = vpack.c.bf16 %v4160, %v4160
        %v4197 = vpack.c.bf16 %v4161, %v4161
        %v4198 = vpack.c.bf16 %v4162, %v4162
        %v4199 = vpack.c.bf16 %v4163, %v4163
        %v4200 = vpack.c.bf16 %v4164, %v4164
        %v4201 = vpack.c.bf16 %v4165, %v4165
        %v4202 = vpack.c.bf16 %v4166, %v4166
        %v4203 = vpack.c.bf16 %v4167, %v4167
        %v4204 = vpack.c.bf16 %v4168, %v4168
        %v4205 = vpack.c.bf16 %v4169, %v4169
        %v4206 = vpack.c.bf16 %v4170, %v4170
        %v4207 = vpack.c.bf16 %v4171, %v4171
        %v4208 = vpack.c.bf16 %v4172, %v4172
        %v4209 = vpack.c.bf16 %v4173, %v4173
        %v4210 = vpack.c.bf16 %v4174, %v4174
        %v4211 = vpack.c.bf16 %v4175, %v4175
        %v4212 = vpack.c.bf16 %v4176, %v4176
        %v4213 = vpack.c.bf16 %v4177, %v4177
        %v4214 = vpack.c.bf16 %v4178, %v4178
        %v4251 = vunpack.c.l.b16 %v4179
        %v4252 = vunpack.c.l.b16 %v4180
        %v4253 = vunpack.c.l.b16 %v4181
        %v4254 = vunpack.c.l.b16 %v4182
        %v4255 = vunpack.c.l.b16 %v4183
        %v4256 = vunpack.c.l.b16 %v4184
        %v4257 = vunpack.c.l.b16 %v4185
        %v4258 = vunpack.c.l.b16 %v4186
        %v4259 = vunpack.c.l.b16 %v4187
        %v4260 = vunpack.c.l.b16 %v4188
        %v4261 = vunpack.c.l.b16 %v4189
        %v4262 = vunpack.c.l.b16 %v4190
        %v4263 = vunpack.c.l.b16 %v4191
        %v4264 = vunpack.c.l.b16 %v4192
        %v4265 = vunpack.c.l.b16 %v4193
        %v4266 = vunpack.c.l.b16 %v4194
        %v4267 = vunpack.c.l.b16 %v4195
        %v4268 = vunpack.c.l.b16 %v4196
        %v4269 = vunpack.c.l.b16 %v4197
        %v4270 = vunpack.c.l.b16 %v4198
        %v4271 = vunpack.c.l.b16 %v4199
        %v4272 = vunpack.c.l.b16 %v4200
        %v4273 = vunpack.c.l.b16 %v4201
        %v4274 = vunpack.c.l.b16 %v4202
        %v4275 = vunpack.c.l.b16 %v4203
        %v4276 = vunpack.c.l.b16 %v4204
        %v4277 = vunpack.c.l.b16 %v4205
        %v4278 = vunpack.c.l.b16 %v4206
        %v4279 = vunpack.c.l.b16 %v4207
        %v4280 = vunpack.c.l.b16 %v4208
        %v4281 = vunpack.c.l.b16 %v4209
        %v4282 = vunpack.c.l.b16 %v4210
        %v4283 = vunpack.c.l.b16 %v4211
        %v4284 = vunpack.c.l.b16 %v4212
        %v4285 = vunpack.c.l.b16 %v4213
        %v4286 = vunpack.c.l.b16 %v4214
        %v4287 = vpack.c.b16 %v4252, %v4251
        %v4288 = vpack.c.b16 %v4254, %v4253
        %v4289 = vpack.c.b16 %v4256, %v4255
        %v4290 = vpack.c.b16 %v4258, %v4257
        %v4291 = vpack.c.b16 %v4260, %v4259
        %v4292 = vpack.c.b16 %v4262, %v4261
        %v4293 = vpack.c.b16 %v4264, %v4263
        %v4294 = vpack.c.b16 %v4266, %v4265
        %v4295 = vpack.c.b16 %v4268, %v4267
        %v4296 = vpack.c.b16 %v4270, %v4269
        %v4297 = vpack.c.b16 %v4272, %v4271
        %v4298 = vpack.c.b16 %v4274, %v4273
        %v4299 = vpack.c.b16 %v4276, %v4275
        %v4300 = vpack.c.b16 %v4278, %v4277
        %v4301 = vpack.c.b16 %v4280, %v4279
        %v4302 = vpack.c.b16 %v4282, %v4281
        %v4303 = vpack.c.b16 %v4284, %v4283
        %v4304 = vpack.c.b16 %v4286, %v4285
        %4323 = vst [vmem:[%s369] sm:$0x77] %v4287
        %4324 = vst [vmem:[%s369 + $0x8] sm:$0x77] %v4288
        %4325 = vst [vmem:[%s369 + $0x10] sm:$0x77] %v4289
        %4326 = vst [vmem:[%s369 + $0x18] sm:$0x77] %v4290
        %4327 = vst [vmem:[%s369 + $0x20] sm:$0x77] %v4291
        %4328 = vst [vmem:[%s369 + $0x28] sm:$0x77] %v4292
        %4329 = vst [vmem:[%s369 + $0x30] sm:$0x77] %v4293
        %4330 = vst [vmem:[%s369 + $0x38] sm:$0x77] %v4294
        %4331 = vst [vmem:[%s369 + $0x40] sm:$0x77] %v4295
        %4332 = vst [vmem:[%s369 + $0x48] sm:$0x77] %v4296
        %4333 = vst [vmem:[%s369 + $0x50] sm:$0x77] %v4297
        %4334 = vst [vmem:[%s369 + $0x58] sm:$0x77] %v4298
        %4335 = vst [vmem:[%s369 + $0x60] sm:$0x77] %v4299
        %4336 = vst [vmem:[%s369 + $0x68] sm:$0x77] %v4300
        %4337 = vst [vmem:[%s369 + $0x70] sm:$0x77] %v4301
        %4338 = vst [vmem:[%s369 + $0x78] sm:$0x77] %v4302
        %4339 = vst [vmem:[%s369 + $0x80] sm:$0x77] %v4303
        %4340 = vst [vmem:[%s369 + $0x88] sm:$0x77] %v4304
        %s4341 = smul.u32 36, %s14
        %p4342 = scmp.lt.s32.totalorder %s4341, 71
        %s4343 = scalar_select %p4342, %s4341, 71
        %s4344 = smul.addr %s4343, 4
        %s4345 = scalar_lea.vmem %s3, %s4344
        // Predicated region
        $region56: #{audio_cnn_forward.3} parent=50 // pred_check
          %p4346 = pneg %p100
        $region57: #{audio_cnn_forward.3} parent=50 // pred_check_branch
          %4348 = sbr.rel (%p4346) target = $region59
        $region58: #{audio_cnn_forward.3} parent=50 // pred_region
          %s4349 = smul.u32 36, %s14
        $region59: #{audio_cnn_forward.3} parent=50 // pred_fallthru
          _
      $region51: #{audio_cnn_forward.3} parent=5 // pred_fallthru
        _
      %p4350 = scmp.le.s32.totalorder 2, %s9
      // Predicated region
      $region60: #{audio_cnn_forward.3} parent=5 // pred_check
        %p4351 = pneg %p4350
      $region61: #{audio_cnn_forward.3} parent=5 // pred_check_branch
        %4353 = sbr.rel (%p4351) target = $region63
      $region62: #{audio_cnn_forward.3} parent=5 // pred_region
        %s4354 = ssub.s32 %s9, 2
        // Predicated region
        $region64: #{audio_cnn_forward.3} parent=62 // pred_check
          %p4355 = pneg %p106
        $region65: #{audio_cnn_forward.3} parent=62 // pred_check_branch
          %4357 = sbr.rel (%p4355) target = $region67
        $region66: #{audio_cnn_forward.3} parent=62 // pred_region
          %s4358 = smul.u32 36, %s15
          %p4359 = scmp.lt.s32.totalorder %s4358, 71
          %s4360 = scalar_select %p4359, %s4358, 71
          %s4361 = smul.addr %s4360, 4
          %s4362 = scalar_lea.vmem %s3, %s4361
        $region67: #{audio_cnn_forward.3} parent=62 // pred_fallthru
          _
      $region63: #{audio_cnn_forward.3} parent=5 // pred_fallthru
        _
    $region6: #{audio_cnn_forward.3} parent=1 // loop_footer
      %s13 = sadd.s32 1, %s9
    $region7: #{audio_cnn_forward.3} parent=1 // loop_footer_branch
      %8 = sbr.rel target = $region3
    $region8: #{audio_cnn_forward.3} parent=1 // loop_exit
      _

// kernel: audio_cnn_forward.4
$region0: #{audio_cnn_forward.4}
  #allocation0 [shape = 'u32[]', space=smem, size = 0x4, offset = 0x4, fixed_abs, tag = 'smem constant byte address 0x4 - core index']
  #allocation1 [shape = 'u32[144,128]{1,0:T(1,128)}', space=vmem, size = 0x12000, scoped, tag = 'internal scratch']
  %s0 = inlined_call_operand.vmem [shape: bf16[54,2560], index: 0, kind: input, shape index: {}]
  %s1 = inlined_call_operand.vmem [shape: bf16[4,12,54], index: 1, kind: input, shape index: {}]
  %s2 = inlined_call_operand.vmem [shape: f32[12,1], index: 2, kind: input, shape index: {}]
  %s3 = inlined_call_operand.vmem [shape: bf16[12,2560], index: 3, kind: output, shape index: {}]
  %s4 = sld [smem:[#allocation0]]
  $region87: #{audio_cnn_forward.4} parent=0
    _
  %s6 = ssub.s32 1, %s4
  %s7 = scalar_select 0, %s6, %s4
  $region1: #{audio_cnn_forward.4} parent=0
    #allocation2 [shape = 'u8[286720]{0}', space=vmem, size = 0x46000, scoped, tag = 'input window, operand 0']
    #allocation3 [shape = 'u8[81920]{0}', space=vmem, size = 0x14000, scoped, tag = 'output window, operand 0']
    loop: start=0, step=1, limit=4
    $region2: #{audio_cnn_forward.4} parent=1 // loop_pre_header
      _
    $region3: #{audio_cnn_forward.4} parent=1 // loop_header
      %s9 = sphi 0, %s13
      %p10 = scmp.ge.s32.totalorder %s9, 4
      %s19 = sphi 0, %s21
      %s22 = sphi 0, %s19
      %s23 = sphi 0, %s22
      %s39 = sphi 0, %s23
      %s43 = sphi 0, %s43
      %s45 = sphi 0, %s43
      %s46 = sphi 0, %s45
      %s60 = sphi 0, %s46
      %s64 = sphi 0, %s64
      %s66 = sphi 0, %s64
      %s67 = sphi 0, %s66
      %s81 = sphi 0, %s67
      %s87 = sphi 0, %s89
      %s90 = sphi 0, %s87
      %s91 = sphi 0, %s90
      %s107 = sphi 0, %s91
    $region4: #{audio_cnn_forward.4} parent=1 // loop_header_branch
      %12 = sbr.rel (%p10) target = $region8
    $region5: #{audio_cnn_forward.4} parent=1 // loop_body
      %s14 = ssub.s32 %s9, 1
      %s15 = ssub.s32 %s9, 2
      %s16 = sadd.s32 %s9, 1
      %s17 = ssub.s32 %s9, %s16
      %p18 = scmp.eq.s32.totalorder %s17, 0
      %s20 = sadd.s32 %s19, 1
      %s21 = scalar_select %p18, %s19, %s20
      %p24 = pneg %p18
      %p25 = scmp.eq.s32.totalorder %s9, 1
      %p26 = por %p24, %p25
      %p27 = scmp.ne.s32.totalorder %s19, %s22
      %p28 = scmp.eq.s32.totalorder %s9, 0
      %p29 = por %p27, %p28
      %p30 = scmp.ne.s32.totalorder %s19, %s22
      %p31 = scmp.eq.s32.totalorder %s14, 1
      %p32 = por %p30, %p31
      %p33 = scmp.ne.s32.totalorder %s22, %s23
      %p34 = scmp.eq.s32.totalorder %s14, 0
      %p35 = por %p33, %p34
      %p36 = scmp.ne.s32.totalorder %s22, %s23
      %p37 = scmp.eq.s32.totalorder %s15, 1
      %p38 = por %p36, %p37
      %p40 = scmp.ne.s32.totalorder %s23, %s39
      %p41 = scmp.eq.s32.totalorder %s15, 0
      %p42 = por %p40, %p41
      %s44 = sadd.s32 %s43, 1
      %p47 = scmp.eq.s32.totalorder %s9, 1
      %p48 = scmp.ne.s32.totalorder %s43, %s45
      %p49 = scmp.eq.s32.totalorder %s9, 0
      %p50 = por %p48, %p49
      %p51 = scmp.ne.s32.totalorder %s43, %s45
      %p52 = scmp.eq.s32.totalorder %s14, 1
      %p53 = por %p51, %p52
      %p54 = scmp.ne.s32.totalorder %s45, %s46
      %p55 = scmp.eq.s32.totalorder %s14, 0
      %p56 = por %p54, %p55
      %p57 = scmp.ne.s32.totalorder %s45, %s46
      %p58 = scmp.eq.s32.totalorder %s15, 1
      %p59 = por %p57, %p58
      %p61 = scmp.ne.s32.totalorder %s46, %s60
      %p62 = scmp.eq.s32.totalorder %s15, 0
      %p63 = por %p61, %p62
      %s65 = sadd.s32 %s64, 1
      %p68 = scmp.eq.s32.totalorder %s9, 1
      %p69 = scmp.ne.s32.totalorder %s64, %s66
      %p70 = scmp.eq.s32.totalorder %s9, 0
      %p71 = por %p69, %p70
      %p72 = scmp.ne.s32.totalorder %s64, %s66
      %p73 = scmp.eq.s32.totalorder %s14, 1
      %p74 = por %p72, %p73
      %p75 = scmp.ne.s32.totalorder %s66, %s67
      %p76 = scmp.eq.s32.totalorder %s14, 0
      %p77 = por %p75, %p76
      %p78 = scmp.ne.s32.totalorder %s66, %s67
      %p79 = scmp.eq.s32.totalorder %s15, 1
      %p80 = por %p78, %p79
      %p82 = scmp.ne.s32.totalorder %s67, %s81
      %p83 = scmp.eq.s32.totalorder %s15, 0
      %p84 = por %p82, %p83
      %s85 = ssub.s32 %s9, %s16
      %p86 = scmp.eq.s32.totalorder %s85, 0
      %s88 = sadd.s32 %s87, 1
      %s89 = scalar_select %p86, %s87, %s88
      %p92 = pneg %p86
      %p93 = scmp.eq.s32.totalorder %s9, 1
      %p94 = por %p92, %p93
      %p95 = scmp.ne.s32.totalorder %s87, %s90
      %p96 = scmp.eq.s32.totalorder %s9, 0
      %p97 = por %p95, %p96
      %p98 = scmp.ne.s32.totalorder %s87, %s90
      %p99 = scmp.eq.s32.totalorder %s14, 1
      %p100 = por %p98, %p99
      %p101 = scmp.ne.s32.totalorder %s90, %s91
      %p102 = scmp.eq.s32.totalorder %s14, 0
      %p103 = por %p101, %p102
      %p104 = scmp.ne.s32.totalorder %s90, %s91
      %p105 = scmp.eq.s32.totalorder %s15, 1
      %p106 = por %p104, %p105
      %p108 = scmp.ne.s32.totalorder %s91, %s107
      %p109 = scmp.eq.s32.totalorder %s15, 0
      %p110 = por %p108, %p109
      %p111 = scmp.le.s32.totalorder 1, %s9
      %p112 = scmp.lt.s32.totalorder %s9, 3
      %p113 = pnand %p111, %p112
      %p114 = pneg %p113
      // Predicated region
      $region9: #{audio_cnn_forward.4} parent=5 // pred_check
        _
      $region10: #{audio_cnn_forward.4} parent=5 // pred_check_branch
        %116 = sbr.rel (%p113) target = $region12
      $region11: #{audio_cnn_forward.4} parent=5 // pred_region
        %s117 = ssub.s32 %s9, 1
        // Predicated region
        $region13: #{audio_cnn_forward.4} parent=11 // pred_check
          %p118 = pneg %p56
        $region14: #{audio_cnn_forward.4} parent=11 // pred_check_branch
          %120 = sbr.rel (%p118) target = $region16
        $region15: #{audio_cnn_forward.4} parent=11 // pred_region
          _
        $region16: #{audio_cnn_forward.4} parent=11 // pred_fallthru
          _
        // Predicated region
        $region17: #{audio_cnn_forward.4} parent=11 // pred_check
          %p121 = pneg %p77
        $region18: #{audio_cnn_forward.4} parent=11 // pred_check_branch
          %123 = sbr.rel (%p121) target = $region20
        $region19: #{audio_cnn_forward.4} parent=11 // pred_region
          _
        $region20: #{audio_cnn_forward.4} parent=11 // pred_fallthru
          _
      $region12: #{audio_cnn_forward.4} parent=5 // pred_fallthru
        _
      %p124 = scmp.lt.s32.totalorder %s9, 2
      // Predicated region
      $region21: #{audio_cnn_forward.4} parent=5 // pred_check
        %p125 = pneg %p124
      $region22: #{audio_cnn_forward.4} parent=5 // pred_check_branch
        %127 = sbr.rel (%p125) target = $region24
      $region23: #{audio_cnn_forward.4} parent=5 // pred_region
        // Predicated region
        $region25: #{audio_cnn_forward.4} parent=23 // pred_check
          %p128 = pneg %p29
        $region26: #{audio_cnn_forward.4} parent=23 // pred_check_branch
          %130 = sbr.rel (%p128) target = $region28
        $region27: #{audio_cnn_forward.4} parent=23 // pred_region
          %s131 = sand.u32 %s19, 1
          %s132 = sand.u32 %s19, 1
          %s133 = smul.addr %s132, 280
          %s134 = scalar_lea.vmem [#allocation2], %s133
          %s135 = smul.u32 10, %s9
          %s136 = smul.addr %s135, 4
          %s137 = scalar_lea.vmem %s0, %s136
          // Predicated region
          $region29: #{audio_cnn_forward.4} parent=27 // pred_check
            _
          $region30: #{audio_cnn_forward.4} parent=27 // pred_check_branch
            %139 = sbr.rel (0) target = $region32
          $region31: #{audio_cnn_forward.4} parent=27 // pred_region
            // Predicated region
            $region33: #{audio_cnn_forward.4} parent=31 // pred_check
              _
            $region34: #{audio_cnn_forward.4} parent=31 // pred_check_branch
              %141 = sbr.rel (0) target = $region36
            $region35: #{audio_cnn_forward.4} parent=31 // pred_region
              loop: start=0, step=1, limit=1
              $region37: #{audio_cnn_forward.4} parent=35 // loop_pre_header
                _
              $region38: #{audio_cnn_forward.4} parent=35 // loop_header
                %s143 = sphi 0, %s147
                %p144 = scmp.ge.s32.totalorder %s143, 1
                %s148 = sphi %s137, %s137
                %s149 = sphi %s134, %s134
              $region39: #{audio_cnn_forward.4} parent=35 // loop_header_branch
                %146 = sbr.rel (%p144) target = $region43
              $region40: #{audio_cnn_forward.4} parent=35 // loop_body
                %v150 = vld [vmem:[%s148] sm:$0xff]
                %151 = vst [vmem:[%s149] sm:$0xff] %v150
                %v152 = vld [vmem:[%s148 + $0x8] sm:$0xff]
                %153 = vst [vmem:[%s149 + $0x8] sm:$0xff] %v152
                %v154 = vld [vmem:[%s148 + $0x10] sm:$0xff]
                %155 = vst [vmem:[%s149 + $0x10] sm:$0xff] %v154
                %v156 = vld [vmem:[%s148 + $0x18] sm:$0xff]
                %157 = vst [vmem:[%s149 + $0x18] sm:$0xff] %v156
                %v158 = vld [vmem:[%s148 + $0x20] sm:$0xff]
                %159 = vst [vmem:[%s149 + $0x20] sm:$0xff] %v158
                %v160 = vld [vmem:[%s148 + $0x50] sm:$0xff]
                %161 = vst [vmem:[%s149 + $0x28] sm:$0xff] %v160
                %v162 = vld [vmem:[%s148 + $0x58] sm:$0xff]
                %163 = vst [vmem:[%s149 + $0x30] sm:$0xff] %v162
                %v164 = vld [vmem:[%s148 + $0x60] sm:$0xff]
                %165 = vst [vmem:[%s149 + $0x38] sm:$0xff] %v164
                %v166 = vld [vmem:[%s148 + $0x68] sm:$0xff]
                %167 = vst [vmem:[%s149 + $0x40] sm:$0xff] %v166
                %v168 = vld [vmem:[%s148 + $0x70] sm:$0xff]
                %169 = vst [vmem:[%s149 + $0x48] sm:$0xff] %v168
                %v170 = vld [vmem:[%s148 + $0xa0] sm:$0xff]
                %171 = vst [vmem:[%s149 + $0x50] sm:$0xff] %v170
                %v172 = vld [vmem:[%s148 + $0xa8] sm:$0xff]
                %173 = vst [vmem:[%s149 + $0x58] sm:$0xff] %v172
                %v174 = vld [vmem:[%s148 + $0xb0] sm:$0xff]
                %175 = vst [vmem:[%s149 + $0x60] sm:$0xff] %v174
                %v176 = vld [vmem:[%s148 + $0xb8] sm:$0xff]
                %177 = vst [vmem:[%s149 + $0x68] sm:$0xff] %v176
                %v178 = vld [vmem:[%s148 + $0xc0] sm:$0xff]
                %179 = vst [vmem:[%s149 + $0x70] sm:$0xff] %v178
                %v180 = vld [vmem:[%s148 + $0xf0] sm:$0xff]
                %181 = vst [vmem:[%s149 + $0x78] sm:$0xff] %v180
                %v182 = vld [vmem:[%s148 + $0xf8] sm:$0xff]
                %183 = vst [vmem:[%s149 + $0x80] sm:$0xff] %v182
                %v184 = vld [vmem:[%s148 + $0x100] sm:$0xff]
                %185 = vst [vmem:[%s149 + $0x88] sm:$0xff] %v184
                %v186 = vld [vmem:[%s148 + $0x108] sm:$0xff]
                %187 = vst [vmem:[%s149 + $0x90] sm:$0xff] %v186
                %v188 = vld [vmem:[%s148 + $0x110] sm:$0xff]
                %189 = vst [vmem:[%s149 + $0x98] sm:$0xff] %v188
                %v190 = vld [vmem:[%s148 + $0x140] sm:$0xff]
                %191 = vst [vmem:[%s149 + $0xa0] sm:$0xff] %v190
                %v192 = vld [vmem:[%s148 + $0x148] sm:$0xff]
                %193 = vst [vmem:[%s149 + $0xa8] sm:$0xff] %v192
                %v194 = vld [vmem:[%s148 + $0x150] sm:$0xff]
                %195 = vst [vmem:[%s149 + $0xb0] sm:$0xff] %v194
                %v196 = vld [vmem:[%s148 + $0x158] sm:$0xff]
                %197 = vst [vmem:[%s149 + $0xb8] sm:$0xff] %v196
                %v198 = vld [vmem:[%s148 + $0x160] sm:$0xff]
                %199 = vst [vmem:[%s149 + $0xc0] sm:$0xff] %v198
                %v200 = vld [vmem:[%s148 + $0x190] sm:$0xff]
                %201 = vst [vmem:[%s149 + $0xc8] sm:$0xff] %v200
                %v202 = vld [vmem:[%s148 + $0x198] sm:$0xff]
                %203 = vst [vmem:[%s149 + $0xd0] sm:$0xff] %v202
                %v204 = vld [vmem:[%s148 + $0x1a0] sm:$0xff]
                %205 = vst [vmem:[%s149 + $0xd8] sm:$0xff] %v204
                %v206 = vld [vmem:[%s148 + $0x1a8] sm:$0xff]
                %207 = vst [vmem:[%s149 + $0xe0] sm:$0xff] %v206
                %v208 = vld [vmem:[%s148 + $0x1b0] sm:$0xff]
                %209 = vst [vmem:[%s149 + $0xe8] sm:$0xff] %v208
                %v210 = vld [vmem:[%s148 + $0x1e0] sm:$0xff]
                %211 = vst [vmem:[%s149 + $0xf0] sm:$0xff] %v210
                %v212 = vld [vmem:[%s148 + $0x1e8] sm:$0xff]
                %213 = vst [vmem:[%s149 + $0xf8] sm:$0xff] %v212
                %v214 = vld [vmem:[%s148 + $0x1f0] sm:$0xff]
                %215 = vst [vmem:[%s149 + $0x100] sm:$0xff] %v214
                %v216 = vld [vmem:[%s148 + $0x1f8] sm:$0xff]
                %217 = vst [vmem:[%s149 + $0x108] sm:$0xff] %v216
                %v218 = vld [vmem:[%s148 + $0x200] sm:$0xff]
                %219 = vst [vmem:[%s149 + $0x110] sm:$0xff] %v218
              $region41: #{audio_cnn_forward.4} parent=35 // loop_footer
                %s147 = sadd.s32 1, %s143
              $region42: #{audio_cnn_forward.4} parent=35 // loop_footer_branch
                %142 = sbr.rel target = $region38
              $region43: #{audio_cnn_forward.4} parent=35 // loop_exit
                _
            $region36: #{audio_cnn_forward.4} parent=31 // pred_fallthru
              _
            // Predicated region
            $region44: #{audio_cnn_forward.4} parent=31 // pred_check
              _
            $region45: #{audio_cnn_forward.4} parent=31 // pred_check_branch
              %221 = sbr.rel target = $region47
            $region46: #{audio_cnn_forward.4} parent=31 // pred_region
              _
            $region47: #{audio_cnn_forward.4} parent=31 // pred_fallthru
              _
          $region32: #{audio_cnn_forward.4} parent=27 // pred_fallthru
            _
          %222 = vnop
        $region28: #{audio_cnn_forward.4} parent=23 // pred_fallthru
          _
      $region24: #{audio_cnn_forward.4} parent=5 // pred_fallthru
        _
      %p223 = scmp.le.s32.totalorder 1, %s9
      %p224 = scmp.lt.s32.totalorder %s9, 3
      %p225 = pnand %p223, %p224
      %p226 = pneg %p225
      // Predicated region
      $region48: #{audio_cnn_forward.4} parent=5 // pred_check
        _
      $region49: #{audio_cnn_forward.4} parent=5 // pred_check_branch
        %228 = sbr.rel (%p225) target = $region51
      $region50: #{audio_cnn_forward.4} parent=5 // pred_region
        %s229 = ssub.s32 %s9, 1
        %s230 = sand.u32 %s22, 1
        %s231 = sand.u32 %s22, 1
        %s232 = smul.addr %s231, 280
        %s233 = scalar_lea.vmem [#allocation2], %s232
        // Predicated region
        $region52: #{audio_cnn_forward.4} parent=50 // pred_check
          %p234 = pneg %p35
        $region53: #{audio_cnn_forward.4} parent=50 // pred_check_branch
          %236 = sbr.rel (%p234) target = $region55
        $region54: #{audio_cnn_forward.4} parent=50 // pred_region
          _
        $region55: #{audio_cnn_forward.4} parent=50 // pred_fallthru
          _
        %s237 = sand.u32 %s22, 1
        %s238 = sand.u32 %s22, 1
        %s239 = smul.addr %s238, 280
        %s240 = scalar_lea.vmem [#allocation2], %s239
        %p241 = pneg %p35
        %p242 = pneg %p32
        %p243 = pneg %p56
        %p244 = pneg %p53
        %p245 = pneg %p77
        %p246 = pneg %p74
        %p247 = pneg %p103
        %p248 = pneg %p100
        %s249 = sand.u32 %s90, 1
        %s250 = sand.u32 %s90, 1
        %s251 = smul.addr %s250, 80
        %s252 = scalar_lea.vmem [#allocation3], %s251
        %s253 = smul.u32 10, %s14
        %s254 = smul.u32 10, %s14
        %v256 = vld [vmem:[%s233] sm:$0xff]
        %v257 = vld [vmem:[%s233 + $0x8] sm:$0xff]
        %v258 = vld [vmem:[%s233 + $0x10] sm:$0xff]
        %v259 = vld [vmem:[%s233 + $0x18] sm:$0xff]
        %v260 = vld [vmem:[%s233 + $0x20] sm:$0xff]
        %v261 = vld [vmem:[%s233 + $0x28] sm:$0xff]
        %v262 = vld [vmem:[%s233 + $0x30] sm:$0xff]
        %v263 = vld [vmem:[%s233 + $0x38] sm:$0xff]
        %v264 = vld [vmem:[%s233 + $0x40] sm:$0xff]
        %v265 = vld [vmem:[%s233 + $0x48] sm:$0xff]
        %v266 = vld [vmem:[%s233 + $0x50] sm:$0xff]
        %v267 = vld [vmem:[%s233 + $0x58] sm:$0xff]
        %v268 = vld [vmem:[%s233 + $0x60] sm:$0xff]
        %v269 = vld [vmem:[%s233 + $0x68] sm:$0xff]
        %v270 = vld [vmem:[%s233 + $0x70] sm:$0xff]
        %v271 = vld [vmem:[%s233 + $0x78] sm:$0xff]
        %v272 = vld [vmem:[%s233 + $0x80] sm:$0xff]
        %v273 = vld [vmem:[%s233 + $0x88] sm:$0xff]
        %v274 = vld [vmem:[%s233 + $0x90] sm:$0xff]
        %v275 = vld [vmem:[%s233 + $0x98] sm:$0xff]
        %v276 = vld [vmem:[%s233 + $0xa0] sm:$0xff]
        %v277 = vld [vmem:[%s233 + $0xa8] sm:$0xff]
        %v278 = vld [vmem:[%s233 + $0xb0] sm:$0xff]
        %v279 = vld [vmem:[%s233 + $0xb8] sm:$0xff]
        %v280 = vld [vmem:[%s233 + $0xc0] sm:$0xff]
        %v281 = vld [vmem:[%s233 + $0xc8] sm:$0xff]
        %v282 = vld [vmem:[%s233 + $0xd0] sm:$0xff]
        %v283 = vld [vmem:[%s233 + $0xd8] sm:$0xff]
        %v284 = vld [vmem:[%s233 + $0xe0] sm:$0xff]
        %v285 = vld [vmem:[%s233 + $0xe8] sm:$0xff]
        %v286 = vld [vmem:[%s233 + $0xf0] sm:$0x77]
        %v287 = vld [vmem:[%s233 + $0xf8] sm:$0x77]
        %v288 = vld [vmem:[%s233 + $0x100] sm:$0x77]
        %v289 = vld [vmem:[%s233 + $0x108] sm:$0x77]
        %v290 = vld [vmem:[%s233 + $0x110] sm:$0x77]
        %v291 = vld [vmem:[%s1] sm:$0xf]
        %v292 = vld [vmem:[%s1 + $0x4] sm:$0x3]
        %v295 = vunpack.c.l.b16 %v291
        %v296 = vunpack.c.l.b16 %v292
        %v297 = vpack.c.b16 %v296, %v295
        %v333 = vunpack.c.l.b16 %v256
        %v334 = vunpack.c.h.b16 %v256
        %v335 = vunpack.c.l.b16 %v257
        %v336 = vunpack.c.h.b16 %v257
        %v337 = vunpack.c.l.b16 %v258
        %v338 = vunpack.c.h.b16 %v258
        %v339 = vunpack.c.l.b16 %v259
        %v340 = vunpack.c.h.b16 %v259
        %v341 = vunpack.c.l.b16 %v260
        %v342 = vunpack.c.h.b16 %v260
        %v343 = vunpack.c.l.b16 %v261
        %v344 = vunpack.c.h.b16 %v261
        %v345 = vunpack.c.l.b16 %v262
        %v346 = vunpack.c.h.b16 %v262
        %v347 = vunpack.c.l.b16 %v263
        %v348 = vunpack.c.h.b16 %v263
        %v349 = vunpack.c.l.b16 %v264
        %v350 = vunpack.c.h.b16 %v264
        %v351 = vunpack.c.l.b16 %v265
        %v352 = vunpack.c.h.b16 %v265
        %v353 = vunpack.c.l.b16 %v266
        %v354 = vunpack.c.h.b16 %v266
        %v355 = vunpack.c.l.b16 %v267
        %v356 = vunpack.c.h.b16 %v267
        %v357 = vunpack.c.l.b16 %v268
        %v358 = vunpack.c.h.b16 %v268
        %v359 = vunpack.c.l.b16 %v269
        %v360 = vunpack.c.h.b16 %v269
        %v361 = vunpack.c.l.b16 %v270
        %v362 = vunpack.c.h.b16 %v270
        %v363 = vunpack.c.l.b16 %v271
        %v364 = vunpack.c.h.b16 %v271
        %v365 = vunpack.c.l.b16 %v272
        %v366 = vunpack.c.h.b16 %v272
        %v367 = vunpack.c.l.b16 %v273
        %v368 = vunpack.c.h.b16 %v273
        %v369 = vunpack.c.l.b16 %v274
        %v370 = vunpack.c.h.b16 %v274
        %v371 = vunpack.c.l.b16 %v275
        %v372 = vunpack.c.h.b16 %v275
        %v373 = vunpack.c.l.b16 %v276
        %v374 = vunpack.c.h.b16 %v276
        %v375 = vunpack.c.l.b16 %v277
        %v376 = vunpack.c.h.b16 %v277
        %v377 = vunpack.c.l.b16 %v278
        %v378 = vunpack.c.h.b16 %v278
        %v379 = vunpack.c.l.b16 %v279
        %v380 = vunpack.c.h.b16 %v279
        %v381 = vunpack.c.l.b16 %v280
        %v382 = vunpack.c.h.b16 %v280
        %v383 = vunpack.c.l.b16 %v281
        %v384 = vunpack.c.h.b16 %v281
        %v385 = vunpack.c.l.b16 %v282
        %v386 = vunpack.c.h.b16 %v282
        %v387 = vunpack.c.l.b16 %v283
        %v388 = vunpack.c.h.b16 %v283
        %v389 = vunpack.c.l.b16 %v284
        %v390 = vunpack.c.h.b16 %v284
        %v391 = vunpack.c.l.b16 %v285
        %v392 = vunpack.c.h.b16 %v285
        %v393 = vunpack.c.l.b16 %v286
        %v394 = vunpack.c.h.b16 %v286
        %v395 = vunpack.c.l.b16 %v287
        %v396 = vunpack.c.h.b16 %v287
        %v397 = vunpack.c.l.b16 %v288
        %v398 = vunpack.c.h.b16 %v288
        %v399 = vunpack.c.l.b16 %v289
        %v400 = vunpack.c.h.b16 %v289
        %v401 = vunpack.c.l.b16 %v290
        %v402 = vunpack.c.h.b16 %v290
        %v403 = vpack.c.b16 %v343, %v333
        %v404 = vpack.c.b16 %v344, %v334
        %v405 = vpack.c.b16 %v345, %v335
        %v406 = vpack.c.b16 %v346, %v336
        %v407 = vpack.c.b16 %v347, %v337
        %v408 = vpack.c.b16 %v348, %v338
        %v409 = vpack.c.b16 %v349, %v339
        %v410 = vpack.c.b16 %v350, %v340
        %v411 = vpack.c.b16 %v351, %v341
        %v412 = vpack.c.b16 %v352, %v342
        %v413 = vpack.c.b16 %v363, %v353
        %v414 = vpack.c.b16 %v364, %v354
        %v415 = vpack.c.b16 %v365, %v355
        %v416 = vpack.c.b16 %v366, %v356
        %v417 = vpack.c.b16 %v367, %v357
        %v418 = vpack.c.b16 %v368, %v358
        %v419 = vpack.c.b16 %v369, %v359
        %v420 = vpack.c.b16 %v370, %v360
        %v421 = vpack.c.b16 %v371, %v361
        %v422 = vpack.c.b16 %v372, %v362
        %v423 = vpack.c.b16 %v383, %v373
        %v424 = vpack.c.b16 %v384, %v374
        %v425 = vpack.c.b16 %v385, %v375
        %v426 = vpack.c.b16 %v386, %v376
        %v427 = vpack.c.b16 %v387, %v377
        %v428 = vpack.c.b16 %v388, %v378
        %v429 = vpack.c.b16 %v389, %v379
        %v430 = vpack.c.b16 %v390, %v380
        %v431 = vpack.c.b16 %v391, %v381
        %v432 = vpack.c.b16 %v392, %v382
        %v433 = vpack.c.b16 %v393, %v393
        %v434 = vpack.c.b16 %v394, %v394
        %v435 = vpack.c.b16 %v395, %v395
        %v436 = vpack.c.b16 %v396, %v396
        %v437 = vpack.c.b16 %v397, %v397
        %v438 = vpack.c.b16 %v398, %v398
        %v439 = vpack.c.b16 %v399, %v399
        %v440 = vpack.c.b16 %v400, %v400
        %v441 = vpack.c.b16 %v401, %v401
        %v442 = vpack.c.b16 %v402, %v402
        %vm473 = vcmask 441344
        %v475 = vsel %vm473, %v297, 0
        %vm477 = vcmask 1042432
        %v479 = vsel %vm477, %v433, 0
        %v482 = vsel %vm477, %v434, 0
        %v485 = vsel %vm477, %v435, 0
        %v488 = vsel %vm477, %v436, 0
        %v491 = vsel %vm477, %v437, 0
        %v494 = vsel %vm477, %v438, 0
        %v497 = vsel %vm477, %v439, 0
        %v500 = vsel %vm477, %v440, 0
        %v503 = vsel %vm477, %v441, 0
        %v506 = vsel %vm477, %v442, 0
        %508 = vmatprep.subr.bf16.mxu0 %v404
        %509 = vmatpush1.bf16.msra.mxu0 %v403
        %510 = vmatprep.subr.bf16.mxu0 %v414
        %511 = vmatpush1.bf16.msra.mxu0 %v413
        %512 = vmatprep.subr.bf16.mxu0 %v424
        %513 = vmatpush1.bf16.msra.mxu0 %v423
        %514 = vmatprep.subr.bf16.mxu0 %v482
        %515 = vmatpush1.bf16.msra.mxu0 %v479
        %516 = vmatprep.subr.bf16.mxu0 0
        %517 = vmatpush1.bf16.msra.mxu0 0
        %518 = vmatprep.subr.bf16.mxu0 0
        %519 = vmatpush1.bf16.msra.mxu0 0
        %520 = vmatprep.subr.bf16.mxu0 0
        %521 = vmatpush1.bf16.msra.mxu0 0
        %522 = vmatprep.subr.bf16.mxu0 0
        %523 = vmatpush1.bf16.msra.mxu0 0
        %524 = vmatprep.subr.bf16.mxu0 0
        %525 = vmatpush1.bf16.msra.mxu0 0
        %526 = vmatprep.subr.bf16.mxu0 0
        %527 = vmatpush1.bf16.msra.mxu0 0
        %528 = vmatprep.subr.bf16.mxu0 0
        %529 = vmatpush1.bf16.msra.mxu0 0
        %530 = vmatprep.subr.bf16.mxu0 0
        %531 = vmatpush1.bf16.msra.mxu0 0
        %532 = vmatprep.subr.bf16.mxu0 0
        %533 = vmatpush1.bf16.msra.mxu0 0
        %534 = vmatprep.subr.bf16.mxu0 0
        %535 = vmatpush1.bf16.msra.mxu0 0
        %536 = vmatprep.subr.bf16.mxu0 0
        %537 = vmatpush1.bf16.msra.mxu0 0
        %538 = vmatprep.subr.bf16.mxu0 0
        %539 = vmatpush1.bf16.msra.mxu0 0
        %540 = vmatprep.mubr.bf16.mxu0 0
        %541 = vmatmul.mubr.bf16.gmra.mrb[0].mxu0 %v475
        %v542 = vpop.f32.mrb[0].mxu0
        %v543 = vadd.f32 0.0, %v542
        %v544 = vpop.f32.mrb[0].mxu0
        %v545 = vadd.f32 0.0, %v544
        %v546 = vpop.f32.mrb[0].mxu0
        %v547 = vadd.f32 0.0, %v546
        %v548 = vpop.f32.mrb[0].mxu0
        %v549 = vadd.f32 0.0, %v548
        %550 = vdwg.mxu0
        %551 = vmatprep.subr.bf16.mxu0 %v406
        %552 = vmatpush1.bf16.msra.mxu0 %v405
        %553 = vmatprep.subr.bf16.mxu0 %v416
        %554 = vmatpush1.bf16.msra.mxu0 %v415
        %555 = vmatprep.subr.bf16.mxu0 %v426
        %556 = vmatpush1.bf16.msra.mxu0 %v425
        %557 = vmatprep.subr.bf16.mxu0 %v488
        %558 = vmatpush1.bf16.msra.mxu0 %v485
        %559 = vmatprep.subr.bf16.mxu0 0
        %560 = vmatpush1.bf16.msra.mxu0 0
        %561 = vmatprep.subr.bf16.mxu0 0
        %562 = vmatpush1.bf16.msra.mxu0 0
        %563 = vmatprep.subr.bf16.mxu0 0
        %564 = vmatpush1.bf16.msra.mxu0 0
        %565 = vmatprep.subr.bf16.mxu0 0
        %566 = vmatpush1.bf16.msra.mxu0 0
        %567 = vmatprep.subr.bf16.mxu0 0
        %568 = vmatpush1.bf16.msra.mxu0 0
        %569 = vmatprep.subr.bf16.mxu0 0
        %570 = vmatpush1.bf16.msra.mxu0 0
        %571 = vmatprep.subr.bf16.mxu0 0
        %572 = vmatpush1.bf16.msra.mxu0 0
        %573 = vmatprep.subr.bf16.mxu0 0
        %574 = vmatpush1.bf16.msra.mxu0 0
        %575 = vmatprep.subr.bf16.mxu0 0
        %576 = vmatpush1.bf16.msra.mxu0 0
        %577 = vmatprep.subr.bf16.mxu0 0
        %578 = vmatpush1.bf16.msra.mxu0 0
        %579 = vmatprep.subr.bf16.mxu0 0
        %580 = vmatpush1.bf16.msra.mxu0 0
        %581 = vmatprep.subr.bf16.mxu0 0
        %582 = vmatpush1.bf16.msra.mxu0 0
        %583 = vmatprep.mubr.bf16.mxu0 0
        %584 = vmatmul.mubr.bf16.gmra.mrb[0].mxu0 %v475
        %v585 = vpop.f32.mrb[0].mxu0
        %v586 = vadd.f32 0.0, %v585
        %v587 = vpop.f32.mrb[0].mxu0
        %v588 = vadd.f32 0.0, %v587
        %v589 = vpop.f32.mrb[0].mxu0
        %v590 = vadd.f32 0.0, %v589
        %v591 = vpop.f32.mrb[0].mxu0
        %v592 = vadd.f32 0.0, %v591
        %593 = vdwg.mxu0
        %594 = vmatprep.subr.bf16.mxu0 %v408
        %595 = vmatpush1.bf16.msra.mxu0 %v407
        %596 = vmatprep.subr.bf16.mxu0 %v418
        %597 = vmatpush1.bf16.msra.mxu0 %v417
        %598 = vmatprep.subr.bf16.mxu0 %v428
        %599 = vmatpush1.bf16.msra.mxu0 %v427
        %600 = vmatprep.subr.bf16.mxu0 %v494
        %601 = vmatpush1.bf16.msra.mxu0 %v491
        %602 = vmatprep.subr.bf16.mxu0 0
        %603 = vmatpush1.bf16.msra.mxu0 0
        %604 = vmatprep.subr.bf16.mxu0 0
        %605 = vmatpush1.bf16.msra.mxu0 0
        %606 = vmatprep.subr.bf16.mxu0 0
        %607 = vmatpush1.bf16.msra.mxu0 0
        %608 = vmatprep.subr.bf16.mxu0 0
        %609 = vmatpush1.bf16.msra.mxu0 0
        %610 = vmatprep.subr.bf16.mxu0 0
        %611 = vmatpush1.bf16.msra.mxu0 0
        %612 = vmatprep.subr.bf16.mxu0 0
        %613 = vmatpush1.bf16.msra.mxu0 0
        %614 = vmatprep.subr.bf16.mxu0 0
        %615 = vmatpush1.bf16.msra.mxu0 0
        %616 = vmatprep.subr.bf16.mxu0 0
        %617 = vmatpush1.bf16.msra.mxu0 0
        %618 = vmatprep.subr.bf16.mxu0 0
        %619 = vmatpush1.bf16.msra.mxu0 0
        %620 = vmatprep.subr.bf16.mxu0 0
        %621 = vmatpush1.bf16.msra.mxu0 0
        %622 = vmatprep.subr.bf16.mxu0 0
        %623 = vmatpush1.bf16.msra.mxu0 0
        %624 = vmatprep.subr.bf16.mxu0 0
        %625 = vmatpush1.bf16.msra.mxu0 0
        %626 = vmatprep.mubr.bf16.mxu0 0
        %627 = vmatmul.mubr.bf16.gmra.mrb[0].mxu0 %v475
        %v628 = vpop.f32.mrb[0].mxu0
        %v629 = vadd.f32 0.0, %v628
        %v630 = vpop.f32.mrb[0].mxu0
        %v631 = vadd.f32 0.0, %v630
        %v632 = vpop.f32.mrb[0].mxu0
        %v633 = vadd.f32 0.0, %v632
        %v634 = vpop.f32.mrb[0].mxu0
        %v635 = vadd.f32 0.0, %v634
        %636 = vdwg.mxu0
        %637 = vmatprep.subr.bf16.mxu0 %v410
        %638 = vmatpush1.bf16.msra.mxu0 %v409
        %639 = vmatprep.subr.bf16.mxu0 %v420
        %640 = vmatpush1.bf16.msra.mxu0 %v419
        %641 = vmatprep.subr.bf16.mxu0 %v430
        %642 = vmatpush1.bf16.msra.mxu0 %v429
        %643 = vmatprep.subr.bf16.mxu0 %v500
        %644 = vmatpush1.bf16.msra.mxu0 %v497
        %645 = vmatprep.subr.bf16.mxu0 0
        %646 = vmatpush1.bf16.msra.mxu0 0
        %647 = vmatprep.subr.bf16.mxu0 0
        %648 = vmatpush1.bf16.msra.mxu0 0
        %649 = vmatprep.subr.bf16.mxu0 0
        %650 = vmatpush1.bf16.msra.mxu0 0
        %651 = vmatprep.subr.bf16.mxu0 0
        %652 = vmatpush1.bf16.msra.mxu0 0
        %653 = vmatprep.subr.bf16.mxu0 0
        %654 = vmatpush1.bf16.msra.mxu0 0
        %655 = vmatprep.subr.bf16.mxu0 0
        %656 = vmatpush1.bf16.msra.mxu0 0
        %657 = vmatprep.subr.bf16.mxu0 0
        %658 = vmatpush1.bf16.msra.mxu0 0
        %659 = vmatprep.subr.bf16.mxu0 0
        %660 = vmatpush1.bf16.msra.mxu0 0
        %661 = vmatprep.subr.bf16.mxu0 0
        %662 = vmatpush1.bf16.msra.mxu0 0
        %663 = vmatprep.subr.bf16.mxu0 0
        %664 = vmatpush1.bf16.msra.mxu0 0
        %665 = vmatprep.subr.bf16.mxu0 0
        %666 = vmatpush1.bf16.msra.mxu0 0
        %667 = vmatprep.subr.bf16.mxu0 0
        %668 = vmatpush1.bf16.msra.mxu0 0
        %669 = vmatprep.mubr.bf16.mxu0 0
        %670 = vmatmul.mubr.bf16.gmra.mrb[0].mxu0 %v475
        %v671 = vpop.f32.mrb[0].mxu0
        %v672 = vadd.f32 0.0, %v671
        %v673 = vpop.f32.mrb[0].mxu0
        %v674 = vadd.f32 0.0, %v673
        %v675 = vpop.f32.mrb[0].mxu0
        %v676 = vadd.f32 0.0, %v675
        %v677 = vpop.f32.mrb[0].mxu0
        %v678 = vadd.f32 0.0, %v677
        %679 = vdwg.mxu0
        %680 = vmatprep.subr.bf16.mxu0 %v412
        %681 = vmatpush1.bf16.msra.mxu0 %v411
        %682 = vmatprep.subr.bf16.mxu0 %v422
        %683 = vmatpush1.bf16.msra.mxu0 %v421
        %684 = vmatprep.subr.bf16.mxu0 %v432
        %685 = vmatpush1.bf16.msra.mxu0 %v431
        %686 = vmatprep.subr.bf16.mxu0 %v506
        %687 = vmatpush1.bf16.msra.mxu0 %v503
        %688 = vmatprep.subr.bf16.mxu0 0
        %689 = vmatpush1.bf16.msra.mxu0 0
        %690 = vmatprep.subr.bf16.mxu0 0
        %691 = vmatpush1.bf16.msra.mxu0 0
        %692 = vmatprep.subr.bf16.mxu0 0
        %693 = vmatpush1.bf16.msra.mxu0 0
        %694 = vmatprep.subr.bf16.mxu0 0
        %695 = vmatpush1.bf16.msra.mxu0 0
        %696 = vmatprep.subr.bf16.mxu0 0
        %697 = vmatpush1.bf16.msra.mxu0 0
        %698 = vmatprep.subr.bf16.mxu0 0
        %699 = vmatpush1.bf16.msra.mxu0 0
        %700 = vmatprep.subr.bf16.mxu0 0
        %701 = vmatpush1.bf16.msra.mxu0 0
        %702 = vmatprep.subr.bf16.mxu0 0
        %703 = vmatpush1.bf16.msra.mxu0 0
        %704 = vmatprep.subr.bf16.mxu0 0
        %705 = vmatpush1.bf16.msra.mxu0 0
        %706 = vmatprep.subr.bf16.mxu0 0
        %707 = vmatpush1.bf16.msra.mxu0 0
        %708 = vmatprep.subr.bf16.mxu0 0
        %709 = vmatpush1.bf16.msra.mxu0 0
        %710 = vmatprep.subr.bf16.mxu0 0
        %711 = vmatpush1.bf16.msra.mxu0 0
        %712 = vmatprep.mubr.bf16.mxu0 0
        %713 = vmatmul.mubr.bf16.gmra.mrb[0].mxu0 %v475
        %v714 = vpop.f32.mrb[0].mxu0
        %v715 = vadd.f32 0.0, %v714
        %v716 = vpop.f32.mrb[0].mxu0
        %v717 = vadd.f32 0.0, %v716
        %v718 = vpop.f32.mrb[0].mxu0
        %v719 = vadd.f32 0.0, %v718
        %v720 = vpop.f32.mrb[0].mxu0
        %v721 = vadd.f32 0.0, %v720
        %722 = vdwg.mxu0
        %s723 = scalar_lea.vmem %s1, 8
        %v724 = vld [vmem:[%s723] sm:$0xf]
        %v725 = vld [vmem:[%s723 + $0x4] sm:$0x3]
        %v728 = vunpack.c.l.b16 %v724
        %v729 = vunpack.c.l.b16 %v725
        %v730 = vpack.c.b16 %v729, %v728
        %v732 = vsel %vm473, %v730, 0
        %734 = vmatprep.subr.bf16.mxu0 %v404
        %735 = vmatpush1.bf16.msra.mxu0 %v403
        %736 = vmatprep.subr.bf16.mxu0 %v414
        %737 = vmatpush1.bf16.msra.mxu0 %v413
        %738 = vmatprep.subr.bf16.mxu0 %v424
        %739 = vmatpush1.bf16.msra.mxu0 %v423
        %740 = vmatprep.subr.bf16.mxu0 %v482
        %741 = vmatpush1.bf16.msra.mxu0 %v479
        %742 = vmatprep.subr.bf16.mxu0 0
        %743 = vmatpush1.bf16.msra.mxu0 0
        %744 = vmatprep.subr.bf16.mxu0 0
        %745 = vmatpush1.bf16.msra.mxu0 0
        %746 = vmatprep.subr.bf16.mxu0 0
        %747 = vmatpush1.bf16.msra.mxu0 0
        %748 = vmatprep.subr.bf16.mxu0 0
        %749 = vmatpush1.bf16.msra.mxu0 0
        %750 = vmatprep.subr.bf16.mxu0 0
        %751 = vmatpush1.bf16.msra.mxu0 0
        %752 = vmatprep.subr.bf16.mxu0 0
        %753 = vmatpush1.bf16.msra.mxu0 0
        %754 = vmatprep.subr.bf16.mxu0 0
        %755 = vmatpush1.bf16.msra.mxu0 0
        %756 = vmatprep.subr.bf16.mxu0 0
        %757 = vmatpush1.bf16.msra.mxu0 0
        %758 = vmatprep.subr.bf16.mxu0 0
        %759 = vmatpush1.bf16.msra.mxu0 0
        %760 = vmatprep.subr.bf16.mxu0 0
        %761 = vmatpush1.bf16.msra.mxu0 0
        %762 = vmatprep.subr.bf16.mxu0 0
        %763 = vmatpush1.bf16.msra.mxu0 0
        %764 = vmatprep.subr.bf16.mxu0 0
        %765 = vmatpush1.bf16.msra.mxu0 0
        %766 = vmatprep.mubr.bf16.mxu0 0
        %767 = vmatmul.mubr.bf16.gmra.mrb[0].mxu0 %v732
        %v768 = vpop.f32.mrb[0].mxu0
        %v769 = vadd.f32 0.0, %v768
        %v770 = vpop.f32.mrb[0].mxu0
        %v771 = vadd.f32 0.0, %v770
        %v772 = vpop.f32.mrb[0].mxu0
        %v773 = vadd.f32 0.0, %v772
        %v774 = vpop.f32.mrb[0].mxu0
        %v775 = vadd.f32 0.0, %v774
        %776 = vdwg.mxu0
        %777 = vmatprep.subr.bf16.mxu0 %v406
        %778 = vmatpush1.bf16.msra.mxu0 %v405
        %779 = vmatprep.subr.bf16.mxu0 %v416
        %780 = vmatpush1.bf16.msra.mxu0 %v415
        %781 = vmatprep.subr.bf16.mxu0 %v426
        %782 = vmatpush1.bf16.msra.mxu0 %v425
        %783 = vmatprep.subr.bf16.mxu0 %v488
        %784 = vmatpush1.bf16.msra.mxu0 %v485
        %785 = vmatprep.subr.bf16.mxu0 0
        %786 = vmatpush1.bf16.msra.mxu0 0
        %787 = vmatprep.subr.bf16.mxu0 0
        %788 = vmatpush1.bf16.msra.mxu0 0
        %789 = vmatprep.subr.bf16.mxu0 0
        %790 = vmatpush1.bf16.msra.mxu0 0
        %791 = vmatprep.subr.bf16.mxu0 0
        %792 = vmatpush1.bf16.msra.mxu0 0
        %793 = vmatprep.subr.bf16.mxu0 0
        %794 = vmatpush1.bf16.msra.mxu0 0
        %795 = vmatprep.subr.bf16.mxu0 0
        %796 = vmatpush1.bf16.msra.mxu0 0
        %797 = vmatprep.subr.bf16.mxu0 0
        %798 = vmatpush1.bf16.msra.mxu0 0
        %799 = vmatprep.subr.bf16.mxu0 0
        %800 = vmatpush1.bf16.msra.mxu0 0
        %801 = vmatprep.subr.bf16.mxu0 0
        %802 = vmatpush1.bf16.msra.mxu0 0
        %803 = vmatprep.subr.bf16.mxu0 0
        %804 = vmatpush1.bf16.msra.mxu0 0
        %805 = vmatprep.subr.bf16.mxu0 0
        %806 = vmatpush1.bf16.msra.mxu0 0
        %807 = vmatprep.subr.bf16.mxu0 0
        %808 = vmatpush1.bf16.msra.mxu0 0
        %809 = vmatprep.mubr.bf16.mxu0 0
        %810 = vmatmul.mubr.bf16.gmra.mrb[0].mxu0 %v732
        %v811 = vpop.f32.mrb[0].mxu0
        %v812 = vadd.f32 0.0, %v811
        %v813 = vpop.f32.mrb[0].mxu0
        %v814 = vadd.f32 0.0, %v813
        %v815 = vpop.f32.mrb[0].mxu0
        %v816 = vadd.f32 0.0, %v815
        %v817 = vpop.f32.mrb[0].mxu0
        %v818 = vadd.f32 0.0, %v817
        %819 = vdwg.mxu0
        %820 = vmatprep.subr.bf16.mxu0 %v408
        %821 = vmatpush1.bf16.msra.mxu0 %v407
        %822 = vmatprep.subr.bf16.mxu0 %v418
        %823 = vmatpush1.bf16.msra.mxu0 %v417
        %824 = vmatprep.subr.bf16.mxu0 %v428
        %825 = vmatpush1.bf16.msra.mxu0 %v427
        %826 = vmatprep.subr.bf16.mxu0 %v494
        %827 = vmatpush1.bf16.msra.mxu0 %v491
        %828 = vmatprep.subr.bf16.mxu0 0
        %829 = vmatpush1.bf16.msra.mxu0 0
        %830 = vmatprep.subr.bf16.mxu0 0
        %831 = vmatpush1.bf16.msra.mxu0 0
        %832 = vmatprep.subr.bf16.mxu0 0
        %833 = vmatpush1.bf16.msra.mxu0 0
        %834 = vmatprep.subr.bf16.mxu0 0
        %835 = vmatpush1.bf16.msra.mxu0 0
        %836 = vmatprep.subr.bf16.mxu0 0
        %837 = vmatpush1.bf16.msra.mxu0 0
        %838 = vmatprep.subr.bf16.mxu0 0
        %839 = vmatpush1.bf16.msra.mxu0 0
        %840 = vmatprep.subr.bf16.mxu0 0
        %841 = vmatpush1.bf16.msra.mxu0 0
        %842 = vmatprep.subr.bf16.mxu0 0
        %843 = vmatpush1.bf16.msra.mxu0 0
        %844 = vmatprep.subr.bf16.mxu0 0
        %845 = vmatpush1.bf16.msra.mxu0 0
        %846 = vmatprep.subr.bf16.mxu0 0
        %847 = vmatpush1.bf16.msra.mxu0 0
        %848 = vmatprep.subr.bf16.mxu0 0
        %849 = vmatpush1.bf16.msra.mxu0 0
        %850 = vmatprep.subr.bf16.mxu0 0
        %851 = vmatpush1.bf16.msra.mxu0 0
        %852 = vmatprep.mubr.bf16.mxu0 0
        %853 = vmatmul.mubr.bf16.gmra.mrb[0].mxu0 %v732
        %v854 = vpop.f32.mrb[0].mxu0
        %v855 = vadd.f32 0.0, %v854
        %v856 = vpop.f32.mrb[0].mxu0
        %v857 = vadd.f32 0.0, %v856
        %v858 = vpop.f32.mrb[0].mxu0
        %v859 = vadd.f32 0.0, %v858
        %v860 = vpop.f32.mrb[0].mxu0
        %v861 = vadd.f32 0.0, %v860
        %862 = vdwg.mxu0
        %863 = vmatprep.subr.bf16.mxu0 %v410
        %864 = vmatpush1.bf16.msra.mxu0 %v409
        %865 = vmatprep.subr.bf16.mxu0 %v420
        %866 = vmatpush1.bf16.msra.mxu0 %v419
        %867 = vmatprep.subr.bf16.mxu0 %v430
        %868 = vmatpush1.bf16.msra.mxu0 %v429
        %869 = vmatprep.subr.bf16.mxu0 %v500
        %870 = vmatpush1.bf16.msra.mxu0 %v497
        %871 = vmatprep.subr.bf16.mxu0 0
        %872 = vmatpush1.bf16.msra.mxu0 0
        %873 = vmatprep.subr.bf16.mxu0 0
        %874 = vmatpush1.bf16.msra.mxu0 0
        %875 = vmatprep.subr.bf16.mxu0 0
        %876 = vmatpush1.bf16.msra.mxu0 0
        %877 = vmatprep.subr.bf16.mxu0 0
        %878 = vmatpush1.bf16.msra.mxu0 0
        %879 = vmatprep.subr.bf16.mxu0 0
        %880 = vmatpush1.bf16.msra.mxu0 0
        %881 = vmatprep.subr.bf16.mxu0 0
        %882 = vmatpush1.bf16.msra.mxu0 0
        %883 = vmatprep.subr.bf16.mxu0 0
        %884 = vmatpush1.bf16.msra.mxu0 0
        %885 = vmatprep.subr.bf16.mxu0 0
        %886 = vmatpush1.bf16.msra.mxu0 0
        %887 = vmatprep.subr.bf16.mxu0 0
        %888 = vmatpush1.bf16.msra.mxu0 0
        %889 = vmatprep.subr.bf16.mxu0 0
        %890 = vmatpush1.bf16.msra.mxu0 0
        %891 = vmatprep.subr.bf16.mxu0 0
        %892 = vmatpush1.bf16.msra.mxu0 0
        %893 = vmatprep.subr.bf16.mxu0 0
        %894 = vmatpush1.bf16.msra.mxu0 0
        %895 = vmatprep.mubr.bf16.mxu0 0
        %896 = vmatmul.mubr.bf16.gmra.mrb[0].mxu0 %v732
        %v897 = vpop.f32.mrb[0].mxu0
        %v898 = vadd.f32 0.0, %v897
        %v899 = vpop.f32.mrb[0].mxu0
        %v900 = vadd.f32 0.0, %v899
        %v901 = vpop.f32.mrb[0].mxu0
        %v902 = vadd.f32 0.0, %v901
        %v903 = vpop.f32.mrb[0].mxu0
        %v904 = vadd.f32 0.0, %v903
        %905 = vdwg.mxu0
        %906 = vmatprep.subr.bf16.mxu0 %v412
        %907 = vmatpush1.bf16.msra.mxu0 %v411
        %908 = vmatprep.subr.bf16.mxu0 %v422
        %909 = vmatpush1.bf16.msra.mxu0 %v421
        %910 = vmatprep.subr.bf16.mxu0 %v432
        %911 = vmatpush1.bf16.msra.mxu0 %v431
        %912 = vmatprep.subr.bf16.mxu0 %v506
        %913 = vmatpush1.bf16.msra.mxu0 %v503
        %914 = vmatprep.subr.bf16.mxu0 0
        %915 = vmatpush1.bf16.msra.mxu0 0
        %916 = vmatprep.subr.bf16.mxu0 0
        %917 = vmatpush1.bf16.msra.mxu0 0
        %918 = vmatprep.subr.bf16.mxu0 0
        %919 = vmatpush1.bf16.msra.mxu0 0
        %920 = vmatprep.subr.bf16.mxu0 0
        %921 = vmatpush1.bf16.msra.mxu0 0
        %922 = vmatprep.subr.bf16.mxu0 0
        %923 = vmatpush1.bf16.msra.mxu0 0
        %924 = vmatprep.subr.bf16.mxu0 0
        %925 = vmatpush1.bf16.msra.mxu0 0
        %926 = vmatprep.subr.bf16.mxu0 0
        %927 = vmatpush1.bf16.msra.mxu0 0
        %928 = vmatprep.subr.bf16.mxu0 0
        %929 = vmatpush1.bf16.msra.mxu0 0
        %930 = vmatprep.subr.bf16.mxu0 0
        %931 = vmatpush1.bf16.msra.mxu0 0
        %932 = vmatprep.subr.bf16.mxu0 0
        %933 = vmatpush1.bf16.msra.mxu0 0
        %934 = vmatprep.subr.bf16.mxu0 0
        %935 = vmatpush1.bf16.msra.mxu0 0
        %936 = vmatprep.subr.bf16.mxu0 0
        %937 = vmatpush1.bf16.msra.mxu0 0
        %938 = vmatprep.mubr.bf16.mxu0 0
        %939 = vmatmul.mubr.bf16.gmra.mrb[0].mxu0 %v732
        %v940 = vpop.f32.mrb[0].mxu0
        %v941 = vadd.f32 0.0, %v940
        %v942 = vpop.f32.mrb[0].mxu0
        %v943 = vadd.f32 0.0, %v942
        %v944 = vpop.f32.mrb[0].mxu0
        %v945 = vadd.f32 0.0, %v944
        %v946 = vpop.f32.mrb[0].mxu0
        %v947 = vadd.f32 0.0, %v946
        %948 = vdwg.mxu0
        %v949 = vmax.f32 %v543, %v769
        %v950 = vmax.f32 %v545, %v771
        %v951 = vmax.f32 %v586, %v812
        %v952 = vmax.f32 %v588, %v814
        %v953 = vmax.f32 %v629, %v855
        %v954 = vmax.f32 %v631, %v857
        %v955 = vmax.f32 %v672, %v898
        %v956 = vmax.f32 %v674, %v900
        %v957 = vmax.f32 %v715, %v941
        %v958 = vmax.f32 %v717, %v943
        %v959 = vmax.f32 %v547, %v773
        %v960 = vmax.f32 %v549, %v775
        %v961 = vmax.f32 %v590, %v816
        %v962 = vmax.f32 %v592, %v818
        %v963 = vmax.f32 %v633, %v859
        %v964 = vmax.f32 %v635, %v861
        %v965 = vmax.f32 %v676, %v902
        %v966 = vmax.f32 %v678, %v904
        %v967 = vmax.f32 %v719, %v945
        %v968 = vmax.f32 %v721, %v947
        %s969 = scalar_lea.vmem %s1, 16
        %v970 = vld [vmem:[%s969] sm:$0xf]
        %v971 = vld [vmem:[%s969 + $0x4] sm:$0x3]
        %v974 = vunpack.c.l.b16 %v970
        %v975 = vunpack.c.l.b16 %v971
        %v976 = vpack.c.b16 %v975, %v974
        %v978 = vsel %vm473, %v976, 0
        %980 = vmatprep.subr.bf16.mxu0 %v404
        %981 = vmatpush1.bf16.msra.mxu0 %v403
        %982 = vmatprep.subr.bf16.mxu0 %v414
        %983 = vmatpush1.bf16.msra.mxu0 %v413
        %984 = vmatprep.subr.bf16.mxu0 %v424
        %985 = vmatpush1.bf16.msra.mxu0 %v423
        %986 = vmatprep.subr.bf16.mxu0 %v482
        %987 = vmatpush1.bf16.msra.mxu0 %v479
        %988 = vmatprep.subr.bf16.mxu0 0
        %989 = vmatpush1.bf16.msra.mxu0 0
        %990 = vmatprep.subr.bf16.mxu0 0
        %991 = vmatpush1.bf16.msra.mxu0 0
        %992 = vmatprep.subr.bf16.mxu0 0
        %993 = vmatpush1.bf16.msra.mxu0 0
        %994 = vmatprep.subr.bf16.mxu0 0
        %995 = vmatpush1.bf16.msra.mxu0 0
        %996 = vmatprep.subr.bf16.mxu0 0
        %997 = vmatpush1.bf16.msra.mxu0 0
        %998 = vmatprep.subr.bf16.mxu0 0
        %999 = vmatpush1.bf16.msra.mxu0 0
        %1000 = vmatprep.subr.bf16.mxu0 0
        %1001 = vmatpush1.bf16.msra.mxu0 0
        %1002 = vmatprep.subr.bf16.mxu0 0
        %1003 = vmatpush1.bf16.msra.mxu0 0
        %1004 = vmatprep.subr.bf16.mxu0 0
        %1005 = vmatpush1.bf16.msra.mxu0 0
        %1006 = vmatprep.subr.bf16.mxu0 0
        %1007 = vmatpush1.bf16.msra.mxu0 0
        %1008 = vmatprep.subr.bf16.mxu0 0
        %1009 = vmatpush1.bf16.msra.mxu0 0
        %1010 = vmatprep.subr.bf16.mxu0 0
        %1011 = vmatpush1.bf16.msra.mxu0 0
        %1012 = vmatprep.mubr.bf16.mxu0 0
        %1013 = vmatmul.mubr.bf16.gmra.mrb[0].mxu0 %v978
        %v1014 = vpop.f32.mrb[0].mxu0
        %v1015 = vadd.f32 0.0, %v1014
        %v1016 = vpop.f32.mrb[0].mxu0
        %v1017 = vadd.f32 0.0, %v1016
        %v1018 = vpop.f32.mrb[0].mxu0
        %v1019 = vadd.f32 0.0, %v1018
        %v1020 = vpop.f32.mrb[0].mxu0
        %v1021 = vadd.f32 0.0, %v1020
        %1022 = vdwg.mxu0
        %1023 = vmatprep.subr.bf16.mxu0 %v406
        %1024 = vmatpush1.bf16.msra.mxu0 %v405
        %1025 = vmatprep.subr.bf16.mxu0 %v416
        %1026 = vmatpush1.bf16.msra.mxu0 %v415
        %1027 = vmatprep.subr.bf16.mxu0 %v426
        %1028 = vmatpush1.bf16.msra.mxu0 %v425
        %1029 = vmatprep.subr.bf16.mxu0 %v488
        %1030 = vmatpush1.bf16.msra.mxu0 %v485
        %1031 = vmatprep.subr.bf16.mxu0 0
        %1032 = vmatpush1.bf16.msra.mxu0 0
        %1033 = vmatprep.subr.bf16.mxu0 0
        %1034 = vmatpush1.bf16.msra.mxu0 0
        %1035 = vmatprep.subr.bf16.mxu0 0
        %1036 = vmatpush1.bf16.msra.mxu0 0
        %1037 = vmatprep.subr.bf16.mxu0 0
        %1038 = vmatpush1.bf16.msra.mxu0 0
        %1039 = vmatprep.subr.bf16.mxu0 0
        %1040 = vmatpush1.bf16.msra.mxu0 0
        %1041 = vmatprep.subr.bf16.mxu0 0
        %1042 = vmatpush1.bf16.msra.mxu0 0
        %1043 = vmatprep.subr.bf16.mxu0 0
        %1044 = vmatpush1.bf16.msra.mxu0 0
        %1045 = vmatprep.subr.bf16.mxu0 0
        %1046 = vmatpush1.bf16.msra.mxu0 0
        %1047 = vmatprep.subr.bf16.mxu0 0
        %1048 = vmatpush1.bf16.msra.mxu0 0
        %1049 = vmatprep.subr.bf16.mxu0 0
        %1050 = vmatpush1.bf16.msra.mxu0 0
        %1051 = vmatprep.subr.bf16.mxu0 0
        %1052 = vmatpush1.bf16.msra.mxu0 0
        %1053 = vmatprep.subr.bf16.mxu0 0
        %1054 = vmatpush1.bf16.msra.mxu0 0
        %1055 = vmatprep.mubr.bf16.mxu0 0
        %1056 = vmatmul.mubr.bf16.gmra.mrb[0].mxu0 %v978
        %v1057 = vpop.f32.mrb[0].mxu0
        %v1058 = vadd.f32 0.0, %v1057
        %v1059 = vpop.f32.mrb[0].mxu0
        %v1060 = vadd.f32 0.0, %v1059
        %v1061 = vpop.f32.mrb[0].mxu0
        %v1062 = vadd.f32 0.0, %v1061
        %v1063 = vpop.f32.mrb[0].mxu0
        %v1064 = vadd.f32 0.0, %v1063
        %1065 = vdwg.mxu0
        %1066 = vmatprep.subr.bf16.mxu0 %v408
        %1067 = vmatpush1.bf16.msra.mxu0 %v407
        %1068 = vmatprep.subr.bf16.mxu0 %v418
        %1069 = vmatpush1.bf16.msra.mxu0 %v417
        %1070 = vmatprep.subr.bf16.mxu0 %v428
        %1071 = vmatpush1.bf16.msra.mxu0 %v427
        %1072 = vmatprep.subr.bf16.mxu0 %v494
        %1073 = vmatpush1.bf16.msra.mxu0 %v491
        %1074 = vmatprep.subr.bf16.mxu0 0
        %1075 = vmatpush1.bf16.msra.mxu0 0
        %1076 = vmatprep.subr.bf16.mxu0 0
        %1077 = vmatpush1.bf16.msra.mxu0 0
        %1078 = vmatprep.subr.bf16.mxu0 0
        %1079 = vmatpush1.bf16.msra.mxu0 0
        %1080 = vmatprep.subr.bf16.mxu0 0
        %1081 = vmatpush1.bf16.msra.mxu0 0
        %1082 = vmatprep.subr.bf16.mxu0 0
        %1083 = vmatpush1.bf16.msra.mxu0 0
        %1084 = vmatprep.subr.bf16.mxu0 0
        %1085 = vmatpush1.bf16.msra.mxu0 0
        %1086 = vmatprep.subr.bf16.mxu0 0
        %1087 = vmatpush1.bf16.msra.mxu0 0
        %1088 = vmatprep.subr.bf16.mxu0 0
        %1089 = vmatpush1.bf16.msra.mxu0 0
        %1090 = vmatprep.subr.bf16.mxu0 0
        %1091 = vmatpush1.bf16.msra.mxu0 0
        %1092 = vmatprep.subr.bf16.mxu0 0
        %1093 = vmatpush1.bf16.msra.mxu0 0
        %1094 = vmatprep.subr.bf16.mxu0 0
        %1095 = vmatpush1.bf16.msra.mxu0 0
        %1096 = vmatprep.subr.bf16.mxu0 0
        %1097 = vmatpush1.bf16.msra.mxu0 0
        %1098 = vmatprep.mubr.bf16.mxu0 0
        %1099 = vmatmul.mubr.bf16.gmra.mrb[0].mxu0 %v978
        %v1100 = vpop.f32.mrb[0].mxu0
        %v1101 = vadd.f32 0.0, %v1100
        %v1102 = vpop.f32.mrb[0].mxu0
        %v1103 = vadd.f32 0.0, %v1102
        %v1104 = vpop.f32.mrb[0].mxu0
        %v1105 = vadd.f32 0.0, %v1104
        %v1106 = vpop.f32.mrb[0].mxu0
        %v1107 = vadd.f32 0.0, %v1106
        %1108 = vdwg.mxu0
        %1109 = vmatprep.subr.bf16.mxu0 %v410
        %1110 = vmatpush1.bf16.msra.mxu0 %v409
        %1111 = vmatprep.subr.bf16.mxu0 %v420
        %1112 = vmatpush1.bf16.msra.mxu0 %v419
        %1113 = vmatprep.subr.bf16.mxu0 %v430
        %1114 = vmatpush1.bf16.msra.mxu0 %v429
        %1115 = vmatprep.subr.bf16.mxu0 %v500
        %1116 = vmatpush1.bf16.msra.mxu0 %v497
        %1117 = vmatprep.subr.bf16.mxu0 0
        %1118 = vmatpush1.bf16.msra.mxu0 0
        %1119 = vmatprep.subr.bf16.mxu0 0
        %1120 = vmatpush1.bf16.msra.mxu0 0
        %1121 = vmatprep.subr.bf16.mxu0 0
        %1122 = vmatpush1.bf16.msra.mxu0 0
        %1123 = vmatprep.subr.bf16.mxu0 0
        %1124 = vmatpush1.bf16.msra.mxu0 0
        %1125 = vmatprep.subr.bf16.mxu0 0
        %1126 = vmatpush1.bf16.msra.mxu0 0
        %1127 = vmatprep.subr.bf16.mxu0 0
        %1128 = vmatpush1.bf16.msra.mxu0 0
        %1129 = vmatprep.subr.bf16.mxu0 0
        %1130 = vmatpush1.bf16.msra.mxu0 0
        %1131 = vmatprep.subr.bf16.mxu0 0
        %1132 = vmatpush1.bf16.msra.mxu0 0
        %1133 = vmatprep.subr.bf16.mxu0 0
        %1134 = vmatpush1.bf16.msra.mxu0 0
        %1135 = vmatprep.subr.bf16.mxu0 0
        %1136 = vmatpush1.bf16.msra.mxu0 0
        %1137 = vmatprep.subr.bf16.mxu0 0
        %1138 = vmatpush1.bf16.msra.mxu0 0
        %1139 = vmatprep.subr.bf16.mxu0 0
        %1140 = vmatpush1.bf16.msra.mxu0 0
        %1141 = vmatprep.mubr.bf16.mxu0 0
        %1142 = vmatmul.mubr.bf16.gmra.mrb[0].mxu0 %v978
        %v1143 = vpop.f32.mrb[0].mxu0
        %v1144 = vadd.f32 0.0, %v1143
        %v1145 = vpop.f32.mrb[0].mxu0
        %v1146 = vadd.f32 0.0, %v1145
        %v1147 = vpop.f32.mrb[0].mxu0
        %v1148 = vadd.f32 0.0, %v1147
        %v1149 = vpop.f32.mrb[0].mxu0
        %v1150 = vadd.f32 0.0, %v1149
        %1151 = vdwg.mxu0
        %1152 = vmatprep.subr.bf16.mxu0 %v412
        %1153 = vmatpush1.bf16.msra.mxu0 %v411
        %1154 = vmatprep.subr.bf16.mxu0 %v422
        %1155 = vmatpush1.bf16.msra.mxu0 %v421
        %1156 = vmatprep.subr.bf16.mxu0 %v432
        %1157 = vmatpush1.bf16.msra.mxu0 %v431
        %1158 = vmatprep.subr.bf16.mxu0 %v506
        %1159 = vmatpush1.bf16.msra.mxu0 %v503
        %1160 = vmatprep.subr.bf16.mxu0 0
        %1161 = vmatpush1.bf16.msra.mxu0 0
        %1162 = vmatprep.subr.bf16.mxu0 0
        %1163 = vmatpush1.bf16.msra.mxu0 0
        %1164 = vmatprep.subr.bf16.mxu0 0
        %1165 = vmatpush1.bf16.msra.mxu0 0
        %1166 = vmatprep.subr.bf16.mxu0 0
        %1167 = vmatpush1.bf16.msra.mxu0 0
        %1168 = vmatprep.subr.bf16.mxu0 0
        %1169 = vmatpush1.bf16.msra.mxu0 0
        %1170 = vmatprep.subr.bf16.mxu0 0
        %1171 = vmatpush1.bf16.msra.mxu0 0
        %1172 = vmatprep.subr.bf16.mxu0 0
        %1173 = vmatpush1.bf16.msra.mxu0 0
        %1174 = vmatprep.subr.bf16.mxu0 0
        %1175 = vmatpush1.bf16.msra.mxu0 0
        %1176 = vmatprep.subr.bf16.mxu0 0
        %1177 = vmatpush1.bf16.msra.mxu0 0
        %1178 = vmatprep.subr.bf16.mxu0 0
        %1179 = vmatpush1.bf16.msra.mxu0 0
        %1180 = vmatprep.subr.bf16.mxu0 0
        %1181 = vmatpush1.bf16.msra.mxu0 0
        %1182 = vmatprep.subr.bf16.mxu0 0
        %1183 = vmatpush1.bf16.msra.mxu0 0
        %1184 = vmatprep.mubr.bf16.mxu0 0
        %1185 = vmatmul.mubr.bf16.gmra.mrb[0].mxu0 %v978
        %v1186 = vpop.f32.mrb[0].mxu0
        %v1187 = vadd.f32 0.0, %v1186
        %v1188 = vpop.f32.mrb[0].mxu0
        %v1189 = vadd.f32 0.0, %v1188
        %v1190 = vpop.f32.mrb[0].mxu0
        %v1191 = vadd.f32 0.0, %v1190
        %v1192 = vpop.f32.mrb[0].mxu0
        %v1193 = vadd.f32 0.0, %v1192
        %1194 = vdwg.mxu0
        %v1195 = vmax.f32 %v949, %v1015
        %v1196 = vmax.f32 %v950, %v1017
        %v1197 = vmax.f32 %v951, %v1058
        %v1198 = vmax.f32 %v952, %v1060
        %v1199 = vmax.f32 %v953, %v1101
        %v1200 = vmax.f32 %v954, %v1103
        %v1201 = vmax.f32 %v955, %v1144
        %v1202 = vmax.f32 %v956, %v1146
        %v1203 = vmax.f32 %v957, %v1187
        %v1204 = vmax.f32 %v958, %v1189
        %v1205 = vmax.f32 %v959, %v1019
        %v1206 = vmax.f32 %v960, %v1021
        %v1207 = vmax.f32 %v961, %v1062
        %v1208 = vmax.f32 %v962, %v1064
        %v1209 = vmax.f32 %v963, %v1105
        %v1210 = vmax.f32 %v964, %v1107
        %v1211 = vmax.f32 %v965, %v1148
        %v1212 = vmax.f32 %v966, %v1150
        %v1213 = vmax.f32 %v967, %v1191
        %v1214 = vmax.f32 %v968, %v1193
        %s1215 = scalar_lea.vmem %s1, 24
        %v1216 = vld [vmem:[%s1215] sm:$0xf]
        %v1217 = vld [vmem:[%s1215 + $0x4] sm:$0x3]
        %v1220 = vunpack.c.l.b16 %v1216
        %v1221 = vunpack.c.l.b16 %v1217
        %v1222 = vpack.c.b16 %v1221, %v1220
        %v1224 = vsel %vm473, %v1222, 0
        %1226 = vmatprep.subr.bf16.mxu0 %v404
        %1227 = vmatpush1.bf16.msra.mxu0 %v403
        %1228 = vmatprep.subr.bf16.mxu0 %v414
        %1229 = vmatpush1.bf16.msra.mxu0 %v413
        %1230 = vmatprep.subr.bf16.mxu0 %v424
        %1231 = vmatpush1.bf16.msra.mxu0 %v423
        %1232 = vmatprep.subr.bf16.mxu0 %v482
        %1233 = vmatpush1.bf16.msra.mxu0 %v479
        %1234 = vmatprep.subr.bf16.mxu0 0
        %1235 = vmatpush1.bf16.msra.mxu0 0
        %1236 = vmatprep.subr.bf16.mxu0 0
        %1237 = vmatpush1.bf16.msra.mxu0 0
        %1238 = vmatprep.subr.bf16.mxu0 0
        %1239 = vmatpush1.bf16.msra.mxu0 0
        %1240 = vmatprep.subr.bf16.mxu0 0
        %1241 = vmatpush1.bf16.msra.mxu0 0
        %1242 = vmatprep.subr.bf16.mxu0 0
        %1243 = vmatpush1.bf16.msra.mxu0 0
        %1244 = vmatprep.subr.bf16.mxu0 0
        %1245 = vmatpush1.bf16.msra.mxu0 0
        %1246 = vmatprep.subr.bf16.mxu0 0
        %1247 = vmatpush1.bf16.msra.mxu0 0
        %1248 = vmatprep.subr.bf16.mxu0 0
        %1249 = vmatpush1.bf16.msra.mxu0 0
        %1250 = vmatprep.subr.bf16.mxu0 0
        %1251 = vmatpush1.bf16.msra.mxu0 0
        %1252 = vmatprep.subr.bf16.mxu0 0
        %1253 = vmatpush1.bf16.msra.mxu0 0
        %1254 = vmatprep.subr.bf16.mxu0 0
        %1255 = vmatpush1.bf16.msra.mxu0 0
        %1256 = vmatprep.subr.bf16.mxu0 0
        %1257 = vmatpush1.bf16.msra.mxu0 0
        %1258 = vmatprep.mubr.bf16.mxu0 0
        %1259 = vmatmul.mubr.bf16.gmra.mrb[0].mxu0 %v1224
        %v1260 = vpop.f32.mrb[0].mxu0
        %v1261 = vadd.f32 0.0, %v1260
        %v1262 = vpop.f32.mrb[0].mxu0
        %v1263 = vadd.f32 0.0, %v1262
        %v1264 = vpop.f32.mrb[0].mxu0
        %v1265 = vadd.f32 0.0, %v1264
        %v1266 = vpop.f32.mrb[0].mxu0
        %v1267 = vadd.f32 0.0, %v1266
        %1268 = vdwg.mxu0
        %1269 = vmatprep.subr.bf16.mxu0 %v406
        %1270 = vmatpush1.bf16.msra.mxu0 %v405
        %1271 = vmatprep.subr.bf16.mxu0 %v416
        %1272 = vmatpush1.bf16.msra.mxu0 %v415
        %1273 = vmatprep.subr.bf16.mxu0 %v426
        %1274 = vmatpush1.bf16.msra.mxu0 %v425
        %1275 = vmatprep.subr.bf16.mxu0 %v488
        %1276 = vmatpush1.bf16.msra.mxu0 %v485
        %1277 = vmatprep.subr.bf16.mxu0 0
        %1278 = vmatpush1.bf16.msra.mxu0 0
        %1279 = vmatprep.subr.bf16.mxu0 0
        %1280 = vmatpush1.bf16.msra.mxu0 0
        %1281 = vmatprep.subr.bf16.mxu0 0
        %1282 = vmatpush1.bf16.msra.mxu0 0
        %1283 = vmatprep.subr.bf16.mxu0 0
        %1284 = vmatpush1.bf16.msra.mxu0 0
        %1285 = vmatprep.subr.bf16.mxu0 0
        %1286 = vmatpush1.bf16.msra.mxu0 0
        %1287 = vmatprep.subr.bf16.mxu0 0
        %1288 = vmatpush1.bf16.msra.mxu0 0
        %1289 = vmatprep.subr.bf16.mxu0 0
        %1290 = vmatpush1.bf16.msra.mxu0 0
        %1291 = vmatprep.subr.bf16.mxu0 0
        %1292 = vmatpush1.bf16.msra.mxu0 0
        %1293 = vmatprep.subr.bf16.mxu0 0
        %1294 = vmatpush1.bf16.msra.mxu0 0
        %1295 = vmatprep.subr.bf16.mxu0 0
        %1296 = vmatpush1.bf16.msra.mxu0 0
        %1297 = vmatprep.subr.bf16.mxu0 0
        %1298 = vmatpush1.bf16.msra.mxu0 0
        %1299 = vmatprep.subr.bf16.mxu0 0
        %1300 = vmatpush1.bf16.msra.mxu0 0
        %1301 = vmatprep.mubr.bf16.mxu0 0
        %1302 = vmatmul.mubr.bf16.gmra.mrb[0].mxu0 %v1224
        %v1303 = vpop.f32.mrb[0].mxu0
        %v1304 = vadd.f32 0.0, %v1303
        %v1305 = vpop.f32.mrb[0].mxu0
        %v1306 = vadd.f32 0.0, %v1305
        %v1307 = vpop.f32.mrb[0].mxu0
        %v1308 = vadd.f32 0.0, %v1307
        %v1309 = vpop.f32.mrb[0].mxu0
        %v1310 = vadd.f32 0.0, %v1309
        %1311 = vdwg.mxu0
        %1312 = vmatprep.subr.bf16.mxu0 %v408
        %1313 = vmatpush1.bf16.msra.mxu0 %v407
        %1314 = vmatprep.subr.bf16.mxu0 %v418
        %1315 = vmatpush1.bf16.msra.mxu0 %v417
        %1316 = vmatprep.subr.bf16.mxu0 %v428
        %1317 = vmatpush1.bf16.msra.mxu0 %v427
        %1318 = vmatprep.subr.bf16.mxu0 %v494
        %1319 = vmatpush1.bf16.msra.mxu0 %v491
        %1320 = vmatprep.subr.bf16.mxu0 0
        %1321 = vmatpush1.bf16.msra.mxu0 0
        %1322 = vmatprep.subr.bf16.mxu0 0
        %1323 = vmatpush1.bf16.msra.mxu0 0
        %1324 = vmatprep.subr.bf16.mxu0 0
        %1325 = vmatpush1.bf16.msra.mxu0 0
        %1326 = vmatprep.subr.bf16.mxu0 0
        %1327 = vmatpush1.bf16.msra.mxu0 0
        %1328 = vmatprep.subr.bf16.mxu0 0
        %1329 = vmatpush1.bf16.msra.mxu0 0
        %1330 = vmatprep.subr.bf16.mxu0 0
        %1331 = vmatpush1.bf16.msra.mxu0 0
        %1332 = vmatprep.subr.bf16.mxu0 0
        %1333 = vmatpush1.bf16.msra.mxu0 0
        %1334 = vmatprep.subr.bf16.mxu0 0
        %1335 = vmatpush1.bf16.msra.mxu0 0
        %1336 = vmatprep.subr.bf16.mxu0 0
        %1337 = vmatpush1.bf16.msra.mxu0 0
        %1338 = vmatprep.subr.bf16.mxu0 0
        %1339 = vmatpush1.bf16.msra.mxu0 0
        %1340 = vmatprep.subr.bf16.mxu0 0
        %1341 = vmatpush1.bf16.msra.mxu0 0
        %1342 = vmatprep.subr.bf16.mxu0 0
        %1343 = vmatpush1.bf16.msra.mxu0 0
        %1344 = vmatprep.mubr.bf16.mxu0 0
        %1345 = vmatmul.mubr.bf16.gmra.mrb[0].mxu0 %v1224
        %v1346 = vpop.f32.mrb[0].mxu0
        %v1347 = vadd.f32 0.0, %v1346
        %v1348 = vpop.f32.mrb[0].mxu0
        %v1349 = vadd.f32 0.0, %v1348
        %v1350 = vpop.f32.mrb[0].mxu0
        %v1351 = vadd.f32 0.0, %v1350
        %v1352 = vpop.f32.mrb[0].mxu0
        %v1353 = vadd.f32 0.0, %v1352
        %1354 = vdwg.mxu0
        %1355 = vmatprep.subr.bf16.mxu0 %v410
        %1356 = vmatpush1.bf16.msra.mxu0 %v409
        %1357 = vmatprep.subr.bf16.mxu0 %v420
        %1358 = vmatpush1.bf16.msra.mxu0 %v419
        %1359 = vmatprep.subr.bf16.mxu0 %v430
        %1360 = vmatpush1.bf16.msra.mxu0 %v429
        %1361 = vmatprep.subr.bf16.mxu0 %v500
        %1362 = vmatpush1.bf16.msra.mxu0 %v497
        %1363 = vmatprep.subr.bf16.mxu0 0
        %1364 = vmatpush1.bf16.msra.mxu0 0
        %1365 = vmatprep.subr.bf16.mxu0 0
        %1366 = vmatpush1.bf16.msra.mxu0 0
        %1367 = vmatprep.subr.bf16.mxu0 0
        %1368 = vmatpush1.bf16.msra.mxu0 0
        %1369 = vmatprep.subr.bf16.mxu0 0
        %1370 = vmatpush1.bf16.msra.mxu0 0
        %1371 = vmatprep.subr.bf16.mxu0 0
        %1372 = vmatpush1.bf16.msra.mxu0 0
        %1373 = vmatprep.subr.bf16.mxu0 0
        %1374 = vmatpush1.bf16.msra.mxu0 0
        %1375 = vmatprep.subr.bf16.mxu0 0
        %1376 = vmatpush1.bf16.msra.mxu0 0
        %1377 = vmatprep.subr.bf16.mxu0 0
        %1378 = vmatpush1.bf16.msra.mxu0 0
        %1379 = vmatprep.subr.bf16.mxu0 0
        %1380 = vmatpush1.bf16.msra.mxu0 0
        %1381 = vmatprep.subr.bf16.mxu0 0
        %1382 = vmatpush1.bf16.msra.mxu0 0
        %1383 = vmatprep.subr.bf16.mxu0 0
        %1384 = vmatpush1.bf16.msra.mxu0 0
        %1385 = vmatprep.subr.bf16.mxu0 0
        %1386 = vmatpush1.bf16.msra.mxu0 0
        %1387 = vmatprep.mubr.bf16.mxu0 0
        %1388 = vmatmul.mubr.bf16.gmra.mrb[0].mxu0 %v1224
        %v1389 = vpop.f32.mrb[0].mxu0
        %v1390 = vadd.f32 0.0, %v1389
        %v1391 = vpop.f32.mrb[0].mxu0
        %v1392 = vadd.f32 0.0, %v1391
        %v1393 = vpop.f32.mrb[0].mxu0
        %v1394 = vadd.f32 0.0, %v1393
        %v1395 = vpop.f32.mrb[0].mxu0
        %v1396 = vadd.f32 0.0, %v1395
        %1397 = vdwg.mxu0
        %1398 = vmatprep.subr.bf16.mxu0 %v412
        %1399 = vmatpush1.bf16.msra.mxu0 %v411
        %1400 = vmatprep.subr.bf16.mxu0 %v422
        %1401 = vmatpush1.bf16.msra.mxu0 %v421
        %1402 = vmatprep.subr.bf16.mxu0 %v432
        %1403 = vmatpush1.bf16.msra.mxu0 %v431
        %1404 = vmatprep.subr.bf16.mxu0 %v506
        %1405 = vmatpush1.bf16.msra.mxu0 %v503
        %1406 = vmatprep.subr.bf16.mxu0 0
        %1407 = vmatpush1.bf16.msra.mxu0 0
        %1408 = vmatprep.subr.bf16.mxu0 0
        %1409 = vmatpush1.bf16.msra.mxu0 0
        %1410 = vmatprep.subr.bf16.mxu0 0
        %1411 = vmatpush1.bf16.msra.mxu0 0
        %1412 = vmatprep.subr.bf16.mxu0 0
        %1413 = vmatpush1.bf16.msra.mxu0 0
        %1414 = vmatprep.subr.bf16.mxu0 0
        %1415 = vmatpush1.bf16.msra.mxu0 0
        %1416 = vmatprep.subr.bf16.mxu0 0
        %1417 = vmatpush1.bf16.msra.mxu0 0
        %1418 = vmatprep.subr.bf16.mxu0 0
        %1419 = vmatpush1.bf16.msra.mxu0 0
        %1420 = vmatprep.subr.bf16.mxu0 0
        %1421 = vmatpush1.bf16.msra.mxu0 0
        %1422 = vmatprep.subr.bf16.mxu0 0
        %1423 = vmatpush1.bf16.msra.mxu0 0
        %1424 = vmatprep.subr.bf16.mxu0 0
        %1425 = vmatpush1.bf16.msra.mxu0 0
        %1426 = vmatprep.subr.bf16.mxu0 0
        %1427 = vmatpush1.bf16.msra.mxu0 0
        %1428 = vmatprep.subr.bf16.mxu0 0
        %1429 = vmatpush1.bf16.msra.mxu0 0
        %1430 = vmatprep.mubr.bf16.mxu0 0
        %1431 = vmatmul.mubr.bf16.gmra.mrb[0].mxu0 %v1224
        %v1432 = vpop.f32.mrb[0].mxu0
        %v1433 = vadd.f32 0.0, %v1432
        %v1434 = vpop.f32.mrb[0].mxu0
        %v1435 = vadd.f32 0.0, %v1434
        %v1436 = vpop.f32.mrb[0].mxu0
        %v1437 = vadd.f32 0.0, %v1436
        %v1438 = vpop.f32.mrb[0].mxu0
        %v1439 = vadd.f32 0.0, %v1438
        %1440 = vdwg.mxu0
        %v1441 = vmax.f32 %v1195, %v1261
        %v1442 = vmax.f32 %v1196, %v1263
        %v1443 = vmax.f32 %v1197, %v1304
        %v1444 = vmax.f32 %v1198, %v1306
        %v1445 = vmax.f32 %v1199, %v1347
        %v1446 = vmax.f32 %v1200, %v1349
        %v1447 = vmax.f32 %v1201, %v1390
        %v1448 = vmax.f32 %v1202, %v1392
        %v1449 = vmax.f32 %v1203, %v1433
        %v1450 = vmax.f32 %v1204, %v1435
        %v1451 = vmax.f32 %v1205, %v1265
        %v1452 = vmax.f32 %v1206, %v1267
        %v1453 = vmax.f32 %v1207, %v1308
        %v1454 = vmax.f32 %v1208, %v1310
        %v1455 = vmax.f32 %v1209, %v1351
        %v1456 = vmax.f32 %v1210, %v1353
        %v1457 = vmax.f32 %v1211, %v1394
        %v1458 = vmax.f32 %v1212, %v1396
        %v1459 = vmax.f32 %v1213, %v1437
        %v1460 = vmax.f32 %v1214, %v1439
        %v1461 = vld [vmem:[%s2] sm:$0xff]
        %v1462 = vld [vmem:[%s2 + $0x8] sm:$0xf]
        %1464 = vset.pattern.permute.xlu0 0
        %1465 = vperm.xlu0 %1464, %v1461
        %v1466 = vpop.permute.xlu0 %1465
        %1469 = vset.pattern.permute.xlu0 0
        %1470 = vperm.xlu0 %1469, %v1462
        %v1471 = vpop.permute.xlu0 %1470
        %v1473 = vadd.f32 %v1441, %v1466
        %v1474 = vadd.f32 %v1442, %v1466
        %v1475 = vadd.f32 %v1443, %v1466
        %v1476 = vadd.f32 %v1444, %v1466
        %v1477 = vadd.f32 %v1445, %v1466
        %v1478 = vadd.f32 %v1446, %v1466
        %v1479 = vadd.f32 %v1447, %v1466
        %v1480 = vadd.f32 %v1448, %v1466
        %v1481 = vadd.f32 %v1449, %v1466
        %v1482 = vadd.f32 %v1450, %v1466
        %v1483 = vadd.f32 %v1451, %v1471
        %v1484 = vadd.f32 %v1452, %v1471
        %v1485 = vadd.f32 %v1453, %v1471
        %v1486 = vadd.f32 %v1454, %v1471
        %v1487 = vadd.f32 %v1455, %v1471
        %v1488 = vadd.f32 %v1456, %v1471
        %v1489 = vadd.f32 %v1457, %v1471
        %v1490 = vadd.f32 %v1458, %v1471
        %v1491 = vadd.f32 %v1459, %v1471
        %v1492 = vadd.f32 %v1460, %v1471
        %v1493 = vmax.f32 %v1473, 0.0
        %v1494 = vmax.f32 %v1474, 0.0
        %v1495 = vmax.f32 %v1475, 0.0
        %v1496 = vmax.f32 %v1476, 0.0
        %v1497 = vmax.f32 %v1477, 0.0
        %v1498 = vmax.f32 %v1478, 0.0
        %v1499 = vmax.f32 %v1479, 0.0
        %v1500 = vmax.f32 %v1480, 0.0
        %v1501 = vmax.f32 %v1481, 0.0
        %v1502 = vmax.f32 %v1482, 0.0
        %v1503 = vmax.f32 %v1483, 0.0
        %v1504 = vmax.f32 %v1484, 0.0
        %v1505 = vmax.f32 %v1485, 0.0
        %v1506 = vmax.f32 %v1486, 0.0
        %v1507 = vmax.f32 %v1487, 0.0
        %v1508 = vmax.f32 %v1488, 0.0
        %v1509 = vmax.f32 %v1489, 0.0
        %v1510 = vmax.f32 %v1490, 0.0
        %v1511 = vmax.f32 %v1491, 0.0
        %v1512 = vmax.f32 %v1492, 0.0
        %v1513 = vpack.c.bf16 %v1503, %v1493
        %v1514 = vpack.c.bf16 %v1504, %v1494
        %v1515 = vpack.c.bf16 %v1505, %v1495
        %v1516 = vpack.c.bf16 %v1506, %v1496
        %v1517 = vpack.c.bf16 %v1507, %v1497
        %v1518 = vpack.c.bf16 %v1508, %v1498
        %v1519 = vpack.c.bf16 %v1509, %v1499
        %v1520 = vpack.c.bf16 %v1510, %v1500
        %v1521 = vpack.c.bf16 %v1511, %v1501
        %v1522 = vpack.c.bf16 %v1512, %v1502
        %v1533 = vunpack.c.l.b16 %v1513
        %v1534 = vunpack.c.l.b16 %v1514
        %v1535 = vunpack.c.l.b16 %v1515
        %v1536 = vunpack.c.l.b16 %v1516
        %v1537 = vunpack.c.l.b16 %v1517
        %v1538 = vunpack.c.l.b16 %v1518
        %v1539 = vunpack.c.l.b16 %v1519
        %v1540 = vunpack.c.l.b16 %v1520
        %v1541 = vunpack.c.l.b16 %v1521
        %v1542 = vunpack.c.l.b16 %v1522
        %v1543 = vunpack.c.h.b16 %v1513
        %v1544 = vunpack.c.h.b16 %v1514
        %v1545 = vunpack.c.h.b16 %v1515
        %v1546 = vunpack.c.h.b16 %v1516
        %v1547 = vunpack.c.h.b16 %v1517
        %v1548 = vunpack.c.h.b16 %v1518
        %v1549 = vunpack.c.h.b16 %v1519
        %v1550 = vunpack.c.h.b16 %v1520
        %v1551 = vunpack.c.h.b16 %v1521
        %v1552 = vunpack.c.h.b16 %v1522
        %v1553 = vpack.c.b16 %v1534, %v1533
        %v1554 = vpack.c.b16 %v1536, %v1535
        %v1555 = vpack.c.b16 %v1538, %v1537
        %v1556 = vpack.c.b16 %v1540, %v1539
        %v1557 = vpack.c.b16 %v1542, %v1541
        %v1558 = vpack.c.b16 %v1544, %v1543
        %v1559 = vpack.c.b16 %v1546, %v1545
        %v1560 = vpack.c.b16 %v1548, %v1547
        %v1561 = vpack.c.b16 %v1550, %v1549
        %v1562 = vpack.c.b16 %v1552, %v1551
        %1573 = vst [vmem:[%s252] sm:$0xff] %v1553
        %1574 = vst [vmem:[%s252 + $0x8] sm:$0xff] %v1554
        %1575 = vst [vmem:[%s252 + $0x10] sm:$0xff] %v1555
        %1576 = vst [vmem:[%s252 + $0x18] sm:$0xff] %v1556
        %1577 = vst [vmem:[%s252 + $0x20] sm:$0xff] %v1557
        %1578 = vst [vmem:[%s252 + $0x28] sm:$0x33] %v1558
        %1579 = vst [vmem:[%s252 + $0x30] sm:$0x33] %v1559
        %1580 = vst [vmem:[%s252 + $0x38] sm:$0x33] %v1560
        %1581 = vst [vmem:[%s252 + $0x40] sm:$0x33] %v1561
        %1582 = vst [vmem:[%s252 + $0x48] sm:$0x33] %v1562
        %s1583 = sand.u32 %s90, 1
        %s1584 = sand.u32 %s90, 1
        %s1585 = smul.addr %s1584, 80
        %s1586 = scalar_lea.vmem [#allocation3], %s1585
        // Predicated region
        $region56: #{audio_cnn_forward.4} parent=50 // pred_check
          %p1587 = pneg %p100
        $region57: #{audio_cnn_forward.4} parent=50 // pred_check_branch
          %1589 = sbr.rel (%p1587) target = $region59
        $region58: #{audio_cnn_forward.4} parent=50 // pred_region
          %s1590 = smul.u32 10, %s14
          %s1591 = smul.addr %s1590, 4
          %s1592 = scalar_lea.vmem %s3, %s1591
          // Predicated region
          $region60: #{audio_cnn_forward.4} parent=58 // pred_check
            _
          $region61: #{audio_cnn_forward.4} parent=58 // pred_check_branch
            %1594 = sbr.rel (0) target = $region63
          $region62: #{audio_cnn_forward.4} parent=58 // pred_region
            // Predicated region
            $region64: #{audio_cnn_forward.4} parent=62 // pred_check
              _
            $region65: #{audio_cnn_forward.4} parent=62 // pred_check_branch
              %1596 = sbr.rel (0) target = $region67
            $region66: #{audio_cnn_forward.4} parent=62 // pred_region
              loop: start=0, step=1, limit=1
              $region68: #{audio_cnn_forward.4} parent=66 // loop_pre_header
                _
              $region69: #{audio_cnn_forward.4} parent=66 // loop_header
                %s1598 = sphi 0, %s1602
                %p1599 = scmp.ge.s32.totalorder %s1598, 1
                %s1603 = sphi %s1586, %s1586
                %s1604 = sphi %s1592, %s1592
              $region70: #{audio_cnn_forward.4} parent=66 // loop_header_branch
                %1601 = sbr.rel (%p1599) target = $region74
              $region71: #{audio_cnn_forward.4} parent=66 // loop_body
                %v1605 = vld [vmem:[%s1603] sm:$0xff]
                %1606 = vst [vmem:[%s1604] sm:$0xff] %v1605
                %v1607 = vld [vmem:[%s1603 + $0x8] sm:$0xff]
                %1608 = vst [vmem:[%s1604 + $0x8] sm:$0xff] %v1607
                %v1609 = vld [vmem:[%s1603 + $0x10] sm:$0xff]
                %1610 = vst [vmem:[%s1604 + $0x10] sm:$0xff] %v1609
                %v1611 = vld [vmem:[%s1603 + $0x18] sm:$0xff]
                %1612 = vst [vmem:[%s1604 + $0x18] sm:$0xff] %v1611
                %v1613 = vld [vmem:[%s1603 + $0x20] sm:$0xff]
                %1614 = vst [vmem:[%s1604 + $0x20] sm:$0xff] %v1613
                %v1615 = vld [vmem:[%s1603 + $0x28] sm:$0xff]
                %1616 = vst [vmem:[%s1604 + $0x50] sm:$0xff] %v1615
                %v1617 = vld [vmem:[%s1603 + $0x30] sm:$0xff]
                %1618 = vst [vmem:[%s1604 + $0x58] sm:$0xff] %v1617
                %v1619 = vld [vmem:[%s1603 + $0x38] sm:$0xff]
                %1620 = vst [vmem:[%s1604 + $0x60] sm:$0xff] %v1619
                %v1621 = vld [vmem:[%s1603 + $0x40] sm:$0xff]
                %1622 = vst [vmem:[%s1604 + $0x68] sm:$0xff] %v1621
                %v1623 = vld [vmem:[%s1603 + $0x48] sm:$0xff]
                %1624 = vst [vmem:[%s1604 + $0x70] sm:$0xff] %v1623
              $region72: #{audio_cnn_forward.4} parent=66 // loop_footer
                %s1602 = sadd.s32 1, %s1598
              $region73: #{audio_cnn_forward.4} parent=66 // loop_footer_branch
                %1597 = sbr.rel target = $region69
              $region74: #{audio_cnn_forward.4} parent=66 // loop_exit
                _
            $region67: #{audio_cnn_forward.4} parent=62 // pred_fallthru
              _
            // Predicated region
            $region75: #{audio_cnn_forward.4} parent=62 // pred_check
              _
            $region76: #{audio_cnn_forward.4} parent=62 // pred_check_branch
              %1626 = sbr.rel target = $region78
            $region77: #{audio_cnn_forward.4} parent=62 // pred_region
              _
            $region78: #{audio_cnn_forward.4} parent=62 // pred_fallthru
              _
          $region63: #{audio_cnn_forward.4} parent=58 // pred_fallthru
            _
          %1627 = vnop
        $region59: #{audio_cnn_forward.4} parent=50 // pred_fallthru
          _
      $region51: #{audio_cnn_forward.4} parent=5 // pred_fallthru
        _
      %p1628 = scmp.le.s32.totalorder 2, %s9
      // Predicated region
      $region79: #{audio_cnn_forward.4} parent=5 // pred_check
        %p1629 = pneg %p1628
      $region80: #{audio_cnn_forward.4} parent=5 // pred_check_branch
        %1631 = sbr.rel (%p1629) target = $region82
      $region81: #{audio_cnn_forward.4} parent=5 // pred_region
        %s1632 = ssub.s32 %s9, 2
        // Predicated region
        $region83: #{audio_cnn_forward.4} parent=81 // pred_check
          %p1633 = pneg %p106
        $region84: #{audio_cnn_forward.4} parent=81 // pred_check_branch
          %1635 = sbr.rel (%p1633) target = $region86
        $region85: #{audio_cnn_forward.4} parent=81 // pred_region
          %s1636 = sand.u32 %s91, 1
          %s1637 = sand.u32 %s91, 1
          %s1638 = smul.addr %s1637, 80
          %s1639 = scalar_lea.vmem [#allocation3], %s1638
        $region86: #{audio_cnn_forward.4} parent=81 // pred_fallthru
          _
      $region82: #{audio_cnn_forward.4} parent=5 // pred_fallthru
        _
    $region6: #{audio_cnn_forward.4} parent=1 // loop_footer
      %s13 = sadd.s32 1, %s9
    $region7: #{audio_cnn_forward.4} parent=1 // loop_footer_branch
      %8 = sbr.rel target = $region3
    $region8: #{audio_cnn_forward.4} parent=1 // loop_exit
      _

// kernel: audio_cnn_forward.5
$region0: #{audio_cnn_forward.5}
  #allocation0 [shape = 'u32[]', space=smem, size = 0x4, offset = 0x4, fixed_abs, tag = 'smem constant byte address 0x4 - core index']
  #allocation1 [shape = 'u32[144,128]{1,0:T(1,128)}', space=vmem, size = 0x12000, scoped, tag = 'internal scratch']
  #allocation2 [shape = 'f32[8,512]{1,0:T(8,128)}', space=vmem, size = 0x4000, scoped, tag = 'scratch operand']
  %s0 = inlined_call_operand.vmem [shape: bf16[8,14336], index: 0, kind: input, shape index: {}]
  %s1 = inlined_call_operand.vmem [shape: s8[14336,512], index: 1, kind: input, shape index: {}]
  %s2 = inlined_call_operand.vmem [shape: f32[1,512], index: 2, kind: input, shape index: {}]
  %s3 = inlined_call_operand.vmem [shape: f32[1,512], index: 3, kind: input, shape index: {}]
  %s4 = inlined_call_operand.vmem [shape: f32[512,128], index: 4, kind: input, shape index: {}]
  %s5 = inlined_call_operand.vmem [shape: f32[1,128], index: 5, kind: input, shape index: {}]
  %s6 = inlined_call_operand.vmem [shape: f32[128,8], index: 6, kind: input, shape index: {}]
  %s7 = inlined_call_operand.vmem [shape: f32[1,8], index: 7, kind: input, shape index: {}]
  %s8 = inlined_call_operand.vmem [shape: f32[8,8], index: 8, kind: output, shape index: {}]
  %s9 = sld [smem:[#allocation0]]
  $region73: #{audio_cnn_forward.5} parent=0
    _
  %s11 = ssub.s32 1, %s9
  %s12 = scalar_select 0, %s11, %s9
  loop: start=0, step=1, limit=9
  $region2: #{audio_cnn_forward.5} parent=0 // loop_pre_header
    _
  $region3: #{audio_cnn_forward.5} parent=0 // loop_header
    %s14 = sphi 0, %s18
    %p15 = scmp.ge.s32.totalorder %s14, 9
    %s24 = sphi 0, %s26
    %s27 = sphi 0, %s24
    %s28 = sphi 0, %s27
    %s44 = sphi 0, %s28
    %s50 = sphi 0, %s52
    %s53 = sphi 0, %s50
    %s54 = sphi 0, %s53
    %s70 = sphi 0, %s54
    %s74 = sphi 0, %s74
    %s76 = sphi 0, %s74
    %s77 = sphi 0, %s76
    %s91 = sphi 0, %s77
    %s95 = sphi 0, %s95
    %s97 = sphi 0, %s95
    %s98 = sphi 0, %s97
    %s112 = sphi 0, %s98
    %s116 = sphi 0, %s116
    %s118 = sphi 0, %s116
    %s119 = sphi 0, %s118
    %s133 = sphi 0, %s119
    %s137 = sphi 0, %s137
    %s139 = sphi 0, %s137
    %s140 = sphi 0, %s139
    %s154 = sphi 0, %s140
    %s158 = sphi 0, %s158
    %s160 = sphi 0, %s158
    %s161 = sphi 0, %s160
    %s175 = sphi 0, %s161
    %s179 = sphi 0, %s179
    %s181 = sphi 0, %s179
    %s182 = sphi 0, %s181
    %s196 = sphi 0, %s182
    %s200 = sphi 0, %s200
    %s202 = sphi 0, %s200
    %s203 = sphi 0, %s202
    %s217 = sphi 0, %s203
  $region4: #{audio_cnn_forward.5} parent=0 // loop_header_branch
    %17 = sbr.rel (%p15) target = $region8
  $region5: #{audio_cnn_forward.5} parent=0 // loop_body
    %s19 = ssub.s32 %s14, 1
    %s20 = ssub.s32 %s14, 2
    %s21 = sadd.s32 %s14, 1
    %s22 = ssub.s32 %s14, %s21
    %p23 = scmp.eq.s32.totalorder %s22, 0
    %s25 = sadd.s32 %s24, 1
    %s26 = scalar_select %p23, %s24, %s25
    %p29 = pneg %p23
    %p30 = scmp.eq.s32.totalorder %s14, 6
    %p31 = por %p29, %p30
    %p32 = scmp.ne.s32.totalorder %s24, %s27
    %p33 = scmp.eq.s32.totalorder %s14, 0
    %p34 = por %p32, %p33
    %p35 = scmp.ne.s32.totalorder %s24, %s27
    %p36 = scmp.eq.s32.totalorder %s19, 6
    %p37 = por %p35, %p36
    %p38 = scmp.ne.s32.totalorder %s27, %s28
    %p39 = scmp.eq.s32.totalorder %s19, 0
    %p40 = por %p38, %p39
    %p41 = scmp.ne.s32.totalorder %s27, %s28
    %p42 = scmp.eq.s32.totalorder %s20, 6
    %p43 = por %p41, %p42
    %p45 = scmp.ne.s32.totalorder %s28, %s44
    %p46 = scmp.eq.s32.totalorder %s20, 0
    %p47 = por %p45, %p46
    %s48 = ssub.s32 %s14, %s21
    %p49 = scmp.eq.s32.totalorder %s48, 0
    %s51 = sadd.s32 %s50, 1
    %s52 = scalar_select %p49, %s50, %s51
    %p55 = pneg %p49
    %p56 = scmp.eq.s32.totalorder %s14, 6
    %p57 = por %p55, %p56
    %p58 = scmp.ne.s32.totalorder %s50, %s53
    %p59 = scmp.eq.s32.totalorder %s14, 0
    %p60 = por %p58, %p59
    %p61 = scmp.ne.s32.totalorder %s50, %s53
    %p62 = scmp.eq.s32.totalorder %s19, 6
    %p63 = por %p61, %p62
    %p64 = scmp.ne.s32.totalorder %s53, %s54
    %p65 = scmp.eq.s32.totalorder %s19, 0
    %p66 = por %p64, %p65
    %p67 = scmp.ne.s32.totalorder %s53, %s54
    %p68 = scmp.eq.s32.totalorder %s20, 6
    %p69 = por %p67, %p68
    %p71 = scmp.ne.s32.totalorder %s54, %s70
    %p72 = scmp.eq.s32.totalorder %s20, 0
    %p73 = por %p71, %p72
    %s75 = sadd.s32 %s74, 1
    %p78 = scmp.eq.s32.totalorder %s14, 6
    %p79 = scmp.ne.s32.totalorder %s74, %s76
    %p80 = scmp.eq.s32.totalorder %s14, 0
    %p81 = por %p79, %p80
    %p82 = scmp.ne.s32.totalorder %s74, %s76
    %p83 = scmp.eq.s32.totalorder %s19, 6
    %p84 = por %p82, %p83
    %p85 = scmp.ne.s32.totalorder %s76, %s77
    %p86 = scmp.eq.s32.totalorder %s19, 0
    %p87 = por %p85, %p86
    %p88 = scmp.ne.s32.totalorder %s76, %s77
    %p89 = scmp.eq.s32.totalorder %s20, 6
    %p90 = por %p88, %p89
    %p92 = scmp.ne.s32.totalorder %s77, %s91
    %p93 = scmp.eq.s32.totalorder %s20, 0
    %p94 = por %p92, %p93
    %s96 = sadd.s32 %s95, 1
    %p99 = scmp.eq.s32.totalorder %s14, 6
    %p100 = scmp.ne.s32.totalorder %s95, %s97
    %p101 = scmp.eq.s32.totalorder %s14, 0
    %p102 = por %p100, %p101
    %p103 = scmp.ne.s32.totalorder %s95, %s97
    %p104 = scmp.eq.s32.totalorder %s19, 6
    %p105 = por %p103, %p104
    %p106 = scmp.ne.s32.totalorder %s97, %s98
    %p107 = scmp.eq.s32.totalorder %s19, 0
    %p108 = por %p106, %p107
    %p109 = scmp.ne.s32.totalorder %s97, %s98
    %p110 = scmp.eq.s32.totalorder %s20, 6
    %p111 = por %p109, %p110
    %p113 = scmp.ne.s32.totalorder %s98, %s112
    %p114 = scmp.eq.s32.totalorder %s20, 0
    %p115 = por %p113, %p114
    %s117 = sadd.s32 %s116, 1
    %p120 = scmp.eq.s32.totalorder %s14, 6
    %p121 = scmp.ne.s32.totalorder %s116, %s118
    %p122 = scmp.eq.s32.totalorder %s14, 0
    %p123 = por %p121, %p122
    %p124 = scmp.ne.s32.totalorder %s116, %s118
    %p125 = scmp.eq.s32.totalorder %s19, 6
    %p126 = por %p124, %p125
    %p127 = scmp.ne.s32.totalorder %s118, %s119
    %p128 = scmp.eq.s32.totalorder %s19, 0
    %p129 = por %p127, %p128
    %p130 = scmp.ne.s32.totalorder %s118, %s119
    %p131 = scmp.eq.s32.totalorder %s20, 6
    %p132 = por %p130, %p131
    %p134 = scmp.ne.s32.totalorder %s119, %s133
    %p135 = scmp.eq.s32.totalorder %s20, 0
    %p136 = por %p134, %p135
    %s138 = sadd.s32 %s137, 1
    %p141 = scmp.eq.s32.totalorder %s14, 6
    %p142 = scmp.ne.s32.totalorder %s137, %s139
    %p143 = scmp.eq.s32.totalorder %s14, 0
    %p144 = por %p142, %p143
    %p145 = scmp.ne.s32.totalorder %s137, %s139
    %p146 = scmp.eq.s32.totalorder %s19, 6
    %p147 = por %p145, %p146
    %p148 = scmp.ne.s32.totalorder %s139, %s140
    %p149 = scmp.eq.s32.totalorder %s19, 0
    %p150 = por %p148, %p149
    %p151 = scmp.ne.s32.totalorder %s139, %s140
    %p152 = scmp.eq.s32.totalorder %s20, 6
    %p153 = por %p151, %p152
    %p155 = scmp.ne.s32.totalorder %s140, %s154
    %p156 = scmp.eq.s32.totalorder %s20, 0
    %p157 = por %p155, %p156
    %s159 = sadd.s32 %s158, 1
    %p162 = scmp.eq.s32.totalorder %s14, 6
    %p163 = scmp.ne.s32.totalorder %s158, %s160
    %p164 = scmp.eq.s32.totalorder %s14, 0
    %p165 = por %p163, %p164
    %p166 = scmp.ne.s32.totalorder %s158, %s160
    %p167 = scmp.eq.s32.totalorder %s19, 6
    %p168 = por %p166, %p167
    %p169 = scmp.ne.s32.totalorder %s160, %s161
    %p170 = scmp.eq.s32.totalorder %s19, 0
    %p171 = por %p169, %p170
    %p172 = scmp.ne.s32.totalorder %s160, %s161
    %p173 = scmp.eq.s32.totalorder %s20, 6
    %p174 = por %p172, %p173
    %p176 = scmp.ne.s32.totalorder %s161, %s175
    %p177 = scmp.eq.s32.totalorder %s20, 0
    %p178 = por %p176, %p177
    %s180 = sadd.s32 %s179, 1
    %p183 = scmp.eq.s32.totalorder %s14, 6
    %p184 = scmp.ne.s32.totalorder %s179, %s181
    %p185 = scmp.eq.s32.totalorder %s14, 0
    %p186 = por %p184, %p185
    %p187 = scmp.ne.s32.totalorder %s179, %s181
    %p188 = scmp.eq.s32.totalorder %s19, 6
    %p189 = por %p187, %p188
    %p190 = scmp.ne.s32.totalorder %s181, %s182
    %p191 = scmp.eq.s32.totalorder %s19, 0
    %p192 = por %p190, %p191
    %p193 = scmp.ne.s32.totalorder %s181, %s182
    %p194 = scmp.eq.s32.totalorder %s20, 6
    %p195 = por %p193, %p194
    %p197 = scmp.ne.s32.totalorder %s182, %s196
    %p198 = scmp.eq.s32.totalorder %s20, 0
    %p199 = por %p197, %p198
    %s201 = sadd.s32 %s200, 1
    %p204 = scmp.eq.s32.totalorder %s14, 6
    %p205 = scmp.ne.s32.totalorder %s200, %s202
    %p206 = scmp.eq.s32.totalorder %s14, 0
    %p207 = por %p205, %p206
    %p208 = scmp.ne.s32.totalorder %s200, %s202
    %p209 = scmp.eq.s32.totalorder %s19, 6
    %p210 = por %p208, %p209
    %p211 = scmp.ne.s32.totalorder %s202, %s203
    %p212 = scmp.eq.s32.totalorder %s19, 0
    %p213 = por %p211, %p212
    %p214 = scmp.ne.s32.totalorder %s202, %s203
    %p215 = scmp.eq.s32.totalorder %s20, 6
    %p216 = por %p214, %p215
    %p218 = scmp.ne.s32.totalorder %s203, %s217
    %p219 = scmp.eq.s32.totalorder %s20, 0
    %p220 = por %p218, %p219
    %p221 = scmp.le.s32.totalorder 1, %s14
    %p222 = scmp.lt.s32.totalorder %s14, 8
    %p223 = pnand %p221, %p222
    %p224 = pneg %p223
    // Predicated region
    $region9: #{audio_cnn_forward.5} parent=5 // pred_check
      _
    $region10: #{audio_cnn_forward.5} parent=5 // pred_check_branch
      %226 = sbr.rel (%p223) target = $region12
    $region11: #{audio_cnn_forward.5} parent=5 // pred_region
      %s227 = ssub.s32 %s14, 1
      // Predicated region
      $region13: #{audio_cnn_forward.5} parent=11 // pred_check
        %p228 = pneg %p87
      $region14: #{audio_cnn_forward.5} parent=11 // pred_check_branch
        %230 = sbr.rel (%p228) target = $region16
      $region15: #{audio_cnn_forward.5} parent=11 // pred_region
        _
      $region16: #{audio_cnn_forward.5} parent=11 // pred_fallthru
        _
      // Predicated region
      $region17: #{audio_cnn_forward.5} parent=11 // pred_check
        %p231 = pneg %p108
      $region18: #{audio_cnn_forward.5} parent=11 // pred_check_branch
        %233 = sbr.rel (%p231) target = $region20
      $region19: #{audio_cnn_forward.5} parent=11 // pred_region
        _
      $region20: #{audio_cnn_forward.5} parent=11 // pred_fallthru
        _
      // Predicated region
      $region21: #{audio_cnn_forward.5} parent=11 // pred_check
        %p234 = pneg %p129
      $region22: #{audio_cnn_forward.5} parent=11 // pred_check_branch
        %236 = sbr.rel (%p234) target = $region24
      $region23: #{audio_cnn_forward.5} parent=11 // pred_region
        _
      $region24: #{audio_cnn_forward.5} parent=11 // pred_fallthru
        _
      // Predicated region
      $region25: #{audio_cnn_forward.5} parent=11 // pred_check
        %p237 = pneg %p150
      $region26: #{audio_cnn_forward.5} parent=11 // pred_check_branch
        %239 = sbr.rel (%p237) target = $region28
      $region27: #{audio_cnn_forward.5} parent=11 // pred_region
        _
      $region28: #{audio_cnn_forward.5} parent=11 // pred_fallthru
        _
      // Predicated region
      $region29: #{audio_cnn_forward.5} parent=11 // pred_check
        %p240 = pneg %p171
      $region30: #{audio_cnn_forward.5} parent=11 // pred_check_branch
        %242 = sbr.rel (%p240) target = $region32
      $region31: #{audio_cnn_forward.5} parent=11 // pred_region
        _
      $region32: #{audio_cnn_forward.5} parent=11 // pred_fallthru
        _
      // Predicated region
      $region33: #{audio_cnn_forward.5} parent=11 // pred_check
        %p243 = pneg %p192
      $region34: #{audio_cnn_forward.5} parent=11 // pred_check_branch
        %245 = sbr.rel (%p243) target = $region36
      $region35: #{audio_cnn_forward.5} parent=11 // pred_region
        _
      $region36: #{audio_cnn_forward.5} parent=11 // pred_fallthru
        _
    $region12: #{audio_cnn_forward.5} parent=5 // pred_fallthru
      _
    %p246 = scmp.lt.s32.totalorder %s14, 7
    // Predicated region
    $region37: #{audio_cnn_forward.5} parent=5 // pred_check
      %p247 = pneg %p246
    $region38: #{audio_cnn_forward.5} parent=5 // pred_check_branch
      %249 = sbr.rel (%p247) target = $region40
    $region39: #{audio_cnn_forward.5} parent=5 // pred_region
      // Predicated region
      $region41: #{audio_cnn_forward.5} parent=39 // pred_check
        %p250 = pneg %p34
      $region42: #{audio_cnn_forward.5} parent=39 // pred_check_branch
        %252 = sbr.rel (%p250) target = $region44
      $region43: #{audio_cnn_forward.5} parent=39 // pred_region
        %s253 = smul.u32 16, %s14
        %p254 = scmp.lt.s32.totalorder %s253, 111
        %s255 = scalar_select %p254, %s253, 111
        %s256 = smul.addr %s255, 4
        %s257 = scalar_lea.vmem %s0, %s256
        %s258 = smul.u32 16, %s14
      $region44: #{audio_cnn_forward.5} parent=39 // pred_fallthru
        _
      // Predicated region
      $region45: #{audio_cnn_forward.5} parent=39 // pred_check
        %p259 = pneg %p60
      $region46: #{audio_cnn_forward.5} parent=39 // pred_check_branch
        %261 = sbr.rel (%p259) target = $region48
      $region47: #{audio_cnn_forward.5} parent=39 // pred_region
        %s262 = smul.u32 64, %s14
        %p263 = scmp.lt.s32.totalorder %s262, 447
        %s264 = scalar_select %p263, %s262, 447
        %s265 = smul.addr %s264, 4
        %s266 = smul.addr %s265, 8
        %s267 = scalar_lea.vmem %s1, %s266
        %s268 = smul.u32 64, %s14
      $region48: #{audio_cnn_forward.5} parent=39 // pred_fallthru
        _
    $region40: #{audio_cnn_forward.5} parent=5 // pred_fallthru
      _
    %p269 = scmp.le.s32.totalorder 1, %s14
    %p270 = scmp.lt.s32.totalorder %s14, 8
    %p271 = pnand %p269, %p270
    %p272 = pneg %p271
    // Predicated region
    $region49: #{audio_cnn_forward.5} parent=5 // pred_check
      _
    $region50: #{audio_cnn_forward.5} parent=5 // pred_check_branch
      %274 = sbr.rel (%p271) target = $region52
    $region51: #{audio_cnn_forward.5} parent=5 // pred_region
      %s275 = ssub.s32 %s14, 1
      %s276 = smul.u32 16, %s19
      %p277 = scmp.lt.s32.totalorder %s276, 111
      %s278 = scalar_select %p277, %s276, 111
      %s279 = smul.addr %s278, 4
      %s280 = scalar_lea.vmem %s0, %s279
      %p281 = pneg %p40
      %p282 = pneg %p37
      %s283 = smul.u32 64, %s19
      %p284 = scmp.lt.s32.totalorder %s283, 447
      %s285 = scalar_select %p284, %s283, 447
      %s286 = smul.addr %s285, 4
      %s287 = smul.addr %s286, 8
      %s288 = scalar_lea.vmem %s1, %s287
      %p289 = pneg %p66
      %p290 = pneg %p63
      %p291 = pneg %p87
      %p292 = pneg %p84
      %p293 = pneg %p108
      %p294 = pneg %p105
      %p295 = pneg %p129
      %p296 = pneg %p126
      %p297 = pneg %p150
      %p298 = pneg %p147
      %p299 = pneg %p171
      %p300 = pneg %p168
      %p301 = pneg %p192
      %p302 = pneg %p189
      %p303 = pneg %p213
      %p304 = pneg %p210
      %s305 = smul.u32 16, %s19
      %p306 = scmp.lt.s32.totalorder %s305, 111
      %s307 = scalar_select %p306, %s305, 111
      %s308 = smul.addr %s307, 4
      %s309 = scalar_lea.vmem %s0, %s308
      %s310 = smul.u32 16, %s19
      %s311 = smul.u32 64, %s19
      %p312 = scmp.lt.s32.totalorder %s311, 447
      %s313 = scalar_select %p312, %s311, 447
      %s314 = smul.addr %s313, 4
      %s315 = smul.addr %s314, 8
      %s316 = scalar_lea.vmem %s1, %s315
      %s317 = smul.u32 64, %s19
      %p318 = scmp.eq.s32.totalorder %s19, 0
      // Predicated region
      $region53: #{audio_cnn_forward.5} parent=51 // pred_check
        %p319 = pneg %p318
      $region54: #{audio_cnn_forward.5} parent=51 // pred_check_branch
        %321 = sbr.rel (%p319) target = $region56
      $region55: #{audio_cnn_forward.5} parent=51 // pred_region
        %322 = vst [vmem:[#allocation2] sm:$0xff] 0.0
        %323 = vst [vmem:[#allocation2 + $0x8] sm:$0xff] 0.0
        %324 = vst [vmem:[#allocation2 + $0x10] sm:$0xff] 0.0
        %325 = vst [vmem:[#allocation2 + $0x18] sm:$0xff] 0.0
      $region56: #{audio_cnn_forward.5} parent=51 // pred_fallthru
        _
      %v326 = vld [vmem:[%s316] sm:$0xff]
      %v327 = vld [vmem:[%s316 + $0x8] sm:$0xff]
      %v328 = vld [vmem:[%s316 + $0x10] sm:$0xff]
      %v329 = vld [vmem:[%s316 + $0x18] sm:$0xff]
      %v330 = vld [vmem:[%s316 + $0x20] sm:$0xff]
      %v331 = vld [vmem:[%s316 + $0x28] sm:$0xff]
      %v332 = vld [vmem:[%s316 + $0x30] sm:$0xff]
      %v333 = vld [vmem:[%s316 + $0x38] sm:$0xff]
      %v334 = vld [vmem:[%s316 + $0x40] sm:$0xff]
      %v335 = vld [vmem:[%s316 + $0x48] sm:$0xff]
      %v336 = vld [vmem:[%s316 + $0x50] sm:$0xff]
      %v337 = vld [vmem:[%s316 + $0x58] sm:$0xff]
      %v338 = vld [vmem:[%s316 + $0x60] sm:$0xff]
      %v339 = vld [vmem:[%s316 + $0x68] sm:$0xff]
      %v340 = vld [vmem:[%s316 + $0x70] sm:$0xff]
      %v341 = vld [vmem:[%s316 + $0x78] sm:$0xff]
      %v342 = vld [vmem:[%s316 + $0x80] sm:$0xff]
      %v343 = vld [vmem:[%s316 + $0x88] sm:$0xff]
      %v344 = vld [vmem:[%s316 + $0x90] sm:$0xff]
      %v345 = vld [vmem:[%s316 + $0x98] sm:$0xff]
      %v346 = vld [vmem:[%s316 + $0xa0] sm:$0xff]
      %v347 = vld [vmem:[%s316 + $0xa8] sm:$0xff]
      %v348 = vld [vmem:[%s316 + $0xb0] sm:$0xff]
      %v349 = vld [vmem:[%s316 + $0xb8] sm:$0xff]
      %v350 = vld [vmem:[%s316 + $0xc0] sm:$0xff]
      %v351 = vld [vmem:[%s316 + $0xc8] sm:$0xff]
      %v352 = vld [vmem:[%s316 + $0xd0] sm:$0xff]
      %v353 = vld [vmem:[%s316 + $0xd8] sm:$0xff]
      %v354 = vld [vmem:[%s316 + $0xe0] sm:$0xff]
      %v355 = vld [vmem:[%s316 + $0xe8] sm:$0xff]
      %v356 = vld [vmem:[%s316 + $0xf0] sm:$0xff]
      %v357 = vld [vmem:[%s316 + $0xf8] sm:$0xff]
      %v358 = vld [vmem:[%s316 + $0x100] sm:$0xff]
      %v359 = vld [vmem:[%s316 + $0x108] sm:$0xff]
      %v360 = vld [vmem:[%s316 + $0x110] sm:$0xff]
      %v361 = vld [vmem:[%s316 + $0x118] sm:$0xff]
      %v362 = vld [vmem:[%s316 + $0x120] sm:$0xff]
      %v363 = vld [vmem:[%s316 + $0x128] sm:$0xff]
      %v364 = vld [vmem:[%s316 + $0x130] sm:$0xff]
      %v365 = vld [vmem:[%s316 + $0x138] sm:$0xff]
      %v366 = vld [vmem:[%s316 + $0x140] sm:$0xff]
      %v367 = vld [vmem:[%s316 + $0x148] sm:$0xff]
      %v368 = vld [vmem:[%s316 + $0x150] sm:$0xff]
      %v369 = vld [vmem:[%s316 + $0x158] sm:$0xff]
      %v370 = vld [vmem:[%s316 + $0x160] sm:$0xff]
      %v371 = vld [vmem:[%s316 + $0x168] sm:$0xff]
      %v372 = vld [vmem:[%s316 + $0x170] sm:$0xff]
      %v373 = vld [vmem:[%s316 + $0x178] sm:$0xff]
      %v374 = vld [vmem:[%s316 + $0x180] sm:$0xff]
      %v375 = vld [vmem:[%s316 + $0x188] sm:$0xff]
      %v376 = vld [vmem:[%s316 + $0x190] sm:$0xff]
      %v377 = vld [vmem:[%s316 + $0x198] sm:$0xff]
      %v378 = vld [vmem:[%s316 + $0x1a0] sm:$0xff]
      %v379 = vld [vmem:[%s316 + $0x1a8] sm:$0xff]
      %v380 = vld [vmem:[%s316 + $0x1b0] sm:$0xff]
      %v381 = vld [vmem:[%s316 + $0x1b8] sm:$0xff]
      %v382 = vld [vmem:[%s316 + $0x1c0] sm:$0xff]
      %v383 = vld [vmem:[%s316 + $0x1c8] sm:$0xff]
      %v384 = vld [vmem:[%s316 + $0x1d0] sm:$0xff]
      %v385 = vld [vmem:[%s316 + $0x1d8] sm:$0xff]
      %v386 = vld [vmem:[%s316 + $0x1e0] sm:$0xff]
      %v387 = vld [vmem:[%s316 + $0x1e8] sm:$0xff]
      %v388 = vld [vmem:[%s316 + $0x1f0] sm:$0xff]
      %v389 = vld [vmem:[%s316 + $0x1f8] sm:$0xff]
      %v390 = vld [vmem:[%s316 + $0x200] sm:$0xff]
      %v391 = vld [vmem:[%s316 + $0x208] sm:$0xff]
      %v392 = vld [vmem:[%s316 + $0x210] sm:$0xff]
      %v393 = vld [vmem:[%s316 + $0x218] sm:$0xff]
      %v394 = vld [vmem:[%s316 + $0x220] sm:$0xff]
      %v395 = vld [vmem:[%s316 + $0x228] sm:$0xff]
      %v396 = vld [vmem:[%s316 + $0x230] sm:$0xff]
      %v397 = vld [vmem:[%s316 + $0x238] sm:$0xff]
      %v398 = vld [vmem:[%s316 + $0x240] sm:$0xff]
      %v399 = vld [vmem:[%s316 + $0x248] sm:$0xff]
      %v400 = vld [vmem:[%s316 + $0x250] sm:$0xff]
      %v401 = vld [vmem:[%s316 + $0x258] sm:$0xff]
      %v402 = vld [vmem:[%s316 + $0x260] sm:$0xff]
      %v403 = vld [vmem:[%s316 + $0x268] sm:$0xff]
      %v404 = vld [vmem:[%s316 + $0x270] sm:$0xff]
      %v405 = vld [vmem:[%s316 + $0x278] sm:$0xff]
      %v406 = vld [vmem:[%s316 + $0x280] sm:$0xff]
      %v407 = vld [vmem:[%s316 + $0x288] sm:$0xff]
      %v408 = vld [vmem:[%s316 + $0x290] sm:$0xff]
      %v409 = vld [vmem:[%s316 + $0x298] sm:$0xff]
      %v410 = vld [vmem:[%s316 + $0x2a0] sm:$0xff]
      %v411 = vld [vmem:[%s316 + $0x2a8] sm:$0xff]
      %v412 = vld [vmem:[%s316 + $0x2b0] sm:$0xff]
      %v413 = vld [vmem:[%s316 + $0x2b8] sm:$0xff]
      %v414 = vld [vmem:[%s316 + $0x2c0] sm:$0xff]
      %v415 = vld [vmem:[%s316 + $0x2c8] sm:$0xff]
      %v416 = vld [vmem:[%s316 + $0x2d0] sm:$0xff]
      %v417 = vld [vmem:[%s316 + $0x2d8] sm:$0xff]
      %v418 = vld [vmem:[%s316 + $0x2e0] sm:$0xff]
      %v419 = vld [vmem:[%s316 + $0x2e8] sm:$0xff]
      %v420 = vld [vmem:[%s316 + $0x2f0] sm:$0xff]
      %v421 = vld [vmem:[%s316 + $0x2f8] sm:$0xff]
      %v422 = vld [vmem:[%s316 + $0x300] sm:$0xff]
      %v423 = vld [vmem:[%s316 + $0x308] sm:$0xff]
      %v424 = vld [vmem:[%s316 + $0x310] sm:$0xff]
      %v425 = vld [vmem:[%s316 + $0x318] sm:$0xff]
      %v426 = vld [vmem:[%s316 + $0x320] sm:$0xff]
      %v427 = vld [vmem:[%s316 + $0x328] sm:$0xff]
      %v428 = vld [vmem:[%s316 + $0x330] sm:$0xff]
      %v429 = vld [vmem:[%s316 + $0x338] sm:$0xff]
      %v430 = vld [vmem:[%s316 + $0x340] sm:$0xff]
      %v431 = vld [vmem:[%s316 + $0x348] sm:$0xff]
      %v432 = vld [vmem:[%s316 + $0x350] sm:$0xff]
      %v433 = vld [vmem:[%s316 + $0x358] sm:$0xff]
      %v434 = vld [vmem:[%s316 + $0x360] sm:$0xff]
      %v435 = vld [vmem:[%s316 + $0x368] sm:$0xff]
      %v436 = vld [vmem:[%s316 + $0x370] sm:$0xff]
      %v437 = vld [vmem:[%s316 + $0x378] sm:$0xff]
      %v438 = vld [vmem:[%s316 + $0x380] sm:$0xff]
      %v439 = vld [vmem:[%s316 + $0x388] sm:$0xff]
      %v440 = vld [vmem:[%s316 + $0x390] sm:$0xff]
      %v441 = vld [vmem:[%s316 + $0x398] sm:$0xff]
      %v442 = vld [vmem:[%s316 + $0x3a0] sm:$0xff]
      %v443 = vld [vmem:[%s316 + $0x3a8] sm:$0xff]
      %v444 = vld [vmem:[%s316 + $0x3b0] sm:$0xff]
      %v445 = vld [vmem:[%s316 + $0x3b8] sm:$0xff]
      %v446 = vld [vmem:[%s316 + $0x3c0] sm:$0xff]
      %v447 = vld [vmem:[%s316 + $0x3c8] sm:$0xff]
      %v448 = vld [vmem:[%s316 + $0x3d0] sm:$0xff]
      %v449 = vld [vmem:[%s316 + $0x3d8] sm:$0xff]
      %v450 = vld [vmem:[%s316 + $0x3e0] sm:$0xff]
      %v451 = vld [vmem:[%s316 + $0x3e8] sm:$0xff]
      %v452 = vld [vmem:[%s316 + $0x3f0] sm:$0xff]
      %v453 = vld [vmem:[%s316 + $0x3f8] sm:$0xff]
      %v454 = vld [vmem:[%s316 + $0x400] sm:$0xff]
      %v455 = vld [vmem:[%s316 + $0x408] sm:$0xff]
      %v456 = vld [vmem:[%s316 + $0x410] sm:$0xff]
      %v457 = vld [vmem:[%s316 + $0x418] sm:$0xff]
      %v458 = vld [vmem:[%s316 + $0x420] sm:$0xff]
      %v459 = vld [vmem:[%s316 + $0x428] sm:$0xff]
      %v460 = vld [vmem:[%s316 + $0x430] sm:$0xff]
      %v461 = vld [vmem:[%s316 + $0x438] sm:$0xff]
      %v462 = vld [vmem:[%s316 + $0x440] sm:$0xff]
      %v463 = vld [vmem:[%s316 + $0x448] sm:$0xff]
      %v464 = vld [vmem:[%s316 + $0x450] sm:$0xff]
      %v465 = vld [vmem:[%s316 + $0x458] sm:$0xff]
      %v466 = vld [vmem:[%s316 + $0x460] sm:$0xff]
      %v467 = vld [vmem:[%s316 + $0x468] sm:$0xff]
      %v468 = vld [vmem:[%s316 + $0x470] sm:$0xff]
      %v469 = vld [vmem:[%s316 + $0x478] sm:$0xff]
      %v470 = vld [vmem:[%s316 + $0x480] sm:$0xff]
      %v471 = vld [vmem:[%s316 + $0x488] sm:$0xff]
      %v472 = vld [vmem:[%s316 + $0x490] sm:$0xff]
      %v473 = vld [vmem:[%s316 + $0x498] sm:$0xff]
      %v474 = vld [vmem:[%s316 + $0x4a0] sm:$0xff]
      %v475 = vld [vmem:[%s316 + $0x4a8] sm:$0xff]
      %v476 = vld [vmem:[%s316 + $0x4b0] sm:$0xff]
      %v477 = vld [vmem:[%s316 + $0x4b8] sm:$0xff]
      %v478 = vld [vmem:[%s316 + $0x4c0] sm:$0xff]
      %v479 = vld [vmem:[%s316 + $0x4c8] sm:$0xff]
      %v480 = vld [vmem:[%s316 + $0x4d0] sm:$0xff]
      %v481 = vld [vmem:[%s316 + $0x4d8] sm:$0xff]
      %v482 = vld [vmem:[%s316 + $0x4e0] sm:$0xff]
      %v483 = vld [vmem:[%s316 + $0x4e8] sm:$0xff]
      %v484 = vld [vmem:[%s316 + $0x4f0] sm:$0xff]
      %v485 = vld [vmem:[%s316 + $0x4f8] sm:$0xff]
      %v486 = vld [vmem:[%s316 + $0x500] sm:$0xff]
      %v487 = vld [vmem:[%s316 + $0x508] sm:$0xff]
      %v488 = vld [vmem:[%s316 + $0x510] sm:$0xff]
      %v489 = vld [vmem:[%s316 + $0x518] sm:$0xff]
      %v490 = vld [vmem:[%s316 + $0x520] sm:$0xff]
      %v491 = vld [vmem:[%s316 + $0x528] sm:$0xff]
      %v492 = vld [vmem:[%s316 + $0x530] sm:$0xff]
      %v493 = vld [vmem:[%s316 + $0x538] sm:$0xff]
      %v494 = vld [vmem:[%s316 + $0x540] sm:$0xff]
      %v495 = vld [vmem:[%s316 + $0x548] sm:$0xff]
      %v496 = vld [vmem:[%s316 + $0x550] sm:$0xff]
      %v497 = vld [vmem:[%s316 + $0x558] sm:$0xff]
      %v498 = vld [vmem:[%s316 + $0x560] sm:$0xff]
      %v499 = vld [vmem:[%s316 + $0x568] sm:$0xff]
      %v500 = vld [vmem:[%s316 + $0x570] sm:$0xff]
      %v501 = vld [vmem:[%s316 + $0x578] sm:$0xff]
      %v502 = vld [vmem:[%s316 + $0x580] sm:$0xff]
      %v503 = vld [vmem:[%s316 + $0x588] sm:$0xff]
      %v504 = vld [vmem:[%s316 + $0x590] sm:$0xff]
      %v505 = vld [vmem:[%s316 + $0x598] sm:$0xff]
      %v506 = vld [vmem:[%s316 + $0x5a0] sm:$0xff]
      %v507 = vld [vmem:[%s316 + $0x5a8] sm:$0xff]
      %v508 = vld [vmem:[%s316 + $0x5b0] sm:$0xff]
      %v509 = vld [vmem:[%s316 + $0x5b8] sm:$0xff]
      %v510 = vld [vmem:[%s316 + $0x5c0] sm:$0xff]
      %v511 = vld [vmem:[%s316 + $0x5c8] sm:$0xff]
      %v512 = vld [vmem:[%s316 + $0x5d0] sm:$0xff]
      %v513 = vld [vmem:[%s316 + $0x5d8] sm:$0xff]
      %v514 = vld [vmem:[%s316 + $0x5e0] sm:$0xff]
      %v515 = vld [vmem:[%s316 + $0x5e8] sm:$0xff]
      %v516 = vld [vmem:[%s316 + $0x5f0] sm:$0xff]
      %v517 = vld [vmem:[%s316 + $0x5f8] sm:$0xff]
      %v518 = vld [vmem:[%s316 + $0x600] sm:$0xff]
      %v519 = vld [vmem:[%s316 + $0x608] sm:$0xff]
      %v520 = vld [vmem:[%s316 + $0x610] sm:$0xff]
      %v521 = vld [vmem:[%s316 + $0x618] sm:$0xff]
      %v522 = vld [vmem:[%s316 + $0x620] sm:$0xff]
      %v523 = vld [vmem:[%s316 + $0x628] sm:$0xff]
      %v524 = vld [vmem:[%s316 + $0x630] sm:$0xff]
      %v525 = vld [vmem:[%s316 + $0x638] sm:$0xff]
      %v526 = vld [vmem:[%s316 + $0x640] sm:$0xff]
      %v527 = vld [vmem:[%s316 + $0x648] sm:$0xff]
      %v528 = vld [vmem:[%s316 + $0x650] sm:$0xff]
      %v529 = vld [vmem:[%s316 + $0x658] sm:$0xff]
      %v530 = vld [vmem:[%s316 + $0x660] sm:$0xff]
      %v531 = vld [vmem:[%s316 + $0x668] sm:$0xff]
      %v532 = vld [vmem:[%s316 + $0x670] sm:$0xff]
      %v533 = vld [vmem:[%s316 + $0x678] sm:$0xff]
      %v534 = vld [vmem:[%s316 + $0x680] sm:$0xff]
      %v535 = vld [vmem:[%s316 + $0x688] sm:$0xff]
      %v536 = vld [vmem:[%s316 + $0x690] sm:$0xff]
      %v537 = vld [vmem:[%s316 + $0x698] sm:$0xff]
      %v538 = vld [vmem:[%s316 + $0x6a0] sm:$0xff]
      %v539 = vld [vmem:[%s316 + $0x6a8] sm:$0xff]
      %v540 = vld [vmem:[%s316 + $0x6b0] sm:$0xff]
      %v541 = vld [vmem:[%s316 + $0x6b8] sm:$0xff]
      %v542 = vld [vmem:[%s316 + $0x6c0] sm:$0xff]
      %v543 = vld [vmem:[%s316 + $0x6c8] sm:$0xff]
      %v544 = vld [vmem:[%s316 + $0x6d0] sm:$0xff]
      %v545 = vld [vmem:[%s316 + $0x6d8] sm:$0xff]
      %v546 = vld [vmem:[%s316 + $0x6e0] sm:$0xff]
      %v547 = vld [vmem:[%s316 + $0x6e8] sm:$0xff]
      %v548 = vld [vmem:[%s316 + $0x6f0] sm:$0xff]
      %v549 = vld [vmem:[%s316 + $0x6f8] sm:$0xff]
      %v550 = vld [vmem:[%s316 + $0x700] sm:$0xff]
      %v551 = vld [vmem:[%s316 + $0x708] sm:$0xff]
      %v552 = vld [vmem:[%s316 + $0x710] sm:$0xff]
      %v553 = vld [vmem:[%s316 + $0x718] sm:$0xff]
      %v554 = vld [vmem:[%s316 + $0x720] sm:$0xff]
      %v555 = vld [vmem:[%s316 + $0x728] sm:$0xff]
      %v556 = vld [vmem:[%s316 + $0x730] sm:$0xff]
      %v557 = vld [vmem:[%s316 + $0x738] sm:$0xff]
      %v558 = vld [vmem:[%s316 + $0x740] sm:$0xff]
      %v559 = vld [vmem:[%s316 + $0x748] sm:$0xff]
      %v560 = vld [vmem:[%s316 + $0x750] sm:$0xff]
      %v561 = vld [vmem:[%s316 + $0x758] sm:$0xff]
      %v562 = vld [vmem:[%s316 + $0x760] sm:$0xff]
      %v563 = vld [vmem:[%s316 + $0x768] sm:$0xff]
      %v564 = vld [vmem:[%s316 + $0x770] sm:$0xff]
      %v565 = vld [vmem:[%s316 + $0x778] sm:$0xff]
      %v566 = vld [vmem:[%s316 + $0x780] sm:$0xff]
      %v567 = vld [vmem:[%s316 + $0x788] sm:$0xff]
      %v568 = vld [vmem:[%s316 + $0x790] sm:$0xff]
      %v569 = vld [vmem:[%s316 + $0x798] sm:$0xff]
      %v570 = vld [vmem:[%s316 + $0x7a0] sm:$0xff]
      %v571 = vld [vmem:[%s316 + $0x7a8] sm:$0xff]
      %v572 = vld [vmem:[%s316 + $0x7b0] sm:$0xff]
      %v573 = vld [vmem:[%s316 + $0x7b8] sm:$0xff]
      %v574 = vld [vmem:[%s316 + $0x7c0] sm:$0xff]
      %v575 = vld [vmem:[%s316 + $0x7c8] sm:$0xff]
      %v576 = vld [vmem:[%s316 + $0x7d0] sm:$0xff]
      %v577 = vld [vmem:[%s316 + $0x7d8] sm:$0xff]
      %v578 = vld [vmem:[%s316 + $0x7e0] sm:$0xff]
      %v579 = vld [vmem:[%s316 + $0x7e8] sm:$0xff]
      %v580 = vld [vmem:[%s316 + $0x7f0] sm:$0xff]
      %v581 = vld [vmem:[%s316 + $0x7f8] sm:$0xff]
      %v582 = vunpack.c.0.s8 %v326
      %v583 = vunpack.c.0.s8 %v327
      %v584 = vunpack.c.0.s8 %v328
      %v585 = vunpack.c.0.s8 %v329
      %v586 = vunpack.c.1.s8 %v326
      %v587 = vunpack.c.1.s8 %v327
      %v588 = vunpack.c.1.s8 %v328
      %v589 = vunpack.c.1.s8 %v329
      %v590 = vunpack.c.2.s8 %v326
      %v591 = vunpack.c.2.s8 %v327
      %v592 = vunpack.c.2.s8 %v328
      %v593 = vunpack.c.2.s8 %v329
      %v594 = vunpack.c.3.s8 %v326
      %v595 = vunpack.c.3.s8 %v327
      %v596 = vunpack.c.3.s8 %v328
      %v597 = vunpack.c.3.s8 %v329
      %v598 = vunpack.c.0.s8 %v330
      %v599 = vunpack.c.0.s8 %v331
      %v600 = vunpack.c.0.s8 %v332
      %v601 = vunpack.c.0.s8 %v333
      %v602 = vunpack.c.1.s8 %v330
      %v603 = vunpack.c.1.s8 %v331
      %v604 = vunpack.c.1.s8 %v332
      %v605 = vunpack.c.1.s8 %v333
      %v606 = vunpack.c.2.s8 %v330
      %v607 = vunpack.c.2.s8 %v331
      %v608 = vunpack.c.2.s8 %v332
      %v609 = vunpack.c.2.s8 %v333
      %v610 = vunpack.c.3.s8 %v330
      %v611 = vunpack.c.3.s8 %v331
      %v612 = vunpack.c.3.s8 %v332
      %v613 = vunpack.c.3.s8 %v333
      %v614 = vunpack.c.0.s8 %v334
      %v615 = vunpack.c.0.s8 %v335
      %v616 = vunpack.c.0.s8 %v336
      %v617 = vunpack.c.0.s8 %v337
      %v618 = vunpack.c.1.s8 %v334
      %v619 = vunpack.c.1.s8 %v335
      %v620 = vunpack.c.1.s8 %v336
      %v621 = vunpack.c.1.s8 %v337
      %v622 = vunpack.c.2.s8 %v334
      %v623 = vunpack.c.2.s8 %v335
      %v624 = vunpack.c.2.s8 %v336
      %v625 = vunpack.c.2.s8 %v337
      %v626 = vunpack.c.3.s8 %v334
      %v627 = vunpack.c.3.s8 %v335
      %v628 = vunpack.c.3.s8 %v336
      %v629 = vunpack.c.3.s8 %v337
      %v630 = vunpack.c.0.s8 %v338
      %v631 = vunpack.c.0.s8 %v339
      %v632 = vunpack.c.0.s8 %v340
      %v633 = vunpack.c.0.s8 %v341
      %v634 = vunpack.c.1.s8 %v338
      %v635 = vunpack.c.1.s8 %v339
      %v636 = vunpack.c.1.s8 %v340
      %v637 = vunpack.c.1.s8 %v341
      %v638 = vunpack.c.2.s8 %v338
      %v639 = vunpack.c.2.s8 %v339
      %v640 = vunpack.c.2.s8 %v340
      %v641 = vunpack.c.2.s8 %v341
      %v642 = vunpack.c.3.s8 %v338
      %v643 = vunpack.c.3.s8 %v339
      %v644 = vunpack.c.3.s8 %v340
      %v645 = vunpack.c.3.s8 %v341
      %v646 = vunpack.c.0.s8 %v342
      %v647 = vunpack.c.0.s8 %v343
      %v648 = vunpack.c.0.s8 %v344
      %v649 = vunpack.c.0.s8 %v345
      %v650 = vunpack.c.1.s8 %v342
      %v651 = vunpack.c.1.s8 %v343
      %v652 = vunpack.c.1.s8 %v344
      %v653 = vunpack.c.1.s8 %v345
      %v654 = vunpack.c.2.s8 %v342
      %v655 = vunpack.c.2.s8 %v343
      %v656 = vunpack.c.2.s8 %v344
      %v657 = vunpack.c.2.s8 %v345
      %v658 = vunpack.c.3.s8 %v342
      %v659 = vunpack.c.3.s8 %v343
      %v660 = vunpack.c.3.s8 %v344
      %v661 = vunpack.c.3.s8 %v345
      %v662 = vunpack.c.0.s8 %v346
      %v663 = vunpack.c.0.s8 %v347
      %v664 = vunpack.c.0.s8 %v348
      %v665 = vunpack.c.0.s8 %v349
      %v666 = vunpack.c.1.s8 %v346
      %v667 = vunpack.c.1.s8 %v347
      %v668 = vunpack.c.1.s8 %v348
      %v669 = vunpack.c.1.s8 %v349
      %v670 = vunpack.c.2.s8 %v346
      %v671 = vunpack.c.2.s8 %v347
      %v672 = vunpack.c.2.s8 %v348
      %v673 = vunpack.c.2.s8 %v349
      %v674 = vunpack.c.3.s8 %v346
      %v675 = vunpack.c.3.s8 %v347
      %v676 = vunpack.c.3.s8 %v348
      %v677 = vunpack.c.3.s8 %v349
      %v678 = vunpack.c.0.s8 %v350
      %v679 = vunpack.c.0.s8 %v351
      %v680 = vunpack.c.0.s8 %v352
      %v681 = vunpack.c.0.s8 %v353
      %v682 = vunpack.c.1.s8 %v350
      %v683 = vunpack.c.1.s8 %v351
      %v684 = vunpack.c.1.s8 %v352
      %v685 = vunpack.c.1.s8 %v353
      %v686 = vunpack.c.2.s8 %v350
      %v687 = vunpack.c.2.s8 %v351
      %v688 = vunpack.c.2.s8 %v352
      %v689 = vunpack.c.2.s8 %v353
      %v690 = vunpack.c.3.s8 %v350
      %v691 = vunpack.c.3.s8 %v351
      %v692 = vunpack.c.3.s8 %v352
      %v693 = vunpack.c.3.s8 %v353
      %v694 = vunpack.c.0.s8 %v354
      %v695 = vunpack.c.0.s8 %v355
      %v696 = vunpack.c.0.s8 %v356
      %v697 = vunpack.c.0.s8 %v357
      %v698 = vunpack.c.1.s8 %v354
      %v699 = vunpack.c.1.s8 %v355
      %v700 = vunpack.c.1.s8 %v356
      %v701 = vunpack.c.1.s8 %v357
      %v702 = vunpack.c.2.s8 %v354
      %v703 = vunpack.c.2.s8 %v355
      %v704 = vunpack.c.2.s8 %v356
      %v705 = vunpack.c.2.s8 %v357
      %v706 = vunpack.c.3.s8 %v354
      %v707 = vunpack.c.3.s8 %v355
      %v708 = vunpack.c.3.s8 %v356
      %v709 = vunpack.c.3.s8 %v357
      %v710 = vunpack.c.0.s8 %v358
      %v711 = vunpack.c.0.s8 %v359
      %v712 = vunpack.c.0.s8 %v360
      %v713 = vunpack.c.0.s8 %v361
      %v714 = vunpack.c.1.s8 %v358
      %v715 = vunpack.c.1.s8 %v359
      %v716 = vunpack.c.1.s8 %v360
      %v717 = vunpack.c.1.s8 %v361
      %v718 = vunpack.c.2.s8 %v358
      %v719 = vunpack.c.2.s8 %v359
      %v720 = vunpack.c.2.s8 %v360
      %v721 = vunpack.c.2.s8 %v361
      %v722 = vunpack.c.3.s8 %v358
      %v723 = vunpack.c.3.s8 %v359
      %v724 = vunpack.c.3.s8 %v360
      %v725 = vunpack.c.3.s8 %v361
      %v726 = vunpack.c.0.s8 %v362
      %v727 = vunpack.c.0.s8 %v363
      %v728 = vunpack.c.0.s8 %v364
      %v729 = vunpack.c.0.s8 %v365
      %v730 = vunpack.c.1.s8 %v362
      %v731 = vunpack.c.1.s8 %v363
      %v732 = vunpack.c.1.s8 %v364
      %v733 = vunpack.c.1.s8 %v365
      %v734 = vunpack.c.2.s8 %v362
      %v735 = vunpack.c.2.s8 %v363
      %v736 = vunpack.c.2.s8 %v364
      %v737 = vunpack.c.2.s8 %v365
      %v738 = vunpack.c.3.s8 %v362
      %v739 = vunpack.c.3.s8 %v363
      %v740 = vunpack.c.3.s8 %v364
      %v741 = vunpack.c.3.s8 %v365
      %v742 = vunpack.c.0.s8 %v366
      %v743 = vunpack.c.0.s8 %v367
      %v744 = vunpack.c.0.s8 %v368
      %v745 = vunpack.c.0.s8 %v369
      %v746 = vunpack.c.1.s8 %v366
      %v747 = vunpack.c.1.s8 %v367
      %v748 = vunpack.c.1.s8 %v368
      %v749 = vunpack.c.1.s8 %v369
      %v750 = vunpack.c.2.s8 %v366
      %v751 = vunpack.c.2.s8 %v367
      %v752 = vunpack.c.2.s8 %v368
      %v753 = vunpack.c.2.s8 %v369
      %v754 = vunpack.c.3.s8 %v366
      %v755 = vunpack.c.3.s8 %v367
      %v756 = vunpack.c.3.s8 %v368
      %v757 = vunpack.c.3.s8 %v369
      %v758 = vunpack.c.0.s8 %v370
      %v759 = vunpack.c.0.s8 %v371
      %v760 = vunpack.c.0.s8 %v372
      %v761 = vunpack.c.0.s8 %v373
      %v762 = vunpack.c.1.s8 %v370
      %v763 = vunpack.c.1.s8 %v371
      %v764 = vunpack.c.1.s8 %v372
      %v765 = vunpack.c.1.s8 %v373
      %v766 = vunpack.c.2.s8 %v370
      %v767 = vunpack.c.2.s8 %v371
      %v768 = vunpack.c.2.s8 %v372
      %v769 = vunpack.c.2.s8 %v373
      %v770 = vunpack.c.3.s8 %v370
      %v771 = vunpack.c.3.s8 %v371
      %v772 = vunpack.c.3.s8 %v372
      %v773 = vunpack.c.3.s8 %v373
      %v774 = vunpack.c.0.s8 %v374
      %v775 = vunpack.c.0.s8 %v375
      %v776 = vunpack.c.0.s8 %v376
      %v777 = vunpack.c.0.s8 %v377
      %v778 = vunpack.c.1.s8 %v374
      %v779 = vunpack.c.1.s8 %v375
      %v780 = vunpack.c.1.s8 %v376
      %v781 = vunpack.c.1.s8 %v377
      %v782 = vunpack.c.2.s8 %v374
      %v783 = vunpack.c.2.s8 %v375
      %v784 = vunpack.c.2.s8 %v376
      %v785 = vunpack.c.2.s8 %v377
      %v786 = vunpack.c.3.s8 %v374
      %v787 = vunpack.c.3.s8 %v375
      %v788 = vunpack.c.3.s8 %v376
      %v789 = vunpack.c.3.s8 %v377
      %v790 = vunpack.c.0.s8 %v378
      %v791 = vunpack.c.0.s8 %v379
      %v792 = vunpack.c.0.s8 %v380
      %v793 = vunpack.c.0.s8 %v381
      %v794 = vunpack.c.1.s8 %v378
      %v795 = vunpack.c.1.s8 %v379
      %v796 = vunpack.c.1.s8 %v380
      %v797 = vunpack.c.1.s8 %v381
      %v798 = vunpack.c.2.s8 %v378
      %v799 = vunpack.c.2.s8 %v379
      %v800 = vunpack.c.2.s8 %v380
      %v801 = vunpack.c.2.s8 %v381
      %v802 = vunpack.c.3.s8 %v378
      %v803 = vunpack.c.3.s8 %v379
      %v804 = vunpack.c.3.s8 %v380
      %v805 = vunpack.c.3.s8 %v381
      %v806 = vunpack.c.0.s8 %v382
      %v807 = vunpack.c.0.s8 %v383
      %v808 = vunpack.c.0.s8 %v384
      %v809 = vunpack.c.0.s8 %v385
      %v810 = vunpack.c.1.s8 %v382
      %v811 = vunpack.c.1.s8 %v383
      %v812 = vunpack.c.1.s8 %v384
      %v813 = vunpack.c.1.s8 %v385
      %v814 = vunpack.c.2.s8 %v382
      %v815 = vunpack.c.2.s8 %v383
      %v816 = vunpack.c.2.s8 %v384
      %v817 = vunpack.c.2.s8 %v385
      %v818 = vunpack.c.3.s8 %v382
      %v819 = vunpack.c.3.s8 %v383
      %v820 = vunpack.c.3.s8 %v384
      %v821 = vunpack.c.3.s8 %v385
      %v822 = vunpack.c.0.s8 %v386
      %v823 = vunpack.c.0.s8 %v387
      %v824 = vunpack.c.0.s8 %v388
      %v825 = vunpack.c.0.s8 %v389
      %v826 = vunpack.c.1.s8 %v386
      %v827 = vunpack.c.1.s8 %v387
      %v828 = vunpack.c.1.s8 %v388
      %v829 = vunpack.c.1.s8 %v389
      %v830 = vunpack.c.2.s8 %v386
      %v831 = vunpack.c.2.s8 %v387
      %v832 = vunpack.c.2.s8 %v388
      %v833 = vunpack.c.2.s8 %v389
      %v834 = vunpack.c.3.s8 %v386
      %v835 = vunpack.c.3.s8 %v387
      %v836 = vunpack.c.3.s8 %v388
      %v837 = vunpack.c.3.s8 %v389
      %v838 = vunpack.c.0.s8 %v390
      %v839 = vunpack.c.0.s8 %v391
      %v840 = vunpack.c.0.s8 %v392
      %v841 = vunpack.c.0.s8 %v393
      %v842 = vunpack.c.1.s8 %v390
      %v843 = vunpack.c.1.s8 %v391
      %v844 = vunpack.c.1.s8 %v392
      %v845 = vunpack.c.1.s8 %v393
      %v846 = vunpack.c.2.s8 %v390
      %v847 = vunpack.c.2.s8 %v391
      %v848 = vunpack.c.2.s8 %v392
      %v849 = vunpack.c.2.s8 %v393
      %v850 = vunpack.c.3.s8 %v390
      %v851 = vunpack.c.3.s8 %v391
      %v852 = vunpack.c.3.s8 %v392
      %v853 = vunpack.c.3.s8 %v393
      %v854 = vunpack.c.0.s8 %v394
      %v855 = vunpack.c.0.s8 %v395
      %v856 = vunpack.c.0.s8 %v396
      %v857 = vunpack.c.0.s8 %v397
      %v858 = vunpack.c.1.s8 %v394
      %v859 = vunpack.c.1.s8 %v395
      %v860 = vunpack.c.1.s8 %v396
      %v861 = vunpack.c.1.s8 %v397
      %v862 = vunpack.c.2.s8 %v394
      %v863 = vunpack.c.2.s8 %v395
      %v864 = vunpack.c.2.s8 %v396
      %v865 = vunpack.c.2.s8 %v397
      %v866 = vunpack.c.3.s8 %v394
      %v867 = vunpack.c.3.s8 %v395
      %v868 = vunpack.c.3.s8 %v396
      %v869 = vunpack.c.3.s8 %v397
      %v870 = vunpack.c.0.s8 %v398
      %v871 = vunpack.c.0.s8 %v399
      %v872 = vunpack.c.0.s8 %v400
      %v873 = vunpack.c.0.s8 %v401
      %v874 = vunpack.c.1.s8 %v398
      %v875 = vunpack.c.1.s8 %v399
      %v876 = vunpack.c.1.s8 %v400
      %v877 = vunpack.c.1.s8 %v401
      %v878 = vunpack.c.2.s8 %v398
      %v879 = vunpack.c.2.s8 %v399
      %v880 = vunpack.c.2.s8 %v400
      %v881 = vunpack.c.2.s8 %v401
      %v882 = vunpack.c.3.s8 %v398
      %v883 = vunpack.c.3.s8 %v399
      %v884 = vunpack.c.3.s8 %v400
      %v885 = vunpack.c.3.s8 %v401
      %v886 = vunpack.c.0.s8 %v402
      %v887 = vunpack.c.0.s8 %v403
      %v888 = vunpack.c.0.s8 %v404
      %v889 = vunpack.c.0.s8 %v405
      %v890 = vunpack.c.1.s8 %v402
      %v891 = vunpack.c.1.s8 %v403
      %v892 = vunpack.c.1.s8 %v404
      %v893 = vunpack.c.1.s8 %v405
      %v894 = vunpack.c.2.s8 %v402
      %v895 = vunpack.c.2.s8 %v403
      %v896 = vunpack.c.2.s8 %v404
      %v897 = vunpack.c.2.s8 %v405
      %v898 = vunpack.c.3.s8 %v402
      %v899 = vunpack.c.3.s8 %v403
      %v900 = vunpack.c.3.s8 %v404
      %v901 = vunpack.c.3.s8 %v405
      %v902 = vunpack.c.0.s8 %v406
      %v903 = vunpack.c.0.s8 %v407
      %v904 = vunpack.c.0.s8 %v408
      %v905 = vunpack.c.0.s8 %v409
      %v906 = vunpack.c.1.s8 %v406
      %v907 = vunpack.c.1.s8 %v407
      %v908 = vunpack.c.1.s8 %v408
      %v909 = vunpack.c.1.s8 %v409
      %v910 = vunpack.c.2.s8 %v406
      %v911 = vunpack.c.2.s8 %v407
      %v912 = vunpack.c.2.s8 %v408
      %v913 = vunpack.c.2.s8 %v409
      %v914 = vunpack.c.3.s8 %v406
      %v915 = vunpack.c.3.s8 %v407
      %v916 = vunpack.c.3.s8 %v408
      %v917 = vunpack.c.3.s8 %v409
      %v918 = vunpack.c.0.s8 %v410
      %v919 = vunpack.c.0.s8 %v411
      %v920 = vunpack.c.0.s8 %v412
      %v921 = vunpack.c.0.s8 %v413
      %v922 = vunpack.c.1.s8 %v410
      %v923 = vunpack.c.1.s8 %v411
      %v924 = vunpack.c.1.s8 %v412
      %v925 = vunpack.c.1.s8 %v413
      %v926 = vunpack.c.2.s8 %v410
      %v927 = vunpack.c.2.s8 %v411
      %v928 = vunpack.c.2.s8 %v412
      %v929 = vunpack.c.2.s8 %v413
      %v930 = vunpack.c.3.s8 %v410
      %v931 = vunpack.c.3.s8 %v411
      %v932 = vunpack.c.3.s8 %v412
      %v933 = vunpack.c.3.s8 %v413
      %v934 = vunpack.c.0.s8 %v414
      %v935 = vunpack.c.0.s8 %v415
      %v936 = vunpack.c.0.s8 %v416
      %v937 = vunpack.c.0.s8 %v417
      %v938 = vunpack.c.1.s8 %v414
      %v939 = vunpack.c.1.s8 %v415
      %v940 = vunpack.c.1.s8 %v416
      %v941 = vunpack.c.1.s8 %v417
      %v942 = vunpack.c.2.s8 %v414
      %v943 = vunpack.c.2.s8 %v415
      %v944 = vunpack.c.2.s8 %v416
      %v945 = vunpack.c.2.s8 %v417
      %v946 = vunpack.c.3.s8 %v414
      %v947 = vunpack.c.3.s8 %v415
      %v948 = vunpack.c.3.s8 %v416
      %v949 = vunpack.c.3.s8 %v417
      %v950 = vunpack.c.0.s8 %v418
      %v951 = vunpack.c.0.s8 %v419
      %v952 = vunpack.c.0.s8 %v420
      %v953 = vunpack.c.0.s8 %v421
      %v954 = vunpack.c.1.s8 %v418
      %v955 = vunpack.c.1.s8 %v419
      %v956 = vunpack.c.1.s8 %v420
      %v957 = vunpack.c.1.s8 %v421
      %v958 = vunpack.c.2.s8 %v418
      %v959 = vunpack.c.2.s8 %v419
      %v960 = vunpack.c.2.s8 %v420
      %v961 = vunpack.c.2.s8 %v421
      %v962 = vunpack.c.3.s8 %v418
      %v963 = vunpack.c.3.s8 %v419
      %v964 = vunpack.c.3.s8 %v420
      %v965 = vunpack.c.3.s8 %v421
      %v966 = vunpack.c.0.s8 %v422
      %v967 = vunpack.c.0.s8 %v423
      %v968 = vunpack.c.0.s8 %v424
      %v969 = vunpack.c.0.s8 %v425
      %v970 = vunpack.c.1.s8 %v422
      %v971 = vunpack.c.1.s8 %v423
      %v972 = vunpack.c.1.s8 %v424
      %v973 = vunpack.c.1.s8 %v425
      %v974 = vunpack.c.2.s8 %v422
      %v975 = vunpack.c.2.s8 %v423
      %v976 = vunpack.c.2.s8 %v424
      %v977 = vunpack.c.2.s8 %v425
      %v978 = vunpack.c.3.s8 %v422
      %v979 = vunpack.c.3.s8 %v423
      %v980 = vunpack.c.3.s8 %v424
      %v981 = vunpack.c.3.s8 %v425
      %v982 = vunpack.c.0.s8 %v426
      %v983 = vunpack.c.0.s8 %v427
      %v984 = vunpack.c.0.s8 %v428
      %v985 = vunpack.c.0.s8 %v429
      %v986 = vunpack.c.1.s8 %v426
      %v987 = vunpack.c.1.s8 %v427
      %v988 = vunpack.c.1.s8 %v428
      %v989 = vunpack.c.1.s8 %v429
      %v990 = vunpack.c.2.s8 %v426
      %v991 = vunpack.c.2.s8 %v427
      %v992 = vunpack.c.2.s8 %v428
      %v993 = vunpack.c.2.s8 %v429
      %v994 = vunpack.c.3.s8 %v426
      %v995 = vunpack.c.3.s8 %v427
      %v996 = vunpack.c.3.s8 %v428
      %v997 = vunpack.c.3.s8 %v429
      %v998 = vunpack.c.0.s8 %v430
      %v999 = vunpack.c.0.s8 %v431
      %v1000 = vunpack.c.0.s8 %v432
      %v1001 = vunpack.c.0.s8 %v433
      %v1002 = vunpack.c.1.s8 %v430
      %v1003 = vunpack.c.1.s8 %v431
      %v1004 = vunpack.c.1.s8 %v432
      %v1005 = vunpack.c.1.s8 %v433
      %v1006 = vunpack.c.2.s8 %v430
      %v1007 = vunpack.c.2.s8 %v431
      %v1008 = vunpack.c.2.s8 %v432
      %v1009 = vunpack.c.2.s8 %v433
      %v1010 = vunpack.c.3.s8 %v430
      %v1011 = vunpack.c.3.s8 %v431
      %v1012 = vunpack.c.3.s8 %v432
      %v1013 = vunpack.c.3.s8 %v433
      %v1014 = vunpack.c.0.s8 %v434
      %v1015 = vunpack.c.0.s8 %v435
      %v1016 = vunpack.c.0.s8 %v436
      %v1017 = vunpack.c.0.s8 %v437
      %v1018 = vunpack.c.1.s8 %v434
      %v1019 = vunpack.c.1.s8 %v435
      %v1020 = vunpack.c.1.s8 %v436
      %v1021 = vunpack.c.1.s8 %v437
      %v1022 = vunpack.c.2.s8 %v434
      %v1023 = vunpack.c.2.s8 %v435
      %v1024 = vunpack.c.2.s8 %v436
      %v1025 = vunpack.c.2.s8 %v437
      %v1026 = vunpack.c.3.s8 %v434
      %v1027 = vunpack.c.3.s8 %v435
      %v1028 = vunpack.c.3.s8 %v436
      %v1029 = vunpack.c.3.s8 %v437
      %v1030 = vunpack.c.0.s8 %v438
      %v1031 = vunpack.c.0.s8 %v439
      %v1032 = vunpack.c.0.s8 %v440
      %v1033 = vunpack.c.0.s8 %v441
      %v1034 = vunpack.c.1.s8 %v438
      %v1035 = vunpack.c.1.s8 %v439
      %v1036 = vunpack.c.1.s8 %v440
      %v1037 = vunpack.c.1.s8 %v441
      %v1038 = vunpack.c.2.s8 %v438
      %v1039 = vunpack.c.2.s8 %v439
      %v1040 = vunpack.c.2.s8 %v440
      %v1041 = vunpack.c.2.s8 %v441
      %v1042 = vunpack.c.3.s8 %v438
      %v1043 = vunpack.c.3.s8 %v439
      %v1044 = vunpack.c.3.s8 %v440
      %v1045 = vunpack.c.3.s8 %v441
      %v1046 = vunpack.c.0.s8 %v442
      %v1047 = vunpack.c.0.s8 %v443
      %v1048 = vunpack.c.0.s8 %v444
      %v1049 = vunpack.c.0.s8 %v445
      %v1050 = vunpack.c.1.s8 %v442
      %v1051 = vunpack.c.1.s8 %v443
      %v1052 = vunpack.c.1.s8 %v444
      %v1053 = vunpack.c.1.s8 %v445
      %v1054 = vunpack.c.2.s8 %v442
      %v1055 = vunpack.c.2.s8 %v443
      %v1056 = vunpack.c.2.s8 %v444
      %v1057 = vunpack.c.2.s8 %v445
      %v1058 = vunpack.c.3.s8 %v442
      %v1059 = vunpack.c.3.s8 %v443
      %v1060 = vunpack.c.3.s8 %v444
      %v1061 = vunpack.c.3.s8 %v445
      %v1062 = vunpack.c.0.s8 %v446
      %v1063 = vunpack.c.0.s8 %v447
      %v1064 = vunpack.c.0.s8 %v448
      %v1065 = vunpack.c.0.s8 %v449
      %v1066 = vunpack.c.1.s8 %v446
      %v1067 = vunpack.c.1.s8 %v447
      %v1068 = vunpack.c.1.s8 %v448
      %v1069 = vunpack.c.1.s8 %v449
      %v1070 = vunpack.c.2.s8 %v446
      %v1071 = vunpack.c.2.s8 %v447
      %v1072 = vunpack.c.2.s8 %v448
      %v1073 = vunpack.c.2.s8 %v449
      %v1074 = vunpack.c.3.s8 %v446
      %v1075 = vunpack.c.3.s8 %v447
      %v1076 = vunpack.c.3.s8 %v448
      %v1077 = vunpack.c.3.s8 %v449
      %v1078 = vunpack.c.0.s8 %v450
      %v1079 = vunpack.c.0.s8 %v451
      %v1080 = vunpack.c.0.s8 %v452
      %v1081 = vunpack.c.0.s8 %v453
      %v1082 = vunpack.c.1.s8 %v450
      %v1083 = vunpack.c.1.s8 %v451
      %v1084 = vunpack.c.1.s8 %v452
      %v1085 = vunpack.c.1.s8 %v453
      %v1086 = vunpack.c.2.s8 %v450
      %v1087 = vunpack.c.2.s8 %v451
      %v1088 = vunpack.c.2.s8 %v452
      %v1089 = vunpack.c.2.s8 %v453
      %v1090 = vunpack.c.3.s8 %v450
      %v1091 = vunpack.c.3.s8 %v451
      %v1092 = vunpack.c.3.s8 %v452
      %v1093 = vunpack.c.3.s8 %v453
      %v1094 = vunpack.c.0.s8 %v454
      %v1095 = vunpack.c.0.s8 %v455
      %v1096 = vunpack.c.0.s8 %v456
      %v1097 = vunpack.c.0.s8 %v457
      %v1098 = vunpack.c.1.s8 %v454
      %v1099 = vunpack.c.1.s8 %v455
      %v1100 = vunpack.c.1.s8 %v456
      %v1101 = vunpack.c.1.s8 %v457
      %v1102 = vunpack.c.2.s8 %v454
      %v1103 = vunpack.c.2.s8 %v455
      %v1104 = vunpack.c.2.s8 %v456
      %v1105 = vunpack.c.2.s8 %v457
      %v1106 = vunpack.c.3.s8 %v454
      %v1107 = vunpack.c.3.s8 %v455
      %v1108 = vunpack.c.3.s8 %v456
      %v1109 = vunpack.c.3.s8 %v457
      %v1110 = vunpack.c.0.s8 %v458
      %v1111 = vunpack.c.0.s8 %v459
      %v1112 = vunpack.c.0.s8 %v460
      %v1113 = vunpack.c.0.s8 %v461
      %v1114 = vunpack.c.1.s8 %v458
      %v1115 = vunpack.c.1.s8 %v459
      %v1116 = vunpack.c.1.s8 %v460
      %v1117 = vunpack.c.1.s8 %v461
      %v1118 = vunpack.c.2.s8 %v458
      %v1119 = vunpack.c.2.s8 %v459
      %v1120 = vunpack.c.2.s8 %v460
      %v1121 = vunpack.c.2.s8 %v461
      %v1122 = vunpack.c.3.s8 %v458
      %v1123 = vunpack.c.3.s8 %v459
      %v1124 = vunpack.c.3.s8 %v460
      %v1125 = vunpack.c.3.s8 %v461
      %v1126 = vunpack.c.0.s8 %v462
      %v1127 = vunpack.c.0.s8 %v463
      %v1128 = vunpack.c.0.s8 %v464
      %v1129 = vunpack.c.0.s8 %v465
      %v1130 = vunpack.c.1.s8 %v462
      %v1131 = vunpack.c.1.s8 %v463
      %v1132 = vunpack.c.1.s8 %v464
      %v1133 = vunpack.c.1.s8 %v465
      %v1134 = vunpack.c.2.s8 %v462
      %v1135 = vunpack.c.2.s8 %v463
      %v1136 = vunpack.c.2.s8 %v464
      %v1137 = vunpack.c.2.s8 %v465
      %v1138 = vunpack.c.3.s8 %v462
      %v1139 = vunpack.c.3.s8 %v463
      %v1140 = vunpack.c.3.s8 %v464
      %v1141 = vunpack.c.3.s8 %v465
      %v1142 = vunpack.c.0.s8 %v466
      %v1143 = vunpack.c.0.s8 %v467
      %v1144 = vunpack.c.0.s8 %v468
      %v1145 = vunpack.c.0.s8 %v469
      %v1146 = vunpack.c.1.s8 %v466
      %v1147 = vunpack.c.1.s8 %v467
      %v1148 = vunpack.c.1.s8 %v468
      %v1149 = vunpack.c.1.s8 %v469
      %v1150 = vunpack.c.2.s8 %v466
      %v1151 = vunpack.c.2.s8 %v467
      %v1152 = vunpack.c.2.s8 %v468
      %v1153 = vunpack.c.2.s8 %v469
      %v1154 = vunpack.c.3.s8 %v466
      %v1155 = vunpack.c.3.s8 %v467
      %v1156 = vunpack.c.3.s8 %v468
      %v1157 = vunpack.c.3.s8 %v469
      %v1158 = vunpack.c.0.s8 %v470
      %v1159 = vunpack.c.0.s8 %v471
      %v1160 = vunpack.c.0.s8 %v472
      %v1161 = vunpack.c.0.s8 %v473
      %v1162 = vunpack.c.1.s8 %v470
      %v1163 = vunpack.c.1.s8 %v471
      %v1164 = vunpack.c.1.s8 %v472
      %v1165 = vunpack.c.1.s8 %v473
      %v1166 = vunpack.c.2.s8 %v470
      %v1167 = vunpack.c.2.s8 %v471
      %v1168 = vunpack.c.2.s8 %v472
      %v1169 = vunpack.c.2.s8 %v473
      %v1170 = vunpack.c.3.s8 %v470
      %v1171 = vunpack.c.3.s8 %v471
      %v1172 = vunpack.c.3.s8 %v472
      %v1173 = vunpack.c.3.s8 %v473
      %v1174 = vunpack.c.0.s8 %v474
      %v1175 = vunpack.c.0.s8 %v475
      %v1176 = vunpack.c.0.s8 %v476
      %v1177 = vunpack.c.0.s8 %v477
      %v1178 = vunpack.c.1.s8 %v474
      %v1179 = vunpack.c.1.s8 %v475
      %v1180 = vunpack.c.1.s8 %v476
      %v1181 = vunpack.c.1.s8 %v477
      %v1182 = vunpack.c.2.s8 %v474
      %v1183 = vunpack.c.2.s8 %v475
      %v1184 = vunpack.c.2.s8 %v476
      %v1185 = vunpack.c.2.s8 %v477
      %v1186 = vunpack.c.3.s8 %v474
      %v1187 = vunpack.c.3.s8 %v475
      %v1188 = vunpack.c.3.s8 %v476
      %v1189 = vunpack.c.3.s8 %v477
      %v1190 = vunpack.c.0.s8 %v478
      %v1191 = vunpack.c.0.s8 %v479
      %v1192 = vunpack.c.0.s8 %v480
      %v1193 = vunpack.c.0.s8 %v481
      %v1194 = vunpack.c.1.s8 %v478
      %v1195 = vunpack.c.1.s8 %v479
      %v1196 = vunpack.c.1.s8 %v480
      %v1197 = vunpack.c.1.s8 %v481
      %v1198 = vunpack.c.2.s8 %v478
      %v1199 = vunpack.c.2.s8 %v479
      %v1200 = vunpack.c.2.s8 %v480
      %v1201 = vunpack.c.2.s8 %v481
      %v1202 = vunpack.c.3.s8 %v478
      %v1203 = vunpack.c.3.s8 %v479
      %v1204 = vunpack.c.3.s8 %v480
      %v1205 = vunpack.c.3.s8 %v481
      %v1206 = vunpack.c.0.s8 %v482
      %v1207 = vunpack.c.0.s8 %v483
      %v1208 = vunpack.c.0.s8 %v484
      %v1209 = vunpack.c.0.s8 %v485
      %v1210 = vunpack.c.1.s8 %v482
      %v1211 = vunpack.c.1.s8 %v483
      %v1212 = vunpack.c.1.s8 %v484
      %v1213 = vunpack.c.1.s8 %v485
      %v1214 = vunpack.c.2.s8 %v482
      %v1215 = vunpack.c.2.s8 %v483
      %v1216 = vunpack.c.2.s8 %v484
      %v1217 = vunpack.c.2.s8 %v485
      %v1218 = vunpack.c.3.s8 %v482
      %v1219 = vunpack.c.3.s8 %v483
      %v1220 = vunpack.c.3.s8 %v484
      %v1221 = vunpack.c.3.s8 %v485
      %v1222 = vunpack.c.0.s8 %v486
      %v1223 = vunpack.c.0.s8 %v487
      %v1224 = vunpack.c.0.s8 %v488
      %v1225 = vunpack.c.0.s8 %v489
      %v1226 = vunpack.c.1.s8 %v486
      %v1227 = vunpack.c.1.s8 %v487
      %v1228 = vunpack.c.1.s8 %v488
      %v1229 = vunpack.c.1.s8 %v489
      %v1230 = vunpack.c.2.s8 %v486
      %v1231 = vunpack.c.2.s8 %v487
      %v1232 = vunpack.c.2.s8 %v488
      %v1233 = vunpack.c.2.s8 %v489
      %v1234 = vunpack.c.3.s8 %v486
      %v1235 = vunpack.c.3.s8 %v487
      %v1236 = vunpack.c.3.s8 %v488
      %v1237 = vunpack.c.3.s8 %v489
      %v1238 = vunpack.c.0.s8 %v490
      %v1239 = vunpack.c.0.s8 %v491
      %v1240 = vunpack.c.0.s8 %v492
      %v1241 = vunpack.c.0.s8 %v493
      %v1242 = vunpack.c.1.s8 %v490
      %v1243 = vunpack.c.1.s8 %v491
      %v1244 = vunpack.c.1.s8 %v492
      %v1245 = vunpack.c.1.s8 %v493
      %v1246 = vunpack.c.2.s8 %v490
      %v1247 = vunpack.c.2.s8 %v491
      %v1248 = vunpack.c.2.s8 %v492
      %v1249 = vunpack.c.2.s8 %v493
      %v1250 = vunpack.c.3.s8 %v490
      %v1251 = vunpack.c.3.s8 %v491
      %v1252 = vunpack.c.3.s8 %v492
      %v1253 = vunpack.c.3.s8 %v493
      %v1254 = vunpack.c.0.s8 %v494
      %v1255 = vunpack.c.0.s8 %v495
      %v1256 = vunpack.c.0.s8 %v496
      %v1257 = vunpack.c.0.s8 %v497
      %v1258 = vunpack.c.1.s8 %v494
      %v1259 = vunpack.c.1.s8 %v495
      %v1260 = vunpack.c.1.s8 %v496
      %v1261 = vunpack.c.1.s8 %v497
      %v1262 = vunpack.c.2.s8 %v494
      %v1263 = vunpack.c.2.s8 %v495
      %v1264 = vunpack.c.2.s8 %v496
      %v1265 = vunpack.c.2.s8 %v497
      %v1266 = vunpack.c.3.s8 %v494
      %v1267 = vunpack.c.3.s8 %v495
      %v1268 = vunpack.c.3.s8 %v496
      %v1269 = vunpack.c.3.s8 %v497
      %v1270 = vunpack.c.0.s8 %v498
      %v1271 = vunpack.c.0.s8 %v499
      %v1272 = vunpack.c.0.s8 %v500
      %v1273 = vunpack.c.0.s8 %v501
      %v1274 = vunpack.c.1.s8 %v498
      %v1275 = vunpack.c.1.s8 %v499
      %v1276 = vunpack.c.1.s8 %v500
      %v1277 = vunpack.c.1.s8 %v501
      %v1278 = vunpack.c.2.s8 %v498
      %v1279 = vunpack.c.2.s8 %v499
      %v1280 = vunpack.c.2.s8 %v500
      %v1281 = vunpack.c.2.s8 %v501
      %v1282 = vunpack.c.3.s8 %v498
      %v1283 = vunpack.c.3.s8 %v499
      %v1284 = vunpack.c.3.s8 %v500
      %v1285 = vunpack.c.3.s8 %v501
      %v1286 = vunpack.c.0.s8 %v502
      %v1287 = vunpack.c.0.s8 %v503
      %v1288 = vunpack.c.0.s8 %v504
      %v1289 = vunpack.c.0.s8 %v505
      %v1290 = vunpack.c.1.s8 %v502
      %v1291 = vunpack.c.1.s8 %v503
      %v1292 = vunpack.c.1.s8 %v504
      %v1293 = vunpack.c.1.s8 %v505
      %v1294 = vunpack.c.2.s8 %v502
      %v1295 = vunpack.c.2.s8 %v503
      %v1296 = vunpack.c.2.s8 %v504
      %v1297 = vunpack.c.2.s8 %v505
      %v1298 = vunpack.c.3.s8 %v502
      %v1299 = vunpack.c.3.s8 %v503
      %v1300 = vunpack.c.3.s8 %v504
      %v1301 = vunpack.c.3.s8 %v505
      %v1302 = vunpack.c.0.s8 %v506
      %v1303 = vunpack.c.0.s8 %v507
      %v1304 = vunpack.c.0.s8 %v508
      %v1305 = vunpack.c.0.s8 %v509
      %v1306 = vunpack.c.1.s8 %v506
      %v1307 = vunpack.c.1.s8 %v507
      %v1308 = vunpack.c.1.s8 %v508
      %v1309 = vunpack.c.1.s8 %v509
      %v1310 = vunpack.c.2.s8 %v506
      %v1311 = vunpack.c.2.s8 %v507
      %v1312 = vunpack.c.2.s8 %v508
      %v1313 = vunpack.c.2.s8 %v509
      %v1314 = vunpack.c.3.s8 %v506
      %v1315 = vunpack.c.3.s8 %v507
      %v1316 = vunpack.c.3.s8 %v508
      %v1317 = vunpack.c.3.s8 %v509
      %v1318 = vunpack.c.0.s8 %v510
      %v1319 = vunpack.c.0.s8 %v511
      %v1320 = vunpack.c.0.s8 %v512
      %v1321 = vunpack.c.0.s8 %v513
      %v1322 = vunpack.c.1.s8 %v510
      %v1323 = vunpack.c.1.s8 %v511
      %v1324 = vunpack.c.1.s8 %v512
      %v1325 = vunpack.c.1.s8 %v513
      %v1326 = vunpack.c.2.s8 %v510
      %v1327 = vunpack.c.2.s8 %v511
      %v1328 = vunpack.c.2.s8 %v512
      %v1329 = vunpack.c.2.s8 %v513
      %v1330 = vunpack.c.3.s8 %v510
      %v1331 = vunpack.c.3.s8 %v511
      %v1332 = vunpack.c.3.s8 %v512
      %v1333 = vunpack.c.3.s8 %v513
      %v1334 = vunpack.c.0.s8 %v514
      %v1335 = vunpack.c.0.s8 %v515
      %v1336 = vunpack.c.0.s8 %v516
      %v1337 = vunpack.c.0.s8 %v517
      %v1338 = vunpack.c.1.s8 %v514
      %v1339 = vunpack.c.1.s8 %v515
      %v1340 = vunpack.c.1.s8 %v516
      %v1341 = vunpack.c.1.s8 %v517
      %v1342 = vunpack.c.2.s8 %v514
      %v1343 = vunpack.c.2.s8 %v515
      %v1344 = vunpack.c.2.s8 %v516
      %v1345 = vunpack.c.2.s8 %v517
      %v1346 = vunpack.c.3.s8 %v514
      %v1347 = vunpack.c.3.s8 %v515
      %v1348 = vunpack.c.3.s8 %v516
      %v1349 = vunpack.c.3.s8 %v517
      %v1350 = vunpack.c.0.s8 %v518
      %v1351 = vunpack.c.0.s8 %v519
      %v1352 = vunpack.c.0.s8 %v520
      %v1353 = vunpack.c.0.s8 %v521
      %v1354 = vunpack.c.1.s8 %v518
      %v1355 = vunpack.c.1.s8 %v519
      %v1356 = vunpack.c.1.s8 %v520
      %v1357 = vunpack.c.1.s8 %v521
      %v1358 = vunpack.c.2.s8 %v518
      %v1359 = vunpack.c.2.s8 %v519
      %v1360 = vunpack.c.2.s8 %v520
      %v1361 = vunpack.c.2.s8 %v521
      %v1362 = vunpack.c.3.s8 %v518
      %v1363 = vunpack.c.3.s8 %v519
      %v1364 = vunpack.c.3.s8 %v520
      %v1365 = vunpack.c.3.s8 %v521
      %v1366 = vunpack.c.0.s8 %v522
      %v1367 = vunpack.c.0.s8 %v523
      %v1368 = vunpack.c.0.s8 %v524
      %v1369 = vunpack.c.0.s8 %v525
      %v1370 = vunpack.c.1.s8 %v522
      %v1371 = vunpack.c.1.s8 %v523
      %v1372 = vunpack.c.1.s8 %v524
      %v1373 = vunpack.c.1.s8 %v525
      %v1374 = vunpack.c.2.s8 %v522
      %v1375 = vunpack.c.2.s8 %v523
      %v1376 = vunpack.c.2.s8 %v524
      %v1377 = vunpack.c.2.s8 %v525
      %v1378 = vunpack.c.3.s8 %v522
      %v1379 = vunpack.c.3.s8 %v523
      %v1380 = vunpack.c.3.s8 %v524
      %v1381 = vunpack.c.3.s8 %v525
      %v1382 = vunpack.c.0.s8 %v526
      %v1383 = vunpack.c.0.s8 %v527
      %v1384 = vunpack.c.0.s8 %v528
      %v1385 = vunpack.c.0.s8 %v529
      %v1386 = vunpack.c.1.s8 %v526
      %v1387 = vunpack.c.1.s8 %v527
      %v1388 = vunpack.c.1.s8 %v528
      %v1389 = vunpack.c.1.s8 %v529
      %v1390 = vunpack.c.2.s8 %v526
      %v1391 = vunpack.c.2.s8 %v527
      %v1392 = vunpack.c.2.s8 %v528
      %v1393 = vunpack.c.2.s8 %v529
      %v1394 = vunpack.c.3.s8 %v526
      %v1395 = vunpack.c.3.s8 %v527
      %v1396 = vunpack.c.3.s8 %v528
      %v1397 = vunpack.c.3.s8 %v529
      %v1398 = vunpack.c.0.s8 %v530
      %v1399 = vunpack.c.0.s8 %v531
      %v1400 = vunpack.c.0.s8 %v532
      %v1401 = vunpack.c.0.s8 %v533
      %v1402 = vunpack.c.1.s8 %v530
      %v1403 = vunpack.c.1.s8 %v531
      %v1404 = vunpack.c.1.s8 %v532
      %v1405 = vunpack.c.1.s8 %v533
      %v1406 = vunpack.c.2.s8 %v530
      %v1407 = vunpack.c.2.s8 %v531
      %v1408 = vunpack.c.2.s8 %v532
      %v1409 = vunpack.c.2.s8 %v533
      %v1410 = vunpack.c.3.s8 %v530
      %v1411 = vunpack.c.3.s8 %v531
      %v1412 = vunpack.c.3.s8 %v532
      %v1413 = vunpack.c.3.s8 %v533
      %v1414 = vunpack.c.0.s8 %v534
      %v1415 = vunpack.c.0.s8 %v535
      %v1416 = vunpack.c.0.s8 %v536
      %v1417 = vunpack.c.0.s8 %v537
      %v1418 = vunpack.c.1.s8 %v534
      %v1419 = vunpack.c.1.s8 %v535
      %v1420 = vunpack.c.1.s8 %v536
      %v1421 = vunpack.c.1.s8 %v537
      %v1422 = vunpack.c.2.s8 %v534
      %v1423 = vunpack.c.2.s8 %v535
      %v1424 = vunpack.c.2.s8 %v536
      %v1425 = vunpack.c.2.s8 %v537
      %v1426 = vunpack.c.3.s8 %v534
      %v1427 = vunpack.c.3.s8 %v535
      %v1428 = vunpack.c.3.s8 %v536
      %v1429 = vunpack.c.3.s8 %v537
      %v1430 = vunpack.c.0.s8 %v538
      %v1431 = vunpack.c.0.s8 %v539
      %v1432 = vunpack.c.0.s8 %v540
      %v1433 = vunpack.c.0.s8 %v541
      %v1434 = vunpack.c.1.s8 %v538
      %v1435 = vunpack.c.1.s8 %v539
      %v1436 = vunpack.c.1.s8 %v540
      %v1437 = vunpack.c.1.s8 %v541
      %v1438 = vunpack.c.2.s8 %v538
      %v1439 = vunpack.c.2.s8 %v539
      %v1440 = vunpack.c.2.s8 %v540
      %v1441 = vunpack.c.2.s8 %v541
      %v1442 = vunpack.c.3.s8 %v538
      %v1443 = vunpack.c.3.s8 %v539
      %v1444 = vunpack.c.3.s8 %v540
      %v1445 = vunpack.c.3.s8 %v541
      %v1446 = vunpack.c.0.s8 %v542
      %v1447 = vunpack.c.0.s8 %v543
      %v1448 = vunpack.c.0.s8 %v544
      %v1449 = vunpack.c.0.s8 %v545
      %v1450 = vunpack.c.1.s8 %v542
      %v1451 = vunpack.c.1.s8 %v543
      %v1452 = vunpack.c.1.s8 %v544
      %v1453 = vunpack.c.1.s8 %v545
      %v1454 = vunpack.c.2.s8 %v542
      %v1455 = vunpack.c.2.s8 %v543
      %v1456 = vunpack.c.2.s8 %v544
      %v1457 = vunpack.c.2.s8 %v545
      %v1458 = vunpack.c.3.s8 %v542
      %v1459 = vunpack.c.3.s8 %v543
      %v1460 = vunpack.c.3.s8 %v544
      %v1461 = vunpack.c.3.s8 %v545
      %v1462 = vunpack.c.0.s8 %v546
      %v1463 = vunpack.c.0.s8 %v547
      %v1464 = vunpack.c.0.s8 %v548
      %v1465 = vunpack.c.0.s8 %v549
      %v1466 = vunpack.c.1.s8 %v546
      %v1467 = vunpack.c.1.s8 %v547
      %v1468 = vunpack.c.1.s8 %v548
      %v1469 = vunpack.c.1.s8 %v549
      %v1470 = vunpack.c.2.s8 %v546
      %v1471 = vunpack.c.2.s8 %v547
      %v1472 = vunpack.c.2.s8 %v548
      %v1473 = vunpack.c.2.s8 %v549
      %v1474 = vunpack.c.3.s8 %v546
      %v1475 = vunpack.c.3.s8 %v547
      %v1476 = vunpack.c.3.s8 %v548
      %v1477 = vunpack.c.3.s8 %v549
      %v1478 = vunpack.c.0.s8 %v550
      %v1479 = vunpack.c.0.s8 %v551
      %v1480 = vunpack.c.0.s8 %v552
      %v1481 = vunpack.c.0.s8 %v553
      %v1482 = vunpack.c.1.s8 %v550
      %v1483 = vunpack.c.1.s8 %v551
      %v1484 = vunpack.c.1.s8 %v552
      %v1485 = vunpack.c.1.s8 %v553
      %v1486 = vunpack.c.2.s8 %v550
      %v1487 = vunpack.c.2.s8 %v551
      %v1488 = vunpack.c.2.s8 %v552
      %v1489 = vunpack.c.2.s8 %v553
      %v1490 = vunpack.c.3.s8 %v550
      %v1491 = vunpack.c.3.s8 %v551
      %v1492 = vunpack.c.3.s8 %v552
      %v1493 = vunpack.c.3.s8 %v553
      %v1494 = vunpack.c.0.s8 %v554
      %v1495 = vunpack.c.0.s8 %v555
      %v1496 = vunpack.c.0.s8 %v556
      %v1497 = vunpack.c.0.s8 %v557
      %v1498 = vunpack.c.1.s8 %v554
      %v1499 = vunpack.c.1.s8 %v555
      %v1500 = vunpack.c.1.s8 %v556
      %v1501 = vunpack.c.1.s8 %v557
      %v1502 = vunpack.c.2.s8 %v554
      %v1503 = vunpack.c.2.s8 %v555
      %v1504 = vunpack.c.2.s8 %v556
      %v1505 = vunpack.c.2.s8 %v557
      %v1506 = vunpack.c.3.s8 %v554
      %v1507 = vunpack.c.3.s8 %v555
      %v1508 = vunpack.c.3.s8 %v556
      %v1509 = vunpack.c.3.s8 %v557
      %v1510 = vunpack.c.0.s8 %v558
      %v1511 = vunpack.c.0.s8 %v559
      %v1512 = vunpack.c.0.s8 %v560
      %v1513 = vunpack.c.0.s8 %v561
      %v1514 = vunpack.c.1.s8 %v558
      %v1515 = vunpack.c.1.s8 %v559
      %v1516 = vunpack.c.1.s8 %v560
      %v1517 = vunpack.c.1.s8 %v561
      %v1518 = vunpack.c.2.s8 %v558
      %v1519 = vunpack.c.2.s8 %v559
      %v1520 = vunpack.c.2.s8 %v560
      %v1521 = vunpack.c.2.s8 %v561
      %v1522 = vunpack.c.3.s8 %v558
      %v1523 = vunpack.c.3.s8 %v559
      %v1524 = vunpack.c.3.s8 %v560
      %v1525 = vunpack.c.3.s8 %v561
      %v1526 = vunpack.c.0.s8 %v562
      %v1527 = vunpack.c.0.s8 %v563
      %v1528 = vunpack.c.0.s8 %v564
      %v1529 = vunpack.c.0.s8 %v565
      %v1530 = vunpack.c.1.s8 %v562
      %v1531 = vunpack.c.1.s8 %v563
      %v1532 = vunpack.c.1.s8 %v564
      %v1533 = vunpack.c.1.s8 %v565
      %v1534 = vunpack.c.2.s8 %v562
      %v1535 = vunpack.c.2.s8 %v563
      %v1536 = vunpack.c.2.s8 %v564
      %v1537 = vunpack.c.2.s8 %v565
      %v1538 = vunpack.c.3.s8 %v562
      %v1539 = vunpack.c.3.s8 %v563
      %v1540 = vunpack.c.3.s8 %v564
      %v1541 = vunpack.c.3.s8 %v565
      %v1542 = vunpack.c.0.s8 %v566
      %v1543 = vunpack.c.0.s8 %v567
      %v1544 = vunpack.c.0.s8 %v568
      %v1545 = vunpack.c.0.s8 %v569
      %v1546 = vunpack.c.1.s8 %v566
      %v1547 = vunpack.c.1.s8 %v567
      %v1548 = vunpack.c.1.s8 %v568
      %v1549 = vunpack.c.1.s8 %v569
      %v1550 = vunpack.c.2.s8 %v566
      %v1551 = vunpack.c.2.s8 %v567
      %v1552 = vunpack.c.2.s8 %v568
      %v1553 = vunpack.c.2.s8 %v569
      %v1554 = vunpack.c.3.s8 %v566
      %v1555 = vunpack.c.3.s8 %v567
      %v1556 = vunpack.c.3.s8 %v568
      %v1557 = vunpack.c.3.s8 %v569
      %v1558 = vunpack.c.0.s8 %v570
      %v1559 = vunpack.c.0.s8 %v571
      %v1560 = vunpack.c.0.s8 %v572
      %v1561 = vunpack.c.0.s8 %v573
      %v1562 = vunpack.c.1.s8 %v570
      %v1563 = vunpack.c.1.s8 %v571
      %v1564 = vunpack.c.1.s8 %v572
      %v1565 = vunpack.c.1.s8 %v573
      %v1566 = vunpack.c.2.s8 %v570
      %v1567 = vunpack.c.2.s8 %v571
      %v1568 = vunpack.c.2.s8 %v572
      %v1569 = vunpack.c.2.s8 %v573
      %v1570 = vunpack.c.3.s8 %v570
      %v1571 = vunpack.c.3.s8 %v571
      %v1572 = vunpack.c.3.s8 %v572
      %v1573 = vunpack.c.3.s8 %v573
      %v1574 = vunpack.c.0.s8 %v574
      %v1575 = vunpack.c.0.s8 %v575
      %v1576 = vunpack.c.0.s8 %v576
      %v1577 = vunpack.c.0.s8 %v577
      %v1578 = vunpack.c.1.s8 %v574
      %v1579 = vunpack.c.1.s8 %v575
      %v1580 = vunpack.c.1.s8 %v576
      %v1581 = vunpack.c.1.s8 %v577
      %v1582 = vunpack.c.2.s8 %v574
      %v1583 = vunpack.c.2.s8 %v575
      %v1584 = vunpack.c.2.s8 %v576
      %v1585 = vunpack.c.2.s8 %v577
      %v1586 = vunpack.c.3.s8 %v574
      %v1587 = vunpack.c.3.s8 %v575
      %v1588 = vunpack.c.3.s8 %v576
      %v1589 = vunpack.c.3.s8 %v577
      %v1590 = vunpack.c.0.s8 %v578
      %v1591 = vunpack.c.0.s8 %v579
      %v1592 = vunpack.c.0.s8 %v580
      %v1593 = vunpack.c.0.s8 %v581
      %v1594 = vunpack.c.1.s8 %v578
      %v1595 = vunpack.c.1.s8 %v579
      %v1596 = vunpack.c.1.s8 %v580
      %v1597 = vunpack.c.1.s8 %v581
      %v1598 = vunpack.c.2.s8 %v578
      %v1599 = vunpack.c.2.s8 %v579
      %v1600 = vunpack.c.2.s8 %v580
      %v1601 = vunpack.c.2.s8 %v581
      %v1602 = vunpack.c.3.s8 %v578
      %v1603 = vunpack.c.3.s8 %v579
      %v1604 = vunpack.c.3.s8 %v580
      %v1605 = vunpack.c.3.s8 %v581
      %v1606 = vcvt.s32.f32 %v582
      %v1607 = vcvt.s32.f32 %v583
      %v1608 = vcvt.s32.f32 %v584
      %v1609 = vcvt.s32.f32 %v585
      %v1610 = vcvt.s32.f32 %v586
      %v1611 = vcvt.s32.f32 %v587
      %v1612 = vcvt.s32.f32 %v588
      %v1613 = vcvt.s32.f32 %v589
      %v1614 = vcvt.s32.f32 %v590
      %v1615 = vcvt.s32.f32 %v591
      %v1616 = vcvt.s32.f32 %v592
      %v1617 = vcvt.s32.f32 %v593
      %v1618 = vcvt.s32.f32 %v594
      %v1619 = vcvt.s32.f32 %v595
      %v1620 = vcvt.s32.f32 %v596
      %v1621 = vcvt.s32.f32 %v597
      %v1622 = vcvt.s32.f32 %v598
      %v1623 = vcvt.s32.f32 %v599
      %v1624 = vcvt.s32.f32 %v600
      %v1625 = vcvt.s32.f32 %v601
      %v1626 = vcvt.s32.f32 %v602
      %v1627 = vcvt.s32.f32 %v603
      %v1628 = vcvt.s32.f32 %v604
      %v1629 = vcvt.s32.f32 %v605
      %v1630 = vcvt.s32.f32 %v606
      %v1631 = vcvt.s32.f32 %v607
      %v1632 = vcvt.s32.f32 %v608
      %v1633 = vcvt.s32.f32 %v609
      %v1634 = vcvt.s32.f32 %v610
      %v1635 = vcvt.s32.f32 %v611
      %v1636 = vcvt.s32.f32 %v612
      %v1637 = vcvt.s32.f32 %v613
      %v1638 = vcvt.s32.f32 %v614
      %v1639 = vcvt.s32.f32 %v615
      %v1640 = vcvt.s32.f32 %v616
      %v1641 = vcvt.s32.f32 %v617
      %v1642 = vcvt.s32.f32 %v618
      %v1643 = vcvt.s32.f32 %v619
      %v1644 = vcvt.s32.f32 %v620
      %v1645 = vcvt.s32.f32 %v621
      %v1646 = vcvt.s32.f32 %v622
      %v1647 = vcvt.s32.f32 %v623
      %v1648 = vcvt.s32.f32 %v624
      %v1649 = vcvt.s32.f32 %v625
      %v1650 = vcvt.s32.f32 %v626
      %v1651 = vcvt.s32.f32 %v627
      %v1652 = vcvt.s32.f32 %v628
      %v1653 = vcvt.s32.f32 %v629
      %v1654 = vcvt.s32.f32 %v630
      %v1655 = vcvt.s32.f32 %v631
      %v1656 = vcvt.s32.f32 %v632
      %v1657 = vcvt.s32.f32 %v633
      %v1658 = vcvt.s32.f32 %v634
      %v1659 = vcvt.s32.f32 %v635
      %v1660 = vcvt.s32.f32 %v636
      %v1661 = vcvt.s32.f32 %v637
      %v1662 = vcvt.s32.f32 %v638
      %v1663 = vcvt.s32.f32 %v639
      %v1664 = vcvt.s32.f32 %v640
      %v1665 = vcvt.s32.f32 %v641
      %v1666 = vcvt.s32.f32 %v642
      %v1667 = vcvt.s32.f32 %v643
      %v1668 = vcvt.s32.f32 %v644
      %v1669 = vcvt.s32.f32 %v645
      %v1670 = vcvt.s32.f32 %v646
      %v1671 = vcvt.s32.f32 %v647
      %v1672 = vcvt.s32.f32 %v648
      %v1673 = vcvt.s32.f32 %v649
      %v1674 = vcvt.s32.f32 %v650
      %v1675 = vcvt.s32.f32 %v651
      %v1676 = vcvt.s32.f32 %v652
      %v1677 = vcvt.s32.f32 %v653
      %v1678 = vcvt.s32.f32 %v654
      %v1679 = vcvt.s32.f32 %v655
      %v1680 = vcvt.s32.f32 %v656
      %v1681 = vcvt.s32.f32 %v657
      %v1682 = vcvt.s32.f32 %v658
      %v1683 = vcvt.s32.f32 %v659
      %v1684 = vcvt.s32.f32 %v660
      %v1685 = vcvt.s32.f32 %v661
      %v1686 = vcvt.s32.f32 %v662
      %v1687 = vcvt.s32.f32 %v663
      %v1688 = vcvt.s32.f32 %v664
      %v1689 = vcvt.s32.f32 %v665
      %v1690 = vcvt.s32.f32 %v666
      %v1691 = vcvt.s32.f32 %v667
      %v1692 = vcvt.s32.f32 %v668
      %v1693 = vcvt.s32.f32 %v669
      %v1694 = vcvt.s32.f32 %v670
      %v1695 = vcvt.s32.f32 %v671
      %v1696 = vcvt.s32.f32 %v672
      %v1697 = vcvt.s32.f32 %v673
      %v1698 = vcvt.s32.f32 %v674
      %v1699 = vcvt.s32.f32 %v675
      %v1700 = vcvt.s32.f32 %v676
      %v1701 = vcvt.s32.f32 %v677
      %v1702 = vcvt.s32.f32 %v678
      %v1703 = vcvt.s32.f32 %v679
      %v1704 = vcvt.s32.f32 %v680
      %v1705 = vcvt.s32.f32 %v681
      %v1706 = vcvt.s32.f32 %v682
      %v1707 = vcvt.s32.f32 %v683
      %v1708 = vcvt.s32.f32 %v684
      %v1709 = vcvt.s32.f32 %v685
      %v1710 = vcvt.s32.f32 %v686
      %v1711 = vcvt.s32.f32 %v687
      %v1712 = vcvt.s32.f32 %v688
      %v1713 = vcvt.s32.f32 %v689
      %v1714 = vcvt.s32.f32 %v690
      %v1715 = vcvt.s32.f32 %v691
      %v1716 = vcvt.s32.f32 %v692
      %v1717 = vcvt.s32.f32 %v693
      %v1718 = vcvt.s32.f32 %v694
      %v1719 = vcvt.s32.f32 %v695
      %v1720 = vcvt.s32.f32 %v696
      %v1721 = vcvt.s32.f32 %v697
      %v1722 = vcvt.s32.f32 %v698
      %v1723 = vcvt.s32.f32 %v699
      %v1724 = vcvt.s32.f32 %v700
      %v1725 = vcvt.s32.f32 %v701
      %v1726 = vcvt.s32.f32 %v702
      %v1727 = vcvt.s32.f32 %v703
      %v1728 = vcvt.s32.f32 %v704
      %v1729 = vcvt.s32.f32 %v705
      %v1730 = vcvt.s32.f32 %v706
      %v1731 = vcvt.s32.f32 %v707
      %v1732 = vcvt.s32.f32 %v708
      %v1733 = vcvt.s32.f32 %v709
      %v1734 = vcvt.s32.f32 %v710
      %v1735 = vcvt.s32.f32 %v711
      %v1736 = vcvt.s32.f32 %v712
      %v1737 = vcvt.s32.f32 %v713
      %v1738 = vcvt.s32.f32 %v714
      %v1739 = vcvt.s32.f32 %v715
      %v1740 = vcvt.s32.f32 %v716
      %v1741 = vcvt.s32.f32 %v717
      %v1742 = vcvt.s32.f32 %v718
      %v1743 = vcvt.s32.f32 %v719
      %v1744 = vcvt.s32.f32 %v720
      %v1745 = vcvt.s32.f32 %v721
      %v1746 = vcvt.s32.f32 %v722
      %v1747 = vcvt.s32.f32 %v723
      %v1748 = vcvt.s32.f32 %v724
      %v1749 = vcvt.s32.f32 %v725
      %v1750 = vcvt.s32.f32 %v726
      %v1751 = vcvt.s32.f32 %v727
      %v1752 = vcvt.s32.f32 %v728
      %v1753 = vcvt.s32.f32 %v729
      %v1754 = vcvt.s32.f32 %v730
      %v1755 = vcvt.s32.f32 %v731
      %v1756 = vcvt.s32.f32 %v732
      %v1757 = vcvt.s32.f32 %v733
      %v1758 = vcvt.s32.f32 %v734
      %v1759 = vcvt.s32.f32 %v735
      %v1760 = vcvt.s32.f32 %v736
      %v1761 = vcvt.s32.f32 %v737
      %v1762 = vcvt.s32.f32 %v738
      %v1763 = vcvt.s32.f32 %v739
      %v1764 = vcvt.s32.f32 %v740
      %v1765 = vcvt.s32.f32 %v741
      %v1766 = vcvt.s32.f32 %v742
      %v1767 = vcvt.s32.f32 %v743
      %v1768 = vcvt.s32.f32 %v744
      %v1769 = vcvt.s32.f32 %v745
      %v1770 = vcvt.s32.f32 %v746
      %v1771 = vcvt.s32.f32 %v747
      %v1772 = vcvt.s32.f32 %v748
      %v1773 = vcvt.s32.f32 %v749
      %v1774 = vcvt.s32.f32 %v750
      %v1775 = vcvt.s32.f32 %v751
      %v1776 = vcvt.s32.f32 %v752
      %v1777 = vcvt.s32.f32 %v753
      %v1778 = vcvt.s32.f32 %v754
      %v1779 = vcvt.s32.f32 %v755
      %v1780 = vcvt.s32.f32 %v756
      %v1781 = vcvt.s32.f32 %v757
      %v1782 = vcvt.s32.f32 %v758
      %v1783 = vcvt.s32.f32 %v759
      %v1784 = vcvt.s32.f32 %v760
      %v1785 = vcvt.s32.f32 %v761
      %v1786 = vcvt.s32.f32 %v762
      %v1787 = vcvt.s32.f32 %v763
      %v1788 = vcvt.s32.f32 %v764
      %v1789 = vcvt.s32.f32 %v765
      %v1790 = vcvt.s32.f32 %v766
      %v1791 = vcvt.s32.f32 %v767
      %v1792 = vcvt.s32.f32 %v768
      %v1793 = vcvt.s32.f32 %v769
      %v1794 = vcvt.s32.f32 %v770
      %v1795 = vcvt.s32.f32 %v771
      %v1796 = vcvt.s32.f32 %v772
      %v1797 = vcvt.s32.f32 %v773
      %v1798 = vcvt.s32.f32 %v774
      %v1799 = vcvt.s32.f32 %v775
      %v1800 = vcvt.s32.f32 %v776
      %v1801 = vcvt.s32.f32 %v777
      %v1802 = vcvt.s32.f32 %v778
      %v1803 = vcvt.s32.f32 %v779
      %v1804 = vcvt.s32.f32 %v780
      %v1805 = vcvt.s32.f32 %v781
      %v1806 = vcvt.s32.f32 %v782
      %v1807 = vcvt.s32.f32 %v783
      %v1808 = vcvt.s32.f32 %v784
      %v1809 = vcvt.s32.f32 %v785
      %v1810 = vcvt.s32.f32 %v786
      %v1811 = vcvt.s32.f32 %v787
      %v1812 = vcvt.s32.f32 %v788
      %v1813 = vcvt.s32.f32 %v789
      %v1814 = vcvt.s32.f32 %v790
      %v1815 = vcvt.s32.f32 %v791
      %v1816 = vcvt.s32.f32 %v792
      %v1817 = vcvt.s32.f32 %v793
      %v1818 = vcvt.s32.f32 %v794
      %v1819 = vcvt.s32.f32 %v795
      %v1820 = vcvt.s32.f32 %v796
      %v1821 = vcvt.s32.f32 %v797
      %v1822 = vcvt.s32.f32 %v798
      %v1823 = vcvt.s32.f32 %v799
      %v1824 = vcvt.s32.f32 %v800
      %v1825 = vcvt.s32.f32 %v801
      %v1826 = vcvt.s32.f32 %v802
      %v1827 = vcvt.s32.f32 %v803
      %v1828 = vcvt.s32.f32 %v804
      %v1829 = vcvt.s32.f32 %v805
      %v1830 = vcvt.s32.f32 %v806
      %v1831 = vcvt.s32.f32 %v807
      %v1832 = vcvt.s32.f32 %v808
      %v1833 = vcvt.s32.f32 %v809
      %v1834 = vcvt.s32.f32 %v810
      %v1835 = vcvt.s32.f32 %v811
      %v1836 = vcvt.s32.f32 %v812
      %v1837 = vcvt.s32.f32 %v813
      %v1838 = vcvt.s32.f32 %v814
      %v1839 = vcvt.s32.f32 %v815
      %v1840 = vcvt.s32.f32 %v816
      %v1841 = vcvt.s32.f32 %v817
      %v1842 = vcvt.s32.f32 %v818
      %v1843 = vcvt.s32.f32 %v819
      %v1844 = vcvt.s32.f32 %v820
      %v1845 = vcvt.s32.f32 %v821
      %v1846 = vcvt.s32.f32 %v822
      %v1847 = vcvt.s32.f32 %v823
      %v1848 = vcvt.s32.f32 %v824
      %v1849 = vcvt.s32.f32 %v825
      %v1850 = vcvt.s32.f32 %v826
      %v1851 = vcvt.s32.f32 %v827
      %v1852 = vcvt.s32.f32 %v828
      %v1853 = vcvt.s32.f32 %v829
      %v1854 = vcvt.s32.f32 %v830
      %v1855 = vcvt.s32.f32 %v831
      %v1856 = vcvt.s32.f32 %v832
      %v1857 = vcvt.s32.f32 %v833
      %v1858 = vcvt.s32.f32 %v834
      %v1859 = vcvt.s32.f32 %v835
      %v1860 = vcvt.s32.f32 %v836
      %v1861 = vcvt.s32.f32 %v837
      %v1862 = vcvt.s32.f32 %v838
      %v1863 = vcvt.s32.f32 %v839
      %v1864 = vcvt.s32.f32 %v840
      %v1865 = vcvt.s32.f32 %v841
      %v1866 = vcvt.s32.f32 %v842
      %v1867 = vcvt.s32.f32 %v843
      %v1868 = vcvt.s32.f32 %v844
      %v1869 = vcvt.s32.f32 %v845
      %v1870 = vcvt.s32.f32 %v846
      %v1871 = vcvt.s32.f32 %v847
      %v1872 = vcvt.s32.f32 %v848
      %v1873 = vcvt.s32.f32 %v849
      %v1874 = vcvt.s32.f32 %v850
      %v1875 = vcvt.s32.f32 %v851
      %v1876 = vcvt.s32.f32 %v852
      %v1877 = vcvt.s32.f32 %v853
      %v1878 = vcvt.s32.f32 %v854
      %v1879 = vcvt.s32.f32 %v855
      %v1880 = vcvt.s32.f32 %v856
      %v1881 = vcvt.s32.f32 %v857
      %v1882 = vcvt.s32.f32 %v858
      %v1883 = vcvt.s32.f32 %v859
      %v1884 = vcvt.s32.f32 %v860
      %v1885 = vcvt.s32.f32 %v861
      %v1886 = vcvt.s32.f32 %v862
      %v1887 = vcvt.s32.f32 %v863
      %v1888 = vcvt.s32.f32 %v864
      %v1889 = vcvt.s32.f32 %v865
      %v1890 = vcvt.s32.f32 %v866
      %v1891 = vcvt.s32.f32 %v867
      %v1892 = vcvt.s32.f32 %v868
      %v1893 = vcvt.s32.f32 %v869
      %v1894 = vcvt.s32.f32 %v870
      %v1895 = vcvt.s32.f32 %v871
      %v1896 = vcvt.s32.f32 %v872
      %v1897 = vcvt.s32.f32 %v873
      %v1898 = vcvt.s32.f32 %v874
      %v1899 = vcvt.s32.f32 %v875
      %v1900 = vcvt.s32.f32 %v876
      %v1901 = vcvt.s32.f32 %v877
      %v1902 = vcvt.s32.f32 %v878
      %v1903 = vcvt.s32.f32 %v879
      %v1904 = vcvt.s32.f32 %v880
      %v1905 = vcvt.s32.f32 %v881
      %v1906 = vcvt.s32.f32 %v882
      %v1907 = vcvt.s32.f32 %v883
      %v1908 = vcvt.s32.f32 %v884
      %v1909 = vcvt.s32.f32 %v885
      %v1910 = vcvt.s32.f32 %v886
      %v1911 = vcvt.s32.f32 %v887
      %v1912 = vcvt.s32.f32 %v888
      %v1913 = vcvt.s32.f32 %v889
      %v1914 = vcvt.s32.f32 %v890
      %v1915 = vcvt.s32.f32 %v891
      %v1916 = vcvt.s32.f32 %v892
      %v1917 = vcvt.s32.f32 %v893
      %v1918 = vcvt.s32.f32 %v894
      %v1919 = vcvt.s32.f32 %v895
      %v1920 = vcvt.s32.f32 %v896
      %v1921 = vcvt.s32.f32 %v897
      %v1922 = vcvt.s32.f32 %v898
      %v1923 = vcvt.s32.f32 %v899
      %v1924 = vcvt.s32.f32 %v900
      %v1925 = vcvt.s32.f32 %v901
      %v1926 = vcvt.s32.f32 %v902
      %v1927 = vcvt.s32.f32 %v903
      %v1928 = vcvt.s32.f32 %v904
      %v1929 = vcvt.s32.f32 %v905
      %v1930 = vcvt.s32.f32 %v906
      %v1931 = vcvt.s32.f32 %v907
      %v1932 = vcvt.s32.f32 %v908
      %v1933 = vcvt.s32.f32 %v909
      %v1934 = vcvt.s32.f32 %v910
      %v1935 = vcvt.s32.f32 %v911
      %v1936 = vcvt.s32.f32 %v912
      %v1937 = vcvt.s32.f32 %v913
      %v1938 = vcvt.s32.f32 %v914
      %v1939 = vcvt.s32.f32 %v915
      %v1940 = vcvt.s32.f32 %v916
      %v1941 = vcvt.s32.f32 %v917
      %v1942 = vcvt.s32.f32 %v918
      %v1943 = vcvt.s32.f32 %v919
      %v1944 = vcvt.s32.f32 %v920
      %v1945 = vcvt.s32.f32 %v921
      %v1946 = vcvt.s32.f32 %v922
      %v1947 = vcvt.s32.f32 %v923
      %v1948 = vcvt.s32.f32 %v924
      %v1949 = vcvt.s32.f32 %v925
      %v1950 = vcvt.s32.f32 %v926
      %v1951 = vcvt.s32.f32 %v927
      %v1952 = vcvt.s32.f32 %v928
      %v1953 = vcvt.s32.f32 %v929
      %v1954 = vcvt.s32.f32 %v930
      %v1955 = vcvt.s32.f32 %v931
      %v1956 = vcvt.s32.f32 %v932
      %v1957 = vcvt.s32.f32 %v933
      %v1958 = vcvt.s32.f32 %v934
      %v1959 = vcvt.s32.f32 %v935
      %v1960 = vcvt.s32.f32 %v936
      %v1961 = vcvt.s32.f32 %v937
      %v1962 = vcvt.s32.f32 %v938
      %v1963 = vcvt.s32.f32 %v939
      %v1964 = vcvt.s32.f32 %v940
      %v1965 = vcvt.s32.f32 %v941
      %v1966 = vcvt.s32.f32 %v942
      %v1967 = vcvt.s32.f32 %v943
      %v1968 = vcvt.s32.f32 %v944
      %v1969 = vcvt.s32.f32 %v945
      %v1970 = vcvt.s32.f32 %v946
      %v1971 = vcvt.s32.f32 %v947
      %v1972 = vcvt.s32.f32 %v948
      %v1973 = vcvt.s32.f32 %v949
      %v1974 = vcvt.s32.f32 %v950
      %v1975 = vcvt.s32.f32 %v951
      %v1976 = vcvt.s32.f32 %v952
      %v1977 = vcvt.s32.f32 %v953
      %v1978 = vcvt.s32.f32 %v954
      %v1979 = vcvt.s32.f32 %v955
      %v1980 = vcvt.s32.f32 %v956
      %v1981 = vcvt.s32.f32 %v957
      %v1982 = vcvt.s32.f32 %v958
      %v1983 = vcvt.s32.f32 %v959
      %v1984 = vcvt.s32.f32 %v960
      %v1985 = vcvt.s32.f32 %v961
      %v1986 = vcvt.s32.f32 %v962
      %v1987 = vcvt.s32.f32 %v963
      %v1988 = vcvt.s32.f32 %v964
      %v1989 = vcvt.s32.f32 %v965
      %v1990 = vcvt.s32.f32 %v966
      %v1991 = vcvt.s32.f32 %v967
      %v1992 = vcvt.s32.f32 %v968
      %v1993 = vcvt.s32.f32 %v969
      %v1994 = vcvt.s32.f32 %v970
      %v1995 = vcvt.s32.f32 %v971
      %v1996 = vcvt.s32.f32 %v972
      %v1997 = vcvt.s32.f32 %v973
      %v1998 = vcvt.s32.f32 %v974
      %v1999 = vcvt.s32.f32 %v975
      %v2000 = vcvt.s32.f32 %v976
      %v2001 = vcvt.s32.f32 %v977
      %v2002 = vcvt.s32.f32 %v978
      %v2003 = vcvt.s32.f32 %v979
      %v2004 = vcvt.s32.f32 %v980
      %v2005 = vcvt.s32.f32 %v981
      %v2006 = vcvt.s32.f32 %v982
      %v2007 = vcvt.s32.f32 %v983
      %v2008 = vcvt.s32.f32 %v984
      %v2009 = vcvt.s32.f32 %v985
      %v2010 = vcvt.s32.f32 %v986
      %v2011 = vcvt.s32.f32 %v987
      %v2012 = vcvt.s32.f32 %v988
      %v2013 = vcvt.s32.f32 %v989
      %v2014 = vcvt.s32.f32 %v990
      %v2015 = vcvt.s32.f32 %v991
      %v2016 = vcvt.s32.f32 %v992
      %v2017 = vcvt.s32.f32 %v993
      %v2018 = vcvt.s32.f32 %v994
      %v2019 = vcvt.s32.f32 %v995
      %v2020 = vcvt.s32.f32 %v996
      %v2021 = vcvt.s32.f32 %v997
      %v2022 = vcvt.s32.f32 %v998
      %v2023 = vcvt.s32.f32 %v999
      %v2024 = vcvt.s32.f32 %v1000
      %v2025 = vcvt.s32.f32 %v1001
      %v2026 = vcvt.s32.f32 %v1002
      %v2027 = vcvt.s32.f32 %v1003
      %v2028 = vcvt.s32.f32 %v1004
      %v2029 = vcvt.s32.f32 %v1005
      %v2030 = vcvt.s32.f32 %v1006
      %v2031 = vcvt.s32.f32 %v1007
      %v2032 = vcvt.s32.f32 %v1008
      %v2033 = vcvt.s32.f32 %v1009
      %v2034 = vcvt.s32.f32 %v1010
      %v2035 = vcvt.s32.f32 %v1011
      %v2036 = vcvt.s32.f32 %v1012
      %v2037 = vcvt.s32.f32 %v1013
      %v2038 = vcvt.s32.f32 %v1014
      %v2039 = vcvt.s32.f32 %v1015
      %v2040 = vcvt.s32.f32 %v1016
      %v2041 = vcvt.s32.f32 %v1017
      %v2042 = vcvt.s32.f32 %v1018
      %v2043 = vcvt.s32.f32 %v1019
      %v2044 = vcvt.s32.f32 %v1020
      %v2045 = vcvt.s32.f32 %v1021
      %v2046 = vcvt.s32.f32 %v1022
      %v2047 = vcvt.s32.f32 %v1023
      %v2048 = vcvt.s32.f32 %v1024
      %v2049 = vcvt.s32.f32 %v1025
      %v2050 = vcvt.s32.f32 %v1026
      %v2051 = vcvt.s32.f32 %v1027
      %v2052 = vcvt.s32.f32 %v1028
      %v2053 = vcvt.s32.f32 %v1029
      %v2054 = vcvt.s32.f32 %v1030
      %v2055 = vcvt.s32.f32 %v1031
      %v2056 = vcvt.s32.f32 %v1032
      %v2057 = vcvt.s32.f32 %v1033
      %v2058 = vcvt.s32.f32 %v1034
      %v2059 = vcvt.s32.f32 %v1035
      %v2060 = vcvt.s32.f32 %v1036
      %v2061 = vcvt.s32.f32 %v1037
      %v2062 = vcvt.s32.f32 %v1038
      %v2063 = vcvt.s32.f32 %v1039
      %v2064 = vcvt.s32.f32 %v1040
      %v2065 = vcvt.s32.f32 %v1041
      %v2066 = vcvt.s32.f32 %v1042
      %v2067 = vcvt.s32.f32 %v1043
      %v2068 = vcvt.s32.f32 %v1044
      %v2069 = vcvt.s32.f32 %v1045
      %v2070 = vcvt.s32.f32 %v1046
      %v2071 = vcvt.s32.f32 %v1047
      %v2072 = vcvt.s32.f32 %v1048
      %v2073 = vcvt.s32.f32 %v1049
      %v2074 = vcvt.s32.f32 %v1050
      %v2075 = vcvt.s32.f32 %v1051
      %v2076 = vcvt.s32.f32 %v1052
      %v2077 = vcvt.s32.f32 %v1053
      %v2078 = vcvt.s32.f32 %v1054
      %v2079 = vcvt.s32.f32 %v1055
      %v2080 = vcvt.s32.f32 %v1056
      %v2081 = vcvt.s32.f32 %v1057
      %v2082 = vcvt.s32.f32 %v1058
      %v2083 = vcvt.s32.f32 %v1059
      %v2084 = vcvt.s32.f32 %v1060
      %v2085 = vcvt.s32.f32 %v1061
      %v2086 = vcvt.s32.f32 %v1062
      %v2087 = vcvt.s32.f32 %v1063
      %v2088 = vcvt.s32.f32 %v1064
      %v2089 = vcvt.s32.f32 %v1065
      %v2090 = vcvt.s32.f32 %v1066
      %v2091 = vcvt.s32.f32 %v1067
      %v2092 = vcvt.s32.f32 %v1068
      %v2093 = vcvt.s32.f32 %v1069
      %v2094 = vcvt.s32.f32 %v1070
      %v2095 = vcvt.s32.f32 %v1071
      %v2096 = vcvt.s32.f32 %v1072
      %v2097 = vcvt.s32.f32 %v1073
      %v2098 = vcvt.s32.f32 %v1074
      %v2099 = vcvt.s32.f32 %v1075
      %v2100 = vcvt.s32.f32 %v1076
      %v2101 = vcvt.s32.f32 %v1077
      %v2102 = vcvt.s32.f32 %v1078
      %v2103 = vcvt.s32.f32 %v1079
      %v2104 = vcvt.s32.f32 %v1080
      %v2105 = vcvt.s32.f32 %v1081
      %v2106 = vcvt.s32.f32 %v1082
      %v2107 = vcvt.s32.f32 %v1083
      %v2108 = vcvt.s32.f32 %v1084
      %v2109 = vcvt.s32.f32 %v1085
      %v2110 = vcvt.s32.f32 %v1086
      %v2111 = vcvt.s32.f32 %v1087
      %v2112 = vcvt.s32.f32 %v1088
      %v2113 = vcvt.s32.f32 %v1089
      %v2114 = vcvt.s32.f32 %v1090
      %v2115 = vcvt.s32.f32 %v1091
      %v2116 = vcvt.s32.f32 %v1092
      %v2117 = vcvt.s32.f32 %v1093
      %v2118 = vcvt.s32.f32 %v1094
      %v2119 = vcvt.s32.f32 %v1095
      %v2120 = vcvt.s32.f32 %v1096
      %v2121 = vcvt.s32.f32 %v1097
      %v2122 = vcvt.s32.f32 %v1098
      %v2123 = vcvt.s32.f32 %v1099
      %v2124 = vcvt.s32.f32 %v1100
      %v2125 = vcvt.s32.f32 %v1101
      %v2126 = vcvt.s32.f32 %v1102
      %v2127 = vcvt.s32.f32 %v1103
      %v2128 = vcvt.s32.f32 %v1104
      %v2129 = vcvt.s32.f32 %v1105
      %v2130 = vcvt.s32.f32 %v1106
      %v2131 = vcvt.s32.f32 %v1107
      %v2132 = vcvt.s32.f32 %v1108
      %v2133 = vcvt.s32.f32 %v1109
      %v2134 = vcvt.s32.f32 %v1110
      %v2135 = vcvt.s32.f32 %v1111
      %v2136 = vcvt.s32.f32 %v1112
      %v2137 = vcvt.s32.f32 %v1113
      %v2138 = vcvt.s32.f32 %v1114
      %v2139 = vcvt.s32.f32 %v1115
      %v2140 = vcvt.s32.f32 %v1116
      %v2141 = vcvt.s32.f32 %v1117
      %v2142 = vcvt.s32.f32 %v1118
      %v2143 = vcvt.s32.f32 %v1119
      %v2144 = vcvt.s32.f32 %v1120
      %v2145 = vcvt.s32.f32 %v1121
      %v2146 = vcvt.s32.f32 %v1122
      %v2147 = vcvt.s32.f32 %v1123
      %v2148 = vcvt.s32.f32 %v1124
      %v2149 = vcvt.s32.f32 %v1125
      %v2150 = vcvt.s32.f32 %v1126
      %v2151 = vcvt.s32.f32 %v1127
      %v2152 = vcvt.s32.f32 %v1128
      %v2153 = vcvt.s32.f32 %v1129
      %v2154 = vcvt.s32.f32 %v1130
      %v2155 = vcvt.s32.f32 %v1131
      %v2156 = vcvt.s32.f32 %v1132
      %v2157 = vcvt.s32.f32 %v1133
      %v2158 = vcvt.s32.f32 %v1134
      %v2159 = vcvt.s32.f32 %v1135
      %v2160 = vcvt.s32.f32 %v1136
      %v2161 = vcvt.s32.f32 %v1137
      %v2162 = vcvt.s32.f32 %v1138
      %v2163 = vcvt.s32.f32 %v1139
      %v2164 = vcvt.s32.f32 %v1140
      %v2165 = vcvt.s32.f32 %v1141
      %v2166 = vcvt.s32.f32 %v1142
      %v2167 = vcvt.s32.f32 %v1143
      %v2168 = vcvt.s32.f32 %v1144
      %v2169 = vcvt.s32.f32 %v1145
      %v2170 = vcvt.s32.f32 %v1146
      %v2171 = vcvt.s32.f32 %v1147
      %v2172 = vcvt.s32.f32 %v1148
      %v2173 = vcvt.s32.f32 %v1149
      %v2174 = vcvt.s32.f32 %v1150
      %v2175 = vcvt.s32.f32 %v1151
      %v2176 = vcvt.s32.f32 %v1152
      %v2177 = vcvt.s32.f32 %v1153
      %v2178 = vcvt.s32.f32 %v1154
      %v2179 = vcvt.s32.f32 %v1155
      %v2180 = vcvt.s32.f32 %v1156
      %v2181 = vcvt.s32.f32 %v1157
      %v2182 = vcvt.s32.f32 %v1158
      %v2183 = vcvt.s32.f32 %v1159
      %v2184 = vcvt.s32.f32 %v1160
      %v2185 = vcvt.s32.f32 %v1161
      %v2186 = vcvt.s32.f32 %v1162
      %v2187 = vcvt.s32.f32 %v1163
      %v2188 = vcvt.s32.f32 %v1164
      %v2189 = vcvt.s32.f32 %v1165
      %v2190 = vcvt.s32.f32 %v1166
      %v2191 = vcvt.s32.f32 %v1167
      %v2192 = vcvt.s32.f32 %v1168
      %v2193 = vcvt.s32.f32 %v1169
      %v2194 = vcvt.s32.f32 %v1170
      %v2195 = vcvt.s32.f32 %v1171
      %v2196 = vcvt.s32.f32 %v1172
      %v2197 = vcvt.s32.f32 %v1173
      %v2198 = vcvt.s32.f32 %v1174
      %v2199 = vcvt.s32.f32 %v1175
      %v2200 = vcvt.s32.f32 %v1176
      %v2201 = vcvt.s32.f32 %v1177
      %v2202 = vcvt.s32.f32 %v1178
      %v2203 = vcvt.s32.f32 %v1179
      %v2204 = vcvt.s32.f32 %v1180
      %v2205 = vcvt.s32.f32 %v1181
      %v2206 = vcvt.s32.f32 %v1182
      %v2207 = vcvt.s32.f32 %v1183
      %v2208 = vcvt.s32.f32 %v1184
      %v2209 = vcvt.s32.f32 %v1185
      %v2210 = vcvt.s32.f32 %v1186
      %v2211 = vcvt.s32.f32 %v1187
      %v2212 = vcvt.s32.f32 %v1188
      %v2213 = vcvt.s32.f32 %v1189
      %v2214 = vcvt.s32.f32 %v1190
      %v2215 = vcvt.s32.f32 %v1191
      %v2216 = vcvt.s32.f32 %v1192
      %v2217 = vcvt.s32.f32 %v1193
      %v2218 = vcvt.s32.f32 %v1194
      %v2219 = vcvt.s32.f32 %v1195
      %v2220 = vcvt.s32.f32 %v1196
      %v2221 = vcvt.s32.f32 %v1197
      %v2222 = vcvt.s32.f32 %v1198
      %v2223 = vcvt.s32.f32 %v1199
      %v2224 = vcvt.s32.f32 %v1200
      %v2225 = vcvt.s32.f32 %v1201
      %v2226 = vcvt.s32.f32 %v1202
      %v2227 = vcvt.s32.f32 %v1203
      %v2228 = vcvt.s32.f32 %v1204
      %v2229 = vcvt.s32.f32 %v1205
      %v2230 = vcvt.s32.f32 %v1206
      %v2231 = vcvt.s32.f32 %v1207
      %v2232 = vcvt.s32.f32 %v1208
      %v2233 = vcvt.s32.f32 %v1209
      %v2234 = vcvt.s32.f32 %v1210
      %v2235 = vcvt.s32.f32 %v1211
      %v2236 = vcvt.s32.f32 %v1212
      %v2237 = vcvt.s32.f32 %v1213
      %v2238 = vcvt.s32.f32 %v1214
      %v2239 = vcvt.s32.f32 %v1215
      %v2240 = vcvt.s32.f32 %v1216
      %v2241 = vcvt.s32.f32 %v1217
      %v2242 = vcvt.s32.f32 %v1218
      %v2243 = vcvt.s32.f32 %v1219
      %v2244 = vcvt.s32.f32 %v1220
      %v2245 = vcvt.s32.f32 %v1221
      %v2246 = vcvt.s32.f32 %v1222
      %v2247 = vcvt.s32.f32 %v1223
      %v2248 = vcvt.s32.f32 %v1224
      %v2249 = vcvt.s32.f32 %v1225
      %v2250 = vcvt.s32.f32 %v1226
      %v2251 = vcvt.s32.f32 %v1227
      %v2252 = vcvt.s32.f32 %v1228
      %v2253 = vcvt.s32.f32 %v1229
      %v2254 = vcvt.s32.f32 %v1230
      %v2255 = vcvt.s32.f32 %v1231
      %v2256 = vcvt.s32.f32 %v1232
      %v2257 = vcvt.s32.f32 %v1233
      %v2258 = vcvt.s32.f32 %v1234
      %v2259 = vcvt.s32.f32 %v1235
      %v2260 = vcvt.s32.f32 %v1236
      %v2261 = vcvt.s32.f32 %v1237
      %v2262 = vcvt.s32.f32 %v1238
      %v2263 = vcvt.s32.f32 %v1239
      %v2264 = vcvt.s32.f32 %v1240
      %v2265 = vcvt.s32.f32 %v1241
      %v2266 = vcvt.s32.f32 %v1242
      %v2267 = vcvt.s32.f32 %v1243
      %v2268 = vcvt.s32.f32 %v1244
      %v2269 = vcvt.s32.f32 %v1245
      %v2270 = vcvt.s32.f32 %v1246
      %v2271 = vcvt.s32.f32 %v1247
      %v2272 = vcvt.s32.f32 %v1248
      %v2273 = vcvt.s32.f32 %v1249
      %v2274 = vcvt.s32.f32 %v1250
      %v2275 = vcvt.s32.f32 %v1251
      %v2276 = vcvt.s32.f32 %v1252
      %v2277 = vcvt.s32.f32 %v1253
      %v2278 = vcvt.s32.f32 %v1254
      %v2279 = vcvt.s32.f32 %v1255
      %v2280 = vcvt.s32.f32 %v1256
      %v2281 = vcvt.s32.f32 %v1257
      %v2282 = vcvt.s32.f32 %v1258
      %v2283 = vcvt.s32.f32 %v1259
      %v2284 = vcvt.s32.f32 %v1260
      %v2285 = vcvt.s32.f32 %v1261
      %v2286 = vcvt.s32.f32 %v1262
      %v2287 = vcvt.s32.f32 %v1263
      %v2288 = vcvt.s32.f32 %v1264
      %v2289 = vcvt.s32.f32 %v1265
      %v2290 = vcvt.s32.f32 %v1266
      %v2291 = vcvt.s32.f32 %v1267
      %v2292 = vcvt.s32.f32 %v1268
      %v2293 = vcvt.s32.f32 %v1269
      %v2294 = vcvt.s32.f32 %v1270
      %v2295 = vcvt.s32.f32 %v1271
      %v2296 = vcvt.s32.f32 %v1272
      %v2297 = vcvt.s32.f32 %v1273
      %v2298 = vcvt.s32.f32 %v1274
      %v2299 = vcvt.s32.f32 %v1275
      %v2300 = vcvt.s32.f32 %v1276
      %v2301 = vcvt.s32.f32 %v1277
      %v2302 = vcvt.s32.f32 %v1278
      %v2303 = vcvt.s32.f32 %v1279
      %v2304 = vcvt.s32.f32 %v1280
      %v2305 = vcvt.s32.f32 %v1281
      %v2306 = vcvt.s32.f32 %v1282
      %v2307 = vcvt.s32.f32 %v1283
      %v2308 = vcvt.s32.f32 %v1284
      %v2309 = vcvt.s32.f32 %v1285
      %v2310 = vcvt.s32.f32 %v1286
      %v2311 = vcvt.s32.f32 %v1287
      %v2312 = vcvt.s32.f32 %v1288
      %v2313 = vcvt.s32.f32 %v1289
      %v2314 = vcvt.s32.f32 %v1290
      %v2315 = vcvt.s32.f32 %v1291
      %v2316 = vcvt.s32.f32 %v1292
      %v2317 = vcvt.s32.f32 %v1293
      %v2318 = vcvt.s32.f32 %v1294
      %v2319 = vcvt.s32.f32 %v1295
      %v2320 = vcvt.s32.f32 %v1296
      %v2321 = vcvt.s32.f32 %v1297
      %v2322 = vcvt.s32.f32 %v1298
      %v2323 = vcvt.s32.f32 %v1299
      %v2324 = vcvt.s32.f32 %v1300
      %v2325 = vcvt.s32.f32 %v1301
      %v2326 = vcvt.s32.f32 %v1302
      %v2327 = vcvt.s32.f32 %v1303
      %v2328 = vcvt.s32.f32 %v1304
      %v2329 = vcvt.s32.f32 %v1305
      %v2330 = vcvt.s32.f32 %v1306
      %v2331 = vcvt.s32.f32 %v1307
      %v2332 = vcvt.s32.f32 %v1308
      %v2333 = vcvt.s32.f32 %v1309
      %v2334 = vcvt.s32.f32 %v1310
      %v2335 = vcvt.s32.f32 %v1311
      %v2336 = vcvt.s32.f32 %v1312
      %v2337 = vcvt.s32.f32 %v1313
      %v2338 = vcvt.s32.f32 %v1314
      %v2339 = vcvt.s32.f32 %v1315
      %v2340 = vcvt.s32.f32 %v1316
      %v2341 = vcvt.s32.f32 %v1317
      %v2342 = vcvt.s32.f32 %v1318
      %v2343 = vcvt.s32.f32 %v1319
      %v2344 = vcvt.s32.f32 %v1320
      %v2345 = vcvt.s32.f32 %v1321
      %v2346 = vcvt.s32.f32 %v1322
      %v2347 = vcvt.s32.f32 %v1323
      %v2348 = vcvt.s32.f32 %v1324
      %v2349 = vcvt.s32.f32 %v1325
      %v2350 = vcvt.s32.f32 %v1326
      %v2351 = vcvt.s32.f32 %v1327
      %v2352 = vcvt.s32.f32 %v1328
      %v2353 = vcvt.s32.f32 %v1329
      %v2354 = vcvt.s32.f32 %v1330
      %v2355 = vcvt.s32.f32 %v1331
      %v2356 = vcvt.s32.f32 %v1332
      %v2357 = vcvt.s32.f32 %v1333
      %v2358 = vcvt.s32.f32 %v1334
      %v2359 = vcvt.s32.f32 %v1335
      %v2360 = vcvt.s32.f32 %v1336
      %v2361 = vcvt.s32.f32 %v1337
      %v2362 = vcvt.s32.f32 %v1338
      %v2363 = vcvt.s32.f32 %v1339
      %v2364 = vcvt.s32.f32 %v1340
      %v2365 = vcvt.s32.f32 %v1341
      %v2366 = vcvt.s32.f32 %v1342
      %v2367 = vcvt.s32.f32 %v1343
      %v2368 = vcvt.s32.f32 %v1344
      %v2369 = vcvt.s32.f32 %v1345
      %v2370 = vcvt.s32.f32 %v1346
      %v2371 = vcvt.s32.f32 %v1347
      %v2372 = vcvt.s32.f32 %v1348
      %v2373 = vcvt.s32.f32 %v1349
      %v2374 = vcvt.s32.f32 %v1350
      %v2375 = vcvt.s32.f32 %v1351
      %v2376 = vcvt.s32.f32 %v1352
      %v2377 = vcvt.s32.f32 %v1353
      %v2378 = vcvt.s32.f32 %v1354
      %v2379 = vcvt.s32.f32 %v1355
      %v2380 = vcvt.s32.f32 %v1356
      %v2381 = vcvt.s32.f32 %v1357
      %v2382 = vcvt.s32.f32 %v1358
      %v2383 = vcvt.s32.f32 %v1359
      %v2384 = vcvt.s32.f32 %v1360
      %v2385 = vcvt.s32.f32 %v1361
      %v2386 = vcvt.s32.f32 %v1362
      %v2387 = vcvt.s32.f32 %v1363
      %v2388 = vcvt.s32.f32 %v1364
      %v2389 = vcvt.s32.f32 %v1365
      %v2390 = vcvt.s32.f32 %v1366
      %v2391 = vcvt.s32.f32 %v1367
      %v2392 = vcvt.s32.f32 %v1368
      %v2393 = vcvt.s32.f32 %v1369
      %v2394 = vcvt.s32.f32 %v1370
      %v2395 = vcvt.s32.f32 %v1371
      %v2396 = vcvt.s32.f32 %v1372
      %v2397 = vcvt.s32.f32 %v1373
      %v2398 = vcvt.s32.f32 %v1374
      %v2399 = vcvt.s32.f32 %v1375
      %v2400 = vcvt.s32.f32 %v1376
      %v2401 = vcvt.s32.f32 %v1377
      %v2402 = vcvt.s32.f32 %v1378
      %v2403 = vcvt.s32.f32 %v1379
      %v2404 = vcvt.s32.f32 %v1380
      %v2405 = vcvt.s32.f32 %v1381
      %v2406 = vcvt.s32.f32 %v1382
      %v2407 = vcvt.s32.f32 %v1383
      %v2408 = vcvt.s32.f32 %v1384
      %v2409 = vcvt.s32.f32 %v1385
      %v2410 = vcvt.s32.f32 %v1386
      %v2411 = vcvt.s32.f32 %v1387
      %v2412 = vcvt.s32.f32 %v1388
      %v2413 = vcvt.s32.f32 %v1389
      %v2414 = vcvt.s32.f32 %v1390
      %v2415 = vcvt.s32.f32 %v1391
      %v2416 = vcvt.s32.f32 %v1392
      %v2417 = vcvt.s32.f32 %v1393
      %v2418 = vcvt.s32.f32 %v1394
      %v2419 = vcvt.s32.f32 %v1395
      %v2420 = vcvt.s32.f32 %v1396
      %v2421 = vcvt.s32.f32 %v1397
      %v2422 = vcvt.s32.f32 %v1398
      %v2423 = vcvt.s32.f32 %v1399
      %v2424 = vcvt.s32.f32 %v1400
      %v2425 = vcvt.s32.f32 %v1401
      %v2426 = vcvt.s32.f32 %v1402
      %v2427 = vcvt.s32.f32 %v1403
      %v2428 = vcvt.s32.f32 %v1404
      %v2429 = vcvt.s32.f32 %v1405
      %v2430 = vcvt.s32.f32 %v1406
      %v2431 = vcvt.s32.f32 %v1407
      %v2432 = vcvt.s32.f32 %v1408
      %v2433 = vcvt.s32.f32 %v1409
      %v2434 = vcvt.s32.f32 %v1410
      %v2435 = vcvt.s32.f32 %v1411
      %v2436 = vcvt.s32.f32 %v1412
      %v2437 = vcvt.s32.f32 %v1413
      %v2438 = vcvt.s32.f32 %v1414
      %v2439 = vcvt.s32.f32 %v1415
      %v2440 = vcvt.s32.f32 %v1416
      %v2441 = vcvt.s32.f32 %v1417
      %v2442 = vcvt.s32.f32 %v1418
      %v2443 = vcvt.s32.f32 %v1419
      %v2444 = vcvt.s32.f32 %v1420
      %v2445 = vcvt.s32.f32 %v1421
      %v2446 = vcvt.s32.f32 %v1422
      %v2447 = vcvt.s32.f32 %v1423
      %v2448 = vcvt.s32.f32 %v1424
      %v2449 = vcvt.s32.f32 %v1425
      %v2450 = vcvt.s32.f32 %v1426
      %v2451 = vcvt.s32.f32 %v1427
      %v2452 = vcvt.s32.f32 %v1428
      %v2453 = vcvt.s32.f32 %v1429
      %v2454 = vcvt.s32.f32 %v1430
      %v2455 = vcvt.s32.f32 %v1431
      %v2456 = vcvt.s32.f32 %v1432
      %v2457 = vcvt.s32.f32 %v1433
      %v2458 = vcvt.s32.f32 %v1434
      %v2459 = vcvt.s32.f32 %v1435
      %v2460 = vcvt.s32.f32 %v1436
      %v2461 = vcvt.s32.f32 %v1437
      %v2462 = vcvt.s32.f32 %v1438
      %v2463 = vcvt.s32.f32 %v1439
      %v2464 = vcvt.s32.f32 %v1440
      %v2465 = vcvt.s32.f32 %v1441
      %v2466 = vcvt.s32.f32 %v1442
      %v2467 = vcvt.s32.f32 %v1443
      %v2468 = vcvt.s32.f32 %v1444
      %v2469 = vcvt.s32.f32 %v1445
      %v2470 = vcvt.s32.f32 %v1446
      %v2471 = vcvt.s32.f32 %v1447
      %v2472 = vcvt.s32.f32 %v1448
      %v2473 = vcvt.s32.f32 %v1449
      %v2474 = vcvt.s32.f32 %v1450
      %v2475 = vcvt.s32.f32 %v1451
      %v2476 = vcvt.s32.f32 %v1452
      %v2477 = vcvt.s32.f32 %v1453
      %v2478 = vcvt.s32.f32 %v1454
      %v2479 = vcvt.s32.f32 %v1455
      %v2480 = vcvt.s32.f32 %v1456
      %v2481 = vcvt.s32.f32 %v1457
      %v2482 = vcvt.s32.f32 %v1458
      %v2483 = vcvt.s32.f32 %v1459
      %v2484 = vcvt.s32.f32 %v1460
      %v2485 = vcvt.s32.f32 %v1461
      %v2486 = vcvt.s32.f32 %v1462
      %v2487 = vcvt.s32.f32 %v1463
      %v2488 = vcvt.s32.f32 %v1464
      %v2489 = vcvt.s32.f32 %v1465
      %v2490 = vcvt.s32.f32 %v1466
      %v2491 = vcvt.s32.f32 %v1467
      %v2492 = vcvt.s32.f32 %v1468
      %v2493 = vcvt.s32.f32 %v1469
      %v2494 = vcvt.s32.f32 %v1470
      %v2495 = vcvt.s32.f32 %v1471
      %v2496 = vcvt.s32.f32 %v1472
      %v2497 = vcvt.s32.f32 %v1473
      %v2498 = vcvt.s32.f32 %v1474
      %v2499 = vcvt.s32.f32 %v1475
      %v2500 = vcvt.s32.f32 %v1476
      %v2501 = vcvt.s32.f32 %v1477
      %v2502 = vcvt.s32.f32 %v1478
      %v2503 = vcvt.s32.f32 %v1479
      %v2504 = vcvt.s32.f32 %v1480
      %v2505 = vcvt.s32.f32 %v1481
      %v2506 = vcvt.s32.f32 %v1482
      %v2507 = vcvt.s32.f32 %v1483
      %v2508 = vcvt.s32.f32 %v1484
      %v2509 = vcvt.s32.f32 %v1485
      %v2510 = vcvt.s32.f32 %v1486
      %v2511 = vcvt.s32.f32 %v1487
      %v2512 = vcvt.s32.f32 %v1488
      %v2513 = vcvt.s32.f32 %v1489
      %v2514 = vcvt.s32.f32 %v1490
      %v2515 = vcvt.s32.f32 %v1491
      %v2516 = vcvt.s32.f32 %v1492
      %v2517 = vcvt.s32.f32 %v1493
      %v2518 = vcvt.s32.f32 %v1494
      %v2519 = vcvt.s32.f32 %v1495
      %v2520 = vcvt.s32.f32 %v1496
      %v2521 = vcvt.s32.f32 %v1497
      %v2522 = vcvt.s32.f32 %v1498
      %v2523 = vcvt.s32.f32 %v1499
      %v2524 = vcvt.s32.f32 %v1500
      %v2525 = vcvt.s32.f32 %v1501
      %v2526 = vcvt.s32.f32 %v1502
      %v2527 = vcvt.s32.f32 %v1503
      %v2528 = vcvt.s32.f32 %v1504
      %v2529 = vcvt.s32.f32 %v1505
      %v2530 = vcvt.s32.f32 %v1506
      %v2531 = vcvt.s32.f32 %v1507
      %v2532 = vcvt.s32.f32 %v1508
      %v2533 = vcvt.s32.f32 %v1509
      %v2534 = vcvt.s32.f32 %v1510
      %v2535 = vcvt.s32.f32 %v1511
      %v2536 = vcvt.s32.f32 %v1512
      %v2537 = vcvt.s32.f32 %v1513
      %v2538 = vcvt.s32.f32 %v1514
      %v2539 = vcvt.s32.f32 %v1515
      %v2540 = vcvt.s32.f32 %v1516
      %v2541 = vcvt.s32.f32 %v1517
      %v2542 = vcvt.s32.f32 %v1518
      %v2543 = vcvt.s32.f32 %v1519
      %v2544 = vcvt.s32.f32 %v1520
      %v2545 = vcvt.s32.f32 %v1521
      %v2546 = vcvt.s32.f32 %v1522
      %v2547 = vcvt.s32.f32 %v1523
      %v2548 = vcvt.s32.f32 %v1524
      %v2549 = vcvt.s32.f32 %v1525
      %v2550 = vcvt.s32.f32 %v1526
      %v2551 = vcvt.s32.f32 %v1527
      %v2552 = vcvt.s32.f32 %v1528
      %v2553 = vcvt.s32.f32 %v1529
      %v2554 = vcvt.s32.f32 %v1530
      %v2555 = vcvt.s32.f32 %v1531
      %v2556 = vcvt.s32.f32 %v1532
      %v2557 = vcvt.s32.f32 %v1533
      %v2558 = vcvt.s32.f32 %v1534
      %v2559 = vcvt.s32.f32 %v1535
      %v2560 = vcvt.s32.f32 %v1536
      %v2561 = vcvt.s32.f32 %v1537
      %v2562 = vcvt.s32.f32 %v1538
      %v2563 = vcvt.s32.f32 %v1539
      %v2564 = vcvt.s32.f32 %v1540
      %v2565 = vcvt.s32.f32 %v1541
      %v2566 = vcvt.s32.f32 %v1542
      %v2567 = vcvt.s32.f32 %v1543
      %v2568 = vcvt.s32.f32 %v1544
      %v2569 = vcvt.s32.f32 %v1545
      %v2570 = vcvt.s32.f32 %v1546
      %v2571 = vcvt.s32.f32 %v1547
      %v2572 = vcvt.s32.f32 %v1548
      %v2573 = vcvt.s32.f32 %v1549
      %v2574 = vcvt.s32.f32 %v1550
      %v2575 = vcvt.s32.f32 %v1551
      %v2576 = vcvt.s32.f32 %v1552
      %v2577 = vcvt.s32.f32 %v1553
      %v2578 = vcvt.s32.f32 %v1554
      %v2579 = vcvt.s32.f32 %v1555
      %v2580 = vcvt.s32.f32 %v1556
      %v2581 = vcvt.s32.f32 %v1557
      %v2582 = vcvt.s32.f32 %v1558
      %v2583 = vcvt.s32.f32 %v1559
      %v2584 = vcvt.s32.f32 %v1560
      %v2585 = vcvt.s32.f32 %v1561
      %v2586 = vcvt.s32.f32 %v1562
      %v2587 = vcvt.s32.f32 %v1563
      %v2588 = vcvt.s32.f32 %v1564
      %v2589 = vcvt.s32.f32 %v1565
      %v2590 = vcvt.s32.f32 %v1566
      %v2591 = vcvt.s32.f32 %v1567
      %v2592 = vcvt.s32.f32 %v1568
      %v2593 = vcvt.s32.f32 %v1569
      %v2594 = vcvt.s32.f32 %v1570
      %v2595 = vcvt.s32.f32 %v1571
      %v2596 = vcvt.s32.f32 %v1572
      %v2597 = vcvt.s32.f32 %v1573
      %v2598 = vcvt.s32.f32 %v1574
      %v2599 = vcvt.s32.f32 %v1575
      %v2600 = vcvt.s32.f32 %v1576
      %v2601 = vcvt.s32.f32 %v1577
      %v2602 = vcvt.s32.f32 %v1578
      %v2603 = vcvt.s32.f32 %v1579
      %v2604 = vcvt.s32.f32 %v1580
      %v2605 = vcvt.s32.f32 %v1581
      %v2606 = vcvt.s32.f32 %v1582
      %v2607 = vcvt.s32.f32 %v1583
      %v2608 = vcvt.s32.f32 %v1584
      %v2609 = vcvt.s32.f32 %v1585
      %v2610 = vcvt.s32.f32 %v1586
      %v2611 = vcvt.s32.f32 %v1587
      %v2612 = vcvt.s32.f32 %v1588
      %v2613 = vcvt.s32.f32 %v1589
      %v2614 = vcvt.s32.f32 %v1590
      %v2615 = vcvt.s32.f32 %v1591
      %v2616 = vcvt.s32.f32 %v1592
      %v2617 = vcvt.s32.f32 %v1593
      %v2618 = vcvt.s32.f32 %v1594
      %v2619 = vcvt.s32.f32 %v1595
      %v2620 = vcvt.s32.f32 %v1596
      %v2621 = vcvt.s32.f32 %v1597
      %v2622 = vcvt.s32.f32 %v1598
      %v2623 = vcvt.s32.f32 %v1599
      %v2624 = vcvt.s32.f32 %v1600
      %v2625 = vcvt.s32.f32 %v1601
      %v2626 = vcvt.s32.f32 %v1602
      %v2627 = vcvt.s32.f32 %v1603
      %v2628 = vcvt.s32.f32 %v1604
      %v2629 = vcvt.s32.f32 %v1605
      %v2630 = vld [vmem:[#allocation2] sm:$0xff]
      %v2631 = vld [vmem:[#allocation2 + $0x8] sm:$0xff]
      %v2632 = vld [vmem:[#allocation2 + $0x10] sm:$0xff]
      %v2633 = vld [vmem:[#allocation2 + $0x18] sm:$0xff]
      %v2634 = vld [vmem:[%s309] sm:$0xff]
      %v2635 = vld [vmem:[%s309 + $0x8] sm:$0xff]
      %v2636 = vld [vmem:[%s309 + $0x10] sm:$0xff]
      %v2637 = vld [vmem:[%s309 + $0x18] sm:$0xff]
      %v2638 = vld [vmem:[%s309 + $0x20] sm:$0xff]
      %v2639 = vld [vmem:[%s309 + $0x28] sm:$0xff]
      %v2640 = vld [vmem:[%s309 + $0x30] sm:$0xff]
      %v2641 = vld [vmem:[%s309 + $0x38] sm:$0xff]
      %v2642 = vunpack.c.l.bf16 %v2634
      %v2643 = vunpack.c.h.bf16 %v2634
      %v2644 = vunpack.c.l.bf16 %v2635
      %v2645 = vunpack.c.h.bf16 %v2635
      %v2646 = vunpack.c.l.bf16 %v2636
      %v2647 = vunpack.c.h.bf16 %v2636
      %v2648 = vunpack.c.l.bf16 %v2637
      %v2649 = vunpack.c.h.bf16 %v2637
      %v2650 = vunpack.c.l.bf16 %v2638
      %v2651 = vunpack.c.h.bf16 %v2638
      %v2652 = vunpack.c.l.bf16 %v2639
      %v2653 = vunpack.c.h.bf16 %v2639
      %v2654 = vunpack.c.l.bf16 %v2640
      %v2655 = vunpack.c.h.bf16 %v2640
      %v2656 = vunpack.c.l.bf16 %v2641
      %v2657 = vunpack.c.h.bf16 %v2641
      %2658 = vmatprep.subr.mxu0 %v1607
      %2659 = vmatpush1.msra.mxu0 %v1606
      %2660 = vmatprep.subr.mxu0 %v1611
      %2661 = vmatpush1.msra.mxu0 %v1610
      %2662 = vmatprep.subr.mxu0 %v1615
      %2663 = vmatpush1.msra.mxu0 %v1614
      %2664 = vmatprep.subr.mxu0 %v1619
      %2665 = vmatpush1.msra.mxu0 %v1618
      %2666 = vmatprep.subr.mxu0 %v1623
      %2667 = vmatpush1.msra.mxu0 %v1622
      %2668 = vmatprep.subr.mxu0 %v1627
      %2669 = vmatpush1.msra.mxu0 %v1626
      %2670 = vmatprep.subr.mxu0 %v1631
      %2671 = vmatpush1.msra.mxu0 %v1630
      %2672 = vmatprep.subr.mxu0 %v1635
      %2673 = vmatpush1.msra.mxu0 %v1634
      %2674 = vmatprep.subr.mxu0 %v1639
      %2675 = vmatpush1.msra.mxu0 %v1638
      %2676 = vmatprep.subr.mxu0 %v1643
      %2677 = vmatpush1.msra.mxu0 %v1642
      %2678 = vmatprep.subr.mxu0 %v1647
      %2679 = vmatpush1.msra.mxu0 %v1646
      %2680 = vmatprep.subr.mxu0 %v1651
      %2681 = vmatpush1.msra.mxu0 %v1650
      %2682 = vmatprep.subr.mxu0 %v1655
      %2683 = vmatpush1.msra.mxu0 %v1654
      %2684 = vmatprep.subr.mxu0 %v1659
      %2685 = vmatpush1.msra.mxu0 %v1658
      %2686 = vmatprep.subr.mxu0 %v1663
      %2687 = vmatpush1.msra.mxu0 %v1662
      %2688 = vmatprep.subr.mxu0 %v1667
      %2689 = vmatpush1.msra.mxu0 %v1666
      %2690 = vmatprep.subr.mxu0 %v1671
      %2691 = vmatpush1.msra.mxu0 %v1670
      %2692 = vmatprep.subr.mxu0 %v1675
      %2693 = vmatpush1.msra.mxu0 %v1674
      %2694 = vmatprep.subr.mxu0 %v1679
      %2695 = vmatpush1.msra.mxu0 %v1678
      %2696 = vmatprep.subr.mxu0 %v1683
      %2697 = vmatpush1.msra.mxu0 %v1682
      %2698 = vmatprep.subr.mxu0 %v1687
      %2699 = vmatpush1.msra.mxu0 %v1686
      %2700 = vmatprep.subr.mxu0 %v1691
      %2701 = vmatpush1.msra.mxu0 %v1690
      %2702 = vmatprep.subr.mxu0 %v1695
      %2703 = vmatpush1.msra.mxu0 %v1694
      %2704 = vmatprep.subr.mxu0 %v1699
      %2705 = vmatpush1.msra.mxu0 %v1698
      %2706 = vmatprep.subr.mxu0 %v1703
      %2707 = vmatpush1.msra.mxu0 %v1702
      %2708 = vmatprep.subr.mxu0 %v1707
      %2709 = vmatpush1.msra.mxu0 %v1706
      %2710 = vmatprep.subr.mxu0 %v1711
      %2711 = vmatpush1.msra.mxu0 %v1710
      %2712 = vmatprep.subr.mxu0 %v1715
      %2713 = vmatpush1.msra.mxu0 %v1714
      %2714 = vmatprep.subr.mxu0 %v1719
      %2715 = vmatpush1.msra.mxu0 %v1718
      %2716 = vmatprep.subr.mxu0 %v1723
      %2717 = vmatpush1.msra.mxu0 %v1722
      %2718 = vmatprep.subr.mxu0 %v1727
      %2719 = vmatpush1.msra.mxu0 %v1726
      %2720 = vmatprep.subr.mxu0 %v1731
      %2721 = vmatpush1.msra.mxu0 %v1730
      %2722 = vmatprep.mubr.f32.mxu0 %v2643
      %2723 = vmatmul.mubr.f32.gmra.mrb[0].mxu0 %v2642
      %v2724 = vpop.f32.mrb[0].mxu0
      %v2725 = vadd.f32 0.0, %v2724
      %v2726 = vpop.f32.mrb[0].mxu0
      %v2727 = vadd.f32 0.0, %v2726
      %2728 = vdwg.mxu0
      %2729 = vmatprep.subr.mxu0 %v1735
      %2730 = vmatpush1.msra.mxu0 %v1734
      %2731 = vmatprep.subr.mxu0 %v1739
      %2732 = vmatpush1.msra.mxu0 %v1738
      %2733 = vmatprep.subr.mxu0 %v1743
      %2734 = vmatpush1.msra.mxu0 %v1742
      %2735 = vmatprep.subr.mxu0 %v1747
      %2736 = vmatpush1.msra.mxu0 %v1746
      %2737 = vmatprep.subr.mxu0 %v1751
      %2738 = vmatpush1.msra.mxu0 %v1750
      %2739 = vmatprep.subr.mxu0 %v1755
      %2740 = vmatpush1.msra.mxu0 %v1754
      %2741 = vmatprep.subr.mxu0 %v1759
      %2742 = vmatpush1.msra.mxu0 %v1758
      %2743 = vmatprep.subr.mxu0 %v1763
      %2744 = vmatpush1.msra.mxu0 %v1762
      %2745 = vmatprep.subr.mxu0 %v1767
      %2746 = vmatpush1.msra.mxu0 %v1766
      %2747 = vmatprep.subr.mxu0 %v1771
      %2748 = vmatpush1.msra.mxu0 %v1770
      %2749 = vmatprep.subr.mxu0 %v1775
      %2750 = vmatpush1.msra.mxu0 %v1774
      %2751 = vmatprep.subr.mxu0 %v1779
      %2752 = vmatpush1.msra.mxu0 %v1778
      %2753 = vmatprep.subr.mxu0 %v1783
      %2754 = vmatpush1.msra.mxu0 %v1782
      %2755 = vmatprep.subr.mxu0 %v1787
      %2756 = vmatpush1.msra.mxu0 %v1786
      %2757 = vmatprep.subr.mxu0 %v1791
      %2758 = vmatpush1.msra.mxu0 %v1790
      %2759 = vmatprep.subr.mxu0 %v1795
      %2760 = vmatpush1.msra.mxu0 %v1794
      %2761 = vmatprep.subr.mxu0 %v1799
      %2762 = vmatpush1.msra.mxu0 %v1798
      %2763 = vmatprep.subr.mxu0 %v1803
      %2764 = vmatpush1.msra.mxu0 %v1802
      %2765 = vmatprep.subr.mxu0 %v1807
      %2766 = vmatpush1.msra.mxu0 %v1806
      %2767 = vmatprep.subr.mxu0 %v1811
      %2768 = vmatpush1.msra.mxu0 %v1810
      %2769 = vmatprep.subr.mxu0 %v1815
      %2770 = vmatpush1.msra.mxu0 %v1814
      %2771 = vmatprep.subr.mxu0 %v1819
      %2772 = vmatpush1.msra.mxu0 %v1818
      %2773 = vmatprep.subr.mxu0 %v1823
      %2774 = vmatpush1.msra.mxu0 %v1822
      %2775 = vmatprep.subr.mxu0 %v1827
      %2776 = vmatpush1.msra.mxu0 %v1826
      %2777 = vmatprep.subr.mxu0 %v1831
      %2778 = vmatpush1.msra.mxu0 %v1830
      %2779 = vmatprep.subr.mxu0 %v1835
      %2780 = vmatpush1.msra.mxu0 %v1834
      %2781 = vmatprep.subr.mxu0 %v1839
      %2782 = vmatpush1.msra.mxu0 %v1838
      %2783 = vmatprep.subr.mxu0 %v1843
      %2784 = vmatpush1.msra.mxu0 %v1842
      %2785 = vmatprep.subr.mxu0 %v1847
      %2786 = vmatpush1.msra.mxu0 %v1846
      %2787 = vmatprep.subr.mxu0 %v1851
      %2788 = vmatpush1.msra.mxu0 %v1850
      %2789 = vmatprep.subr.mxu0 %v1855
      %2790 = vmatpush1.msra.mxu0 %v1854
      %2791 = vmatprep.subr.mxu0 %v1859
      %2792 = vmatpush1.msra.mxu0 %v1858
      %2793 = vmatprep.mubr.f32.mxu0 %v2645
      %2794 = vmatmul.mubr.f32.gmra.mrb[0].mxu0 %v2644
      %v2795 = vpop.f32.mrb[0].mxu0
      %v2796 = vadd.f32 %v2725, %v2795
      %v2797 = vpop.f32.mrb[0].mxu0
      %v2798 = vadd.f32 %v2727, %v2797
      %2799 = vdwg.mxu0
      %2800 = vmatprep.subr.mxu0 %v1863
      %2801 = vmatpush1.msra.mxu0 %v1862
      %2802 = vmatprep.subr.mxu0 %v1867
      %2803 = vmatpush1.msra.mxu0 %v1866
      %2804 = vmatprep.subr.mxu0 %v1871
      %2805 = vmatpush1.msra.mxu0 %v1870
      %2806 = vmatprep.subr.mxu0 %v1875
      %2807 = vmatpush1.msra.mxu0 %v1874
      %2808 = vmatprep.subr.mxu0 %v1879
      %2809 = vmatpush1.msra.mxu0 %v1878
      %2810 = vmatprep.subr.mxu0 %v1883
      %2811 = vmatpush1.msra.mxu0 %v1882
      %2812 = vmatprep.subr.mxu0 %v1887
      %2813 = vmatpush1.msra.mxu0 %v1886
      %2814 = vmatprep.subr.mxu0 %v1891
      %2815 = vmatpush1.msra.mxu0 %v1890
      %2816 = vmatprep.subr.mxu0 %v1895
      %2817 = vmatpush1.msra.mxu0 %v1894
      %2818 = vmatprep.subr.mxu0 %v1899
      %2819 = vmatpush1.msra.mxu0 %v1898
      %2820 = vmatprep.subr.mxu0 %v1903
      %2821 = vmatpush1.msra.mxu0 %v1902
      %2822 = vmatprep.subr.mxu0 %v1907
      %2823 = vmatpush1.msra.mxu0 %v1906
      %2824 = vmatprep.subr.mxu0 %v1911
      %2825 = vmatpush1.msra.mxu0 %v1910
      %2826 = vmatprep.subr.mxu0 %v1915
      %2827 = vmatpush1.msra.mxu0 %v1914
      %2828 = vmatprep.subr.mxu0 %v1919
      %2829 = vmatpush1.msra.mxu0 %v1918
      %2830 = vmatprep.subr.mxu0 %v1923
      %2831 = vmatpush1.msra.mxu0 %v1922
      %2832 = vmatprep.subr.mxu0 %v1927
      %2833 = vmatpush1.msra.mxu0 %v1926
      %2834 = vmatprep.subr.mxu0 %v1931
      %2835 = vmatpush1.msra.mxu0 %v1930
      %2836 = vmatprep.subr.mxu0 %v1935
      %2837 = vmatpush1.msra.mxu0 %v1934
      %2838 = vmatprep.subr.mxu0 %v1939
      %2839 = vmatpush1.msra.mxu0 %v1938
      %2840 = vmatprep.subr.mxu0 %v1943
      %2841 = vmatpush1.msra.mxu0 %v1942
      %2842 = vmatprep.subr.mxu0 %v1947
      %2843 = vmatpush1.msra.mxu0 %v1946
      %2844 = vmatprep.subr.mxu0 %v1951
      %2845 = vmatpush1.msra.mxu0 %v1950
      %2846 = vmatprep.subr.mxu0 %v1955
      %2847 = vmatpush1.msra.mxu0 %v1954
      %2848 = vmatprep.subr.mxu0 %v1959
      %2849 = vmatpush1.msra.mxu0 %v1958
      %2850 = vmatprep.subr.mxu0 %v1963
      %2851 = vmatpush1.msra.mxu0 %v1962
      %2852 = vmatprep.subr.mxu0 %v1967
      %2853 = vmatpush1.msra.mxu0 %v1966
      %2854 = vmatprep.subr.mxu0 %v1971
      %2855 = vmatpush1.msra.mxu0 %v1970
      %2856 = vmatprep.subr.mxu0 %v1975
      %2857 = vmatpush1.msra.mxu0 %v1974
      %2858 = vmatprep.subr.mxu0 %v1979
      %2859 = vmatpush1.msra.mxu0 %v1978
      %2860 = vmatprep.subr.mxu0 %v1983
      %2861 = vmatpush1.msra.mxu0 %v1982
      %2862 = vmatprep.subr.mxu0 %v1987
      %2863 = vmatpush1.msra.mxu0 %v1986
      %2864 = vmatprep.mubr.f32.mxu0 %v2647
      %2865 = vmatmul.mubr.f32.gmra.mrb[0].mxu0 %v2646
      %v2866 = vpop.f32.mrb[0].mxu0
      %v2867 = vadd.f32 %v2796, %v2866
      %v2868 = vpop.f32.mrb[0].mxu0
      %v2869 = vadd.f32 %v2798, %v2868
      %2870 = vdwg.mxu0
      %2871 = vmatprep.subr.mxu0 %v1991
      %2872 = vmatpush1.msra.mxu0 %v1990
      %2873 = vmatprep.subr.mxu0 %v1995
      %2874 = vmatpush1.msra.mxu0 %v1994
      %2875 = vmatprep.subr.mxu0 %v1999
      %2876 = vmatpush1.msra.mxu0 %v1998
      %2877 = vmatprep.subr.mxu0 %v2003
      %2878 = vmatpush1.msra.mxu0 %v2002
      %2879 = vmatprep.subr.mxu0 %v2007
      %2880 = vmatpush1.msra.mxu0 %v2006
      %2881 = vmatprep.subr.mxu0 %v2011
      %2882 = vmatpush1.msra.mxu0 %v2010
      %2883 = vmatprep.subr.mxu0 %v2015
      %2884 = vmatpush1.msra.mxu0 %v2014
      %2885 = vmatprep.subr.mxu0 %v2019
      %2886 = vmatpush1.msra.mxu0 %v2018
      %2887 = vmatprep.subr.mxu0 %v2023
      %2888 = vmatpush1.msra.mxu0 %v2022
      %2889 = vmatprep.subr.mxu0 %v2027
      %2890 = vmatpush1.msra.mxu0 %v2026
      %2891 = vmatprep.subr.mxu0 %v2031
      %2892 = vmatpush1.msra.mxu0 %v2030
      %2893 = vmatprep.subr.mxu0 %v2035
      %2894 = vmatpush1.msra.mxu0 %v2034
      %2895 = vmatprep.subr.mxu0 %v2039
      %2896 = vmatpush1.msra.mxu0 %v2038
      %2897 = vmatprep.subr.mxu0 %v2043
      %2898 = vmatpush1.msra.mxu0 %v2042
      %2899 = vmatprep.subr.mxu0 %v2047
      %2900 = vmatpush1.msra.mxu0 %v2046
      %2901 = vmatprep.subr.mxu0 %v2051
      %2902 = vmatpush1.msra.mxu0 %v2050
      %2903 = vmatprep.subr.mxu0 %v2055
      %2904 = vmatpush1.msra.mxu0 %v2054
      %2905 = vmatprep.subr.mxu0 %v2059
      %2906 = vmatpush1.msra.mxu0 %v2058
      %2907 = vmatprep.subr.mxu0 %v2063
      %2908 = vmatpush1.msra.mxu0 %v2062
      %2909 = vmatprep.subr.mxu0 %v2067
      %2910 = vmatpush1.msra.mxu0 %v2066
      %2911 = vmatprep.subr.mxu0 %v2071
      %2912 = vmatpush1.msra.mxu0 %v2070
      %2913 = vmatprep.subr.mxu0 %v2075
      %2914 = vmatpush1.msra.mxu0 %v2074
      %2915 = vmatprep.subr.mxu0 %v2079
      %2916 = vmatpush1.msra.mxu0 %v2078
      %2917 = vmatprep.subr.mxu0 %v2083
      %2918 = vmatpush1.msra.mxu0 %v2082
      %2919 = vmatprep.subr.mxu0 %v2087
      %2920 = vmatpush1.msra.mxu0 %v2086
      %2921 = vmatprep.subr.mxu0 %v2091
      %2922 = vmatpush1.msra.mxu0 %v2090
      %2923 = vmatprep.subr.mxu0 %v2095
      %2924 = vmatpush1.msra.mxu0 %v2094
      %2925 = vmatprep.subr.mxu0 %v2099
      %2926 = vmatpush1.msra.mxu0 %v2098
      %2927 = vmatprep.subr.mxu0 %v2103
      %2928 = vmatpush1.msra.mxu0 %v2102
      %2929 = vmatprep.subr.mxu0 %v2107
      %2930 = vmatpush1.msra.mxu0 %v2106
      %2931 = vmatprep.subr.mxu0 %v2111
      %2932 = vmatpush1.msra.mxu0 %v2110
      %2933 = vmatprep.subr.mxu0 %v2115
      %2934 = vmatpush1.msra.mxu0 %v2114
      %2935 = vmatprep.mubr.f32.mxu0 %v2649
      %2936 = vmatmul.mubr.f32.gmra.mrb[0].mxu0 %v2648
      %v2937 = vpop.f32.mrb[0].mxu0
      %v2938 = vadd.f32 %v2867, %v2937
      %v2939 = vpop.f32.mrb[0].mxu0
      %v2940 = vadd.f32 %v2869, %v2939
      %2941 = vdwg.mxu0
      %2942 = vmatprep.subr.mxu0 %v2119
      %2943 = vmatpush1.msra.mxu0 %v2118
      %2944 = vmatprep.subr.mxu0 %v2123
      %2945 = vmatpush1.msra.mxu0 %v2122
      %2946 = vmatprep.subr.mxu0 %v2127
      %2947 = vmatpush1.msra.mxu0 %v2126
      %2948 = vmatprep.subr.mxu0 %v2131
      %2949 = vmatpush1.msra.mxu0 %v2130
      %2950 = vmatprep.subr.mxu0 %v2135
      %2951 = vmatpush1.msra.mxu0 %v2134
      %2952 = vmatprep.subr.mxu0 %v2139
      %2953 = vmatpush1.msra.mxu0 %v2138
      %2954 = vmatprep.subr.mxu0 %v2143
      %2955 = vmatpush1.msra.mxu0 %v2142
      %2956 = vmatprep.subr.mxu0 %v2147
      %2957 = vmatpush1.msra.mxu0 %v2146
      %2958 = vmatprep.subr.mxu0 %v2151
      %2959 = vmatpush1.msra.mxu0 %v2150
      %2960 = vmatprep.subr.mxu0 %v2155
      %2961 = vmatpush1.msra.mxu0 %v2154
      %2962 = vmatprep.subr.mxu0 %v2159
      %2963 = vmatpush1.msra.mxu0 %v2158
      %2964 = vmatprep.subr.mxu0 %v2163
      %2965 = vmatpush1.msra.mxu0 %v2162
      %2966 = vmatprep.subr.mxu0 %v2167
      %2967 = vmatpush1.msra.mxu0 %v2166
      %2968 = vmatprep.subr.mxu0 %v2171
      %2969 = vmatpush1.msra.mxu0 %v2170
      %2970 = vmatprep.subr.mxu0 %v2175
      %2971 = vmatpush1.msra.mxu0 %v2174
      %2972 = vmatprep.subr.mxu0 %v2179
      %2973 = vmatpush1.msra.mxu0 %v2178
      %2974 = vmatprep.subr.mxu0 %v2183
      %2975 = vmatpush1.msra.mxu0 %v2182
      %2976 = vmatprep.subr.mxu0 %v2187
      %2977 = vmatpush1.msra.mxu0 %v2186
      %2978 = vmatprep.subr.mxu0 %v2191
      %2979 = vmatpush1.msra.mxu0 %v2190
      %2980 = vmatprep.subr.mxu0 %v2195
      %2981 = vmatpush1.msra.mxu0 %v2194
      %2982 = vmatprep.subr.mxu0 %v2199
      %2983 = vmatpush1.msra.mxu0 %v2198
      %2984 = vmatprep.subr.mxu0 %v2203
      %2985 = vmatpush1.msra.mxu0 %v2202
      %2986 = vmatprep.subr.mxu0 %v2207
      %2987 = vmatpush1.msra.mxu0 %v2206
      %2988 = vmatprep.subr.mxu0 %v2211
      %2989 = vmatpush1.msra.mxu0 %v2210
      %2990 = vmatprep.subr.mxu0 %v2215
      %2991 = vmatpush1.msra.mxu0 %v2214
      %2992 = vmatprep.subr.mxu0 %v2219
      %2993 = vmatpush1.msra.mxu0 %v2218
      %2994 = vmatprep.subr.mxu0 %v2223
      %2995 = vmatpush1.msra.mxu0 %v2222
      %2996 = vmatprep.subr.mxu0 %v2227
      %2997 = vmatpush1.msra.mxu0 %v2226
      %2998 = vmatprep.subr.mxu0 %v2231
      %2999 = vmatpush1.msra.mxu0 %v2230
      %3000 = vmatprep.subr.mxu0 %v2235
      %3001 = vmatpush1.msra.mxu0 %v2234
      %3002 = vmatprep.subr.mxu0 %v2239
      %3003 = vmatpush1.msra.mxu0 %v2238
      %3004 = vmatprep.subr.mxu0 %v2243
      %3005 = vmatpush1.msra.mxu0 %v2242
      %3006 = vmatprep.mubr.f32.mxu0 %v2651
      %3007 = vmatmul.mubr.f32.gmra.mrb[0].mxu0 %v2650
      %v3008 = vpop.f32.mrb[0].mxu0
      %v3009 = vadd.f32 %v2938, %v3008
      %v3010 = vpop.f32.mrb[0].mxu0
      %v3011 = vadd.f32 %v2940, %v3010
      %3012 = vdwg.mxu0
      %3013 = vmatprep.subr.mxu0 %v2247
      %3014 = vmatpush1.msra.mxu0 %v2246
      %3015 = vmatprep.subr.mxu0 %v2251
      %3016 = vmatpush1.msra.mxu0 %v2250
      %3017 = vmatprep.subr.mxu0 %v2255
      %3018 = vmatpush1.msra.mxu0 %v2254
      %3019 = vmatprep.subr.mxu0 %v2259
      %3020 = vmatpush1.msra.mxu0 %v2258
      %3021 = vmatprep.subr.mxu0 %v2263
      %3022 = vmatpush1.msra.mxu0 %v2262
      %3023 = vmatprep.subr.mxu0 %v2267
      %3024 = vmatpush1.msra.mxu0 %v2266
      %3025 = vmatprep.subr.mxu0 %v2271
      %3026 = vmatpush1.msra.mxu0 %v2270
      %3027 = vmatprep.subr.mxu0 %v2275
      %3028 = vmatpush1.msra.mxu0 %v2274
      %3029 = vmatprep.subr.mxu0 %v2279
      %3030 = vmatpush1.msra.mxu0 %v2278
      %3031 = vmatprep.subr.mxu0 %v2283
      %3032 = vmatpush1.msra.mxu0 %v2282
      %3033 = vmatprep.subr.mxu0 %v2287
      %3034 = vmatpush1.msra.mxu0 %v2286
      %3035 = vmatprep.subr.mxu0 %v2291
      %3036 = vmatpush1.msra.mxu0 %v2290
      %3037 = vmatprep.subr.mxu0 %v2295
      %3038 = vmatpush1.msra.mxu0 %v2294
      %3039 = vmatprep.subr.mxu0 %v2299
      %3040 = vmatpush1.msra.mxu0 %v2298
      %3041 = vmatprep.subr.mxu0 %v2303
      %3042 = vmatpush1.msra.mxu0 %v2302
      %3043 = vmatprep.subr.mxu0 %v2307
      %3044 = vmatpush1.msra.mxu0 %v2306
      %3045 = vmatprep.subr.mxu0 %v2311
      %3046 = vmatpush1.msra.mxu0 %v2310
      %3047 = vmatprep.subr.mxu0 %v2315
      %3048 = vmatpush1.msra.mxu0 %v2314
      %3049 = vmatprep.subr.mxu0 %v2319
      %3050 = vmatpush1.msra.mxu0 %v2318
      %3051 = vmatprep.subr.mxu0 %v2323
      %3052 = vmatpush1.msra.mxu0 %v2322
      %3053 = vmatprep.subr.mxu0 %v2327
      %3054 = vmatpush1.msra.mxu0 %v2326
      %3055 = vmatprep.subr.mxu0 %v2331
      %3056 = vmatpush1.msra.mxu0 %v2330
      %3057 = vmatprep.subr.mxu0 %v2335
      %3058 = vmatpush1.msra.mxu0 %v2334
      %3059 = vmatprep.subr.mxu0 %v2339
      %3060 = vmatpush1.msra.mxu0 %v2338
      %3061 = vmatprep.subr.mxu0 %v2343
      %3062 = vmatpush1.msra.mxu0 %v2342
      %3063 = vmatprep.subr.mxu0 %v2347
      %3064 = vmatpush1.msra.mxu0 %v2346
      %3065 = vmatprep.subr.mxu0 %v2351
      %3066 = vmatpush1.msra.mxu0 %v2350
      %3067 = vmatprep.subr.mxu0 %v2355
      %3068 = vmatpush1.msra.mxu0 %v2354
      %3069 = vmatprep.subr.mxu0 %v2359
      %3070 = vmatpush1.msra.mxu0 %v2358
      %3071 = vmatprep.subr.mxu0 %v2363
      %3072 = vmatpush1.msra.mxu0 %v2362
      %3073 = vmatprep.subr.mxu0 %v2367
      %3074 = vmatpush1.msra.mxu0 %v2366
      %3075 = vmatprep.subr.mxu0 %v2371
      %3076 = vmatpush1.msra.mxu0 %v2370
      %3077 = vmatprep.mubr.f32.mxu0 %v2653
      %3078 = vmatmul.mubr.f32.gmra.mrb[0].mxu0 %v2652
      %v3079 = vpop.f32.mrb[0].mxu0
      %v3080 = vadd.f32 %v3009, %v3079
      %v3081 = vpop.f32.mrb[0].mxu0
      %v3082 = vadd.f32 %v3011, %v3081
      %3083 = vdwg.mxu0
      %3084 = vmatprep.subr.mxu0 %v2375
      %3085 = vmatpush1.msra.mxu0 %v2374
      %3086 = vmatprep.subr.mxu0 %v2379
      %3087 = vmatpush1.msra.mxu0 %v2378
      %3088 = vmatprep.subr.mxu0 %v2383
      %3089 = vmatpush1.msra.mxu0 %v2382
      %3090 = vmatprep.subr.mxu0 %v2387
      %3091 = vmatpush1.msra.mxu0 %v2386
      %3092 = vmatprep.subr.mxu0 %v2391
      %3093 = vmatpush1.msra.mxu0 %v2390
      %3094 = vmatprep.subr.mxu0 %v2395
      %3095 = vmatpush1.msra.mxu0 %v2394
      %3096 = vmatprep.subr.mxu0 %v2399
      %3097 = vmatpush1.msra.mxu0 %v2398
      %3098 = vmatprep.subr.mxu0 %v2403
      %3099 = vmatpush1.msra.mxu0 %v2402
      %3100 = vmatprep.subr.mxu0 %v2407
      %3101 = vmatpush1.msra.mxu0 %v2406
      %3102 = vmatprep.subr.mxu0 %v2411
      %3103 = vmatpush1.msra.mxu0 %v2410
      %3104 = vmatprep.subr.mxu0 %v2415
      %3105 = vmatpush1.msra.mxu0 %v2414
      %3106 = vmatprep.subr.mxu0 %v2419
      %3107 = vmatpush1.msra.mxu0 %v2418
      %3108 = vmatprep.subr.mxu0 %v2423
      %3109 = vmatpush1.msra.mxu0 %v2422
      %3110 = vmatprep.subr.mxu0 %v2427
      %3111 = vmatpush1.msra.mxu0 %v2426
      %3112 = vmatprep.subr.mxu0 %v2431
      %3113 = vmatpush1.msra.mxu0 %v2430
      %3114 = vmatprep.subr.mxu0 %v2435
      %3115 = vmatpush1.msra.mxu0 %v2434
      %3116 = vmatprep.subr.mxu0 %v2439
      %3117 = vmatpush1.msra.mxu0 %v2438
      %3118 = vmatprep.subr.mxu0 %v2443
      %3119 = vmatpush1.msra.mxu0 %v2442
      %3120 = vmatprep.subr.mxu0 %v2447
      %3121 = vmatpush1.msra.mxu0 %v2446
      %3122 = vmatprep.subr.mxu0 %v2451
      %3123 = vmatpush1.msra.mxu0 %v2450
      %3124 = vmatprep.subr.mxu0 %v2455
      %3125 = vmatpush1.msra.mxu0 %v2454
      %3126 = vmatprep.subr.mxu0 %v2459
      %3127 = vmatpush1.msra.mxu0 %v2458
      %3128 = vmatprep.subr.mxu0 %v2463
      %3129 = vmatpush1.msra.mxu0 %v2462
      %3130 = vmatprep.subr.mxu0 %v2467
      %3131 = vmatpush1.msra.mxu0 %v2466
      %3132 = vmatprep.subr.mxu0 %v2471
      %3133 = vmatpush1.msra.mxu0 %v2470
      %3134 = vmatprep.subr.mxu0 %v2475
      %3135 = vmatpush1.msra.mxu0 %v2474
      %3136 = vmatprep.subr.mxu0 %v2479
      %3137 = vmatpush1.msra.mxu0 %v2478
      %3138 = vmatprep.subr.mxu0 %v2483
      %3139 = vmatpush1.msra.mxu0 %v2482
      %3140 = vmatprep.subr.mxu0 %v2487
      %3141 = vmatpush1.msra.mxu0 %v2486
      %3142 = vmatprep.subr.mxu0 %v2491
      %3143 = vmatpush1.msra.mxu0 %v2490
      %3144 = vmatprep.subr.mxu0 %v2495
      %3145 = vmatpush1.msra.mxu0 %v2494
      %3146 = vmatprep.subr.mxu0 %v2499
      %3147 = vmatpush1.msra.mxu0 %v2498
      %3148 = vmatprep.mubr.f32.mxu0 %v2655
      %3149 = vmatmul.mubr.f32.gmra.mrb[0].mxu0 %v2654
      %v3150 = vpop.f32.mrb[0].mxu0
      %v3151 = vadd.f32 %v3080, %v3150
      %v3152 = vpop.f32.mrb[0].mxu0
      %v3153 = vadd.f32 %v3082, %v3152
      %3154 = vdwg.mxu0
      %3155 = vmatprep.subr.mxu0 %v2503
      %3156 = vmatpush1.msra.mxu0 %v2502
      %3157 = vmatprep.subr.mxu0 %v2507
      %3158 = vmatpush1.msra.mxu0 %v2506
      %3159 = vmatprep.subr.mxu0 %v2511
      %3160 = vmatpush1.msra.mxu0 %v2510
      %3161 = vmatprep.subr.mxu0 %v2515
      %3162 = vmatpush1.msra.mxu0 %v2514
      %3163 = vmatprep.subr.mxu0 %v2519
      %3164 = vmatpush1.msra.mxu0 %v2518
      %3165 = vmatprep.subr.mxu0 %v2523
      %3166 = vmatpush1.msra.mxu0 %v2522
      %3167 = vmatprep.subr.mxu0 %v2527
      %3168 = vmatpush1.msra.mxu0 %v2526
      %3169 = vmatprep.subr.mxu0 %v2531
      %3170 = vmatpush1.msra.mxu0 %v2530
      %3171 = vmatprep.subr.mxu0 %v2535
      %3172 = vmatpush1.msra.mxu0 %v2534
      %3173 = vmatprep.subr.mxu0 %v2539
      %3174 = vmatpush1.msra.mxu0 %v2538
      %3175 = vmatprep.subr.mxu0 %v2543
      %3176 = vmatpush1.msra.mxu0 %v2542
      %3177 = vmatprep.subr.mxu0 %v2547
      %3178 = vmatpush1.msra.mxu0 %v2546
      %3179 = vmatprep.subr.mxu0 %v2551
      %3180 = vmatpush1.msra.mxu0 %v2550
      %3181 = vmatprep.subr.mxu0 %v2555
      %3182 = vmatpush1.msra.mxu0 %v2554
      %3183 = vmatprep.subr.mxu0 %v2559
      %3184 = vmatpush1.msra.mxu0 %v2558
      %3185 = vmatprep.subr.mxu0 %v2563
      %3186 = vmatpush1.msra.mxu0 %v2562
      %3187 = vmatprep.subr.mxu0 %v2567
      %3188 = vmatpush1.msra.mxu0 %v2566
      %3189 = vmatprep.subr.mxu0 %v2571
      %3190 = vmatpush1.msra.mxu0 %v2570
      %3191 = vmatprep.subr.mxu0 %v2575
      %3192 = vmatpush1.msra.mxu0 %v2574
      %3193 = vmatprep.subr.mxu0 %v2579
      %3194 = vmatpush1.msra.mxu0 %v2578
      %3195 = vmatprep.subr.mxu0 %v2583
      %3196 = vmatpush1.msra.mxu0 %v2582
      %3197 = vmatprep.subr.mxu0 %v2587
      %3198 = vmatpush1.msra.mxu0 %v2586
      %3199 = vmatprep.subr.mxu0 %v2591
      %3200 = vmatpush1.msra.mxu0 %v2590
      %3201 = vmatprep.subr.mxu0 %v2595
      %3202 = vmatpush1.msra.mxu0 %v2594
      %3203 = vmatprep.subr.mxu0 %v2599
      %3204 = vmatpush1.msra.mxu0 %v2598
      %3205 = vmatprep.subr.mxu0 %v2603
      %3206 = vmatpush1.msra.mxu0 %v2602
      %3207 = vmatprep.subr.mxu0 %v2607
      %3208 = vmatpush1.msra.mxu0 %v2606
      %3209 = vmatprep.subr.mxu0 %v2611
      %3210 = vmatpush1.msra.mxu0 %v2610
      %3211 = vmatprep.subr.mxu0 %v2615
      %3212 = vmatpush1.msra.mxu0 %v2614
      %3213 = vmatprep.subr.mxu0 %v2619
      %3214 = vmatpush1.msra.mxu0 %v2618
      %3215 = vmatprep.subr.mxu0 %v2623
      %3216 = vmatpush1.msra.mxu0 %v2622
      %3217 = vmatprep.subr.mxu0 %v2627
      %3218 = vmatpush1.msra.mxu0 %v2626
      %3219 = vmatprep.mubr.f32.mxu0 %v2657
      %3220 = vmatmul.mubr.f32.gmra.mrb[0].mxu0 %v2656
      %v3221 = vpop.f32.mrb[0].mxu0
      %v3222 = vadd.f32 %v3151, %v3221
      %v3223 = vpop.f32.mrb[0].mxu0
      %v3224 = vadd.f32 %v3153, %v3223
      %3225 = vdwg.mxu0
      %3226 = vmatprep.subr.mxu0 %v1609
      %3227 = vmatpush1.msra.mxu0 %v1608
      %3228 = vmatprep.subr.mxu0 %v1613
      %3229 = vmatpush1.msra.mxu0 %v1612
      %3230 = vmatprep.subr.mxu0 %v1617
      %3231 = vmatpush1.msra.mxu0 %v1616
      %3232 = vmatprep.subr.mxu0 %v1621
      %3233 = vmatpush1.msra.mxu0 %v1620
      %3234 = vmatprep.subr.mxu0 %v1625
      %3235 = vmatpush1.msra.mxu0 %v1624
      %3236 = vmatprep.subr.mxu0 %v1629
      %3237 = vmatpush1.msra.mxu0 %v1628
      %3238 = vmatprep.subr.mxu0 %v1633
      %3239 = vmatpush1.msra.mxu0 %v1632
      %3240 = vmatprep.subr.mxu0 %v1637
      %3241 = vmatpush1.msra.mxu0 %v1636
      %3242 = vmatprep.subr.mxu0 %v1641
      %3243 = vmatpush1.msra.mxu0 %v1640
      %3244 = vmatprep.subr.mxu0 %v1645
      %3245 = vmatpush1.msra.mxu0 %v1644
      %3246 = vmatprep.subr.mxu0 %v1649
      %3247 = vmatpush1.msra.mxu0 %v1648
      %3248 = vmatprep.subr.mxu0 %v1653
      %3249 = vmatpush1.msra.mxu0 %v1652
      %3250 = vmatprep.subr.mxu0 %v1657
      %3251 = vmatpush1.msra.mxu0 %v1656
      %3252 = vmatprep.subr.mxu0 %v1661
      %3253 = vmatpush1.msra.mxu0 %v1660
      %3254 = vmatprep.subr.mxu0 %v1665
      %3255 = vmatpush1.msra.mxu0 %v1664
      %3256 = vmatprep.subr.mxu0 %v1669
      %3257 = vmatpush1.msra.mxu0 %v1668
      %3258 = vmatprep.subr.mxu0 %v1673
      %3259 = vmatpush1.msra.mxu0 %v1672
      %3260 = vmatprep.subr.mxu0 %v1677
      %3261 = vmatpush1.msra.mxu0 %v1676
      %3262 = vmatprep.subr.mxu0 %v1681
      %3263 = vmatpush1.msra.mxu0 %v1680
      %3264 = vmatprep.subr.mxu0 %v1685
      %3265 = vmatpush1.msra.mxu0 %v1684
      %3266 = vmatprep.subr.mxu0 %v1689
      %3267 = vmatpush1.msra.mxu0 %v1688
      %3268 = vmatprep.subr.mxu0 %v1693
      %3269 = vmatpush1.msra.mxu0 %v1692
      %3270 = vmatprep.subr.mxu0 %v1697
      %3271 = vmatpush1.msra.mxu0 %v1696
      %3272 = vmatprep.subr.mxu0 %v1701
      %3273 = vmatpush1.msra.mxu0 %v1700
      %3274 = vmatprep.subr.mxu0 %v1705
      %3275 = vmatpush1.msra.mxu0 %v1704
      %3276 = vmatprep.subr.mxu0 %v1709
      %3277 = vmatpush1.msra.mxu0 %v1708
      %3278 = vmatprep.subr.mxu0 %v1713
      %3279 = vmatpush1.msra.mxu0 %v1712
      %3280 = vmatprep.subr.mxu0 %v1717
      %3281 = vmatpush1.msra.mxu0 %v1716
      %3282 = vmatprep.subr.mxu0 %v1721
      %3283 = vmatpush1.msra.mxu0 %v1720
      %3284 = vmatprep.subr.mxu0 %v1725
      %3285 = vmatpush1.msra.mxu0 %v1724
      %3286 = vmatprep.subr.mxu0 %v1729
      %3287 = vmatpush1.msra.mxu0 %v1728
      %3288 = vmatprep.subr.mxu0 %v1733
      %3289 = vmatpush1.msra.mxu0 %v1732
      %3290 = vmatprep.mubr.f32.mxu0 %v2643
      %3291 = vmatmul.mubr.f32.gmra.mrb[0].mxu0 %v2642
      %v3292 = vpop.f32.mrb[0].mxu0
      %v3293 = vadd.f32 0.0, %v3292
      %v3294 = vpop.f32.mrb[0].mxu0
      %v3295 = vadd.f32 0.0, %v3294
      %3296 = vdwg.mxu0
      %3297 = vmatprep.subr.mxu0 %v1737
      %3298 = vmatpush1.msra.mxu0 %v1736
      %3299 = vmatprep.subr.mxu0 %v1741
      %3300 = vmatpush1.msra.mxu0 %v1740
      %3301 = vmatprep.subr.mxu0 %v1745
      %3302 = vmatpush1.msra.mxu0 %v1744
      %3303 = vmatprep.subr.mxu0 %v1749
      %3304 = vmatpush1.msra.mxu0 %v1748
      %3305 = vmatprep.subr.mxu0 %v1753
      %3306 = vmatpush1.msra.mxu0 %v1752
      %3307 = vmatprep.subr.mxu0 %v1757
      %3308 = vmatpush1.msra.mxu0 %v1756
      %3309 = vmatprep.subr.mxu0 %v1761
      %3310 = vmatpush1.msra.mxu0 %v1760
      %3311 = vmatprep.subr.mxu0 %v1765
      %3312 = vmatpush1.msra.mxu0 %v1764
      %3313 = vmatprep.subr.mxu0 %v1769
      %3314 = vmatpush1.msra.mxu0 %v1768
      %3315 = vmatprep.subr.mxu0 %v1773
      %3316 = vmatpush1.msra.mxu0 %v1772
      %3317 = vmatprep.subr.mxu0 %v1777
      %3318 = vmatpush1.msra.mxu0 %v1776
      %3319 = vmatprep.subr.mxu0 %v1781
      %3320 = vmatpush1.msra.mxu0 %v1780
      %3321 = vmatprep.subr.mxu0 %v1785
      %3322 = vmatpush1.msra.mxu0 %v1784
      %3323 = vmatprep.subr.mxu0 %v1789
      %3324 = vmatpush1.msra.mxu0 %v1788
      %3325 = vmatprep.subr.mxu0 %v1793
      %3326 = vmatpush1.msra.mxu0 %v1792
      %3327 = vmatprep.subr.mxu0 %v1797
      %3328 = vmatpush1.msra.mxu0 %v1796
      %3329 = vmatprep.subr.mxu0 %v1801
      %3330 = vmatpush1.msra.mxu0 %v1800
      %3331 = vmatprep.subr.mxu0 %v1805
      %3332 = vmatpush1.msra.mxu0 %v1804
      %3333 = vmatprep.subr.mxu0 %v1809
      %3334 = vmatpush1.msra.mxu0 %v1808
      %3335 = vmatprep.subr.mxu0 %v1813
      %3336 = vmatpush1.msra.mxu0 %v1812
      %3337 = vmatprep.subr.mxu0 %v1817
      %3338 = vmatpush1.msra.mxu0 %v1816
      %3339 = vmatprep.subr.mxu0 %v1821
      %3340 = vmatpush1.msra.mxu0 %v1820
      %3341 = vmatprep.subr.mxu0 %v1825
      %3342 = vmatpush1.msra.mxu0 %v1824
      %3343 = vmatprep.subr.mxu0 %v1829
      %3344 = vmatpush1.msra.mxu0 %v1828
      %3345 = vmatprep.subr.mxu0 %v1833
      %3346 = vmatpush1.msra.mxu0 %v1832
      %3347 = vmatprep.subr.mxu0 %v1837
      %3348 = vmatpush1.msra.mxu0 %v1836
      %3349 = vmatprep.subr.mxu0 %v1841
      %3350 = vmatpush1.msra.mxu0 %v1840
      %3351 = vmatprep.subr.mxu0 %v1845
      %3352 = vmatpush1.msra.mxu0 %v1844
      %3353 = vmatprep.subr.mxu0 %v1849
      %3354 = vmatpush1.msra.mxu0 %v1848
      %3355 = vmatprep.subr.mxu0 %v1853
      %3356 = vmatpush1.msra.mxu0 %v1852
      %3357 = vmatprep.subr.mxu0 %v1857
      %3358 = vmatpush1.msra.mxu0 %v1856
      %3359 = vmatprep.subr.mxu0 %v1861
      %3360 = vmatpush1.msra.mxu0 %v1860
      %3361 = vmatprep.mubr.f32.mxu0 %v2645
      %3362 = vmatmul.mubr.f32.gmra.mrb[0].mxu0 %v2644
      %v3363 = vpop.f32.mrb[0].mxu0
      %v3364 = vadd.f32 %v3293, %v3363
      %v3365 = vpop.f32.mrb[0].mxu0
      %v3366 = vadd.f32 %v3295, %v3365
      %3367 = vdwg.mxu0
      %3368 = vmatprep.subr.mxu0 %v1865
      %3369 = vmatpush1.msra.mxu0 %v1864
      %3370 = vmatprep.subr.mxu0 %v1869
      %3371 = vmatpush1.msra.mxu0 %v1868
      %3372 = vmatprep.subr.mxu0 %v1873
      %3373 = vmatpush1.msra.mxu0 %v1872
      %3374 = vmatprep.subr.mxu0 %v1877
      %3375 = vmatpush1.msra.mxu0 %v1876
      %3376 = vmatprep.subr.mxu0 %v1881
      %3377 = vmatpush1.msra.mxu0 %v1880
      %3378 = vmatprep.subr.mxu0 %v1885
      %3379 = vmatpush1.msra.mxu0 %v1884
      %3380 = vmatprep.subr.mxu0 %v1889
      %3381 = vmatpush1.msra.mxu0 %v1888
      %3382 = vmatprep.subr.mxu0 %v1893
      %3383 = vmatpush1.msra.mxu0 %v1892
      %3384 = vmatprep.subr.mxu0 %v1897
      %3385 = vmatpush1.msra.mxu0 %v1896
      %3386 = vmatprep.subr.mxu0 %v1901
      %3387 = vmatpush1.msra.mxu0 %v1900
      %3388 = vmatprep.subr.mxu0 %v1905
      %3389 = vmatpush1.msra.mxu0 %v1904
      %3390 = vmatprep.subr.mxu0 %v1909
      %3391 = vmatpush1.msra.mxu0 %v1908
      %3392 = vmatprep.subr.mxu0 %v1913
      %3393 = vmatpush1.msra.mxu0 %v1912
      %3394 = vmatprep.subr.mxu0 %v1917
      %3395 = vmatpush1.msra.mxu0 %v1916
      %3396 = vmatprep.subr.mxu0 %v1921
      %3397 = vmatpush1.msra.mxu0 %v1920
      %3398 = vmatprep.subr.mxu0 %v1925
      %3399 = vmatpush1.msra.mxu0 %v1924
      %3400 = vmatprep.subr.mxu0 %v1929
      %3401 = vmatpush1.msra.mxu0 %v1928
      %3402 = vmatprep.subr.mxu0 %v1933
      %3403 = vmatpush1.msra.mxu0 %v1932
      %3404 = vmatprep.subr.mxu0 %v1937
      %3405 = vmatpush1.msra.mxu0 %v1936
      %3406 = vmatprep.subr.mxu0 %v1941
      %3407 = vmatpush1.msra.mxu0 %v1940
      %3408 = vmatprep.subr.mxu0 %v1945
      %3409 = vmatpush1.msra.mxu0 %v1944
      %3410 = vmatprep.subr.mxu0 %v1949
      %3411 = vmatpush1.msra.mxu0 %v1948
      %3412 = vmatprep.subr.mxu0 %v1953
      %3413 = vmatpush1.msra.mxu0 %v1952
      %3414 = vmatprep.subr.mxu0 %v1957
      %3415 = vmatpush1.msra.mxu0 %v1956
      %3416 = vmatprep.subr.mxu0 %v1961
      %3417 = vmatpush1.msra.mxu0 %v1960
      %3418 = vmatprep.subr.mxu0 %v1965
      %3419 = vmatpush1.msra.mxu0 %v1964
      %3420 = vmatprep.subr.mxu0 %v1969
      %3421 = vmatpush1.msra.mxu0 %v1968
      %3422 = vmatprep.subr.mxu0 %v1973
      %3423 = vmatpush1.msra.mxu0 %v1972
      %3424 = vmatprep.subr.mxu0 %v1977
      %3425 = vmatpush1.msra.mxu0 %v1976
      %3426 = vmatprep.subr.mxu0 %v1981
      %3427 = vmatpush1.msra.mxu0 %v1980
      %3428 = vmatprep.subr.mxu0 %v1985
      %3429 = vmatpush1.msra.mxu0 %v1984
      %3430 = vmatprep.subr.mxu0 %v1989
      %3431 = vmatpush1.msra.mxu0 %v1988
      %3432 = vmatprep.mubr.f32.mxu0 %v2647
      %3433 = vmatmul.mubr.f32.gmra.mrb[0].mxu0 %v2646
      %v3434 = vpop.f32.mrb[0].mxu0
      %v3435 = vadd.f32 %v3364, %v3434
      %v3436 = vpop.f32.mrb[0].mxu0
      %v3437 = vadd.f32 %v3366, %v3436
      %3438 = vdwg.mxu0
      %3439 = vmatprep.subr.mxu0 %v1993
      %3440 = vmatpush1.msra.mxu0 %v1992
      %3441 = vmatprep.subr.mxu0 %v1997
      %3442 = vmatpush1.msra.mxu0 %v1996
      %3443 = vmatprep.subr.mxu0 %v2001
      %3444 = vmatpush1.msra.mxu0 %v2000
      %3445 = vmatprep.subr.mxu0 %v2005
      %3446 = vmatpush1.msra.mxu0 %v2004
      %3447 = vmatprep.subr.mxu0 %v2009
      %3448 = vmatpush1.msra.mxu0 %v2008
      %3449 = vmatprep.subr.mxu0 %v2013
      %3450 = vmatpush1.msra.mxu0 %v2012
      %3451 = vmatprep.subr.mxu0 %v2017
      %3452 = vmatpush1.msra.mxu0 %v2016
      %3453 = vmatprep.subr.mxu0 %v2021
      %3454 = vmatpush1.msra.mxu0 %v2020
      %3455 = vmatprep.subr.mxu0 %v2025
      %3456 = vmatpush1.msra.mxu0 %v2024
      %3457 = vmatprep.subr.mxu0 %v2029
      %3458 = vmatpush1.msra.mxu0 %v2028
      %3459 = vmatprep.subr.mxu0 %v2033
      %3460 = vmatpush1.msra.mxu0 %v2032
      %3461 = vmatprep.subr.mxu0 %v2037
      %3462 = vmatpush1.msra.mxu0 %v2036
      %3463 = vmatprep.subr.mxu0 %v2041
      %3464 = vmatpush1.msra.mxu0 %v2040
      %3465 = vmatprep.subr.mxu0 %v2045
      %3466 = vmatpush1.msra.mxu0 %v2044
      %3467 = vmatprep.subr.mxu0 %v2049
      %3468 = vmatpush1.msra.mxu0 %v2048
      %3469 = vmatprep.subr.mxu0 %v2053
      %3470 = vmatpush1.msra.mxu0 %v2052
      %3471 = vmatprep.subr.mxu0 %v2057
      %3472 = vmatpush1.msra.mxu0 %v2056
      %3473 = vmatprep.subr.mxu0 %v2061
      %3474 = vmatpush1.msra.mxu0 %v2060
      %3475 = vmatprep.subr.mxu0 %v2065
      %3476 = vmatpush1.msra.mxu0 %v2064
      %3477 = vmatprep.subr.mxu0 %v2069
      %3478 = vmatpush1.msra.mxu0 %v2068
      %3479 = vmatprep.subr.mxu0 %v2073
      %3480 = vmatpush1.msra.mxu0 %v2072
      %3481 = vmatprep.subr.mxu0 %v2077
      %3482 = vmatpush1.msra.mxu0 %v2076
      %3483 = vmatprep.subr.mxu0 %v2081
      %3484 = vmatpush1.msra.mxu0 %v2080
      %3485 = vmatprep.subr.mxu0 %v2085
      %3486 = vmatpush1.msra.mxu0 %v2084
      %3487 = vmatprep.subr.mxu0 %v2089
      %3488 = vmatpush1.msra.mxu0 %v2088
      %3489 = vmatprep.subr.mxu0 %v2093
      %3490 = vmatpush1.msra.mxu0 %v2092
      %3491 = vmatprep.subr.mxu0 %v2097
      %3492 = vmatpush1.msra.mxu0 %v2096
      %3493 = vmatprep.subr.mxu0 %v2101
      %3494 = vmatpush1.msra.mxu0 %v2100
      %3495 = vmatprep.subr.mxu0 %v2105
      %3496 = vmatpush1.msra.mxu0 %v2104
      %3497 = vmatprep.subr.mxu0 %v2109
      %3498 = vmatpush1.msra.mxu0 %v2108
      %3499 = vmatprep.subr.mxu0 %v2113
      %3500 = vmatpush1.msra.mxu0 %v2112
      %3501 = vmatprep.subr.mxu0 %v2117
      %3502 = vmatpush1.msra.mxu0 %v2116
      %3503 = vmatprep.mubr.f32.mxu0 %v2649
      %3504 = vmatmul.mubr.f32.gmra.mrb[0].mxu0 %v2648
      %v3505 = vpop.f32.mrb[0].mxu0
      %v3506 = vadd.f32 %v3435, %v3505
      %v3507 = vpop.f32.mrb[0].mxu0
      %v3508 = vadd.f32 %v3437, %v3507
      %3509 = vdwg.mxu0
      %3510 = vmatprep.subr.mxu0 %v2121
      %3511 = vmatpush1.msra.mxu0 %v2120
      %3512 = vmatprep.subr.mxu0 %v2125
      %3513 = vmatpush1.msra.mxu0 %v2124
      %3514 = vmatprep.subr.mxu0 %v2129
      %3515 = vmatpush1.msra.mxu0 %v2128
      %3516 = vmatprep.subr.mxu0 %v2133
      %3517 = vmatpush1.msra.mxu0 %v2132
      %3518 = vmatprep.subr.mxu0 %v2137
      %3519 = vmatpush1.msra.mxu0 %v2136
      %3520 = vmatprep.subr.mxu0 %v2141
      %3521 = vmatpush1.msra.mxu0 %v2140
      %3522 = vmatprep.subr.mxu0 %v2145
      %3523 = vmatpush1.msra.mxu0 %v2144
      %3524 = vmatprep.subr.mxu0 %v2149
      %3525 = vmatpush1.msra.mxu0 %v2148
      %3526 = vmatprep.subr.mxu0 %v2153
      %3527 = vmatpush1.msra.mxu0 %v2152
      %3528 = vmatprep.subr.mxu0 %v2157
      %3529 = vmatpush1.msra.mxu0 %v2156
      %3530 = vmatprep.subr.mxu0 %v2161
      %3531 = vmatpush1.msra.mxu0 %v2160
      %3532 = vmatprep.subr.mxu0 %v2165
      %3533 = vmatpush1.msra.mxu0 %v2164
      %3534 = vmatprep.subr.mxu0 %v2169
      %3535 = vmatpush1.msra.mxu0 %v2168
      %3536 = vmatprep.subr.mxu0 %v2173
      %3537 = vmatpush1.msra.mxu0 %v2172
      %3538 = vmatprep.subr.mxu0 %v2177
      %3539 = vmatpush1.msra.mxu0 %v2176
      %3540 = vmatprep.subr.mxu0 %v2181
      %3541 = vmatpush1.msra.mxu0 %v2180
      %3542 = vmatprep.subr.mxu0 %v2185
      %3543 = vmatpush1.msra.mxu0 %v2184
      %3544 = vmatprep.subr.mxu0 %v2189
      %3545 = vmatpush1.msra.mxu0 %v2188
      %3546 = vmatprep.subr.mxu0 %v2193
      %3547 = vmatpush1.msra.mxu0 %v2192
      %3548 = vmatprep.subr.mxu0 %v2197
      %3549 = vmatpush1.msra.mxu0 %v2196
      %3550 = vmatprep.subr.mxu0 %v2201
      %3551 = vmatpush1.msra.mxu0 %v2200
      %3552 = vmatprep.subr.mxu0 %v2205
      %3553 = vmatpush1.msra.mxu0 %v2204
      %3554 = vmatprep.subr.mxu0 %v2209
      %3555 = vmatpush1.msra.mxu0 %v2208
      %3556 = vmatprep.subr.mxu0 %v2213
      %3557 = vmatpush1.msra.mxu0 %v2212
      %3558 = vmatprep.subr.mxu0 %v2217
      %3559 = vmatpush1.msra.mxu0 %v2216
      %3560 = vmatprep.subr.mxu0 %v2221
      %3561 = vmatpush1.msra.mxu0 %v2220
      %3562 = vmatprep.subr.mxu0 %v2225
      %3563 = vmatpush1.msra.mxu0 %v2224
      %3564 = vmatprep.subr.mxu0 %v2229
      %3565 = vmatpush1.msra.mxu0 %v2228
      %3566 = vmatprep.subr.mxu0 %v2233
      %3567 = vmatpush1.msra.mxu0 %v2232
      %3568 = vmatprep.subr.mxu0 %v2237
      %3569 = vmatpush1.msra.mxu0 %v2236
      %3570 = vmatprep.subr.mxu0 %v2241
      %3571 = vmatpush1.msra.mxu0 %v2240
      %3572 = vmatprep.subr.mxu0 %v2245
      %3573 = vmatpush1.msra.mxu0 %v2244
      %3574 = vmatprep.mubr.f32.mxu0 %v2651
      %3575 = vmatmul.mubr.f32.gmra.mrb[0].mxu0 %v2650
      %v3576 = vpop.f32.mrb[0].mxu0
      %v3577 = vadd.f32 %v3506, %v3576
      %v3578 = vpop.f32.mrb[0].mxu0
      %v3579 = vadd.f32 %v3508, %v3578
      %3580 = vdwg.mxu0
      %3581 = vmatprep.subr.mxu0 %v2249
      %3582 = vmatpush1.msra.mxu0 %v2248
      %3583 = vmatprep.subr.mxu0 %v2253
      %3584 = vmatpush1.msra.mxu0 %v2252
      %3585 = vmatprep.subr.mxu0 %v2257
      %3586 = vmatpush1.msra.mxu0 %v2256
      %3587 = vmatprep.subr.mxu0 %v2261
      %3588 = vmatpush1.msra.mxu0 %v2260
      %3589 = vmatprep.subr.mxu0 %v2265
      %3590 = vmatpush1.msra.mxu0 %v2264
      %3591 = vmatprep.subr.mxu0 %v2269
      %3592 = vmatpush1.msra.mxu0 %v2268
      %3593 = vmatprep.subr.mxu0 %v2273
      %3594 = vmatpush1.msra.mxu0 %v2272
      %3595 = vmatprep.subr.mxu0 %v2277
      %3596 = vmatpush1.msra.mxu0 %v2276
      %3597 = vmatprep.subr.mxu0 %v2281
      %3598 = vmatpush1.msra.mxu0 %v2280
      %3599 = vmatprep.subr.mxu0 %v2285
      %3600 = vmatpush1.msra.mxu0 %v2284
      %3601 = vmatprep.subr.mxu0 %v2289
      %3602 = vmatpush1.msra.mxu0 %v2288
      %3603 = vmatprep.subr.mxu0 %v2293
      %3604 = vmatpush1.msra.mxu0 %v2292
      %3605 = vmatprep.subr.mxu0 %v2297
      %3606 = vmatpush1.msra.mxu0 %v2296
      %3607 = vmatprep.subr.mxu0 %v2301
      %3608 = vmatpush1.msra.mxu0 %v2300
      %3609 = vmatprep.subr.mxu0 %v2305
      %3610 = vmatpush1.msra.mxu0 %v2304
      %3611 = vmatprep.subr.mxu0 %v2309
      %3612 = vmatpush1.msra.mxu0 %v2308
      %3613 = vmatprep.subr.mxu0 %v2313
      %3614 = vmatpush1.msra.mxu0 %v2312
      %3615 = vmatprep.subr.mxu0 %v2317
      %3616 = vmatpush1.msra.mxu0 %v2316
      %3617 = vmatprep.subr.mxu0 %v2321
      %3618 = vmatpush1.msra.mxu0 %v2320
      %3619 = vmatprep.subr.mxu0 %v2325
      %3620 = vmatpush1.msra.mxu0 %v2324
      %3621 = vmatprep.subr.mxu0 %v2329
      %3622 = vmatpush1.msra.mxu0 %v2328
      %3623 = vmatprep.subr.mxu0 %v2333
      %3624 = vmatpush1.msra.mxu0 %v2332
      %3625 = vmatprep.subr.mxu0 %v2337
      %3626 = vmatpush1.msra.mxu0 %v2336
      %3627 = vmatprep.subr.mxu0 %v2341
      %3628 = vmatpush1.msra.mxu0 %v2340
      %3629 = vmatprep.subr.mxu0 %v2345
      %3630 = vmatpush1.msra.mxu0 %v2344
      %3631 = vmatprep.subr.mxu0 %v2349
      %3632 = vmatpush1.msra.mxu0 %v2348
      %3633 = vmatprep.subr.mxu0 %v2353
      %3634 = vmatpush1.msra.mxu0 %v2352
      %3635 = vmatprep.subr.mxu0 %v2357
      %3636 = vmatpush1.msra.mxu0 %v2356
      %3637 = vmatprep.subr.mxu0 %v2361
      %3638 = vmatpush1.msra.mxu0 %v2360
      %3639 = vmatprep.subr.mxu0 %v2365
      %3640 = vmatpush1.msra.mxu0 %v2364
      %3641 = vmatprep.subr.mxu0 %v2369
      %3642 = vmatpush1.msra.mxu0 %v2368
      %3643 = vmatprep.subr.mxu0 %v2373
      %3644 = vmatpush1.msra.mxu0 %v2372
      %3645 = vmatprep.mubr.f32.mxu0 %v2653
      %3646 = vmatmul.mubr.f32.gmra.mrb[0].mxu0 %v2652
      %v3647 = vpop.f32.mrb[0].mxu0
      %v3648 = vadd.f32 %v3577, %v3647
      %v3649 = vpop.f32.mrb[0].mxu0
      %v3650 = vadd.f32 %v3579, %v3649
      %3651 = vdwg.mxu0
      %3652 = vmatprep.subr.mxu0 %v2377
      %3653 = vmatpush1.msra.mxu0 %v2376
      %3654 = vmatprep.subr.mxu0 %v2381
      %3655 = vmatpush1.msra.mxu0 %v2380
      %3656 = vmatprep.subr.mxu0 %v2385
      %3657 = vmatpush1.msra.mxu0 %v2384
      %3658 = vmatprep.subr.mxu0 %v2389
      %3659 = vmatpush1.msra.mxu0 %v2388
      %3660 = vmatprep.subr.mxu0 %v2393
      %3661 = vmatpush1.msra.mxu0 %v2392
      %3662 = vmatprep.subr.mxu0 %v2397
      %3663 = vmatpush1.msra.mxu0 %v2396
      %3664 = vmatprep.subr.mxu0 %v2401
      %3665 = vmatpush1.msra.mxu0 %v2400
      %3666 = vmatprep.subr.mxu0 %v2405
      %3667 = vmatpush1.msra.mxu0 %v2404
      %3668 = vmatprep.subr.mxu0 %v2409
      %3669 = vmatpush1.msra.mxu0 %v2408
      %3670 = vmatprep.subr.mxu0 %v2413
      %3671 = vmatpush1.msra.mxu0 %v2412
      %3672 = vmatprep.subr.mxu0 %v2417
      %3673 = vmatpush1.msra.mxu0 %v2416
      %3674 = vmatprep.subr.mxu0 %v2421
      %3675 = vmatpush1.msra.mxu0 %v2420
      %3676 = vmatprep.subr.mxu0 %v2425
      %3677 = vmatpush1.msra.mxu0 %v2424
      %3678 = vmatprep.subr.mxu0 %v2429
      %3679 = vmatpush1.msra.mxu0 %v2428
      %3680 = vmatprep.subr.mxu0 %v2433
      %3681 = vmatpush1.msra.mxu0 %v2432
      %3682 = vmatprep.subr.mxu0 %v2437
      %3683 = vmatpush1.msra.mxu0 %v2436
      %3684 = vmatprep.subr.mxu0 %v2441
      %3685 = vmatpush1.msra.mxu0 %v2440
      %3686 = vmatprep.subr.mxu0 %v2445
      %3687 = vmatpush1.msra.mxu0 %v2444
      %3688 = vmatprep.subr.mxu0 %v2449
      %3689 = vmatpush1.msra.mxu0 %v2448
      %3690 = vmatprep.subr.mxu0 %v2453
      %3691 = vmatpush1.msra.mxu0 %v2452
      %3692 = vmatprep.subr.mxu0 %v2457
      %3693 = vmatpush1.msra.mxu0 %v2456
      %3694 = vmatprep.subr.mxu0 %v2461
      %3695 = vmatpush1.msra.mxu0 %v2460
      %3696 = vmatprep.subr.mxu0 %v2465
      %3697 = vmatpush1.msra.mxu0 %v2464
      %3698 = vmatprep.subr.mxu0 %v2469
      %3699 = vmatpush1.msra.mxu0 %v2468
      %3700 = vmatprep.subr.mxu0 %v2473
      %3701 = vmatpush1.msra.mxu0 %v2472
      %3702 = vmatprep.subr.mxu0 %v2477
      %3703 = vmatpush1.msra.mxu0 %v2476
      %3704 = vmatprep.subr.mxu0 %v2481
      %3705 = vmatpush1.msra.mxu0 %v2480
      %3706 = vmatprep.subr.mxu0 %v2485
      %3707 = vmatpush1.msra.mxu0 %v2484
      %3708 = vmatprep.subr.mxu0 %v2489
      %3709 = vmatpush1.msra.mxu0 %v2488
      %3710 = vmatprep.subr.mxu0 %v2493
      %3711 = vmatpush1.msra.mxu0 %v2492
      %3712 = vmatprep.subr.mxu0 %v2497
      %3713 = vmatpush1.msra.mxu0 %v2496
      %3714 = vmatprep.subr.mxu0 %v2501
      %3715 = vmatpush1.msra.mxu0 %v2500
      %3716 = vmatprep.mubr.f32.mxu0 %v2655
      %3717 = vmatmul.mubr.f32.gmra.mrb[0].mxu0 %v2654
      %v3718 = vpop.f32.mrb[0].mxu0
      %v3719 = vadd.f32 %v3648, %v3718
      %v3720 = vpop.f32.mrb[0].mxu0
      %v3721 = vadd.f32 %v3650, %v3720
      %3722 = vdwg.mxu0
      %3723 = vmatprep.subr.mxu0 %v2505
      %3724 = vmatpush1.msra.mxu0 %v2504
      %3725 = vmatprep.subr.mxu0 %v2509
      %3726 = vmatpush1.msra.mxu0 %v2508
      %3727 = vmatprep.subr.mxu0 %v2513
      %3728 = vmatpush1.msra.mxu0 %v2512
      %3729 = vmatprep.subr.mxu0 %v2517
      %3730 = vmatpush1.msra.mxu0 %v2516
      %3731 = vmatprep.subr.mxu0 %v2521
      %3732 = vmatpush1.msra.mxu0 %v2520
      %3733 = vmatprep.subr.mxu0 %v2525
      %3734 = vmatpush1.msra.mxu0 %v2524
      %3735 = vmatprep.subr.mxu0 %v2529
      %3736 = vmatpush1.msra.mxu0 %v2528
      %3737 = vmatprep.subr.mxu0 %v2533
      %3738 = vmatpush1.msra.mxu0 %v2532
      %3739 = vmatprep.subr.mxu0 %v2537
      %3740 = vmatpush1.msra.mxu0 %v2536
      %3741 = vmatprep.subr.mxu0 %v2541
      %3742 = vmatpush1.msra.mxu0 %v2540
      %3743 = vmatprep.subr.mxu0 %v2545
      %3744 = vmatpush1.msra.mxu0 %v2544
      %3745 = vmatprep.subr.mxu0 %v2549
      %3746 = vmatpush1.msra.mxu0 %v2548
      %3747 = vmatprep.subr.mxu0 %v2553
      %3748 = vmatpush1.msra.mxu0 %v2552
      %3749 = vmatprep.subr.mxu0 %v2557
      %3750 = vmatpush1.msra.mxu0 %v2556
      %3751 = vmatprep.subr.mxu0 %v2561
      %3752 = vmatpush1.msra.mxu0 %v2560
      %3753 = vmatprep.subr.mxu0 %v2565
      %3754 = vmatpush1.msra.mxu0 %v2564
      %3755 = vmatprep.subr.mxu0 %v2569
      %3756 = vmatpush1.msra.mxu0 %v2568
      %3757 = vmatprep.subr.mxu0 %v2573
      %3758 = vmatpush1.msra.mxu0 %v2572
      %3759 = vmatprep.subr.mxu0 %v2577
      %3760 = vmatpush1.msra.mxu0 %v2576
      %3761 = vmatprep.subr.mxu0 %v2581
      %3762 = vmatpush1.msra.mxu0 %v2580
      %3763 = vmatprep.subr.mxu0 %v2585
      %3764 = vmatpush1.msra.mxu0 %v2584
      %3765 = vmatprep.subr.mxu0 %v2589
      %3766 = vmatpush1.msra.mxu0 %v2588
      %3767 = vmatprep.subr.mxu0 %v2593
      %3768 = vmatpush1.msra.mxu0 %v2592
      %3769 = vmatprep.subr.mxu0 %v2597
      %3770 = vmatpush1.msra.mxu0 %v2596
      %3771 = vmatprep.subr.mxu0 %v2601
      %3772 = vmatpush1.msra.mxu0 %v2600
      %3773 = vmatprep.subr.mxu0 %v2605
      %3774 = vmatpush1.msra.mxu0 %v2604
      %3775 = vmatprep.subr.mxu0 %v2609
      %3776 = vmatpush1.msra.mxu0 %v2608
      %3777 = vmatprep.subr.mxu0 %v2613
      %3778 = vmatpush1.msra.mxu0 %v2612
      %3779 = vmatprep.subr.mxu0 %v2617
      %3780 = vmatpush1.msra.mxu0 %v2616
      %3781 = vmatprep.subr.mxu0 %v2621
      %3782 = vmatpush1.msra.mxu0 %v2620
      %3783 = vmatprep.subr.mxu0 %v2625
      %3784 = vmatpush1.msra.mxu0 %v2624
      %3785 = vmatprep.subr.mxu0 %v2629
      %3786 = vmatpush1.msra.mxu0 %v2628
      %3787 = vmatprep.mubr.f32.mxu0 %v2657
      %3788 = vmatmul.mubr.f32.gmra.mrb[0].mxu0 %v2656
      %v3789 = vpop.f32.mrb[0].mxu0
      %v3790 = vadd.f32 %v3719, %v3789
      %v3791 = vpop.f32.mrb[0].mxu0
      %v3792 = vadd.f32 %v3721, %v3791
      %3793 = vdwg.mxu0
      %v3794 = vadd.f32 %v2630, %v3222
      %v3795 = vadd.f32 %v2631, %v3224
      %v3796 = vadd.f32 %v2632, %v3790
      %v3797 = vadd.f32 %v2633, %v3792
      %3798 = vst [vmem:[#allocation2] sm:$0xff] %v3794
      %3799 = vst [vmem:[#allocation2 + $0x8] sm:$0xff] %v3795
      %3800 = vst [vmem:[#allocation2 + $0x10] sm:$0xff] %v3796
      %3801 = vst [vmem:[#allocation2 + $0x18] sm:$0xff] %v3797
      %p3802 = scmp.eq.s32.totalorder %s19, 6
      // Predicated region
      $region57: #{audio_cnn_forward.5} parent=51 // pred_check
        %p3803 = pneg %p3802
      $region58: #{audio_cnn_forward.5} parent=51 // pred_check_branch
        %3805 = sbr.rel (%p3803) target = $region60
      $region59: #{audio_cnn_forward.5} parent=51 // pred_region
        %v3806 = vld [vmem:[#allocation2] sm:$0xff]
        %v3807 = vld [vmem:[#allocation2 + $0x8] sm:$0xff]
        %v3808 = vld [vmem:[#allocation2 + $0x10] sm:$0xff]
        %v3809 = vld [vmem:[#allocation2 + $0x18] sm:$0xff]
        %v3810 = vld [vmem:[%s2] sm:$0xf]
        %v3812 = vlaneseq
        %v3813 = vshrl.u32 %v3812, 7
        %v3814 = vsub.s32 0, %v3813
        %v3815 = vrot.slane %v3810, %v3814
        %v3816 = vlaneseq
        %v3817 = vshrl.u32 %v3816, 7
        %v3818 = vsub.s32 1, %v3817
        %v3819 = vrot.slane %v3810, %v3818
        %v3820 = vlaneseq
        %v3821 = vshrl.u32 %v3820, 7
        %v3822 = vsub.s32 2, %v3821
        %v3823 = vrot.slane %v3810, %v3822
        %v3824 = vlaneseq
        %v3825 = vshrl.u32 %v3824, 7
        %v3826 = vsub.s32 3, %v3825
        %v3827 = vrot.slane %v3810, %v3826
        %v3832 = vmul.f32 %v3806, %v3815
        %v3833 = vmul.f32 %v3807, %v3819
        %v3834 = vmul.f32 %v3808, %v3823
        %v3835 = vmul.f32 %v3809, %v3827
        %v3836 = vld [vmem:[%s3] sm:$0xf]
        %v3838 = vlaneseq
        %v3839 = vshrl.u32 %v3838, 7
        %v3840 = vsub.s32 0, %v3839
        %v3841 = vrot.slane %v3836, %v3840
        %v3842 = vlaneseq
        %v3843 = vshrl.u32 %v3842, 7
        %v3844 = vsub.s32 1, %v3843
        %v3845 = vrot.slane %v3836, %v3844
        %v3846 = vlaneseq
        %v3847 = vshrl.u32 %v3846, 7
        %v3848 = vsub.s32 2, %v3847
        %v3849 = vrot.slane %v3836, %v3848
        %v3850 = vlaneseq
        %v3851 = vshrl.u32 %v3850, 7
        %v3852 = vsub.s32 3, %v3851
        %v3853 = vrot.slane %v3836, %v3852
        %v3858 = vadd.f32 %v3832, %v3841
        %v3859 = vadd.f32 %v3833, %v3845
        %v3860 = vadd.f32 %v3834, %v3849
        %v3861 = vadd.f32 %v3835, %v3853
        %v3862 = vmax.f32 %v3858, 0.0
        %v3863 = vmax.f32 %v3859, 0.0
        %v3864 = vmax.f32 %v3860, 0.0
        %v3865 = vmax.f32 %v3861, 0.0
        %v3866 = vld [vmem:[%s4] sm:$0xff]
        %v3867 = vld [vmem:[%s4 + $0x8] sm:$0xff]
        %v3868 = vld [vmem:[%s4 + $0x10] sm:$0xff]
        %v3869 = vld [vmem:[%s4 + $0x18] sm:$0xff]
        %v3870 = vld [vmem:[%s4 + $0x20] sm:$0xff]
        %v3871 = vld [vmem:[%s4 + $0x28] sm:$0xff]
        %v3872 = vld [vmem:[%s4 + $0x30] sm:$0xff]
        %v3873 = vld [vmem:[%s4 + $0x38] sm:$0xff]
        %v3874 = vld [vmem:[%s4 + $0x40] sm:$0xff]
        %v3875 = vld [vmem:[%s4 + $0x48] sm:$0xff]
        %v3876 = vld [vmem:[%s4 + $0x50] sm:$0xff]
        %v3877 = vld [vmem:[%s4 + $0x58] sm:$0xff]
        %v3878 = vld [vmem:[%s4 + $0x60] sm:$0xff]
        %v3879 = vld [vmem:[%s4 + $0x68] sm:$0xff]
        %v3880 = vld [vmem:[%s4 + $0x70] sm:$0xff]
        %v3881 = vld [vmem:[%s4 + $0x78] sm:$0xff]
        %v3882 = vld [vmem:[%s4 + $0x80] sm:$0xff]
        %v3883 = vld [vmem:[%s4 + $0x88] sm:$0xff]
        %v3884 = vld [vmem:[%s4 + $0x90] sm:$0xff]
        %v3885 = vld [vmem:[%s4 + $0x98] sm:$0xff]
        %v3886 = vld [vmem:[%s4 + $0xa0] sm:$0xff]
        %v3887 = vld [vmem:[%s4 + $0xa8] sm:$0xff]
        %v3888 = vld [vmem:[%s4 + $0xb0] sm:$0xff]
        %v3889 = vld [vmem:[%s4 + $0xb8] sm:$0xff]
        %v3890 = vld [vmem:[%s4 + $0xc0] sm:$0xff]
        %v3891 = vld [vmem:[%s4 + $0xc8] sm:$0xff]
        %v3892 = vld [vmem:[%s4 + $0xd0] sm:$0xff]
        %v3893 = vld [vmem:[%s4 + $0xd8] sm:$0xff]
        %v3894 = vld [vmem:[%s4 + $0xe0] sm:$0xff]
        %v3895 = vld [vmem:[%s4 + $0xe8] sm:$0xff]
        %v3896 = vld [vmem:[%s4 + $0xf0] sm:$0xff]
        %v3897 = vld [vmem:[%s4 + $0xf8] sm:$0xff]
        %v3898 = vld [vmem:[%s4 + $0x100] sm:$0xff]
        %v3899 = vld [vmem:[%s4 + $0x108] sm:$0xff]
        %v3900 = vld [vmem:[%s4 + $0x110] sm:$0xff]
        %v3901 = vld [vmem:[%s4 + $0x118] sm:$0xff]
        %v3902 = vld [vmem:[%s4 + $0x120] sm:$0xff]
        %v3903 = vld [vmem:[%s4 + $0x128] sm:$0xff]
        %v3904 = vld [vmem:[%s4 + $0x130] sm:$0xff]
        %v3905 = vld [vmem:[%s4 + $0x138] sm:$0xff]
        %v3906 = vld [vmem:[%s4 + $0x140] sm:$0xff]
        %v3907 = vld [vmem:[%s4 + $0x148] sm:$0xff]
        %v3908 = vld [vmem:[%s4 + $0x150] sm:$0xff]
        %v3909 = vld [vmem:[%s4 + $0x158] sm:$0xff]
        %v3910 = vld [vmem:[%s4 + $0x160] sm:$0xff]
        %v3911 = vld [vmem:[%s4 + $0x168] sm:$0xff]
        %v3912 = vld [vmem:[%s4 + $0x170] sm:$0xff]
        %v3913 = vld [vmem:[%s4 + $0x178] sm:$0xff]
        %v3914 = vld [vmem:[%s4 + $0x180] sm:$0xff]
        %v3915 = vld [vmem:[%s4 + $0x188] sm:$0xff]
        %v3916 = vld [vmem:[%s4 + $0x190] sm:$0xff]
        %v3917 = vld [vmem:[%s4 + $0x198] sm:$0xff]
        %v3918 = vld [vmem:[%s4 + $0x1a0] sm:$0xff]
        %v3919 = vld [vmem:[%s4 + $0x1a8] sm:$0xff]
        %v3920 = vld [vmem:[%s4 + $0x1b0] sm:$0xff]
        %v3921 = vld [vmem:[%s4 + $0x1b8] sm:$0xff]
        %v3922 = vld [vmem:[%s4 + $0x1c0] sm:$0xff]
        %v3923 = vld [vmem:[%s4 + $0x1c8] sm:$0xff]
        %v3924 = vld [vmem:[%s4 + $0x1d0] sm:$0xff]
        %v3925 = vld [vmem:[%s4 + $0x1d8] sm:$0xff]
        %v3926 = vld [vmem:[%s4 + $0x1e0] sm:$0xff]
        %v3927 = vld [vmem:[%s4 + $0x1e8] sm:$0xff]
        %v3928 = vld [vmem:[%s4 + $0x1f0] sm:$0xff]
        %v3929 = vld [vmem:[%s4 + $0x1f8] sm:$0xff]
        %v3930 = vld [vmem:[%s5] sm:$0x1]
        %v3932 = vlaneseq
        %v3933 = vshrl.u32 %v3932, 7
        %v3934 = vsub.s32 0, %v3933
        %v3935 = vrot.slane %v3930, %v3934
        %3937 = vmatprep.subr.mxu0 0.0
        %3938 = vmatpush1.msra.mxu0 %v3866
        %3939 = vmatprep.subr.mxu0 0.0
        %3940 = vmatpush1.msra.mxu0 %v3867
        %3941 = vmatprep.subr.mxu0 0.0
        %3942 = vmatpush1.msra.mxu0 %v3868
        %3943 = vmatprep.subr.mxu0 0.0
        %3944 = vmatpush1.msra.mxu0 %v3869
        %3945 = vmatprep.subr.mxu0 0.0
        %3946 = vmatpush1.msra.mxu0 %v3870
        %3947 = vmatprep.subr.mxu0 0.0
        %3948 = vmatpush1.msra.mxu0 %v3871
        %3949 = vmatprep.subr.mxu0 0.0
        %3950 = vmatpush1.msra.mxu0 %v3872
        %3951 = vmatprep.subr.mxu0 0.0
        %3952 = vmatpush1.msra.mxu0 %v3873
        %3953 = vmatprep.subr.mxu0 0.0
        %3954 = vmatpush1.msra.mxu0 %v3874
        %3955 = vmatprep.subr.mxu0 0.0
        %3956 = vmatpush1.msra.mxu0 %v3875
        %3957 = vmatprep.subr.mxu0 0.0
        %3958 = vmatpush1.msra.mxu0 %v3876
        %3959 = vmatprep.subr.mxu0 0.0
        %3960 = vmatpush1.msra.mxu0 %v3877
        %3961 = vmatprep.subr.mxu0 0.0
        %3962 = vmatpush1.msra.mxu0 %v3878
        %3963 = vmatprep.subr.mxu0 0.0
        %3964 = vmatpush1.msra.mxu0 %v3879
        %3965 = vmatprep.subr.mxu0 0.0
        %3966 = vmatpush1.msra.mxu0 %v3880
        %3967 = vmatprep.subr.mxu0 0.0
        %3968 = vmatpush1.msra.mxu0 %v3881
        %3969 = vmatprep.subr.mxu0 0.0
        %3970 = vmatpush1.msra.mxu0 %v3882
        %3971 = vmatprep.subr.mxu0 0.0
        %3972 = vmatpush1.msra.mxu0 %v3883
        %3973 = vmatprep.subr.mxu0 0.0
        %3974 = vmatpush1.msra.mxu0 %v3884
        %3975 = vmatprep.subr.mxu0 0.0
        %3976 = vmatpush1.msra.mxu0 %v3885
        %3977 = vmatprep.subr.mxu0 0.0
        %3978 = vmatpush1.msra.mxu0 %v3886
        %3979 = vmatprep.subr.mxu0 0.0
        %3980 = vmatpush1.msra.mxu0 %v3887
        %3981 = vmatprep.subr.mxu0 0.0
        %3982 = vmatpush1.msra.mxu0 %v3888
        %3983 = vmatprep.subr.mxu0 0.0
        %3984 = vmatpush1.msra.mxu0 %v3889
        %3985 = vmatprep.subr.mxu0 0.0
        %3986 = vmatpush1.msra.mxu0 %v3890
        %3987 = vmatprep.subr.mxu0 0.0
        %3988 = vmatpush1.msra.mxu0 %v3891
        %3989 = vmatprep.subr.mxu0 0.0
        %3990 = vmatpush1.msra.mxu0 %v3892
        %3991 = vmatprep.subr.mxu0 0.0
        %3992 = vmatpush1.msra.mxu0 %v3893
        %3993 = vmatprep.subr.mxu0 0.0
        %3994 = vmatpush1.msra.mxu0 %v3894
        %3995 = vmatprep.subr.mxu0 0.0
        %3996 = vmatpush1.msra.mxu0 %v3895
        %3997 = vmatprep.subr.mxu0 0.0
        %3998 = vmatpush1.msra.mxu0 %v3896
        %3999 = vmatprep.subr.mxu0 0.0
        %4000 = vmatpush1.msra.mxu0 %v3897
        %4001 = vmatprep.mubr.f32.mxu0 %v3863
        %4002 = vmatmul.mubr.f32.gmra.mrb[0].mxu0 %v3862
        %v4003 = vpop.f32.mrb[0].mxu0
        %v4004 = vadd.f32 %v3935, %v4003
        %v4005 = vpop.f32.mrb[0].mxu0
        %4006 = vdwg.mxu0
        %4007 = vmatprep.subr.mxu0 0.0
        %4008 = vmatpush1.msra.mxu0 %v3898
        %4009 = vmatprep.subr.mxu0 0.0
        %4010 = vmatpush1.msra.mxu0 %v3899
        %4011 = vmatprep.subr.mxu0 0.0
        %4012 = vmatpush1.msra.mxu0 %v3900
        %4013 = vmatprep.subr.mxu0 0.0
        %4014 = vmatpush1.msra.mxu0 %v3901
        %4015 = vmatprep.subr.mxu0 0.0
        %4016 = vmatpush1.msra.mxu0 %v3902
        %4017 = vmatprep.subr.mxu0 0.0
        %4018 = vmatpush1.msra.mxu0 %v3903
        %4019 = vmatprep.subr.mxu0 0.0
        %4020 = vmatpush1.msra.mxu0 %v3904
        %4021 = vmatprep.subr.mxu0 0.0
        %4022 = vmatpush1.msra.mxu0 %v3905
        %4023 = vmatprep.subr.mxu0 0.0
        %4024 = vmatpush1.msra.mxu0 %v3906
        %4025 = vmatprep.subr.mxu0 0.0
        %4026 = vmatpush1.msra.mxu0 %v3907
        %4027 = vmatprep.subr.mxu0 0.0
        %4028 = vmatpush1.msra.mxu0 %v3908
        %4029 = vmatprep.subr.mxu0 0.0
        %4030 = vmatpush1.msra.mxu0 %v3909
        %4031 = vmatprep.subr.mxu0 0.0
        %4032 = vmatpush1.msra.mxu0 %v3910
        %4033 = vmatprep.subr.mxu0 0.0
        %4034 = vmatpush1.msra.mxu0 %v3911
        %4035 = vmatprep.subr.mxu0 0.0
        %4036 = vmatpush1.msra.mxu0 %v3912
        %4037 = vmatprep.subr.mxu0 0.0
        %4038 = vmatpush1.msra.mxu0 %v3913
        %4039 = vmatprep.subr.mxu0 0.0
        %4040 = vmatpush1.msra.mxu0 %v3914
        %4041 = vmatprep.subr.mxu0 0.0
        %4042 = vmatpush1.msra.mxu0 %v3915
        %4043 = vmatprep.subr.mxu0 0.0
        %4044 = vmatpush1.msra.mxu0 %v3916
        %4045 = vmatprep.subr.mxu0 0.0
        %4046 = vmatpush1.msra.mxu0 %v3917
        %4047 = vmatprep.subr.mxu0 0.0
        %4048 = vmatpush1.msra.mxu0 %v3918
        %4049 = vmatprep.subr.mxu0 0.0
        %4050 = vmatpush1.msra.mxu0 %v3919
        %4051 = vmatprep.subr.mxu0 0.0
        %4052 = vmatpush1.msra.mxu0 %v3920
        %4053 = vmatprep.subr.mxu0 0.0
        %4054 = vmatpush1.msra.mxu0 %v3921
        %4055 = vmatprep.subr.mxu0 0.0
        %4056 = vmatpush1.msra.mxu0 %v3922
        %4057 = vmatprep.subr.mxu0 0.0
        %4058 = vmatpush1.msra.mxu0 %v3923
        %4059 = vmatprep.subr.mxu0 0.0
        %4060 = vmatpush1.msra.mxu0 %v3924
        %4061 = vmatprep.subr.mxu0 0.0
        %4062 = vmatpush1.msra.mxu0 %v3925
        %4063 = vmatprep.subr.mxu0 0.0
        %4064 = vmatpush1.msra.mxu0 %v3926
        %4065 = vmatprep.subr.mxu0 0.0
        %4066 = vmatpush1.msra.mxu0 %v3927
        %4067 = vmatprep.subr.mxu0 0.0
        %4068 = vmatpush1.msra.mxu0 %v3928
        %4069 = vmatprep.subr.mxu0 0.0
        %4070 = vmatpush1.msra.mxu0 %v3929
        %4071 = vmatprep.mubr.f32.mxu0 %v3865
        %4072 = vmatmul.mubr.f32.gmra.mrb[0].mxu0 %v3864
        %v4073 = vpop.f32.mrb[0].mxu0
        %v4074 = vadd.f32 %v4004, %v4073
        %v4075 = vpop.f32.mrb[0].mxu0
        %4076 = vdwg.mxu0
        %v4077 = vmax.f32 %v4074, 0.0
        %v4078 = vld [vmem:[%s6] sm:$0xff]
        %v4079 = vld [vmem:[%s6 + $0x8] sm:$0xff]
        %v4080 = vld [vmem:[%s6 + $0x10] sm:$0xff]
        %v4081 = vld [vmem:[%s6 + $0x18] sm:$0xff]
        %v4082 = vld [vmem:[%s6 + $0x20] sm:$0xff]
        %v4083 = vld [vmem:[%s6 + $0x28] sm:$0xff]
        %v4084 = vld [vmem:[%s6 + $0x30] sm:$0xff]
        %v4085 = vld [vmem:[%s6 + $0x38] sm:$0xff]
        %v4086 = vld [vmem:[%s6 + $0x40] sm:$0xff]
        %v4087 = vld [vmem:[%s6 + $0x48] sm:$0xff]
        %v4088 = vld [vmem:[%s6 + $0x50] sm:$0xff]
        %v4089 = vld [vmem:[%s6 + $0x58] sm:$0xff]
        %v4090 = vld [vmem:[%s6 + $0x60] sm:$0xff]
        %v4091 = vld [vmem:[%s6 + $0x68] sm:$0xff]
        %v4092 = vld [vmem:[%s6 + $0x70] sm:$0xff]
        %v4093 = vld [vmem:[%s6 + $0x78] sm:$0xff]
        %v4094 = vld [vmem:[%s7] sm:$0x1]
        %v4096 = vlaneseq
        %v4097 = vshrl.u32 %v4096, 7
        %v4098 = vsub.s32 0, %v4097
        %v4099 = vrot.slane %v4094, %v4098
        %4101 = vmatprep.subr.mxu0 0.0
        %4102 = vmatpush1.msra.mxu0 %v4078
        %4103 = vmatprep.subr.mxu0 0.0
        %4104 = vmatpush1.msra.mxu0 %v4079
        %4105 = vmatprep.subr.mxu0 0.0
        %4106 = vmatpush1.msra.mxu0 %v4080
        %4107 = vmatprep.subr.mxu0 0.0
        %4108 = vmatpush1.msra.mxu0 %v4081
        %4109 = vmatprep.subr.mxu0 0.0
        %4110 = vmatpush1.msra.mxu0 %v4082
        %4111 = vmatprep.subr.mxu0 0.0
        %4112 = vmatpush1.msra.mxu0 %v4083
        %4113 = vmatprep.subr.mxu0 0.0
        %4114 = vmatpush1.msra.mxu0 %v4084
        %4115 = vmatprep.subr.mxu0 0.0
        %4116 = vmatpush1.msra.mxu0 %v4085
        %4117 = vmatprep.subr.mxu0 0.0
        %4118 = vmatpush1.msra.mxu0 %v4086
        %4119 = vmatprep.subr.mxu0 0.0
        %4120 = vmatpush1.msra.mxu0 %v4087
        %4121 = vmatprep.subr.mxu0 0.0
        %4122 = vmatpush1.msra.mxu0 %v4088
        %4123 = vmatprep.subr.mxu0 0.0
        %4124 = vmatpush1.msra.mxu0 %v4089
        %4125 = vmatprep.subr.mxu0 0.0
        %4126 = vmatpush1.msra.mxu0 %v4090
        %4127 = vmatprep.subr.mxu0 0.0
        %4128 = vmatpush1.msra.mxu0 %v4091
        %4129 = vmatprep.subr.mxu0 0.0
        %4130 = vmatpush1.msra.mxu0 %v4092
        %4131 = vmatprep.subr.mxu0 0.0
        %4132 = vmatpush1.msra.mxu0 %v4093
        %4133 = vmatprep.subr.mxu0 0.0
        %4134 = vmatpush1.msra.mxu0 0.0
        %4135 = vmatprep.subr.mxu0 0.0
        %4136 = vmatpush1.msra.mxu0 0.0
        %4137 = vmatprep.subr.mxu0 0.0
        %4138 = vmatpush1.msra.mxu0 0.0
        %4139 = vmatprep.subr.mxu0 0.0
        %4140 = vmatpush1.msra.mxu0 0.0
        %4141 = vmatprep.subr.mxu0 0.0
        %4142 = vmatpush1.msra.mxu0 0.0
        %4143 = vmatprep.subr.mxu0 0.0
        %4144 = vmatpush1.msra.mxu0 0.0
        %4145 = vmatprep.subr.mxu0 0.0
        %4146 = vmatpush1.msra.mxu0 0.0
        %4147 = vmatprep.subr.mxu0 0.0
        %4148 = vmatpush1.msra.mxu0 0.0
        %4149 = vmatprep.subr.mxu0 0.0
        %4150 = vmatpush1.msra.mxu0 0.0
        %4151 = vmatprep.subr.mxu0 0.0
        %4152 = vmatpush1.msra.mxu0 0.0
        %4153 = vmatprep.subr.mxu0 0.0
        %4154 = vmatpush1.msra.mxu0 0.0
        %4155 = vmatprep.subr.mxu0 0.0
        %4156 = vmatpush1.msra.mxu0 0.0
        %4157 = vmatprep.subr.mxu0 0.0
        %4158 = vmatpush1.msra.mxu0 0.0
        %4159 = vmatprep.subr.mxu0 0.0
        %4160 = vmatpush1.msra.mxu0 0.0
        %4161 = vmatprep.subr.mxu0 0.0
        %4162 = vmatpush1.msra.mxu0 0.0
        %4163 = vmatprep.subr.mxu0 0.0
        %4164 = vmatpush1.msra.mxu0 0.0
        %4165 = vmatprep.mubr.f32.mxu0 0.0
        %4166 = vmatmul.mubr.f32.gmra.mrb[0].mxu0 %v4077
        %v4167 = vpop.f32.mrb[0].mxu0
        %v4168 = vadd.f32 %v4099, %v4167
        %v4169 = vpop.f32.mrb[0].mxu0
        %4170 = vdwg.mxu0
        %vm4171 = vcmask 64512
        %4172 = vst.msk [vmem:[%s8] sm:$0xff] %vm4171, %v4168
      $region60: #{audio_cnn_forward.5} parent=51 // pred_fallthru
        _
      // Predicated region
      $region61: #{audio_cnn_forward.5} parent=51 // pred_check
        %p4173 = pneg %p210
      $region62: #{audio_cnn_forward.5} parent=51 // pred_check_branch
        %4175 = sbr.rel (%p4173) target = $region64
      $region63: #{audio_cnn_forward.5} parent=51 // pred_region
        _
      $region64: #{audio_cnn_forward.5} parent=51 // pred_fallthru
        _
      // Predicated region
      $region65: #{audio_cnn_forward.5} parent=51 // pred_check
        %p4176 = pneg %p210
      $region66: #{audio_cnn_forward.5} parent=51 // pred_check_branch
        %4178 = sbr.rel (%p4176) target = $region68
      $region67: #{audio_cnn_forward.5} parent=51 // pred_region
        _
      $region68: #{audio_cnn_forward.5} parent=51 // pred_fallthru
        _
    $region52: #{audio_cnn_forward.5} parent=5 // pred_fallthru
      _
    %p4179 = scmp.le.s32.totalorder 2, %s14
    // Predicated region
    $region69: #{audio_cnn_forward.5} parent=5 // pred_check
      %p4180 = pneg %p4179
    $region70: #{audio_cnn_forward.5} parent=5 // pred_check_branch
      %4182 = sbr.rel (%p4180) target = $region72
    $region71: #{audio_cnn_forward.5} parent=5 // pred_region
      %s4183 = ssub.s32 %s14, 2
    $region72: #{audio_cnn_forward.5} parent=5 // pred_fallthru
      _
  $region6: #{audio_cnn_forward.5} parent=0 // loop_footer
    %s18 = sadd.s32 1, %s14
  $region7: #{audio_cnn_forward.5} parent=0 // loop_footer_branch
    %13 = sbr.rel target = $region3
  $region8: #{audio_cnn_forward.5} parent=0 // loop_exit
    _

</llo_original>
